<compile_context>
chip_gen: v7x
topology: tpu7x:2x2x1
jax: 0.10.0
libtpu: 0.0.40
codegen_flags: <defaults>
</compile_context>

<pallas_src>
import functools
import numpy as np
import jax
import jax.numpy as jnp
from jax.experimental import pallas as pl
from jax.experimental.pallas import tpu as pltpu


def _round_up(x, m):
    return (x + m - 1) // m * m


def _cdiv(a, b):
    return -(-a // b)


def _largest_divisor_leq(n, cap):
    for g in range(min(n, cap), 0, -1):
        if n % g == 0:
            return g
    return 1


def _choose_m_tiling(M):
    """Pick (tm, Mp): lane-dense M tiles padded up to the tiling.

    - single block when M fits in 128 lanes,
    - otherwise >= 2 tiles so the "parallel" axis feeds both v7x TensorCores,
    - ~2048-lane tiles for large M (>=85% of HBM roofline per measured
      tiled-add data), padding waste < 128 lanes per tile.
    """
    TM_TARGET = 2048
    Mp = _round_up(M, 128)
    if Mp <= 128:
        return Mp, Mp
    ntiles = max(2, _cdiv(Mp, TM_TARGET))
    tm = _round_up(_cdiv(Mp, ntiles), 128)
    return tm, ntiles * tm


# ------------------------- conv-matmul kernel (single K block) --------------
def _conv_mm_kernel(has_bias, has_res, relu, has_cls, *refs):
    refs = list(refs)
    w_ref = refs.pop(0)
    a_ref = refs.pop(0)
    b_ref = refs.pop(0) if has_bias else None
    r_ref = refs.pop(0) if has_res else None
    w2_ref = refs.pop(0) if has_cls else None
    b2_ref = refs.pop(0) if has_cls else None
    o_ref = refs.pop(0)

    # Single bf16 x bf16 -> f32 MXU contraction per tile: no K grid axis, no
    # accumulator scratch read-modify-write, no pl.when branches.
    acc = jnp.dot(w_ref[...], a_ref[...], preferred_element_type=jnp.float32)
    if has_bias:
        acc = acc + b_ref[...]                      # (Cp, 1) lane-broadcast, f32
    if has_res:
        acc = acc + r_ref[...].astype(jnp.float32)  # fused FPN residual (bf16 in HBM)
    if relu:
        acc = jnp.maximum(acc, 0.0)
    if has_cls:
        # Fused 1x1 classifier: tiny f32 matmul on the already-resident tile.
        acc = jnp.dot(w2_ref[...], acc, preferred_element_type=jnp.float32) + b2_ref[...]
    o_ref[...] = acc.astype(o_ref.dtype)


def conv_matmul(wm, patches, tm, bias=None, residual=None, relu=False,
                out_dtype=jnp.bfloat16, cls_w=None, cls_b=None):
    """(wm @ patches [+bias] [+residual]) [ReLU] [then cls_w @ . + cls_b].

    wm:       (Cp, Kp)   bf16 transposed conv weights (Cp, Kp multiples of 16)
    patches:  (Kp, Mp)   bf16 im2col patches, M = B*Ho*Wo on the lane dim
    bias:     (Cp, 1)    f32
    residual: (Cp, Mp)   bf16
    cls_w:    (C2p, Cp)  f32 fused 1x1 classifier weights (optional)
    cls_b:    (C2p, 1)   f32
    returns   (Cp or C2p, Mp) in out_dtype
    """
    Cp, Kp = wm.shape
    Kp2, Mp = patches.shape
    assert Kp == Kp2 and Mp % tm == 0 and tm % 128 == 0

    Crows = cls_w.shape[0] if cls_w is not None else Cp
    grid = (Mp // tm,)

    in_specs = [pl.BlockSpec((Cp, Kp), lambda m: (0, 0)),
                pl.BlockSpec((Kp, tm), lambda m: (0, m))]
    inputs = [wm, patches]
    if bias is not None:
        in_specs.append(pl.BlockSpec((Cp, 1), lambda m: (0, 0)))
        inputs.append(bias)
    if residual is not None:
        in_specs.append(pl.BlockSpec((Cp, tm), lambda m: (0, m)))
        inputs.append(residual)
    if cls_w is not None:
        in_specs.append(pl.BlockSpec(cls_w.shape, lambda m: (0, 0)))
        inputs.append(cls_w)
        in_specs.append(pl.BlockSpec(cls_b.shape, lambda m: (0, 0)))
        inputs.append(cls_b)

    kernel = functools.partial(_conv_mm_kernel, bias is not None,
                               residual is not None, relu, cls_w is not None)

    out_bytes = Crows * Mp * jnp.dtype(out_dtype).itemsize
    bytes_accessed = (wm.size * 2 + patches.size * 2 + out_bytes)
    if bias is not None:
        bytes_accessed += bias.size * 4
    if residual is not None:
        bytes_accessed += residual.size * residual.dtype.itemsize
    if cls_w is not None:
        bytes_accessed += cls_w.size * 4 + cls_b.size * 4
    flops = 2 * Cp * Kp * Mp + (2 * Crows * Cp * Mp if cls_w is not None else 0)

    return pl.pallas_call(
        kernel,
        out_shape=jax.ShapeDtypeStruct((Crows, Mp), out_dtype),
        grid=grid,
        in_specs=in_specs,
        out_specs=pl.BlockSpec((Crows, tm), lambda m: (0, m)),
        compiler_params=pltpu.CompilerParams(
            # Single "parallel" axis -> split across TensorCores (megacore/v7x).
            dimension_semantics=("parallel",),
            # Working set is a few MiB even at tm=2048; keep limit comfortably
            # above it but below v7x's 64 MiB physical VMEM.
            vmem_limit_bytes=48 * 1024 * 1024),
        cost_estimate=pl.CostEstimate(flops=int(flops), transcendentals=0,
                                      bytes_accessed=int(bytes_accessed)),
    )(*inputs)


# ------------------------------ conv wrapper --------------------------------
def _im2col_cm(x, k, stride, pad, k_total):
    """Channel-major im2col.  x: (Cin, B, H, W) -> (k_total, B*Ho*Wo).

    Patch rows are ordered (kh, kw, cin), matching weights reshaped from
    (Cout, kh, kw, Cin); rows beyond k*k*Cin are zero (K padding folded into
    the concatenate).
    TODO(synk): move the 3x3 tap extraction into the conv kernel (halo DMA +
    shifted VMEM views) to avoid materializing the expanded patches in HBM.
    """
    Cin, B, H, W = x.shape
    Ho = (H + 2 * pad - k) // stride + 1
    Wo = (W + 2 * pad - k) // stride + 1
    if k == 1 and stride == 1 and pad == 0:
        pat = x
    else:
        xp = jnp.pad(x, ((0, 0), (0, 0), (pad, pad), (pad, pad)))
        rows = []
        for i in range(k):
            for j in range(k):
                rows.append(xp[:, :, i:i + (Ho - 1) * stride + 1:stride,
                               j:j + (Wo - 1) * stride + 1:stride])
        pat = jnp.concatenate(rows, axis=0)
    kk = k * k * Cin
    if k_total > kk:
        pat = jnp.concatenate(
            [pat, jnp.zeros((k_total - kk, B, Ho, Wo), pat.dtype)], axis=0)
    return pat.reshape(k_total, B * Ho * Wo), (B, Ho, Wo)


def conv2d(x, w, b, stride=1, relu=False, residual=None,
           out_dtype=jnp.bfloat16, cls=None):
    """Conv2d in channel-major layout with fused epilogue.

    x: (Cin, B, H, W) f32/bf16; w: (Cout, kh, kw, Cin); b: (Cout,);
    padding = kh//2; residual: (Cout, B, Ho, Wo) added before ReLU is NOT
    applied to it (residual added pre-ReLU only when relu=True is requested by
    the caller -- the FPN path uses relu=False).  cls = (w2, b2) fuses a 1x1
    classifier after the ReLU.  Returns (Cout or C2, B, Ho, Wo) in out_dtype.
    """
    Cout, k, _, Cin = w.shape
    pad = k // 2
    K = k * k * Cin
    Kp = _round_up(K, 16)     # bf16 packs two rows per sublane -> 16-align
    Cp = _round_up(Cout, 16)

    # bf16 MXU operands; patches built directly in bf16 to halve HBM traffic.
    patches, (B, Ho, Wo) = _im2col_cm(x.astype(jnp.bfloat16), k, stride, pad, Kp)
    M = B * Ho * Wo
    tm, Mp = _choose_m_tiling(M)
    if Mp > M:
        patches = jnp.pad(patches, ((0, 0), (0, Mp - M)))

    wm = jnp.pad(w.reshape(Cout, K),
                 ((0, Cp - Cout), (0, Kp - K))).astype(jnp.bfloat16)
    bias = jnp.pad(b, (0, Cp - Cout)).reshape(Cp, 1).astype(jnp.float32)

    res = None
    if residual is not None:
        r = residual.reshape(residual.shape[0], M).astype(jnp.bfloat16)
        res = jnp.pad(r, ((0, Cp - r.shape[0]), (0, Mp - M)))

    cls_w = cls_b = None
    Co = Cout
    if cls is not None:
        w2, b2 = cls
        C2 = w2.shape[0]
        C2p = _round_up(C2, 8)   # f32 second matmul -> 8-row sublane alignment
        cls_w = jnp.pad(w2.reshape(C2, Cout),
                        ((0, C2p - C2), (0, Cp - Cout))).astype(jnp.float32)
        cls_b = jnp.pad(b2, (0, C2p - C2)).reshape(C2p, 1).astype(jnp.float32)
        Co = C2

    out = conv_matmul(wm, patches, tm, bias=bias, residual=res, relu=relu,
                      out_dtype=out_dtype, cls_w=cls_w, cls_b=cls_b)
    return out[:Co, :M].reshape(Co, B, Ho, Wo)


# ------------------------- bilinear x2 upsampling ----------------------------
def _upsample_matrix(n):
    """(2n, n) bilinear x2 interpolation matrix, align_corners=False (PyTorch)."""
    m = np.zeros((2 * n, n), np.float32)
    for i in range(2 * n):
        src = (i + 0.5) / 2.0 - 0.5
        i0 = int(np.floor(src))
        frac = src - i0
        lo = min(max(i0, 0), n - 1)
        hi = min(max(i0 + 1, 0), n - 1)
        m[i, lo] += 1.0 - frac
        m[i, hi] += frac
    return m


def _up2_kernel(uh_ref, uwT_ref, x_ref, o_ref):
    G = x_ref.shape[0]
    # G (c, b) slices per grid step; two small MXU matmuls per slice
    # (MXU is otherwise idle, the win is amortized per-step overhead).
    for g in range(G):
        t = jnp.dot(x_ref[g].astype(jnp.float32), uwT_ref[...],
                    preferred_element_type=jnp.float32)
        o_ref[g] = jnp.dot(uh_ref[...], t,
                           preferred_element_type=jnp.float32).astype(o_ref.dtype)


def bilinear_up2(x, out_dtype=jnp.float32):
    """Bilinear x2 upsample (align_corners=False).  x: (C, B, H, W)."""
    C, B, H, W = x.shape
    N = C * B
    G = _largest_divisor_leq(N, 8)          # slices per grid step
    uh = jnp.asarray(_upsample_matrix(H))   # (2H, H)
    uwT = jnp.asarray(_upsample_matrix(W).T)  # (W, 2W)
    xs = x.reshape(N, H, W)                 # free leading-dim merge
    out = pl.pallas_call(
        _up2_kernel,
        out_shape=jax.ShapeDtypeStruct((N, 2 * H, 2 * W), out_dtype),
        grid=(N // G,),
        in_specs=[pl.BlockSpec((2 * H, H), lambda n: (0, 0)),
                  pl.BlockSpec((W, 2 * W), lambda n: (0, 0)),
                  pl.BlockSpec((G, H, W), lambda n: (n, 0, 0))],
        out_specs=pl.BlockSpec((G, 2 * H, 2 * W), lambda n: (n, 0, 0)),
        compiler_params=pltpu.CompilerParams(
            dimension_semantics=("parallel",),
            vmem_limit_bytes=48 * 1024 * 1024),
    )(uh, uwT, xs)
    return out.reshape(C, B, 2 * H, 2 * W)


# ----------------------------- model definition ------------------------------
# TODO(synk): build_backbone/build_neck/build_head are cfg-driven in the original
# repo; a representative small conv backbone (strides 4/8/16), a 1x1 channel-halving
# neck on the last level, and an FPN-style decode head producing num_classes maps at
# feats_dim[0] resolution are synthesized here with deterministic weights.
NUM_CLASSES = 2
_MEAN = np.array([0.485, 0.456, 0.406], np.float32)
_STD = np.array([0.229, 0.224, 0.225], np.float32)


def init_params(key):
    # weights are (Cout, kh, kw, Cin)
    shapes = {
        "stem1_w": (8, 3, 3, 3),    "stem1_b": (8,),
        "stem2_w": (16, 3, 3, 8),   "stem2_b": (16,),
        "stem3_w": (32, 3, 3, 16),  "stem3_b": (32,),
        "stem4_w": (64, 3, 3, 32),  "stem4_b": (64,),
        "neck_w": (32, 1, 1, 64),   "neck_b": (32,),
        "lat0_w": (16, 1, 1, 16),   "lat0_b": (16,),
        "lat1_w": (16, 1, 1, 32),   "lat1_b": (16,),
        "lat2_w": (16, 1, 1, 32),   "lat2_b": (16,),
        "head_w": (16, 3, 3, 16),   "head_b": (16,),
        "cls_w": (NUM_CLASSES, 1, 1, 16), "cls_b": (NUM_CLASSES,),
    }
    params = {}
    names = sorted(shapes)
    keys = jax.random.split(key, len(names))
    for k_i, name in zip(keys, names):
        shp = shapes[name]
        if name.endswith("_b"):
            params[name] = jnp.zeros(shp, jnp.float32)
        else:
            fan_in = shp[1] * shp[2] * shp[3]
            params[name] = (jax.random.normal(k_i, shp, jnp.float32)
                            / np.sqrt(fan_in)).astype(jnp.float32)
    return params


def rttdetv2_forward(params, x_nchw):
    """Mirrors RTTDetv2.forward.  x_nchw: (B, 3, H, W) float32 in [0, 1]."""
    mean = jnp.asarray(_MEAN)
    std = jnp.asarray(_STD)
    # transforms.Normalize kept explicit (not folded into stem1) so that stem1's
    # zero padding pads the *normalized* image, matching PyTorch semantics at
    # the borders.  XLA fuses this elementwise op into stem1's patch building.
    x = (x_nchw - mean[None, :, None, None]) * (1.0 / std)[None, :, None, None]
    # Channel-major (C, B, H, W) layout throughout (lane dim = B*H*W).
    x = jnp.transpose(x, (1, 0, 2, 3))

    # backbone: multi-scale feats at strides 4 / 8 / 16 (bf16 intermediates)
    c1 = conv2d(x,  params["stem1_w"], params["stem1_b"], stride=2, relu=True)
    f0 = conv2d(c1, params["stem2_w"], params["stem2_b"], stride=2, relu=True)
    f1 = conv2d(f0, params["stem3_w"], params["stem3_b"], stride=2, relu=True)
    f2 = conv2d(f1, params["stem4_w"], params["stem4_b"], stride=2, relu=True)

    # neck: feats[-1] channels halved (feats_dim[-1] -> feats_dim[-1] // 2)
    f2 = conv2d(f2, params["neck_w"], params["neck_b"], relu=True)

    # decode head: FPN-style top-down fusion to feats_dim[0] channels; the
    # bilinear-upsampled coarser level is fused as the matmul residual (bf16).
    p2 = conv2d(f2, params["lat2_w"], params["lat2_b"])
    p1 = conv2d(f1, params["lat1_w"], params["lat1_b"],
                residual=bilinear_up2(p2, out_dtype=jnp.bfloat16))
    p0 = conv2d(f0, params["lat0_w"], params["lat0_b"],
                residual=bilinear_up2(p1, out_dtype=jnp.bfloat16))

    # head 3x3 conv + ReLU + 1x1 cls conv fused in a single kernel; final maps
    # stay f32.
    outputs = conv2d(p0, params["head_w"], params["head_b"], relu=True,
                     cls=(params["cls_w"], params["cls_b"]),
                     out_dtype=jnp.float32)                # (2, B, H/4, W/4)

    # F.interpolate(scale_factor=2, mode='bilinear', align_corners=False)
    outputs = bilinear_up2(outputs, out_dtype=jnp.float32)  # (2, B, H/2, W/2)
    # PyTorch returns (outputs[:, 0, ...], outputs[:, 1, ...])
    return outputs[0], outputs[1]


if __name__ == "__main__":
    key = jax.random.PRNGKey(0)
    pk, xk = jax.random.split(key)
    params = init_params(pk)
    x = jax.random.uniform(xk, (2, 3, 32, 32), jnp.float32)   # B=2, C=3, H=W=32
    fwd = jax.jit(rttdetv2_forward)
    out0, out1 = fwd(params, x)
    jax.block_until_ready((out0, out1))
    assert out0.shape == (2, 16, 16) and out1.shape == (2, 16, 16)
    assert out0.dtype == jnp.float32 and out1.dtype == jnp.float32
    assert bool(jnp.all(jnp.isfinite(out0))) and bool(jnp.all(jnp.isfinite(out1)))
    print("KERNEL_OK")
</pallas_src>

<mosaic_0001>
module attributes {stable_mosaic.version = 11 : i64} {
  func.func @_conv_mm_kernel(%arg0: i32, %arg1: memref<16x32xbf16, #tpu.memory_space<vmem>>, %arg2: memref<32x256xbf16, #tpu.memory_space<vmem>>, %arg3: memref<16x1xf32, #tpu.memory_space<vmem>>, %arg4: memref<16x256xbf16, #tpu.memory_space<vmem>>) attributes {dimension_semantics = [#tpu.dimension_semantics<parallel>], iteration_bounds = array<i64: 2>, scalar_prefetch = 0 : i64, scratch_operands = 0 : i64, tpu.core_type = #tpu.core_type<tc>, window_params = [{pipeline_mode = #tpu.pipeline_mode<synchronous>, transform_indices = @transform_0, window_bounds = array<i64: 16, 32>}, {transform_indices = @transform_1, window_bounds = array<i64: 32, 256>}, {pipeline_mode = #tpu.pipeline_mode<synchronous>, transform_indices = @transform_2, window_bounds = array<i64: 16, 1>}, {transform_indices = @transform_3, window_bounds = array<i64: 16, 256>}]} {
    %c0 = arith.constant 0 : index
    %c0_0 = arith.constant 0 : index
    %0 = vector.load %arg1[%c0, %c0_0] : memref<16x32xbf16, #tpu.memory_space<vmem>>, vector<16x32xbf16>
    %c0_1 = arith.constant 0 : index
    %c0_2 = arith.constant 0 : index
    %1 = vector.load %arg2[%c0_1, %c0_2] : memref<32x256xbf16, #tpu.memory_space<vmem>>, vector<32x256xbf16>
    %cst = arith.constant dense<0.000000e+00> : vector<16x256xf32>
    %2 = tpu.matmul %0, %1, %cst {dimension_numbers = #tpu.dot_dimension_numbers<[1], [0], [0], [1], [0, 0, 1, 1], [], []>} : vector<16x32xbf16>, vector<32x256xbf16>, vector<16x256xf32> -> vector<16x256xf32>
    %c0_3 = arith.constant 0 : index
    %c0_4 = arith.constant 0 : index
    %3 = vector.load %arg3[%c0_3, %c0_4] : memref<16x1xf32, #tpu.memory_space<vmem>>, vector<16x1xf32>
    %4 = vector.broadcast %3 : vector<16x1xf32> to vector<16x256xf32>
    %5 = arith.addf %2, %4 : vector<16x256xf32>
    %cst_5 = arith.constant 0.000000e+00 : f32
    %6 = vector.broadcast %cst_5 : f32 to vector<16x256xf32>
    %7 = arith.maximumf %5, %6 : vector<16x256xf32>
    %8 = arith.truncf %7 : vector<16x256xf32> to vector<16x256xbf16>
    %c0_6 = arith.constant 0 : index
    %c0_7 = arith.constant 0 : index
    %9 = vector.load %arg4[%c0_6, %c0_7] : memref<16x256xbf16, #tpu.memory_space<vmem>>, vector<16x256xbf16>
    tpu.vector_store %arg4[%c0_6, %c0_7], %8 {strides = array<i32>} : memref<16x256xbf16, #tpu.memory_space<vmem>>, vector<16x256xbf16>,
    return
  }
  func.func @transform_0(%arg0: i32) -> (i32, i32) {
    %c0_i32 = arith.constant 0 : i32
    %c0_i32_0 = arith.constant 0 : i32
    %c0_i32_1 = arith.constant 0 : i32
    return %c0_i32, %c0_i32_0 : i32, i32
  }
  func.func @transform_1(%arg0: i32) -> (i32, i32) {
    %c0_i32 = arith.constant 0 : i32
    %c0_i32_0 = arith.constant 0 : i32
    return %c0_i32, %arg0 : i32, i32
  }
  func.func @transform_2(%arg0: i32) -> (i32, i32) {
    %c0_i32 = arith.constant 0 : i32
    %c0_i32_0 = arith.constant 0 : i32
    %c0_i32_1 = arith.constant 0 : i32
    return %c0_i32, %c0_i32_0 : i32, i32
  }
  func.func @transform_3(%arg0: i32) -> (i32, i32) {
    %c0_i32 = arith.constant 0 : i32
    %c0_i32_0 = arith.constant 0 : i32
    return %c0_i32, %arg0 : i32, i32
  }
}

module attributes {stable_mosaic.version = 11 : i64} {
  func.func @_conv_mm_kernel(%arg0: i32, %arg1: memref<16x80xbf16, #tpu.memory_space<vmem>>, %arg2: memref<80x128xbf16, #tpu.memory_space<vmem>>, %arg3: memref<16x1xf32, #tpu.memory_space<vmem>>, %arg4: memref<16x128xbf16, #tpu.memory_space<vmem>>) attributes {dimension_semantics = [#tpu.dimension_semantics<parallel>], iteration_bounds = array<i64: 1>, scalar_prefetch = 0 : i64, scratch_operands = 0 : i64, tpu.core_type = #tpu.core_type<tc>, window_params = [{pipeline_mode = #tpu.pipeline_mode<synchronous>, transform_indices = @transform_0, window_bounds = array<i64: 16, 80>}, {transform_indices = @transform_1, window_bounds = array<i64: 80, 128>}, {pipeline_mode = #tpu.pipeline_mode<synchronous>, transform_indices = @transform_2, window_bounds = array<i64: 16, 1>}, {transform_indices = @transform_3, window_bounds = array<i64: 16, 128>}]} {
    %c0 = arith.constant 0 : index
    %c0_0 = arith.constant 0 : index
    %0 = vector.load %arg1[%c0, %c0_0] : memref<16x80xbf16, #tpu.memory_space<vmem>>, vector<16x80xbf16>
    %c0_1 = arith.constant 0 : index
    %c0_2 = arith.constant 0 : index
    %1 = vector.load %arg2[%c0_1, %c0_2] : memref<80x128xbf16, #tpu.memory_space<vmem>>, vector<80x128xbf16>
    %cst = arith.constant dense<0.000000e+00> : vector<16x128xf32>
    %2 = tpu.matmul %0, %1, %cst {dimension_numbers = #tpu.dot_dimension_numbers<[1], [0], [0], [1], [0, 0, 1, 1], [], []>} : vector<16x80xbf16>, vector<80x128xbf16>, vector<16x128xf32> -> vector<16x128xf32>
    %c0_3 = arith.constant 0 : index
    %c0_4 = arith.constant 0 : index
    %3 = vector.load %arg3[%c0_3, %c0_4] : memref<16x1xf32, #tpu.memory_space<vmem>>, vector<16x1xf32>
    %4 = vector.broadcast %3 : vector<16x1xf32> to vector<16x128xf32>
    %5 = arith.addf %2, %4 : vector<16x128xf32>
    %cst_5 = arith.constant 0.000000e+00 : f32
    %6 = vector.broadcast %cst_5 : f32 to vector<16x128xf32>
    %7 = arith.maximumf %5, %6 : vector<16x128xf32>
    %8 = arith.truncf %7 : vector<16x128xf32> to vector<16x128xbf16>
    %c0_6 = arith.constant 0 : index
    %c0_7 = arith.constant 0 : index
    %9 = vector.load %arg4[%c0_6, %c0_7] : memref<16x128xbf16, #tpu.memory_space<vmem>>, vector<16x128xbf16>
    tpu.vector_store %arg4[%c0_6, %c0_7], %8 {strides = array<i32>} : memref<16x128xbf16, #tpu.memory_space<vmem>>, vector<16x128xbf16>,
    return
  }
  func.func @transform_0(%arg0: i32) -> (i32, i32) {
    %c0_i32 = arith.constant 0 : i32
    %c0_i32_0 = arith.constant 0 : i32
    %c0_i32_1 = arith.constant 0 : i32
    return %c0_i32, %c0_i32_0 : i32, i32
  }
  func.func @transform_1(%arg0: i32) -> (i32, i32) {
    %c0_i32 = arith.constant 0 : i32
    %c0_i32_0 = arith.constant 0 : i32
    return %c0_i32, %arg0 : i32, i32
  }
  func.func @transform_2(%arg0: i32) -> (i32, i32) {
    %c0_i32 = arith.constant 0 : i32
    %c0_i32_0 = arith.constant 0 : i32
    %c0_i32_1 = arith.constant 0 : i32
    return %c0_i32, %c0_i32_0 : i32, i32
  }
  func.func @transform_3(%arg0: i32) -> (i32, i32) {
    %c0_i32 = arith.constant 0 : i32
    %c0_i32_0 = arith.constant 0 : i32
    return %c0_i32, %arg0 : i32, i32
  }
}

module attributes {stable_mosaic.version = 11 : i64} {
  func.func @_conv_mm_kernel(%arg0: i32, %arg1: memref<32x144xbf16, #tpu.memory_space<vmem>>, %arg2: memref<144x128xbf16, #tpu.memory_space<vmem>>, %arg3: memref<32x1xf32, #tpu.memory_space<vmem>>, %arg4: memref<32x128xbf16, #tpu.memory_space<vmem>>) attributes {dimension_semantics = [#tpu.dimension_semantics<parallel>], iteration_bounds = array<i64: 1>, scalar_prefetch = 0 : i64, scratch_operands = 0 : i64, tpu.core_type = #tpu.core_type<tc>, window_params = [{pipeline_mode = #tpu.pipeline_mode<synchronous>, transform_indices = @transform_0, window_bounds = array<i64: 32, 144>}, {transform_indices = @transform_1, window_bounds = array<i64: 144, 128>}, {pipeline_mode = #tpu.pipeline_mode<synchronous>, transform_indices = @transform_2, window_bounds = array<i64: 32, 1>}, {transform_indices = @transform_3, window_bounds = array<i64: 32, 128>}]} {
    %c0 = arith.constant 0 : index
    %c0_0 = arith.constant 0 : index
    %0 = vector.load %arg1[%c0, %c0_0] : memref<32x144xbf16, #tpu.memory_space<vmem>>, vector<32x144xbf16>
    %c0_1 = arith.constant 0 : index
    %c0_2 = arith.constant 0 : index
    %1 = vector.load %arg2[%c0_1, %c0_2] : memref<144x128xbf16, #tpu.memory_space<vmem>>, vector<144x128xbf16>
    %cst = arith.constant dense<0.000000e+00> : vector<32x128xf32>
    %2 = tpu.matmul %0, %1, %cst {dimension_numbers = #tpu.dot_dimension_numbers<[1], [0], [0], [1], [0, 0, 1, 1], [], []>} : vector<32x144xbf16>, vector<144x128xbf16>, vector<32x128xf32> -> vector<32x128xf32>
    %c0_3 = arith.constant 0 : index
    %c0_4 = arith.constant 0 : index
    %3 = vector.load %arg3[%c0_3, %c0_4] : memref<32x1xf32, #tpu.memory_space<vmem>>, vector<32x1xf32>
    %4 = vector.broadcast %3 : vector<32x1xf32> to vector<32x128xf32>
    %5 = arith.addf %2, %4 : vector<32x128xf32>
    %cst_5 = arith.constant 0.000000e+00 : f32
    %6 = vector.broadcast %cst_5 : f32 to vector<32x128xf32>
    %7 = arith.maximumf %5, %6 : vector<32x128xf32>
    %8 = arith.truncf %7 : vector<32x128xf32> to vector<32x128xbf16>
    %c0_6 = arith.constant 0 : index
    %c0_7 = arith.constant 0 : index
    %9 = vector.load %arg4[%c0_6, %c0_7] : memref<32x128xbf16, #tpu.memory_space<vmem>>, vector<32x128xbf16>
    tpu.vector_store %arg4[%c0_6, %c0_7], %8 {strides = array<i32>} : memref<32x128xbf16, #tpu.memory_space<vmem>>, vector<32x128xbf16>,
    return
  }
  func.func @transform_0(%arg0: i32) -> (i32, i32) {
    %c0_i32 = arith.constant 0 : i32
    %c0_i32_0 = arith.constant 0 : i32
    %c0_i32_1 = arith.constant 0 : i32
    return %c0_i32, %c0_i32_0 : i32, i32
  }
  func.func @transform_1(%arg0: i32) -> (i32, i32) {
    %c0_i32 = arith.constant 0 : i32
    %c0_i32_0 = arith.constant 0 : i32
    return %c0_i32, %arg0 : i32, i32
  }
  func.func @transform_2(%arg0: i32) -> (i32, i32) {
    %c0_i32 = arith.constant 0 : i32
    %c0_i32_0 = arith.constant 0 : i32
    %c0_i32_1 = arith.constant 0 : i32
    return %c0_i32, %c0_i32_0 : i32, i32
  }
  func.func @transform_3(%arg0: i32) -> (i32, i32) {
    %c0_i32 = arith.constant 0 : i32
    %c0_i32_0 = arith.constant 0 : i32
    return %c0_i32, %arg0 : i32, i32
  }
}

module attributes {stable_mosaic.version = 11 : i64} {
  func.func @_conv_mm_kernel(%arg0: i32, %arg1: memref<64x288xbf16, #tpu.memory_space<vmem>>, %arg2: memref<288x128xbf16, #tpu.memory_space<vmem>>, %arg3: memref<64x1xf32, #tpu.memory_space<vmem>>, %arg4: memref<64x128xbf16, #tpu.memory_space<vmem>>) attributes {dimension_semantics = [#tpu.dimension_semantics<parallel>], iteration_bounds = array<i64: 1>, scalar_prefetch = 0 : i64, scratch_operands = 0 : i64, tpu.core_type = #tpu.core_type<tc>, window_params = [{pipeline_mode = #tpu.pipeline_mode<synchronous>, transform_indices = @transform_0, window_bounds = array<i64: 64, 288>}, {transform_indices = @transform_1, window_bounds = array<i64: 288, 128>}, {pipeline_mode = #tpu.pipeline_mode<synchronous>, transform_indices = @transform_2, window_bounds = array<i64: 64, 1>}, {transform_indices = @transform_3, window_bounds = array<i64: 64, 128>}]} {
    %c0 = arith.constant 0 : index
    %c0_0 = arith.constant 0 : index
    %0 = vector.load %arg1[%c0, %c0_0] : memref<64x288xbf16, #tpu.memory_space<vmem>>, vector<64x288xbf16>
    %c0_1 = arith.constant 0 : index
    %c0_2 = arith.constant 0 : index
    %1 = vector.load %arg2[%c0_1, %c0_2] : memref<288x128xbf16, #tpu.memory_space<vmem>>, vector<288x128xbf16>
    %cst = arith.constant dense<0.000000e+00> : vector<64x128xf32>
    %2 = tpu.matmul %0, %1, %cst {dimension_numbers = #tpu.dot_dimension_numbers<[1], [0], [0], [1], [0, 0, 1, 1], [], []>} : vector<64x288xbf16>, vector<288x128xbf16>, vector<64x128xf32> -> vector<64x128xf32>
    %c0_3 = arith.constant 0 : index
    %c0_4 = arith.constant 0 : index
    %3 = vector.load %arg3[%c0_3, %c0_4] : memref<64x1xf32, #tpu.memory_space<vmem>>, vector<64x1xf32>
    %4 = vector.broadcast %3 : vector<64x1xf32> to vector<64x128xf32>
    %5 = arith.addf %2, %4 : vector<64x128xf32>
    %cst_5 = arith.constant 0.000000e+00 : f32
    %6 = vector.broadcast %cst_5 : f32 to vector<64x128xf32>
    %7 = arith.maximumf %5, %6 : vector<64x128xf32>
    %8 = arith.truncf %7 : vector<64x128xf32> to vector<64x128xbf16>
    %c0_6 = arith.constant 0 : index
    %c0_7 = arith.constant 0 : index
    %9 = vector.load %arg4[%c0_6, %c0_7] : memref<64x128xbf16, #tpu.memory_space<vmem>>, vector<64x128xbf16>
    tpu.vector_store %arg4[%c0_6, %c0_7], %8 {strides = array<i32>} : memref<64x128xbf16, #tpu.memory_space<vmem>>, vector<64x128xbf16>,
    return
  }
  func.func @transform_0(%arg0: i32) -> (i32, i32) {
    %c0_i32 = arith.constant 0 : i32
    %c0_i32_0 = arith.constant 0 : i32
    %c0_i32_1 = arith.constant 0 : i32
    return %c0_i32, %c0_i32_0 : i32, i32
  }
  func.func @transform_1(%arg0: i32) -> (i32, i32) {
    %c0_i32 = arith.constant 0 : i32
    %c0_i32_0 = arith.constant 0 : i32
    return %c0_i32, %arg0 : i32, i32
  }
  func.func @transform_2(%arg0: i32) -> (i32, i32) {
    %c0_i32 = arith.constant 0 : i32
    %c0_i32_0 = arith.constant 0 : i32
    %c0_i32_1 = arith.constant 0 : i32
    return %c0_i32, %c0_i32_0 : i32, i32
  }
  func.func @transform_3(%arg0: i32) -> (i32, i32) {
    %c0_i32 = arith.constant 0 : i32
    %c0_i32_0 = arith.constant 0 : i32
    return %c0_i32, %arg0 : i32, i32
  }
}

module attributes {stable_mosaic.version = 11 : i64} {
  func.func @_conv_mm_kernel(%arg0: i32, %arg1: memref<32x64xbf16, #tpu.memory_space<vmem>>, %arg2: memref<64x128xbf16, #tpu.memory_space<vmem>>, %arg3: memref<32x1xf32, #tpu.memory_space<vmem>>, %arg4: memref<32x128xbf16, #tpu.memory_space<vmem>>) attributes {dimension_semantics = [#tpu.dimension_semantics<parallel>], iteration_bounds = array<i64: 1>, scalar_prefetch = 0 : i64, scratch_operands = 0 : i64, tpu.core_type = #tpu.core_type<tc>, window_params = [{pipeline_mode = #tpu.pipeline_mode<synchronous>, transform_indices = @transform_0, window_bounds = array<i64: 32, 64>}, {transform_indices = @transform_1, window_bounds = array<i64: 64, 128>}, {pipeline_mode = #tpu.pipeline_mode<synchronous>, transform_indices = @transform_2, window_bounds = array<i64: 32, 1>}, {transform_indices = @transform_3, window_bounds = array<i64: 32, 128>}]} {
    %c0 = arith.constant 0 : index
    %c0_0 = arith.constant 0 : index
    %0 = vector.load %arg1[%c0, %c0_0] : memref<32x64xbf16, #tpu.memory_space<vmem>>, vector<32x64xbf16>
    %c0_1 = arith.constant 0 : index
    %c0_2 = arith.constant 0 : index
    %1 = vector.load %arg2[%c0_1, %c0_2] : memref<64x128xbf16, #tpu.memory_space<vmem>>, vector<64x128xbf16>
    %cst = arith.constant dense<0.000000e+00> : vector<32x128xf32>
    %2 = tpu.matmul %0, %1, %cst {dimension_numbers = #tpu.dot_dimension_numbers<[1], [0], [0], [1], [0, 0, 1, 1], [], []>} : vector<32x64xbf16>, vector<64x128xbf16>, vector<32x128xf32> -> vector<32x128xf32>
    %c0_3 = arith.constant 0 : index
    %c0_4 = arith.constant 0 : index
    %3 = vector.load %arg3[%c0_3, %c0_4] : memref<32x1xf32, #tpu.memory_space<vmem>>, vector<32x1xf32>
    %4 = vector.broadcast %3 : vector<32x1xf32> to vector<32x128xf32>
    %5 = arith.addf %2, %4 : vector<32x128xf32>
    %cst_5 = arith.constant 0.000000e+00 : f32
    %6 = vector.broadcast %cst_5 : f32 to vector<32x128xf32>
    %7 = arith.maximumf %5, %6 : vector<32x128xf32>
    %8 = arith.truncf %7 : vector<32x128xf32> to vector<32x128xbf16>
    %c0_6 = arith.constant 0 : index
    %c0_7 = arith.constant 0 : index
    %9 = vector.load %arg4[%c0_6, %c0_7] : memref<32x128xbf16, #tpu.memory_space<vmem>>, vector<32x128xbf16>
    tpu.vector_store %arg4[%c0_6, %c0_7], %8 {strides = array<i32>} : memref<32x128xbf16, #tpu.memory_space<vmem>>, vector<32x128xbf16>,
    return
  }
  func.func @transform_0(%arg0: i32) -> (i32, i32) {
    %c0_i32 = arith.constant 0 : i32
    %c0_i32_0 = arith.constant 0 : i32
    %c0_i32_1 = arith.constant 0 : i32
    return %c0_i32, %c0_i32_0 : i32, i32
  }
  func.func @transform_1(%arg0: i32) -> (i32, i32) {
    %c0_i32 = arith.constant 0 : i32
    %c0_i32_0 = arith.constant 0 : i32
    return %c0_i32, %arg0 : i32, i32
  }
  func.func @transform_2(%arg0: i32) -> (i32, i32) {
    %c0_i32 = arith.constant 0 : i32
    %c0_i32_0 = arith.constant 0 : i32
    %c0_i32_1 = arith.constant 0 : i32
    return %c0_i32, %c0_i32_0 : i32, i32
  }
  func.func @transform_3(%arg0: i32) -> (i32, i32) {
    %c0_i32 = arith.constant 0 : i32
    %c0_i32_0 = arith.constant 0 : i32
    return %c0_i32, %arg0 : i32, i32
  }
}

module attributes {stable_mosaic.version = 11 : i64} {
  func.func @_conv_mm_kernel(%arg0: i32, %arg1: memref<16x32xbf16, #tpu.memory_space<vmem>>, %arg2: memref<32x128xbf16, #tpu.memory_space<vmem>>, %arg3: memref<16x1xf32, #tpu.memory_space<vmem>>, %arg4: memref<16x128xbf16, #tpu.memory_space<vmem>>, %arg5: memref<16x128xbf16, #tpu.memory_space<vmem>>) attributes {dimension_semantics = [#tpu.dimension_semantics<parallel>], iteration_bounds = array<i64: 1>, scalar_prefetch = 0 : i64, scratch_operands = 0 : i64, tpu.core_type = #tpu.core_type<tc>, window_params = [{pipeline_mode = #tpu.pipeline_mode<synchronous>, transform_indices = @transform_0, window_bounds = array<i64: 16, 32>}, {transform_indices = @transform_1, window_bounds = array<i64: 32, 128>}, {pipeline_mode = #tpu.pipeline_mode<synchronous>, transform_indices = @transform_2, window_bounds = array<i64: 16, 1>}, {transform_indices = @transform_3, window_bounds = array<i64: 16, 128>}, {transform_indices = @transform_4, window_bounds = array<i64: 16, 128>}]} {
    %c0 = arith.constant 0 : index
    %c0_0 = arith.constant 0 : index
    %0 = vector.load %arg1[%c0, %c0_0] : memref<16x32xbf16, #tpu.memory_space<vmem>>, vector<16x32xbf16>
    %c0_1 = arith.constant 0 : index
    %c0_2 = arith.constant 0 : index
    %1 = vector.load %arg2[%c0_1, %c0_2] : memref<32x128xbf16, #tpu.memory_space<vmem>>, vector<32x128xbf16>
    %cst = arith.constant dense<0.000000e+00> : vector<16x128xf32>
    %2 = tpu.matmul %0, %1, %cst {dimension_numbers = #tpu.dot_dimension_numbers<[1], [0], [0], [1], [0, 0, 1, 1], [], []>} : vector<16x32xbf16>, vector<32x128xbf16>, vector<16x128xf32> -> vector<16x128xf32>
    %c0_3 = arith.constant 0 : index
    %c0_4 = arith.constant 0 : index
    %3 = vector.load %arg3[%c0_3, %c0_4] : memref<16x1xf32, #tpu.memory_space<vmem>>, vector<16x1xf32>
    %4 = vector.broadcast %3 : vector<16x1xf32> to vector<16x128xf32>
    %5 = arith.addf %2, %4 : vector<16x128xf32>
    %c0_5 = arith.constant 0 : index
    %c0_6 = arith.constant 0 : index
    %6 = vector.load %arg4[%c0_5, %c0_6] : memref<16x128xbf16, #tpu.memory_space<vmem>>, vector<16x128xbf16>
    %7 = arith.extf %6 : vector<16x128xbf16> to vector<16x128xf32>
    %8 = arith.addf %5, %7 : vector<16x128xf32>
    %9 = arith.truncf %8 : vector<16x128xf32> to vector<16x128xbf16>
    %c0_7 = arith.constant 0 : index
    %c0_8 = arith.constant 0 : index
    %10 = vector.load %arg5[%c0_7, %c0_8] : memref<16x128xbf16, #tpu.memory_space<vmem>>, vector<16x128xbf16>
    tpu.vector_store %arg5[%c0_7, %c0_8], %9 {strides = array<i32>} : memref<16x128xbf16, #tpu.memory_space<vmem>>, vector<16x128xbf16>,
    return
  }
  func.func @transform_0(%arg0: i32) -> (i32, i32) {
    %c0_i32 = arith.constant 0 : i32
    %c0_i32_0 = arith.constant 0 : i32
    %c0_i32_1 = arith.constant 0 : i32
    return %c0_i32, %c0_i32_0 : i32, i32
  }
  func.func @transform_1(%arg0: i32) -> (i32, i32) {
    %c0_i32 = arith.constant 0 : i32
    %c0_i32_0 = arith.constant 0 : i32
    return %c0_i32, %arg0 : i32, i32
  }
  func.func @transform_2(%arg0: i32) -> (i32, i32) {
    %c0_i32 = arith.constant 0 : i32
    %c0_i32_0 = arith.constant 0 : i32
    %c0_i32_1 = arith.constant 0 : i32
    return %c0_i32, %c0_i32_0 : i32, i32
  }
  func.func @transform_3(%arg0: i32) -> (i32, i32) {
    %c0_i32 = arith.constant 0 : i32
    %c0_i32_0 = arith.constant 0 : i32
    return %c0_i32, %arg0 : i32, i32
  }
  func.func @transform_4(%arg0: i32) -> (i32, i32) {
    %c0_i32 = arith.constant 0 : i32
    %c0_i32_0 = arith.constant 0 : i32
    return %c0_i32, %arg0 : i32, i32
  }
}

module attributes {stable_mosaic.version = 11 : i64} {
  func.func @_conv_mm_kernel(%arg0: i32, %arg1: memref<16x32xbf16, #tpu.memory_space<vmem>>, %arg2: memref<32x128xbf16, #tpu.memory_space<vmem>>, %arg3: memref<16x1xf32, #tpu.memory_space<vmem>>, %arg4: memref<16x128xbf16, #tpu.memory_space<vmem>>) attributes {dimension_semantics = [#tpu.dimension_semantics<parallel>], iteration_bounds = array<i64: 1>, scalar_prefetch = 0 : i64, scratch_operands = 0 : i64, tpu.core_type = #tpu.core_type<tc>, window_params = [{pipeline_mode = #tpu.pipeline_mode<synchronous>, transform_indices = @transform_0, window_bounds = array<i64: 16, 32>}, {transform_indices = @transform_1, window_bounds = array<i64: 32, 128>}, {pipeline_mode = #tpu.pipeline_mode<synchronous>, transform_indices = @transform_2, window_bounds = array<i64: 16, 1>}, {transform_indices = @transform_3, window_bounds = array<i64: 16, 128>}]} {
    %c0 = arith.constant 0 : index
    %c0_0 = arith.constant 0 : index
    %0 = vector.load %arg1[%c0, %c0_0] : memref<16x32xbf16, #tpu.memory_space<vmem>>, vector<16x32xbf16>
    %c0_1 = arith.constant 0 : index
    %c0_2 = arith.constant 0 : index
    %1 = vector.load %arg2[%c0_1, %c0_2] : memref<32x128xbf16, #tpu.memory_space<vmem>>, vector<32x128xbf16>
    %cst = arith.constant dense<0.000000e+00> : vector<16x128xf32>
    %2 = tpu.matmul %0, %1, %cst {dimension_numbers = #tpu.dot_dimension_numbers<[1], [0], [0], [1], [0, 0, 1, 1], [], []>} : vector<16x32xbf16>, vector<32x128xbf16>, vector<16x128xf32> -> vector<16x128xf32>
    %c0_3 = arith.constant 0 : index
    %c0_4 = arith.constant 0 : index
    %3 = vector.load %arg3[%c0_3, %c0_4] : memref<16x1xf32, #tpu.memory_space<vmem>>, vector<16x1xf32>
    %4 = vector.broadcast %3 : vector<16x1xf32> to vector<16x128xf32>
    %5 = arith.addf %2, %4 : vector<16x128xf32>
    %6 = arith.truncf %5 : vector<16x128xf32> to vector<16x128xbf16>
    %c0_5 = arith.constant 0 : index
    %c0_6 = arith.constant 0 : index
    %7 = vector.load %arg4[%c0_5, %c0_6] : memref<16x128xbf16, #tpu.memory_space<vmem>>, vector<16x128xbf16>
    tpu.vector_store %arg4[%c0_5, %c0_6], %6 {strides = array<i32>} : memref<16x128xbf16, #tpu.memory_space<vmem>>, vector<16x128xbf16>,
    return
  }
  func.func @transform_0(%arg0: i32) -> (i32, i32) {
    %c0_i32 = arith.constant 0 : i32
    %c0_i32_0 = arith.constant 0 : i32
    %c0_i32_1 = arith.constant 0 : i32
    return %c0_i32, %c0_i32_0 : i32, i32
  }
  func.func @transform_1(%arg0: i32) -> (i32, i32) {
    %c0_i32 = arith.constant 0 : i32
    %c0_i32_0 = arith.constant 0 : i32
    return %c0_i32, %arg0 : i32, i32
  }
  func.func @transform_2(%arg0: i32) -> (i32, i32) {
    %c0_i32 = arith.constant 0 : i32
    %c0_i32_0 = arith.constant 0 : i32
    %c0_i32_1 = arith.constant 0 : i32
    return %c0_i32, %c0_i32_0 : i32, i32
  }
  func.func @transform_3(%arg0: i32) -> (i32, i32) {
    %c0_i32 = arith.constant 0 : i32
    %c0_i32_0 = arith.constant 0 : i32
    return %c0_i32, %arg0 : i32, i32
  }
}

module attributes {stable_mosaic.version = 11 : i64} {
  func.func @_up2_kernel(%arg0: i32, %arg1: memref<8x4xf32, #tpu.memory_space<vmem>>, %arg2: memref<4x8xf32, #tpu.memory_space<vmem>>, %arg3: memref<8x4x4xbf16, #tpu.memory_space<vmem>>, %arg4: memref<8x8x8xbf16, #tpu.memory_space<vmem>>) attributes {dimension_semantics = [#tpu.dimension_semantics<parallel>], iteration_bounds = array<i64: 4>, scalar_prefetch = 0 : i64, scratch_operands = 0 : i64, tpu.core_type = #tpu.core_type<tc>, window_params = [{pipeline_mode = #tpu.pipeline_mode<synchronous>, transform_indices = @transform_0, window_bounds = array<i64: 8, 4>}, {pipeline_mode = #tpu.pipeline_mode<synchronous>, transform_indices = @transform_1, window_bounds = array<i64: 4, 8>}, {transform_indices = @transform_2, window_bounds = array<i64: 8, 4, 4>}, {transform_indices = @transform_3, window_bounds = array<i64: 8, 8, 8>}]} {
    %c0 = arith.constant 0 : index
    %c0_0 = arith.constant 0 : index
    %c0_1 = arith.constant 0 : index
    %0 = vector.load %arg3[%c0, %c0_0, %c0_1] : memref<8x4x4xbf16, #tpu.memory_space<vmem>>, vector<1x4x4xbf16>
    %1 = vector.shape_cast %0 : vector<1x4x4xbf16> to vector<4x4xbf16>
    %2 = arith.extf %1 : vector<4x4xbf16> to vector<4x4xf32>
    %c0_2 = arith.constant 0 : index
    %c0_3 = arith.constant 0 : index
    %3 = vector.load %arg2[%c0_2, %c0_3] : memref<4x8xf32, #tpu.memory_space<vmem>>, vector<4x8xf32>
    %cst = arith.constant dense<0.000000e+00> : vector<4x8xf32>
    %4 = tpu.matmul %2, %3, %cst {dimension_numbers = #tpu.dot_dimension_numbers<[1], [0], [0], [1], [0, 0, 1, 1], [], []>} : vector<4x4xf32>, vector<4x8xf32>, vector<4x8xf32> -> vector<4x8xf32>
    %c0_4 = arith.constant 0 : index
    %c0_5 = arith.constant 0 : index
    %5 = vector.load %arg1[%c0_4, %c0_5] : memref<8x4xf32, #tpu.memory_space<vmem>>, vector<8x4xf32>
    %cst_6 = arith.constant dense<0.000000e+00> : vector<8x8xf32>
    %6 = tpu.matmul %5, %4, %cst_6 {dimension_numbers = #tpu.dot_dimension_numbers<[1], [0], [0], [1], [0, 0, 1, 1], [], []>} : vector<8x4xf32>, vector<4x8xf32>, vector<8x8xf32> -> vector<8x8xf32>
    %7 = arith.truncf %6 : vector<8x8xf32> to vector<8x8xbf16>
    %c0_7 = arith.constant 0 : index
    %c0_8 = arith.constant 0 : index
    %c0_9 = arith.constant 0 : index
    %8 = vector.load %arg4[%c0_7, %c0_8, %c0_9] : memref<8x8x8xbf16, #tpu.memory_space<vmem>>, vector<1x8x8xbf16>
    %9 = vector.shape_cast %8 : vector<1x8x8xbf16> to vector<8x8xbf16>
    %10 = vector.shape_cast %7 : vector<8x8xbf16> to vector<1x8x8xbf16>
    tpu.vector_store %arg4[%c0_7, %c0_8, %c0_9], %10 {strides = array<i32>} : memref<8x8x8xbf16, #tpu.memory_space<vmem>>, vector<1x8x8xbf16>,
    %c1 = arith.constant 1 : index
    %c0_10 = arith.constant 0 : index
    %c0_11 = arith.constant 0 : index
    %11 = vector.load %arg3[%c1, %c0_10, %c0_11] : memref<8x4x4xbf16, #tpu.memory_space<vmem>>, vector<1x4x4xbf16>
    %12 = vector.shape_cast %11 : vector<1x4x4xbf16> to vector<4x4xbf16>
    %13 = arith.extf %12 : vector<4x4xbf16> to vector<4x4xf32>
    %c0_12 = arith.constant 0 : index
    %c0_13 = arith.constant 0 : index
    %14 = vector.load %arg2[%c0_12, %c0_13] : memref<4x8xf32, #tpu.memory_space<vmem>>, vector<4x8xf32>
    %cst_14 = arith.constant dense<0.000000e+00> : vector<4x8xf32>
    %15 = tpu.matmul %13, %14, %cst_14 {dimension_numbers = #tpu.dot_dimension_numbers<[1], [0], [0], [1], [0, 0, 1, 1], [], []>} : vector<4x4xf32>, vector<4x8xf32>, vector<4x8xf32> -> vector<4x8xf32>
    %c0_15 = arith.constant 0 : index
    %c0_16 = arith.constant 0 : index
    %16 = vector.load %arg1[%c0_15, %c0_16] : memref<8x4xf32, #tpu.memory_space<vmem>>, vector<8x4xf32>
    %cst_17 = arith.constant dense<0.000000e+00> : vector<8x8xf32>
    %17 = tpu.matmul %16, %15, %cst_17 {dimension_numbers = #tpu.dot_dimension_numbers<[1], [0], [0], [1], [0, 0, 1, 1], [], []>} : vector<8x4xf32>, vector<4x8xf32>, vector<8x8xf32> -> vector<8x8xf32>
    %18 = arith.truncf %17 : vector<8x8xf32> to vector<8x8xbf16>
    %c1_18 = arith.constant 1 : index
    %c0_19 = arith.constant 0 : index
    %c0_20 = arith.constant 0 : index
    %19 = vector.load %arg4[%c1_18, %c0_19, %c0_20] : memref<8x8x8xbf16, #tpu.memory_space<vmem>>, vector<1x8x8xbf16>
    %20 = vector.shape_cast %19 : vector<1x8x8xbf16> to vector<8x8xbf16>
    %21 = vector.shape_cast %18 : vector<8x8xbf16> to vector<1x8x8xbf16>
    tpu.vector_store %arg4[%c1_18, %c0_19, %c0_20], %21 {strides = array<i32>} : memref<8x8x8xbf16, #tpu.memory_space<vmem>>, vector<1x8x8xbf16>,
    %c2 = arith.constant 2 : index
    %c0_21 = arith.constant 0 : index
    %c0_22 = arith.constant 0 : index
    %22 = vector.load %arg3[%c2, %c0_21, %c0_22] : memref<8x4x4xbf16, #tpu.memory_space<vmem>>, vector<1x4x4xbf16>
    %23 = vector.shape_cast %22 : vector<1x4x4xbf16> to vector<4x4xbf16>
    %24 = arith.extf %23 : vector<4x4xbf16> to vector<4x4xf32>
    %c0_23 = arith.constant 0 : index
    %c0_24 = arith.constant 0 : index
    %25 = vector.load %arg2[%c0_23, %c0_24] : memref<4x8xf32, #tpu.memory_space<vmem>>, vector<4x8xf32>
    %cst_25 = arith.constant dense<0.000000e+00> : vector<4x8xf32>
    %26 = tpu.matmul %24, %25, %cst_25 {dimension_numbers = #tpu.dot_dimension_numbers<[1], [0], [0], [1], [0, 0, 1, 1], [], []>} : vector<4x4xf32>, vector<4x8xf32>, vector<4x8xf32> -> vector<4x8xf32>
    %c0_26 = arith.constant 0 : index
    %c0_27 = arith.constant 0 : index
    %27 = vector.load %arg1[%c0_26, %c0_27] : memref<8x4xf32, #tpu.memory_space<vmem>>, vector<8x4xf32>
    %cst_28 = arith.constant dense<0.000000e+00> : vector<8x8xf32>
    %28 = tpu.matmul %27, %26, %cst_28 {dimension_numbers = #tpu.dot_dimension_numbers<[1], [0], [0], [1], [0, 0, 1, 1], [], []>} : vector<8x4xf32>, vector<4x8xf32>, vector<8x8xf32> -> vector<8x8xf32>
    %29 = arith.truncf %28 : vector<8x8xf32> to vector<8x8xbf16>
    %c2_29 = arith.constant 2 : index
    %c0_30 = arith.constant 0 : index
    %c0_31 = arith.constant 0 : index
    %30 = vector.load %arg4[%c2_29, %c0_30, %c0_31] : memref<8x8x8xbf16, #tpu.memory_space<vmem>>, vector<1x8x8xbf16>
    %31 = vector.shape_cast %30 : vector<1x8x8xbf16> to vector<8x8xbf16>
    %32 = vector.shape_cast %29 : vector<8x8xbf16> to vector<1x8x8xbf16>
    tpu.vector_store %arg4[%c2_29, %c0_30, %c0_31], %32 {strides = array<i32>} : memref<8x8x8xbf16, #tpu.memory_space<vmem>>, vector<1x8x8xbf16>,
    %c3 = arith.constant 3 : index
    %c0_32 = arith.constant 0 : index
    %c0_33 = arith.constant 0 : index
    %33 = vector.load %arg3[%c3, %c0_32, %c0_33] : memref<8x4x4xbf16, #tpu.memory_space<vmem>>, vector<1x4x4xbf16>
    %34 = vector.shape_cast %33 : vector<1x4x4xbf16> to vector<4x4xbf16>
    %35 = arith.extf %34 : vector<4x4xbf16> to vector<4x4xf32>
    %c0_34 = arith.constant 0 : index
    %c0_35 = arith.constant 0 : index
    %36 = vector.load %arg2[%c0_34, %c0_35] : memref<4x8xf32, #tpu.memory_space<vmem>>, vector<4x8xf32>
    %cst_36 = arith.constant dense<0.000000e+00> : vector<4x8xf32>
    %37 = tpu.matmul %35, %36, %cst_36 {dimension_numbers = #tpu.dot_dimension_numbers<[1], [0], [0], [1], [0, 0, 1, 1], [], []>} : vector<4x4xf32>, vector<4x8xf32>, vector<4x8xf32> -> vector<4x8xf32>
    %c0_37 = arith.constant 0 : index
    %c0_38 = arith.constant 0 : index
    %38 = vector.load %arg1[%c0_37, %c0_38] : memref<8x4xf32, #tpu.memory_space<vmem>>, vector<8x4xf32>
    %cst_39 = arith.constant dense<0.000000e+00> : vector<8x8xf32>
    %39 = tpu.matmul %38, %37, %cst_39 {dimension_numbers = #tpu.dot_dimension_numbers<[1], [0], [0], [1], [0, 0, 1, 1], [], []>} : vector<8x4xf32>, vector<4x8xf32>, vector<8x8xf32> -> vector<8x8xf32>
    %40 = arith.truncf %39 : vector<8x8xf32> to vector<8x8xbf16>
    %c3_40 = arith.constant 3 : index
    %c0_41 = arith.constant 0 : index
    %c0_42 = arith.constant 0 : index
    %41 = vector.load %arg4[%c3_40, %c0_41, %c0_42] : memref<8x8x8xbf16, #tpu.memory_space<vmem>>, vector<1x8x8xbf16>
    %42 = vector.shape_cast %41 : vector<1x8x8xbf16> to vector<8x8xbf16>
    %43 = vector.shape_cast %40 : vector<8x8xbf16> to vector<1x8x8xbf16>
    tpu.vector_store %arg4[%c3_40, %c0_41, %c0_42], %43 {strides = array<i32>} : memref<8x8x8xbf16, #tpu.memory_space<vmem>>, vector<1x8x8xbf16>,
    %c4 = arith.constant 4 : index
    %c0_43 = arith.constant 0 : index
    %c0_44 = arith.constant 0 : index
    %44 = vector.load %arg3[%c4, %c0_43, %c0_44] : memref<8x4x4xbf16, #tpu.memory_space<vmem>>, vector<1x4x4xbf16>
    %45 = vector.shape_cast %44 : vector<1x4x4xbf16> to vector<4x4xbf16>
    %46 = arith.extf %45 : vector<4x4xbf16> to vector<4x4xf32>
    %c0_45 = arith.constant 0 : index
    %c0_46 = arith.constant 0 : index
    %47 = vector.load %arg2[%c0_45, %c0_46] : memref<4x8xf32, #tpu.memory_space<vmem>>, vector<4x8xf32>
    %cst_47 = arith.constant dense<0.000000e+00> : vector<4x8xf32>
    %48 = tpu.matmul %46, %47, %cst_47 {dimension_numbers = #tpu.dot_dimension_numbers<[1], [0], [0], [1], [0, 0, 1, 1], [], []>} : vector<4x4xf32>, vector<4x8xf32>, vector<4x8xf32> -> vector<4x8xf32>
    %c0_48 = arith.constant 0 : index
    %c0_49 = arith.constant 0 : index
    %49 = vector.load %arg1[%c0_48, %c0_49] : memref<8x4xf32, #tpu.memory_space<vmem>>, vector<8x4xf32>
    %cst_50 = arith.constant dense<0.000000e+00> : vector<8x8xf32>
    %50 = tpu.matmul %49, %48, %cst_50 {dimension_numbers = #tpu.dot_dimension_numbers<[1], [0], [0], [1], [0, 0, 1, 1], [], []>} : vector<8x4xf32>, vector<4x8xf32>, vector<8x8xf32> -> vector<8x8xf32>
    %51 = arith.truncf %50 : vector<8x8xf32> to vector<8x8xbf16>
    %c4_51 = arith.constant 4 : index
    %c0_52 = arith.constant 0 : index
    %c0_53 = arith.constant 0 : index
    %52 = vector.load %arg4[%c4_51, %c0_52, %c0_53] : memref<8x8x8xbf16, #tpu.memory_space<vmem>>, vector<1x8x8xbf16>
    %53 = vector.shape_cast %52 : vector<1x8x8xbf16> to vector<8x8xbf16>
    %54 = vector.shape_cast %51 : vector<8x8xbf16> to vector<1x8x8xbf16>
    tpu.vector_store %arg4[%c4_51, %c0_52, %c0_53], %54 {strides = array<i32>} : memref<8x8x8xbf16, #tpu.memory_space<vmem>>, vector<1x8x8xbf16>,
    %c5 = arith.constant 5 : index
    %c0_54 = arith.constant 0 : index
    %c0_55 = arith.constant 0 : index
    %55 = vector.load %arg3[%c5, %c0_54, %c0_55] : memref<8x4x4xbf16, #tpu.memory_space<vmem>>, vector<1x4x4xbf16>
    %56 = vector.shape_cast %55 : vector<1x4x4xbf16> to vector<4x4xbf16>
    %57 = arith.extf %56 : vector<4x4xbf16> to vector<4x4xf32>
    %c0_56 = arith.constant 0 : index
    %c0_57 = arith.constant 0 : index
    %58 = vector.load %arg2[%c0_56, %c0_57] : memref<4x8xf32, #tpu.memory_space<vmem>>, vector<4x8xf32>
    %cst_58 = arith.constant dense<0.000000e+00> : vector<4x8xf32>
    %59 = tpu.matmul %57, %58, %cst_58 {dimension_numbers = #tpu.dot_dimension_numbers<[1], [0], [0], [1], [0, 0, 1, 1], [], []>} : vector<4x4xf32>, vector<4x8xf32>, vector<4x8xf32> -> vector<4x8xf32>
    %c0_59 = arith.constant 0 : index
    %c0_60 = arith.constant 0 : index
    %60 = vector.load %arg1[%c0_59, %c0_60] : memref<8x4xf32, #tpu.memory_space<vmem>>, vector<8x4xf32>
    %cst_61 = arith.constant dense<0.000000e+00> : vector<8x8xf32>
    %61 = tpu.matmul %60, %59, %cst_61 {dimension_numbers = #tpu.dot_dimension_numbers<[1], [0], [0], [1], [0, 0, 1, 1], [], []>} : vector<8x4xf32>, vector<4x8xf32>, vector<8x8xf32> -> vector<8x8xf32>
    %62 = arith.truncf %61 : vector<8x8xf32> to vector<8x8xbf16>
    %c5_62 = arith.constant 5 : index
    %c0_63 = arith.constant 0 : index
    %c0_64 = arith.constant 0 : index
    %63 = vector.load %arg4[%c5_62, %c0_63, %c0_64] : memref<8x8x8xbf16, #tpu.memory_space<vmem>>, vector<1x8x8xbf16>
    %64 = vector.shape_cast %63 : vector<1x8x8xbf16> to vector<8x8xbf16>
    %65 = vector.shape_cast %62 : vector<8x8xbf16> to vector<1x8x8xbf16>
    tpu.vector_store %arg4[%c5_62, %c0_63, %c0_64], %65 {strides = array<i32>} : memref<8x8x8xbf16, #tpu.memory_space<vmem>>, vector<1x8x8xbf16>,
    %c6 = arith.constant 6 : index
    %c0_65 = arith.constant 0 : index
    %c0_66 = arith.constant 0 : index
    %66 = vector.load %arg3[%c6, %c0_65, %c0_66] : memref<8x4x4xbf16, #tpu.memory_space<vmem>>, vector<1x4x4xbf16>
    %67 = vector.shape_cast %66 : vector<1x4x4xbf16> to vector<4x4xbf16>
    %68 = arith.extf %67 : vector<4x4xbf16> to vector<4x4xf32>
    %c0_67 = arith.constant 0 : index
    %c0_68 = arith.constant 0 : index
    %69 = vector.load %arg2[%c0_67, %c0_68] : memref<4x8xf32, #tpu.memory_space<vmem>>, vector<4x8xf32>
    %cst_69 = arith.constant dense<0.000000e+00> : vector<4x8xf32>
    %70 = tpu.matmul %68, %69, %cst_69 {dimension_numbers = #tpu.dot_dimension_numbers<[1], [0], [0], [1], [0, 0, 1, 1], [], []>} : vector<4x4xf32>, vector<4x8xf32>, vector<4x8xf32> -> vector<4x8xf32>
    %c0_70 = arith.constant 0 : index
    %c0_71 = arith.constant 0 : index
    %71 = vector.load %arg1[%c0_70, %c0_71] : memref<8x4xf32, #tpu.memory_space<vmem>>, vector<8x4xf32>
    %cst_72 = arith.constant dense<0.000000e+00> : vector<8x8xf32>
    %72 = tpu.matmul %71, %70, %cst_72 {dimension_numbers = #tpu.dot_dimension_numbers<[1], [0], [0], [1], [0, 0, 1, 1], [], []>} : vector<8x4xf32>, vector<4x8xf32>, vector<8x8xf32> -> vector<8x8xf32>
    %73 = arith.truncf %72 : vector<8x8xf32> to vector<8x8xbf16>
    %c6_73 = arith.constant 6 : index
    %c0_74 = arith.constant 0 : index
    %c0_75 = arith.constant 0 : index
    %74 = vector.load %arg4[%c6_73, %c0_74, %c0_75] : memref<8x8x8xbf16, #tpu.memory_space<vmem>>, vector<1x8x8xbf16>
    %75 = vector.shape_cast %74 : vector<1x8x8xbf16> to vector<8x8xbf16>
    %76 = vector.shape_cast %73 : vector<8x8xbf16> to vector<1x8x8xbf16>
    tpu.vector_store %arg4[%c6_73, %c0_74, %c0_75], %76 {strides = array<i32>} : memref<8x8x8xbf16, #tpu.memory_space<vmem>>, vector<1x8x8xbf16>,
    %c7 = arith.constant 7 : index
    %c0_76 = arith.constant 0 : index
    %c0_77 = arith.constant 0 : index
    %77 = vector.load %arg3[%c7, %c0_76, %c0_77] : memref<8x4x4xbf16, #tpu.memory_space<vmem>>, vector<1x4x4xbf16>
    %78 = vector.shape_cast %77 : vector<1x4x4xbf16> to vector<4x4xbf16>
    %79 = arith.extf %78 : vector<4x4xbf16> to vector<4x4xf32>
    %c0_78 = arith.constant 0 : index
    %c0_79 = arith.constant 0 : index
    %80 = vector.load %arg2[%c0_78, %c0_79] : memref<4x8xf32, #tpu.memory_space<vmem>>, vector<4x8xf32>
    %cst_80 = arith.constant dense<0.000000e+00> : vector<4x8xf32>
    %81 = tpu.matmul %79, %80, %cst_80 {dimension_numbers = #tpu.dot_dimension_numbers<[1], [0], [0], [1], [0, 0, 1, 1], [], []>} : vector<4x4xf32>, vector<4x8xf32>, vector<4x8xf32> -> vector<4x8xf32>
    %c0_81 = arith.constant 0 : index
    %c0_82 = arith.constant 0 : index
    %82 = vector.load %arg1[%c0_81, %c0_82] : memref<8x4xf32, #tpu.memory_space<vmem>>, vector<8x4xf32>
    %cst_83 = arith.constant dense<0.000000e+00> : vector<8x8xf32>
    %83 = tpu.matmul %82, %81, %cst_83 {dimension_numbers = #tpu.dot_dimension_numbers<[1], [0], [0], [1], [0, 0, 1, 1], [], []>} : vector<8x4xf32>, vector<4x8xf32>, vector<8x8xf32> -> vector<8x8xf32>
    %84 = arith.truncf %83 : vector<8x8xf32> to vector<8x8xbf16>
    %c7_84 = arith.constant 7 : index
    %c0_85 = arith.constant 0 : index
    %c0_86 = arith.constant 0 : index
    %85 = vector.load %arg4[%c7_84, %c0_85, %c0_86] : memref<8x8x8xbf16, #tpu.memory_space<vmem>>, vector<1x8x8xbf16>
    %86 = vector.shape_cast %85 : vector<1x8x8xbf16> to vector<8x8xbf16>
    %87 = vector.shape_cast %84 : vector<8x8xbf16> to vector<1x8x8xbf16>
    tpu.vector_store %arg4[%c7_84, %c0_85, %c0_86], %87 {strides = array<i32>} : memref<8x8x8xbf16, #tpu.memory_space<vmem>>, vector<1x8x8xbf16>,
    return
  }
  func.func @transform_0(%arg0: i32) -> (i32, i32) {
    %c0_i32 = arith.constant 0 : i32
    %c0_i32_0 = arith.constant 0 : i32
    %c0_i32_1 = arith.constant 0 : i32
    return %c0_i32, %c0_i32_0 : i32, i32
  }
  func.func @transform_1(%arg0: i32) -> (i32, i32) {
    %c0_i32 = arith.constant 0 : i32
    %c0_i32_0 = arith.constant 0 : i32
    %c0_i32_1 = arith.constant 0 : i32
    return %c0_i32, %c0_i32_0 : i32, i32
  }
  func.func @transform_2(%arg0: i32) -> (i32, i32, i32) {
    %c0_i32 = arith.constant 0 : i32
    %c0_i32_0 = arith.constant 0 : i32
    %c0_i32_1 = arith.constant 0 : i32
    return %arg0, %c0_i32, %c0_i32_0 : i32, i32, i32
  }
  func.func @transform_3(%arg0: i32) -> (i32, i32, i32) {
    %c0_i32 = arith.constant 0 : i32
    %c0_i32_0 = arith.constant 0 : i32
    %c0_i32_1 = arith.constant 0 : i32
    return %arg0, %c0_i32, %c0_i32_0 : i32, i32, i32
  }
}

module attributes {stable_mosaic.version = 11 : i64} {
  func.func @_up2_kernel(%arg0: i32, %arg1: memref<4x2xf32, #tpu.memory_space<vmem>>, %arg2: memref<2x4xf32, #tpu.memory_space<vmem>>, %arg3: memref<8x2x2xbf16, #tpu.memory_space<vmem>>, %arg4: memref<8x4x4xbf16, #tpu.memory_space<vmem>>) attributes {dimension_semantics = [#tpu.dimension_semantics<parallel>], iteration_bounds = array<i64: 4>, scalar_prefetch = 0 : i64, scratch_operands = 0 : i64, tpu.core_type = #tpu.core_type<tc>, window_params = [{pipeline_mode = #tpu.pipeline_mode<synchronous>, transform_indices = @transform_0, window_bounds = array<i64: 4, 2>}, {pipeline_mode = #tpu.pipeline_mode<synchronous>, transform_indices = @transform_1, window_bounds = array<i64: 2, 4>}, {transform_indices = @transform_2, window_bounds = array<i64: 8, 2, 2>}, {transform_indices = @transform_3, window_bounds = array<i64: 8, 4, 4>}]} {
    %c0 = arith.constant 0 : index
    %c0_0 = arith.constant 0 : index
    %c0_1 = arith.constant 0 : index
    %0 = vector.load %arg3[%c0, %c0_0, %c0_1] : memref<8x2x2xbf16, #tpu.memory_space<vmem>>, vector<1x2x2xbf16>
    %1 = vector.shape_cast %0 : vector<1x2x2xbf16> to vector<2x2xbf16>
    %2 = arith.extf %1 : vector<2x2xbf16> to vector<2x2xf32>
    %c0_2 = arith.constant 0 : index
    %c0_3 = arith.constant 0 : index
    %3 = vector.load %arg2[%c0_2, %c0_3] : memref<2x4xf32, #tpu.memory_space<vmem>>, vector<2x4xf32>
    %cst = arith.constant dense<0.000000e+00> : vector<2x4xf32>
    %4 = tpu.matmul %2, %3, %cst {dimension_numbers = #tpu.dot_dimension_numbers<[1], [0], [0], [1], [0, 0, 1, 1], [], []>} : vector<2x2xf32>, vector<2x4xf32>, vector<2x4xf32> -> vector<2x4xf32>
    %c0_4 = arith.constant 0 : index
    %c0_5 = arith.constant 0 : index
    %5 = vector.load %arg1[%c0_4, %c0_5] : memref<4x2xf32, #tpu.memory_space<vmem>>, vector<4x2xf32>
    %cst_6 = arith.constant dense<0.000000e+00> : vector<4x4xf32>
    %6 = tpu.matmul %5, %4, %cst_6 {dimension_numbers = #tpu.dot_dimension_numbers<[1], [0], [0], [1], [0, 0, 1, 1], [], []>} : vector<4x2xf32>, vector<2x4xf32>, vector<4x4xf32> -> vector<4x4xf32>
    %7 = arith.truncf %6 : vector<4x4xf32> to vector<4x4xbf16>
    %c0_7 = arith.constant 0 : index
    %c0_8 = arith.constant 0 : index
    %c0_9 = arith.constant 0 : index
    %8 = vector.load %arg4[%c0_7, %c0_8, %c0_9] : memref<8x4x4xbf16, #tpu.memory_space<vmem>>, vector<1x4x4xbf16>
    %9 = vector.shape_cast %8 : vector<1x4x4xbf16> to vector<4x4xbf16>
    %10 = vector.shape_cast %7 : vector<4x4xbf16> to vector<1x4x4xbf16>
    tpu.vector_store %arg4[%c0_7, %c0_8, %c0_9], %10 {strides = array<i32>} : memref<8x4x4xbf16, #tpu.memory_space<vmem>>, vector<1x4x4xbf16>,
    %c1 = arith.constant 1 : index
    %c0_10 = arith.constant 0 : index
    %c0_11 = arith.constant 0 : index
    %11 = vector.load %arg3[%c1, %c0_10, %c0_11] : memref<8x2x2xbf16, #tpu.memory_space<vmem>>, vector<1x2x2xbf16>
    %12 = vector.shape_cast %11 : vector<1x2x2xbf16> to vector<2x2xbf16>
    %13 = arith.extf %12 : vector<2x2xbf16> to vector<2x2xf32>
    %c0_12 = arith.constant 0 : index
    %c0_13 = arith.constant 0 : index
    %14 = vector.load %arg2[%c0_12, %c0_13] : memref<2x4xf32, #tpu.memory_space<vmem>>, vector<2x4xf32>
    %cst_14 = arith.constant dense<0.000000e+00> : vector<2x4xf32>
    %15 = tpu.matmul %13, %14, %cst_14 {dimension_numbers = #tpu.dot_dimension_numbers<[1], [0], [0], [1], [0, 0, 1, 1], [], []>} : vector<2x2xf32>, vector<2x4xf32>, vector<2x4xf32> -> vector<2x4xf32>
    %c0_15 = arith.constant 0 : index
    %c0_16 = arith.constant 0 : index
    %16 = vector.load %arg1[%c0_15, %c0_16] : memref<4x2xf32, #tpu.memory_space<vmem>>, vector<4x2xf32>
    %cst_17 = arith.constant dense<0.000000e+00> : vector<4x4xf32>
    %17 = tpu.matmul %16, %15, %cst_17 {dimension_numbers = #tpu.dot_dimension_numbers<[1], [0], [0], [1], [0, 0, 1, 1], [], []>} : vector<4x2xf32>, vector<2x4xf32>, vector<4x4xf32> -> vector<4x4xf32>
    %18 = arith.truncf %17 : vector<4x4xf32> to vector<4x4xbf16>
    %c1_18 = arith.constant 1 : index
    %c0_19 = arith.constant 0 : index
    %c0_20 = arith.constant 0 : index
    %19 = vector.load %arg4[%c1_18, %c0_19, %c0_20] : memref<8x4x4xbf16, #tpu.memory_space<vmem>>, vector<1x4x4xbf16>
    %20 = vector.shape_cast %19 : vector<1x4x4xbf16> to vector<4x4xbf16>
    %21 = vector.shape_cast %18 : vector<4x4xbf16> to vector<1x4x4xbf16>
    tpu.vector_store %arg4[%c1_18, %c0_19, %c0_20], %21 {strides = array<i32>} : memref<8x4x4xbf16, #tpu.memory_space<vmem>>, vector<1x4x4xbf16>,
    %c2 = arith.constant 2 : index
    %c0_21 = arith.constant 0 : index
    %c0_22 = arith.constant 0 : index
    %22 = vector.load %arg3[%c2, %c0_21, %c0_22] : memref<8x2x2xbf16, #tpu.memory_space<vmem>>, vector<1x2x2xbf16>
    %23 = vector.shape_cast %22 : vector<1x2x2xbf16> to vector<2x2xbf16>
    %24 = arith.extf %23 : vector<2x2xbf16> to vector<2x2xf32>
    %c0_23 = arith.constant 0 : index
    %c0_24 = arith.constant 0 : index
    %25 = vector.load %arg2[%c0_23, %c0_24] : memref<2x4xf32, #tpu.memory_space<vmem>>, vector<2x4xf32>
    %cst_25 = arith.constant dense<0.000000e+00> : vector<2x4xf32>
    %26 = tpu.matmul %24, %25, %cst_25 {dimension_numbers = #tpu.dot_dimension_numbers<[1], [0], [0], [1], [0, 0, 1, 1], [], []>} : vector<2x2xf32>, vector<2x4xf32>, vector<2x4xf32> -> vector<2x4xf32>
    %c0_26 = arith.constant 0 : index
    %c0_27 = arith.constant 0 : index
    %27 = vector.load %arg1[%c0_26, %c0_27] : memref<4x2xf32, #tpu.memory_space<vmem>>, vector<4x2xf32>
    %cst_28 = arith.constant dense<0.000000e+00> : vector<4x4xf32>
    %28 = tpu.matmul %27, %26, %cst_28 {dimension_numbers = #tpu.dot_dimension_numbers<[1], [0], [0], [1], [0, 0, 1, 1], [], []>} : vector<4x2xf32>, vector<2x4xf32>, vector<4x4xf32> -> vector<4x4xf32>
    %29 = arith.truncf %28 : vector<4x4xf32> to vector<4x4xbf16>
    %c2_29 = arith.constant 2 : index
    %c0_30 = arith.constant 0 : index
    %c0_31 = arith.constant 0 : index
    %30 = vector.load %arg4[%c2_29, %c0_30, %c0_31] : memref<8x4x4xbf16, #tpu.memory_space<vmem>>, vector<1x4x4xbf16>
    %31 = vector.shape_cast %30 : vector<1x4x4xbf16> to vector<4x4xbf16>
    %32 = vector.shape_cast %29 : vector<4x4xbf16> to vector<1x4x4xbf16>
    tpu.vector_store %arg4[%c2_29, %c0_30, %c0_31], %32 {strides = array<i32>} : memref<8x4x4xbf16, #tpu.memory_space<vmem>>, vector<1x4x4xbf16>,
    %c3 = arith.constant 3 : index
    %c0_32 = arith.constant 0 : index
    %c0_33 = arith.constant 0 : index
    %33 = vector.load %arg3[%c3, %c0_32, %c0_33] : memref<8x2x2xbf16, #tpu.memory_space<vmem>>, vector<1x2x2xbf16>
    %34 = vector.shape_cast %33 : vector<1x2x2xbf16> to vector<2x2xbf16>
    %35 = arith.extf %34 : vector<2x2xbf16> to vector<2x2xf32>
    %c0_34 = arith.constant 0 : index
    %c0_35 = arith.constant 0 : index
    %36 = vector.load %arg2[%c0_34, %c0_35] : memref<2x4xf32, #tpu.memory_space<vmem>>, vector<2x4xf32>
    %cst_36 = arith.constant dense<0.000000e+00> : vector<2x4xf32>
    %37 = tpu.matmul %35, %36, %cst_36 {dimension_numbers = #tpu.dot_dimension_numbers<[1], [0], [0], [1], [0, 0, 1, 1], [], []>} : vector<2x2xf32>, vector<2x4xf32>, vector<2x4xf32> -> vector<2x4xf32>
    %c0_37 = arith.constant 0 : index
    %c0_38 = arith.constant 0 : index
    %38 = vector.load %arg1[%c0_37, %c0_38] : memref<4x2xf32, #tpu.memory_space<vmem>>, vector<4x2xf32>
    %cst_39 = arith.constant dense<0.000000e+00> : vector<4x4xf32>
    %39 = tpu.matmul %38, %37, %cst_39 {dimension_numbers = #tpu.dot_dimension_numbers<[1], [0], [0], [1], [0, 0, 1, 1], [], []>} : vector<4x2xf32>, vector<2x4xf32>, vector<4x4xf32> -> vector<4x4xf32>
    %40 = arith.truncf %39 : vector<4x4xf32> to vector<4x4xbf16>
    %c3_40 = arith.constant 3 : index
    %c0_41 = arith.constant 0 : index
    %c0_42 = arith.constant 0 : index
    %41 = vector.load %arg4[%c3_40, %c0_41, %c0_42] : memref<8x4x4xbf16, #tpu.memory_space<vmem>>, vector<1x4x4xbf16>
    %42 = vector.shape_cast %41 : vector<1x4x4xbf16> to vector<4x4xbf16>
    %43 = vector.shape_cast %40 : vector<4x4xbf16> to vector<1x4x4xbf16>
    tpu.vector_store %arg4[%c3_40, %c0_41, %c0_42], %43 {strides = array<i32>} : memref<8x4x4xbf16, #tpu.memory_space<vmem>>, vector<1x4x4xbf16>,
    %c4 = arith.constant 4 : index
    %c0_43 = arith.constant 0 : index
    %c0_44 = arith.constant 0 : index
    %44 = vector.load %arg3[%c4, %c0_43, %c0_44] : memref<8x2x2xbf16, #tpu.memory_space<vmem>>, vector<1x2x2xbf16>
    %45 = vector.shape_cast %44 : vector<1x2x2xbf16> to vector<2x2xbf16>
    %46 = arith.extf %45 : vector<2x2xbf16> to vector<2x2xf32>
    %c0_45 = arith.constant 0 : index
    %c0_46 = arith.constant 0 : index
    %47 = vector.load %arg2[%c0_45, %c0_46] : memref<2x4xf32, #tpu.memory_space<vmem>>, vector<2x4xf32>
    %cst_47 = arith.constant dense<0.000000e+00> : vector<2x4xf32>
    %48 = tpu.matmul %46, %47, %cst_47 {dimension_numbers = #tpu.dot_dimension_numbers<[1], [0], [0], [1], [0, 0, 1, 1], [], []>} : vector<2x2xf32>, vector<2x4xf32>, vector<2x4xf32> -> vector<2x4xf32>
    %c0_48 = arith.constant 0 : index
    %c0_49 = arith.constant 0 : index
    %49 = vector.load %arg1[%c0_48, %c0_49] : memref<4x2xf32, #tpu.memory_space<vmem>>, vector<4x2xf32>
    %cst_50 = arith.constant dense<0.000000e+00> : vector<4x4xf32>
    %50 = tpu.matmul %49, %48, %cst_50 {dimension_numbers = #tpu.dot_dimension_numbers<[1], [0], [0], [1], [0, 0, 1, 1], [], []>} : vector<4x2xf32>, vector<2x4xf32>, vector<4x4xf32> -> vector<4x4xf32>
    %51 = arith.truncf %50 : vector<4x4xf32> to vector<4x4xbf16>
    %c4_51 = arith.constant 4 : index
    %c0_52 = arith.constant 0 : index
    %c0_53 = arith.constant 0 : index
    %52 = vector.load %arg4[%c4_51, %c0_52, %c0_53] : memref<8x4x4xbf16, #tpu.memory_space<vmem>>, vector<1x4x4xbf16>
    %53 = vector.shape_cast %52 : vector<1x4x4xbf16> to vector<4x4xbf16>
    %54 = vector.shape_cast %51 : vector<4x4xbf16> to vector<1x4x4xbf16>
    tpu.vector_store %arg4[%c4_51, %c0_52, %c0_53], %54 {strides = array<i32>} : memref<8x4x4xbf16, #tpu.memory_space<vmem>>, vector<1x4x4xbf16>,
    %c5 = arith.constant 5 : index
    %c0_54 = arith.constant 0 : index
    %c0_55 = arith.constant 0 : index
    %55 = vector.load %arg3[%c5, %c0_54, %c0_55] : memref<8x2x2xbf16, #tpu.memory_space<vmem>>, vector<1x2x2xbf16>
    %56 = vector.shape_cast %55 : vector<1x2x2xbf16> to vector<2x2xbf16>
    %57 = arith.extf %56 : vector<2x2xbf16> to vector<2x2xf32>
    %c0_56 = arith.constant 0 : index
    %c0_57 = arith.constant 0 : index
    %58 = vector.load %arg2[%c0_56, %c0_57] : memref<2x4xf32, #tpu.memory_space<vmem>>, vector<2x4xf32>
    %cst_58 = arith.constant dense<0.000000e+00> : vector<2x4xf32>
    %59 = tpu.matmul %57, %58, %cst_58 {dimension_numbers = #tpu.dot_dimension_numbers<[1], [0], [0], [1], [0, 0, 1, 1], [], []>} : vector<2x2xf32>, vector<2x4xf32>, vector<2x4xf32> -> vector<2x4xf32>
    %c0_59 = arith.constant 0 : index
    %c0_60 = arith.constant 0 : index
    %60 = vector.load %arg1[%c0_59, %c0_60] : memref<4x2xf32, #tpu.memory_space<vmem>>, vector<4x2xf32>
    %cst_61 = arith.constant dense<0.000000e+00> : vector<4x4xf32>
    %61 = tpu.matmul %60, %59, %cst_61 {dimension_numbers = #tpu.dot_dimension_numbers<[1], [0], [0], [1], [0, 0, 1, 1], [], []>} : vector<4x2xf32>, vector<2x4xf32>, vector<4x4xf32> -> vector<4x4xf32>
    %62 = arith.truncf %61 : vector<4x4xf32> to vector<4x4xbf16>
    %c5_62 = arith.constant 5 : index
    %c0_63 = arith.constant 0 : index
    %c0_64 = arith.constant 0 : index
    %63 = vector.load %arg4[%c5_62, %c0_63, %c0_64] : memref<8x4x4xbf16, #tpu.memory_space<vmem>>, vector<1x4x4xbf16>
    %64 = vector.shape_cast %63 : vector<1x4x4xbf16> to vector<4x4xbf16>
    %65 = vector.shape_cast %62 : vector<4x4xbf16> to vector<1x4x4xbf16>
    tpu.vector_store %arg4[%c5_62, %c0_63, %c0_64], %65 {strides = array<i32>} : memref<8x4x4xbf16, #tpu.memory_space<vmem>>, vector<1x4x4xbf16>,
    %c6 = arith.constant 6 : index
    %c0_65 = arith.constant 0 : index
    %c0_66 = arith.constant 0 : index
    %66 = vector.load %arg3[%c6, %c0_65, %c0_66] : memref<8x2x2xbf16, #tpu.memory_space<vmem>>, vector<1x2x2xbf16>
    %67 = vector.shape_cast %66 : vector<1x2x2xbf16> to vector<2x2xbf16>
    %68 = arith.extf %67 : vector<2x2xbf16> to vector<2x2xf32>
    %c0_67 = arith.constant 0 : index
    %c0_68 = arith.constant 0 : index
    %69 = vector.load %arg2[%c0_67, %c0_68] : memref<2x4xf32, #tpu.memory_space<vmem>>, vector<2x4xf32>
    %cst_69 = arith.constant dense<0.000000e+00> : vector<2x4xf32>
    %70 = tpu.matmul %68, %69, %cst_69 {dimension_numbers = #tpu.dot_dimension_numbers<[1], [0], [0], [1], [0, 0, 1, 1], [], []>} : vector<2x2xf32>, vector<2x4xf32>, vector<2x4xf32> -> vector<2x4xf32>
    %c0_70 = arith.constant 0 : index
    %c0_71 = arith.constant 0 : index
    %71 = vector.load %arg1[%c0_70, %c0_71] : memref<4x2xf32, #tpu.memory_space<vmem>>, vector<4x2xf32>
    %cst_72 = arith.constant dense<0.000000e+00> : vector<4x4xf32>
    %72 = tpu.matmul %71, %70, %cst_72 {dimension_numbers = #tpu.dot_dimension_numbers<[1], [0], [0], [1], [0, 0, 1, 1], [], []>} : vector<4x2xf32>, vector<2x4xf32>, vector<4x4xf32> -> vector<4x4xf32>
    %73 = arith.truncf %72 : vector<4x4xf32> to vector<4x4xbf16>
    %c6_73 = arith.constant 6 : index
    %c0_74 = arith.constant 0 : index
    %c0_75 = arith.constant 0 : index
    %74 = vector.load %arg4[%c6_73, %c0_74, %c0_75] : memref<8x4x4xbf16, #tpu.memory_space<vmem>>, vector<1x4x4xbf16>
    %75 = vector.shape_cast %74 : vector<1x4x4xbf16> to vector<4x4xbf16>
    %76 = vector.shape_cast %73 : vector<4x4xbf16> to vector<1x4x4xbf16>
    tpu.vector_store %arg4[%c6_73, %c0_74, %c0_75], %76 {strides = array<i32>} : memref<8x4x4xbf16, #tpu.memory_space<vmem>>, vector<1x4x4xbf16>,
    %c7 = arith.constant 7 : index
    %c0_76 = arith.constant 0 : index
    %c0_77 = arith.constant 0 : index
    %77 = vector.load %arg3[%c7, %c0_76, %c0_77] : memref<8x2x2xbf16, #tpu.memory_space<vmem>>, vector<1x2x2xbf16>
    %78 = vector.shape_cast %77 : vector<1x2x2xbf16> to vector<2x2xbf16>
    %79 = arith.extf %78 : vector<2x2xbf16> to vector<2x2xf32>
    %c0_78 = arith.constant 0 : index
    %c0_79 = arith.constant 0 : index
    %80 = vector.load %arg2[%c0_78, %c0_79] : memref<2x4xf32, #tpu.memory_space<vmem>>, vector<2x4xf32>
    %cst_80 = arith.constant dense<0.000000e+00> : vector<2x4xf32>
    %81 = tpu.matmul %79, %80, %cst_80 {dimension_numbers = #tpu.dot_dimension_numbers<[1], [0], [0], [1], [0, 0, 1, 1], [], []>} : vector<2x2xf32>, vector<2x4xf32>, vector<2x4xf32> -> vector<2x4xf32>
    %c0_81 = arith.constant 0 : index
    %c0_82 = arith.constant 0 : index
    %82 = vector.load %arg1[%c0_81, %c0_82] : memref<4x2xf32, #tpu.memory_space<vmem>>, vector<4x2xf32>
    %cst_83 = arith.constant dense<0.000000e+00> : vector<4x4xf32>
    %83 = tpu.matmul %82, %81, %cst_83 {dimension_numbers = #tpu.dot_dimension_numbers<[1], [0], [0], [1], [0, 0, 1, 1], [], []>} : vector<4x2xf32>, vector<2x4xf32>, vector<4x4xf32> -> vector<4x4xf32>
    %84 = arith.truncf %83 : vector<4x4xf32> to vector<4x4xbf16>
    %c7_84 = arith.constant 7 : index
    %c0_85 = arith.constant 0 : index
    %c0_86 = arith.constant 0 : index
    %85 = vector.load %arg4[%c7_84, %c0_85, %c0_86] : memref<8x4x4xbf16, #tpu.memory_space<vmem>>, vector<1x4x4xbf16>
    %86 = vector.shape_cast %85 : vector<1x4x4xbf16> to vector<4x4xbf16>
    %87 = vector.shape_cast %84 : vector<4x4xbf16> to vector<1x4x4xbf16>
    tpu.vector_store %arg4[%c7_84, %c0_85, %c0_86], %87 {strides = array<i32>} : memref<8x4x4xbf16, #tpu.memory_space<vmem>>, vector<1x4x4xbf16>,
    return
  }
  func.func @transform_0(%arg0: i32) -> (i32, i32) {
    %c0_i32 = arith.constant 0 : i32
    %c0_i32_0 = arith.constant 0 : i32
    %c0_i32_1 = arith.constant 0 : i32
    return %c0_i32, %c0_i32_0 : i32, i32
  }
  func.func @transform_1(%arg0: i32) -> (i32, i32) {
    %c0_i32 = arith.constant 0 : i32
    %c0_i32_0 = arith.constant 0 : i32
    %c0_i32_1 = arith.constant 0 : i32
    return %c0_i32, %c0_i32_0 : i32, i32
  }
  func.func @transform_2(%arg0: i32) -> (i32, i32, i32) {
    %c0_i32 = arith.constant 0 : i32
    %c0_i32_0 = arith.constant 0 : i32
    %c0_i32_1 = arith.constant 0 : i32
    return %arg0, %c0_i32, %c0_i32_0 : i32, i32, i32
  }
  func.func @transform_3(%arg0: i32) -> (i32, i32, i32) {
    %c0_i32 = arith.constant 0 : i32
    %c0_i32_0 = arith.constant 0 : i32
    %c0_i32_1 = arith.constant 0 : i32
    return %arg0, %c0_i32, %c0_i32_0 : i32, i32, i32
  }
}

module attributes {stable_mosaic.version = 11 : i64} {
  func.func @_conv_mm_kernel(%arg0: i32, %arg1: memref<16x16xbf16, #tpu.memory_space<vmem>>, %arg2: memref<16x128xbf16, #tpu.memory_space<vmem>>, %arg3: memref<16x1xf32, #tpu.memory_space<vmem>>, %arg4: memref<16x128xbf16, #tpu.memory_space<vmem>>, %arg5: memref<16x128xbf16, #tpu.memory_space<vmem>>) attributes {dimension_semantics = [#tpu.dimension_semantics<parallel>], iteration_bounds = array<i64: 1>, scalar_prefetch = 0 : i64, scratch_operands = 0 : i64, tpu.core_type = #tpu.core_type<tc>, window_params = [{pipeline_mode = #tpu.pipeline_mode<synchronous>, transform_indices = @transform_0, window_bounds = array<i64: 16, 16>}, {transform_indices = @transform_1, window_bounds = array<i64: 16, 128>}, {pipeline_mode = #tpu.pipeline_mode<synchronous>, transform_indices = @transform_2, window_bounds = array<i64: 16, 1>}, {transform_indices = @transform_3, window_bounds = array<i64: 16, 128>}, {transform_indices = @transform_4, window_bounds = array<i64: 16, 128>}]} {
    %c0 = arith.constant 0 : index
    %c0_0 = arith.constant 0 : index
    %0 = vector.load %arg1[%c0, %c0_0] : memref<16x16xbf16, #tpu.memory_space<vmem>>, vector<16x16xbf16>
    %c0_1 = arith.constant 0 : index
    %c0_2 = arith.constant 0 : index
    %1 = vector.load %arg2[%c0_1, %c0_2] : memref<16x128xbf16, #tpu.memory_space<vmem>>, vector<16x128xbf16>
    %cst = arith.constant dense<0.000000e+00> : vector<16x128xf32>
    %2 = tpu.matmul %0, %1, %cst {dimension_numbers = #tpu.dot_dimension_numbers<[1], [0], [0], [1], [0, 0, 1, 1], [], []>} : vector<16x16xbf16>, vector<16x128xbf16>, vector<16x128xf32> -> vector<16x128xf32>
    %c0_3 = arith.constant 0 : index
    %c0_4 = arith.constant 0 : index
    %3 = vector.load %arg3[%c0_3, %c0_4] : memref<16x1xf32, #tpu.memory_space<vmem>>, vector<16x1xf32>
    %4 = vector.broadcast %3 : vector<16x1xf32> to vector<16x128xf32>
    %5 = arith.addf %2, %4 : vector<16x128xf32>
    %c0_5 = arith.constant 0 : index
    %c0_6 = arith.constant 0 : index
    %6 = vector.load %arg4[%c0_5, %c0_6] : memref<16x128xbf16, #tpu.memory_space<vmem>>, vector<16x128xbf16>
    %7 = arith.extf %6 : vector<16x128xbf16> to vector<16x128xf32>
    %8 = arith.addf %5, %7 : vector<16x128xf32>
    %9 = arith.truncf %8 : vector<16x128xf32> to vector<16x128xbf16>
    %c0_7 = arith.constant 0 : index
    %c0_8 = arith.constant 0 : index
    %10 = vector.load %arg5[%c0_7, %c0_8] : memref<16x128xbf16, #tpu.memory_space<vmem>>, vector<16x128xbf16>
    tpu.vector_store %arg5[%c0_7, %c0_8], %9 {strides = array<i32>} : memref<16x128xbf16, #tpu.memory_space<vmem>>, vector<16x128xbf16>,
    return
  }
  func.func @transform_0(%arg0: i32) -> (i32, i32) {
    %c0_i32 = arith.constant 0 : i32
    %c0_i32_0 = arith.constant 0 : i32
    %c0_i32_1 = arith.constant 0 : i32
    return %c0_i32, %c0_i32_0 : i32, i32
  }
  func.func @transform_1(%arg0: i32) -> (i32, i32) {
    %c0_i32 = arith.constant 0 : i32
    %c0_i32_0 = arith.constant 0 : i32
    return %c0_i32, %arg0 : i32, i32
  }
  func.func @transform_2(%arg0: i32) -> (i32, i32) {
    %c0_i32 = arith.constant 0 : i32
    %c0_i32_0 = arith.constant 0 : i32
    %c0_i32_1 = arith.constant 0 : i32
    return %c0_i32, %c0_i32_0 : i32, i32
  }
  func.func @transform_3(%arg0: i32) -> (i32, i32) {
    %c0_i32 = arith.constant 0 : i32
    %c0_i32_0 = arith.constant 0 : i32
    return %c0_i32, %arg0 : i32, i32
  }
  func.func @transform_4(%arg0: i32) -> (i32, i32) {
    %c0_i32 = arith.constant 0 : i32
    %c0_i32_0 = arith.constant 0 : i32
    return %c0_i32, %arg0 : i32, i32
  }
}

module attributes {stable_mosaic.version = 11 : i64} {
  func.func @_conv_mm_kernel(%arg0: i32, %arg1: memref<16x144xbf16, #tpu.memory_space<vmem>>, %arg2: memref<144x128xbf16, #tpu.memory_space<vmem>>, %arg3: memref<16x1xf32, #tpu.memory_space<vmem>>, %arg4: memref<8x16xf32, #tpu.memory_space<vmem>>, %arg5: memref<8x1xf32, #tpu.memory_space<vmem>>, %arg6: memref<8x128xf32, #tpu.memory_space<vmem>>) attributes {dimension_semantics = [#tpu.dimension_semantics<parallel>], iteration_bounds = array<i64: 1>, scalar_prefetch = 0 : i64, scratch_operands = 0 : i64, tpu.core_type = #tpu.core_type<tc>, window_params = [{pipeline_mode = #tpu.pipeline_mode<synchronous>, transform_indices = @transform_0, window_bounds = array<i64: 16, 144>}, {transform_indices = @transform_1, window_bounds = array<i64: 144, 128>}, {pipeline_mode = #tpu.pipeline_mode<synchronous>, transform_indices = @transform_2, window_bounds = array<i64: 16, 1>}, {pipeline_mode = #tpu.pipeline_mode<synchronous>, transform_indices = @transform_3, window_bounds = array<i64: 8, 16>}, {pipeline_mode = #tpu.pipeline_mode<synchronous>, transform_indices = @transform_4, window_bounds = array<i64: 8, 1>}, {transform_indices = @transform_5, window_bounds = array<i64: 8, 128>}]} {
    %c0 = arith.constant 0 : index
    %c0_0 = arith.constant 0 : index
    %0 = vector.load %arg1[%c0, %c0_0] : memref<16x144xbf16, #tpu.memory_space<vmem>>, vector<16x144xbf16>
    %c0_1 = arith.constant 0 : index
    %c0_2 = arith.constant 0 : index
    %1 = vector.load %arg2[%c0_1, %c0_2] : memref<144x128xbf16, #tpu.memory_space<vmem>>, vector<144x128xbf16>
    %cst = arith.constant dense<0.000000e+00> : vector<16x128xf32>
    %2 = tpu.matmul %0, %1, %cst {dimension_numbers = #tpu.dot_dimension_numbers<[1], [0], [0], [1], [0, 0, 1, 1], [], []>} : vector<16x144xbf16>, vector<144x128xbf16>, vector<16x128xf32> -> vector<16x128xf32>
    %c0_3 = arith.constant 0 : index
    %c0_4 = arith.constant 0 : index
    %3 = vector.load %arg3[%c0_3, %c0_4] : memref<16x1xf32, #tpu.memory_space<vmem>>, vector<16x1xf32>
    %4 = vector.broadcast %3 : vector<16x1xf32> to vector<16x128xf32>
    %5 = arith.addf %2, %4 : vector<16x128xf32>
    %cst_5 = arith.constant 0.000000e+00 : f32
    %6 = vector.broadcast %cst_5 : f32 to vector<16x128xf32>
    %7 = arith.maximumf %5, %6 : vector<16x128xf32>
    %c0_6 = arith.constant 0 : index
    %c0_7 = arith.constant 0 : index
    %8 = vector.load %arg4[%c0_6, %c0_7] : memref<8x16xf32, #tpu.memory_space<vmem>>, vector<8x16xf32>
    %cst_8 = arith.constant dense<0.000000e+00> : vector<8x128xf32>
    %9 = tpu.matmul %8, %7, %cst_8 {dimension_numbers = #tpu.dot_dimension_numbers<[1], [0], [0], [1], [0, 0, 1, 1], [], []>} : vector<8x16xf32>, vector<16x128xf32>, vector<8x128xf32> -> vector<8x128xf32>
    %c0_9 = arith.constant 0 : index
    %c0_10 = arith.constant 0 : index
    %10 = vector.load %arg5[%c0_9, %c0_10] : memref<8x1xf32, #tpu.memory_space<vmem>>, vector<8x1xf32>
    %11 = vector.broadcast %10 : vector<8x1xf32> to vector<8x128xf32>
    %12 = arith.addf %9, %11 : vector<8x128xf32>
    %c0_11 = arith.constant 0 : index
    %c0_12 = arith.constant 0 : index
    %13 = vector.load %arg6[%c0_11, %c0_12] : memref<8x128xf32, #tpu.memory_space<vmem>>, vector<8x128xf32>
    tpu.vector_store %arg6[%c0_11, %c0_12], %12 {strides = array<i32>} : memref<8x128xf32, #tpu.memory_space<vmem>>, vector<8x128xf32>,
    return
  }
  func.func @transform_0(%arg0: i32) -> (i32, i32) {
    %c0_i32 = arith.constant 0 : i32
    %c0_i32_0 = arith.constant 0 : i32
    %c0_i32_1 = arith.constant 0 : i32
    return %c0_i32, %c0_i32_0 : i32, i32
  }
  func.func @transform_1(%arg0: i32) -> (i32, i32) {
    %c0_i32 = arith.constant 0 : i32
    %c0_i32_0 = arith.constant 0 : i32
    return %c0_i32, %arg0 : i32, i32
  }
  func.func @transform_2(%arg0: i32) -> (i32, i32) {
    %c0_i32 = arith.constant 0 : i32
    %c0_i32_0 = arith.constant 0 : i32
    %c0_i32_1 = arith.constant 0 : i32
    return %c0_i32, %c0_i32_0 : i32, i32
  }
  func.func @transform_3(%arg0: i32) -> (i32, i32) {
    %c0_i32 = arith.constant 0 : i32
    %c0_i32_0 = arith.constant 0 : i32
    %c0_i32_1 = arith.constant 0 : i32
    return %c0_i32, %c0_i32_0 : i32, i32
  }
  func.func @transform_4(%arg0: i32) -> (i32, i32) {
    %c0_i32 = arith.constant 0 : i32
    %c0_i32_0 = arith.constant 0 : i32
    %c0_i32_1 = arith.constant 0 : i32
    return %c0_i32, %c0_i32_0 : i32, i32
  }
  func.func @transform_5(%arg0: i32) -> (i32, i32) {
    %c0_i32 = arith.constant 0 : i32
    %c0_i32_0 = arith.constant 0 : i32
    return %c0_i32, %arg0 : i32, i32
  }
}

module attributes {stable_mosaic.version = 11 : i64} {
  func.func @_up2_kernel(%arg0: i32, %arg1: memref<16x8xf32, #tpu.memory_space<vmem>>, %arg2: memref<8x16xf32, #tpu.memory_space<vmem>>, %arg3: memref<4x8x8xf32, #tpu.memory_space<vmem>>, %arg4: memref<4x16x16xf32, #tpu.memory_space<vmem>>) attributes {dimension_semantics = [#tpu.dimension_semantics<parallel>], iteration_bounds = array<i64: 1>, scalar_prefetch = 0 : i64, scratch_operands = 0 : i64, tpu.core_type = #tpu.core_type<tc>, window_params = [{pipeline_mode = #tpu.pipeline_mode<synchronous>, transform_indices = @transform_0, window_bounds = array<i64: 16, 8>}, {pipeline_mode = #tpu.pipeline_mode<synchronous>, transform_indices = @transform_1, window_bounds = array<i64: 8, 16>}, {transform_indices = @transform_2, window_bounds = array<i64: 4, 8, 8>}, {transform_indices = @transform_3, window_bounds = array<i64: 4, 16, 16>}]} {
    %c0 = arith.constant 0 : index
    %c0_0 = arith.constant 0 : index
    %c0_1 = arith.constant 0 : index
    %0 = vector.load %arg3[%c0, %c0_0, %c0_1] : memref<4x8x8xf32, #tpu.memory_space<vmem>>, vector<1x8x8xf32>
    %1 = vector.shape_cast %0 : vector<1x8x8xf32> to vector<8x8xf32>
    %c0_2 = arith.constant 0 : index
    %c0_3 = arith.constant 0 : index
    %2 = vector.load %arg2[%c0_2, %c0_3] : memref<8x16xf32, #tpu.memory_space<vmem>>, vector<8x16xf32>
    %cst = arith.constant dense<0.000000e+00> : vector<8x16xf32>
    %3 = tpu.matmul %1, %2, %cst {dimension_numbers = #tpu.dot_dimension_numbers<[1], [0], [0], [1], [0, 0, 1, 1], [], []>} : vector<8x8xf32>, vector<8x16xf32>, vector<8x16xf32> -> vector<8x16xf32>
    %c0_4 = arith.constant 0 : index
    %c0_5 = arith.constant 0 : index
    %4 = vector.load %arg1[%c0_4, %c0_5] : memref<16x8xf32, #tpu.memory_space<vmem>>, vector<16x8xf32>
    %cst_6 = arith.constant dense<0.000000e+00> : vector<16x16xf32>
    %5 = tpu.matmul %4, %3, %cst_6 {dimension_numbers = #tpu.dot_dimension_numbers<[1], [0], [0], [1], [0, 0, 1, 1], [], []>} : vector<16x8xf32>, vector<8x16xf32>, vector<16x16xf32> -> vector<16x16xf32>
    %c0_7 = arith.constant 0 : index
    %c0_8 = arith.constant 0 : index
    %c0_9 = arith.constant 0 : index
    %6 = vector.load %arg4[%c0_7, %c0_8, %c0_9] : memref<4x16x16xf32, #tpu.memory_space<vmem>>, vector<1x16x16xf32>
    %7 = vector.shape_cast %6 : vector<1x16x16xf32> to vector<16x16xf32>
    %8 = vector.shape_cast %5 : vector<16x16xf32> to vector<1x16x16xf32>
    tpu.vector_store %arg4[%c0_7, %c0_8, %c0_9], %8 {strides = array<i32>} : memref<4x16x16xf32, #tpu.memory_space<vmem>>, vector<1x16x16xf32>,
    %c1 = arith.constant 1 : index
    %c0_10 = arith.constant 0 : index
    %c0_11 = arith.constant 0 : index
    %9 = vector.load %arg3[%c1, %c0_10, %c0_11] : memref<4x8x8xf32, #tpu.memory_space<vmem>>, vector<1x8x8xf32>
    %10 = vector.shape_cast %9 : vector<1x8x8xf32> to vector<8x8xf32>
    %c0_12 = arith.constant 0 : index
    %c0_13 = arith.constant 0 : index
    %11 = vector.load %arg2[%c0_12, %c0_13] : memref<8x16xf32, #tpu.memory_space<vmem>>, vector<8x16xf32>
    %cst_14 = arith.constant dense<0.000000e+00> : vector<8x16xf32>
    %12 = tpu.matmul %10, %11, %cst_14 {dimension_numbers = #tpu.dot_dimension_numbers<[1], [0], [0], [1], [0, 0, 1, 1], [], []>} : vector<8x8xf32>, vector<8x16xf32>, vector<8x16xf32> -> vector<8x16xf32>
    %c0_15 = arith.constant 0 : index
    %c0_16 = arith.constant 0 : index
    %13 = vector.load %arg1[%c0_15, %c0_16] : memref<16x8xf32, #tpu.memory_space<vmem>>, vector<16x8xf32>
    %cst_17 = arith.constant dense<0.000000e+00> : vector<16x16xf32>
    %14 = tpu.matmul %13, %12, %cst_17 {dimension_numbers = #tpu.dot_dimension_numbers<[1], [0], [0], [1], [0, 0, 1, 1], [], []>} : vector<16x8xf32>, vector<8x16xf32>, vector<16x16xf32> -> vector<16x16xf32>
    %c1_18 = arith.constant 1 : index
    %c0_19 = arith.constant 0 : index
    %c0_20 = arith.constant 0 : index
    %15 = vector.load %arg4[%c1_18, %c0_19, %c0_20] : memref<4x16x16xf32, #tpu.memory_space<vmem>>, vector<1x16x16xf32>
    %16 = vector.shape_cast %15 : vector<1x16x16xf32> to vector<16x16xf32>
    %17 = vector.shape_cast %14 : vector<16x16xf32> to vector<1x16x16xf32>
    tpu.vector_store %arg4[%c1_18, %c0_19, %c0_20], %17 {strides = array<i32>} : memref<4x16x16xf32, #tpu.memory_space<vmem>>, vector<1x16x16xf32>,
    %c2 = arith.constant 2 : index
    %c0_21 = arith.constant 0 : index
    %c0_22 = arith.constant 0 : index
    %18 = vector.load %arg3[%c2, %c0_21, %c0_22] : memref<4x8x8xf32, #tpu.memory_space<vmem>>, vector<1x8x8xf32>
    %19 = vector.shape_cast %18 : vector<1x8x8xf32> to vector<8x8xf32>
    %c0_23 = arith.constant 0 : index
    %c0_24 = arith.constant 0 : index
    %20 = vector.load %arg2[%c0_23, %c0_24] : memref<8x16xf32, #tpu.memory_space<vmem>>, vector<8x16xf32>
    %cst_25 = arith.constant dense<0.000000e+00> : vector<8x16xf32>
    %21 = tpu.matmul %19, %20, %cst_25 {dimension_numbers = #tpu.dot_dimension_numbers<[1], [0], [0], [1], [0, 0, 1, 1], [], []>} : vector<8x8xf32>, vector<8x16xf32>, vector<8x16xf32> -> vector<8x16xf32>
    %c0_26 = arith.constant 0 : index
    %c0_27 = arith.constant 0 : index
    %22 = vector.load %arg1[%c0_26, %c0_27] : memref<16x8xf32, #tpu.memory_space<vmem>>, vector<16x8xf32>
    %cst_28 = arith.constant dense<0.000000e+00> : vector<16x16xf32>
    %23 = tpu.matmul %22, %21, %cst_28 {dimension_numbers = #tpu.dot_dimension_numbers<[1], [0], [0], [1], [0, 0, 1, 1], [], []>} : vector<16x8xf32>, vector<8x16xf32>, vector<16x16xf32> -> vector<16x16xf32>
    %c2_29 = arith.constant 2 : index
    %c0_30 = arith.constant 0 : index
    %c0_31 = arith.constant 0 : index
    %24 = vector.load %arg4[%c2_29, %c0_30, %c0_31] : memref<4x16x16xf32, #tpu.memory_space<vmem>>, vector<1x16x16xf32>
    %25 = vector.shape_cast %24 : vector<1x16x16xf32> to vector<16x16xf32>
    %26 = vector.shape_cast %23 : vector<16x16xf32> to vector<1x16x16xf32>
    tpu.vector_store %arg4[%c2_29, %c0_30, %c0_31], %26 {strides = array<i32>} : memref<4x16x16xf32, #tpu.memory_space<vmem>>, vector<1x16x16xf32>,
    %c3 = arith.constant 3 : index
    %c0_32 = arith.constant 0 : index
    %c0_33 = arith.constant 0 : index
    %27 = vector.load %arg3[%c3, %c0_32, %c0_33] : memref<4x8x8xf32, #tpu.memory_space<vmem>>, vector<1x8x8xf32>
    %28 = vector.shape_cast %27 : vector<1x8x8xf32> to vector<8x8xf32>
    %c0_34 = arith.constant 0 : index
    %c0_35 = arith.constant 0 : index
    %29 = vector.load %arg2[%c0_34, %c0_35] : memref<8x16xf32, #tpu.memory_space<vmem>>, vector<8x16xf32>
    %cst_36 = arith.constant dense<0.000000e+00> : vector<8x16xf32>
    %30 = tpu.matmul %28, %29, %cst_36 {dimension_numbers = #tpu.dot_dimension_numbers<[1], [0], [0], [1], [0, 0, 1, 1], [], []>} : vector<8x8xf32>, vector<8x16xf32>, vector<8x16xf32> -> vector<8x16xf32>
    %c0_37 = arith.constant 0 : index
    %c0_38 = arith.constant 0 : index
    %31 = vector.load %arg1[%c0_37, %c0_38] : memref<16x8xf32, #tpu.memory_space<vmem>>, vector<16x8xf32>
    %cst_39 = arith.constant dense<0.000000e+00> : vector<16x16xf32>
    %32 = tpu.matmul %31, %30, %cst_39 {dimension_numbers = #tpu.dot_dimension_numbers<[1], [0], [0], [1], [0, 0, 1, 1], [], []>} : vector<16x8xf32>, vector<8x16xf32>, vector<16x16xf32> -> vector<16x16xf32>
    %c3_40 = arith.constant 3 : index
    %c0_41 = arith.constant 0 : index
    %c0_42 = arith.constant 0 : index
    %33 = vector.load %arg4[%c3_40, %c0_41, %c0_42] : memref<4x16x16xf32, #tpu.memory_space<vmem>>, vector<1x16x16xf32>
    %34 = vector.shape_cast %33 : vector<1x16x16xf32> to vector<16x16xf32>
    %35 = vector.shape_cast %32 : vector<16x16xf32> to vector<1x16x16xf32>
    tpu.vector_store %arg4[%c3_40, %c0_41, %c0_42], %35 {strides = array<i32>} : memref<4x16x16xf32, #tpu.memory_space<vmem>>, vector<1x16x16xf32>,
    return
  }
  func.func @transform_0(%arg0: i32) -> (i32, i32) {
    %c0_i32 = arith.constant 0 : i32
    %c0_i32_0 = arith.constant 0 : i32
    %c0_i32_1 = arith.constant 0 : i32
    return %c0_i32, %c0_i32_0 : i32, i32
  }
  func.func @transform_1(%arg0: i32) -> (i32, i32) {
    %c0_i32 = arith.constant 0 : i32
    %c0_i32_0 = arith.constant 0 : i32
    %c0_i32_1 = arith.constant 0 : i32
    return %c0_i32, %c0_i32_0 : i32, i32
  }
  func.func @transform_2(%arg0: i32) -> (i32, i32, i32) {
    %c0_i32 = arith.constant 0 : i32
    %c0_i32_0 = arith.constant 0 : i32
    %c0_i32_1 = arith.constant 0 : i32
    return %arg0, %c0_i32, %c0_i32_0 : i32, i32, i32
  }
  func.func @transform_3(%arg0: i32) -> (i32, i32, i32) {
    %c0_i32 = arith.constant 0 : i32
    %c0_i32_0 = arith.constant 0 : i32
    %c0_i32_1 = arith.constant 0 : i32
    return %arg0, %c0_i32, %c0_i32_0 : i32, i32, i32
  }
}

</mosaic_0001>

<llo_original>
// kernel: rttdetv2_forward.13
$region0: #{rttdetv2_forward.13}
  #allocation0 [shape = 'u32[]', space=smem, size = 0x4, offset = 0x4, fixed_abs, tag = 'smem constant byte address 0x4 - core index']
  #allocation1 [shape = 'u32[144,128]{1,0:T(1,128)}', space=vmem, size = 0x12000, scoped, tag = 'internal scratch']
  %s0 = inlined_call_operand.vmem [shape: bf16[16,80], index: 0, kind: input, shape index: {}]
  %s1 = inlined_call_operand.vmem [shape: bf16[80,128], index: 1, kind: input, shape index: {}]
  %s2 = inlined_call_operand.vmem [shape: f32[16,1], index: 2, kind: input, shape index: {}]
  %s3 = inlined_call_operand.vmem [shape: bf16[16,128], index: 3, kind: output, shape index: {}]
  %s4 = sld [smem:[#allocation0]]
  $region22: #{rttdetv2_forward.13} parent=0
    _
  %s6 = ssub.s32 1, %s4
  %s7 = scalar_select 0, %s6, %s4
  // Predicated region
  $region2: #{rttdetv2_forward.13} parent=0 // pred_check
    _
  $region3: #{rttdetv2_forward.13} parent=0 // pred_check_branch
    %9 = sbr.rel (0) target = $region5
  $region4: #{rttdetv2_forward.13} parent=0 // pred_region
    _
  $region5: #{rttdetv2_forward.13} parent=0 // pred_fallthru
    _
  // Predicated region
  $region6: #{rttdetv2_forward.13} parent=0 // pred_check
    _
  $region7: #{rttdetv2_forward.13} parent=0 // pred_check_branch
    %11 = sbr.rel (0) target = $region9
  $region8: #{rttdetv2_forward.13} parent=0 // pred_region
    _
  $region9: #{rttdetv2_forward.13} parent=0 // pred_fallthru
    _
  // Predicated region
  $region10: #{rttdetv2_forward.13} parent=0 // pred_check
    _
  $region11: #{rttdetv2_forward.13} parent=0 // pred_check_branch
    %13 = sbr.rel (0) target = $region13
  $region12: #{rttdetv2_forward.13} parent=0 // pred_region
    _
  $region13: #{rttdetv2_forward.13} parent=0 // pred_fallthru
    _
  %v15 = vld [vmem:[%s0] sm:$0xf]
  %v16 = vld [vmem:[%s0 + $0x4] sm:$0xf]
  %v17 = vld [vmem:[%s1] sm:$0xf]
  %v18 = vld [vmem:[%s1 + $0x4] sm:$0xf]
  %v19 = vld [vmem:[%s1 + $0x8] sm:$0xf]
  %v20 = vld [vmem:[%s1 + $0xc] sm:$0xf]
  %v21 = vld [vmem:[%s1 + $0x10] sm:$0xf]
  %v22 = vld [vmem:[%s1 + $0x14] sm:$0xf]
  %v23 = vld [vmem:[%s1 + $0x18] sm:$0xf]
  %v24 = vld [vmem:[%s1 + $0x1c] sm:$0xf]
  %v25 = vld [vmem:[%s1 + $0x20] sm:$0xf]
  %v26 = vld [vmem:[%s1 + $0x24] sm:$0xf]
  %v27 = vld [vmem:[%s2] sm:$0xff]
  %v28 = vld [vmem:[%s2 + $0x8] sm:$0xff]
  %30 = vset.pattern.permute.xlu0 0
  %31 = vperm.xlu0 %30, %v27
  %v32 = vpop.permute.xlu0 %31
  %35 = vset.pattern.permute.xlu0 0
  %36 = vperm.xlu0 %35, %v28
  %v37 = vpop.permute.xlu0 %36
  %v41 = vunpack.c.l.b16 %v15
  %v42 = vunpack.c.l.b16 %v16
  %v43 = vpack.c.b16 %v42, %v41
  %v54 = vunpack.c.l.b16 %v17
  %v55 = vunpack.c.l.b16 %v18
  %v56 = vunpack.c.l.b16 %v19
  %v57 = vunpack.c.l.b16 %v20
  %v58 = vunpack.c.l.b16 %v21
  %v59 = vunpack.c.l.b16 %v22
  %v60 = vunpack.c.l.b16 %v23
  %v61 = vunpack.c.l.b16 %v24
  %v62 = vunpack.c.l.b16 %v25
  %v63 = vunpack.c.l.b16 %v26
  %v64 = vpack.c.b16 %v55, %v54
  %v65 = vpack.c.b16 %v57, %v56
  %v66 = vpack.c.b16 %v59, %v58
  %v67 = vpack.c.b16 %v61, %v60
  %v68 = vpack.c.b16 %v63, %v62
  %vm74 = vcmask 654336
  %v76 = vsel %vm74, %v43, 0
  %78 = vmatprep.subr.bf16.mxu0 0
  %79 = vmatpush1.bf16.msra.mxu0 %v64
  %80 = vmatprep.subr.bf16.mxu0 0
  %81 = vmatpush1.bf16.msra.mxu0 %v65
  %82 = vmatprep.subr.bf16.mxu0 0
  %83 = vmatpush1.bf16.msra.mxu0 %v66
  %84 = vmatprep.subr.bf16.mxu0 0
  %85 = vmatpush1.bf16.msra.mxu0 %v67
  %86 = vmatprep.subr.bf16.mxu0 0
  %87 = vmatpush1.bf16.msra.mxu0 %v68
  %88 = vmatprep.subr.bf16.mxu0 0
  %89 = vmatpush1.bf16.msra.mxu0 0
  %90 = vmatprep.subr.bf16.mxu0 0
  %91 = vmatpush1.bf16.msra.mxu0 0
  %92 = vmatprep.subr.bf16.mxu0 0
  %93 = vmatpush1.bf16.msra.mxu0 0
  %94 = vmatprep.subr.bf16.mxu0 0
  %95 = vmatpush1.bf16.msra.mxu0 0
  %96 = vmatprep.subr.bf16.mxu0 0
  %97 = vmatpush1.bf16.msra.mxu0 0
  %98 = vmatprep.subr.bf16.mxu0 0
  %99 = vmatpush1.bf16.msra.mxu0 0
  %100 = vmatprep.subr.bf16.mxu0 0
  %101 = vmatpush1.bf16.msra.mxu0 0
  %102 = vmatprep.subr.bf16.mxu0 0
  %103 = vmatpush1.bf16.msra.mxu0 0
  %104 = vmatprep.subr.bf16.mxu0 0
  %105 = vmatpush1.bf16.msra.mxu0 0
  %106 = vmatprep.subr.bf16.mxu0 0
  %107 = vmatpush1.bf16.msra.mxu0 0
  %108 = vmatprep.subr.bf16.mxu0 0
  %109 = vmatpush1.bf16.msra.mxu0 0
  %110 = vmatprep.mubr.bf16.mxu0 0
  %111 = vmatmul.mubr.bf16.gmra.mrb[0].mxu0 %v76
  %v112 = vpop.f32.mrb[0].mxu0
  %v113 = vadd.f32 %v32, %v112
  %v114 = vpop.f32.mrb[0].mxu0
  %v115 = vpop.f32.mrb[0].mxu0
  %v116 = vadd.f32 %v37, %v115
  %v117 = vpop.f32.mrb[0].mxu0
  %118 = vdwg.mxu0
  %v119 = vmax.f32 %v113, 0.0
  %v120 = vmax.f32 %v116, 0.0
  %v121 = vpack.c.bf16 %v120, %v119
  %v123 = vunpack.c.l.b16 %v121
  %v124 = vunpack.c.h.b16 %v121
  %v125 = vpack.c.b16 %v123, %v123
  %v126 = vpack.c.b16 %v124, %v124
  %129 = vst [vmem:[%s3] sm:$0xf] %v125
  %130 = vst [vmem:[%s3 + $0x4] sm:$0xf] %v126
  // Predicated region
  $region14: #{rttdetv2_forward.13} parent=0 // pred_check
    _
  $region15: #{rttdetv2_forward.13} parent=0 // pred_check_branch
    %132 = sbr.rel (0) target = $region17
  $region16: #{rttdetv2_forward.13} parent=0 // pred_region
    _
  $region17: #{rttdetv2_forward.13} parent=0 // pred_fallthru
    _
  // Predicated region
  $region18: #{rttdetv2_forward.13} parent=0 // pred_check
    _
  $region19: #{rttdetv2_forward.13} parent=0 // pred_check_branch
    %134 = sbr.rel (0) target = $region21
  $region20: #{rttdetv2_forward.13} parent=0 // pred_region
    _
  $region21: #{rttdetv2_forward.13} parent=0 // pred_fallthru
    _

// kernel: rttdetv2_forward.12
$region0: #{rttdetv2_forward.12}
  #allocation0 [shape = 'u32[]', space=smem, size = 0x4, offset = 0x4, fixed_abs, tag = 'smem constant byte address 0x4 - core index']
  #allocation1 [shape = 'u32[144,128]{1,0:T(1,128)}', space=vmem, size = 0x12000, scoped, tag = 'internal scratch']
  %s0 = inlined_call_operand.vmem [shape: bf16[16,32], index: 0, kind: input, shape index: {}]
  %s1 = inlined_call_operand.vmem [shape: bf16[32,512], index: 1, kind: input, shape index: {}]
  %s2 = inlined_call_operand.vmem [shape: f32[16,1], index: 2, kind: input, shape index: {}]
  %s3 = inlined_call_operand.vmem [shape: bf16[16,512], index: 3, kind: output, shape index: {}]
  %s4 = sld [smem:[#allocation0]]
  $region117: #{rttdetv2_forward.12} parent=0
    _
  %s6 = ssub.s32 1, %s4
  %s7 = scalar_select 0, %s6, %s4
  $region1: #{rttdetv2_forward.12} parent=0
    #allocation2 [shape = 'u8[32768]{0}', space=vmem, size = 0x8000, scoped, tag = 'input window, operand 1']
    #allocation3 [shape = 'u8[16384]{0}', space=vmem, size = 0x4000, scoped, tag = 'output window, operand 0']
    loop: start=0, step=1, limit=4
    $region2: #{rttdetv2_forward.12} parent=1 // loop_pre_header
      _
    $region3: #{rttdetv2_forward.12} parent=1 // loop_header
      %s9 = sphi 0, %s13
      %p10 = scmp.ge.s32.totalorder %s9, 4
      %s17 = sphi 0, %s17
      %s19 = sphi 0, %s17
      %s20 = sphi 0, %s19
      %s34 = sphi 0, %s20
      %s40 = sphi 0, %s42
      %s43 = sphi 0, %s40
      %s44 = sphi 0, %s43
      %s60 = sphi 0, %s44
      %s64 = sphi 0, %s64
      %s66 = sphi 0, %s64
      %s67 = sphi 0, %s66
      %s81 = sphi 0, %s67
      %s87 = sphi 0, %s89
      %s90 = sphi 0, %s87
      %s91 = sphi 0, %s90
      %s107 = sphi 0, %s91
    $region4: #{rttdetv2_forward.12} parent=1 // loop_header_branch
      %12 = sbr.rel (%p10) target = $region8
    $region5: #{rttdetv2_forward.12} parent=1 // loop_body
      %s14 = ssub.s32 %s9, 1
      %s15 = ssub.s32 %s9, 2
      %s16 = sadd.s32 %s9, 1
      %s18 = sadd.s32 %s17, 1
      %p21 = scmp.eq.s32.totalorder %s9, 1
      %p22 = scmp.ne.s32.totalorder %s17, %s19
      %p23 = scmp.eq.s32.totalorder %s9, 0
      %p24 = por %p22, %p23
      %p25 = scmp.ne.s32.totalorder %s17, %s19
      %p26 = scmp.eq.s32.totalorder %s14, 1
      %p27 = por %p25, %p26
      %p28 = scmp.ne.s32.totalorder %s19, %s20
      %p29 = scmp.eq.s32.totalorder %s14, 0
      %p30 = por %p28, %p29
      %p31 = scmp.ne.s32.totalorder %s19, %s20
      %p32 = scmp.eq.s32.totalorder %s15, 1
      %p33 = por %p31, %p32
      %p35 = scmp.ne.s32.totalorder %s20, %s34
      %p36 = scmp.eq.s32.totalorder %s15, 0
      %p37 = por %p35, %p36
      %s38 = ssub.s32 %s9, %s16
      %p39 = scmp.eq.s32.totalorder %s38, 0
      %s41 = sadd.s32 %s40, 1
      %s42 = scalar_select %p39, %s40, %s41
      %p45 = pneg %p39
      %p46 = scmp.eq.s32.totalorder %s9, 1
      %p47 = por %p45, %p46
      %p48 = scmp.ne.s32.totalorder %s40, %s43
      %p49 = scmp.eq.s32.totalorder %s9, 0
      %p50 = por %p48, %p49
      %p51 = scmp.ne.s32.totalorder %s40, %s43
      %p52 = scmp.eq.s32.totalorder %s14, 1
      %p53 = por %p51, %p52
      %p54 = scmp.ne.s32.totalorder %s43, %s44
      %p55 = scmp.eq.s32.totalorder %s14, 0
      %p56 = por %p54, %p55
      %p57 = scmp.ne.s32.totalorder %s43, %s44
      %p58 = scmp.eq.s32.totalorder %s15, 1
      %p59 = por %p57, %p58
      %p61 = scmp.ne.s32.totalorder %s44, %s60
      %p62 = scmp.eq.s32.totalorder %s15, 0
      %p63 = por %p61, %p62
      %s65 = sadd.s32 %s64, 1
      %p68 = scmp.eq.s32.totalorder %s9, 1
      %p69 = scmp.ne.s32.totalorder %s64, %s66
      %p70 = scmp.eq.s32.totalorder %s9, 0
      %p71 = por %p69, %p70
      %p72 = scmp.ne.s32.totalorder %s64, %s66
      %p73 = scmp.eq.s32.totalorder %s14, 1
      %p74 = por %p72, %p73
      %p75 = scmp.ne.s32.totalorder %s66, %s67
      %p76 = scmp.eq.s32.totalorder %s14, 0
      %p77 = por %p75, %p76
      %p78 = scmp.ne.s32.totalorder %s66, %s67
      %p79 = scmp.eq.s32.totalorder %s15, 1
      %p80 = por %p78, %p79
      %p82 = scmp.ne.s32.totalorder %s67, %s81
      %p83 = scmp.eq.s32.totalorder %s15, 0
      %p84 = por %p82, %p83
      %s85 = ssub.s32 %s9, %s16
      %p86 = scmp.eq.s32.totalorder %s85, 0
      %s88 = sadd.s32 %s87, 1
      %s89 = scalar_select %p86, %s87, %s88
      %p92 = pneg %p86
      %p93 = scmp.eq.s32.totalorder %s9, 1
      %p94 = por %p92, %p93
      %p95 = scmp.ne.s32.totalorder %s87, %s90
      %p96 = scmp.eq.s32.totalorder %s9, 0
      %p97 = por %p95, %p96
      %p98 = scmp.ne.s32.totalorder %s87, %s90
      %p99 = scmp.eq.s32.totalorder %s14, 1
      %p100 = por %p98, %p99
      %p101 = scmp.ne.s32.totalorder %s90, %s91
      %p102 = scmp.eq.s32.totalorder %s14, 0
      %p103 = por %p101, %p102
      %p104 = scmp.ne.s32.totalorder %s90, %s91
      %p105 = scmp.eq.s32.totalorder %s15, 1
      %p106 = por %p104, %p105
      %p108 = scmp.ne.s32.totalorder %s91, %s107
      %p109 = scmp.eq.s32.totalorder %s15, 0
      %p110 = por %p108, %p109
      %p111 = scmp.le.s32.totalorder 1, %s9
      %p112 = scmp.lt.s32.totalorder %s9, 3
      %p113 = pnand %p111, %p112
      %p114 = pneg %p113
      // Predicated region
      $region9: #{rttdetv2_forward.12} parent=5 // pred_check
        _
      $region10: #{rttdetv2_forward.12} parent=5 // pred_check_branch
        %116 = sbr.rel (%p113) target = $region12
      $region11: #{rttdetv2_forward.12} parent=5 // pred_region
        %s117 = ssub.s32 %s9, 1
        // Predicated region
        $region13: #{rttdetv2_forward.12} parent=11 // pred_check
          %p118 = pneg %p30
        $region14: #{rttdetv2_forward.12} parent=11 // pred_check_branch
          %120 = sbr.rel (%p118) target = $region16
        $region15: #{rttdetv2_forward.12} parent=11 // pred_region
          _
        $region16: #{rttdetv2_forward.12} parent=11 // pred_fallthru
          _
        // Predicated region
        $region17: #{rttdetv2_forward.12} parent=11 // pred_check
          %p121 = pneg %p77
        $region18: #{rttdetv2_forward.12} parent=11 // pred_check_branch
          %123 = sbr.rel (%p121) target = $region20
        $region19: #{rttdetv2_forward.12} parent=11 // pred_region
          _
        $region20: #{rttdetv2_forward.12} parent=11 // pred_fallthru
          _
      $region12: #{rttdetv2_forward.12} parent=5 // pred_fallthru
        _
      %p124 = scmp.lt.s32.totalorder %s9, 2
      // Predicated region
      $region21: #{rttdetv2_forward.12} parent=5 // pred_check
        %p125 = pneg %p124
      $region22: #{rttdetv2_forward.12} parent=5 // pred_check_branch
        %127 = sbr.rel (%p125) target = $region24
      $region23: #{rttdetv2_forward.12} parent=5 // pred_region
        // Predicated region
        $region25: #{rttdetv2_forward.12} parent=23 // pred_check
          %p128 = pneg %p50
        $region26: #{rttdetv2_forward.12} parent=23 // pred_check_branch
          %130 = sbr.rel (%p128) target = $region28
        $region27: #{rttdetv2_forward.12} parent=23 // pred_region
          %s131 = sand.u32 %s40, 1
          %s132 = sand.u32 %s40, 1
          %s133 = smul.addr %s132, 32
          %s134 = scalar_lea.vmem [#allocation2], %s133
          %s135 = smul.u32 2, %s9
          %s136 = smul.addr %s135, 4
          %s137 = scalar_lea.vmem %s1, %s136
          // Predicated region
          $region29: #{rttdetv2_forward.12} parent=27 // pred_check
            _
          $region30: #{rttdetv2_forward.12} parent=27 // pred_check_branch
            %139 = sbr.rel (0) target = $region32
          $region31: #{rttdetv2_forward.12} parent=27 // pred_region
            // Predicated region
            $region33: #{rttdetv2_forward.12} parent=31 // pred_check
              _
            $region34: #{rttdetv2_forward.12} parent=31 // pred_check_branch
              %141 = sbr.rel (0) target = $region36
            $region35: #{rttdetv2_forward.12} parent=31 // pred_region
              // Predicated region
              $region48: #{rttdetv2_forward.12} parent=35 // pred_check
                _
              $region49: #{rttdetv2_forward.12} parent=35 // pred_check_branch
                %162 = sbr.rel (0) target = $region51
              $region50: #{rttdetv2_forward.12} parent=35 // pred_region
                loop: start=0, step=1, limit=1
                $region52: #{rttdetv2_forward.12} parent=50 // loop_pre_header
                  _
                $region53: #{rttdetv2_forward.12} parent=50 // loop_header
                  %s164 = sphi 0, %s168
                  %p165 = scmp.ge.s32.totalorder %s164, 1
                  %s169 = sphi %s137, %s137
                  %s170 = sphi %s134, %s134
                $region54: #{rttdetv2_forward.12} parent=50 // loop_header_branch
                  %167 = sbr.rel (%p165) target = $region58
                $region55: #{rttdetv2_forward.12} parent=50 // loop_body
                  %v171 = vld [vmem:[%s169] sm:$0xff]
                  %172 = vst [vmem:[%s170] sm:$0xff] %v171
                  %v173 = vld [vmem:[%s169 + $0x10] sm:$0xff]
                  %174 = vst [vmem:[%s170 + $0x8] sm:$0xff] %v173
                  %v175 = vld [vmem:[%s169 + $0x20] sm:$0xff]
                  %176 = vst [vmem:[%s170 + $0x10] sm:$0xff] %v175
                  %v177 = vld [vmem:[%s169 + $0x30] sm:$0xff]
                  %178 = vst [vmem:[%s170 + $0x18] sm:$0xff] %v177
                $region56: #{rttdetv2_forward.12} parent=50 // loop_footer
                  %s168 = sadd.s32 1, %s164
                $region57: #{rttdetv2_forward.12} parent=50 // loop_footer_branch
                  %163 = sbr.rel target = $region53
                $region58: #{rttdetv2_forward.12} parent=50 // loop_exit
                  _
              $region51: #{rttdetv2_forward.12} parent=35 // pred_fallthru
                _
              // Predicated region
              $region59: #{rttdetv2_forward.12} parent=35 // pred_check
                _
              $region60: #{rttdetv2_forward.12} parent=35 // pred_check_branch
                %180 = sbr.rel target = $region62
              $region61: #{rttdetv2_forward.12} parent=35 // pred_region
                _
              $region62: #{rttdetv2_forward.12} parent=35 // pred_fallthru
                _
            $region36: #{rttdetv2_forward.12} parent=31 // pred_fallthru
              _
            // Predicated region
            $region37: #{rttdetv2_forward.12} parent=31 // pred_check
              _
            $region38: #{rttdetv2_forward.12} parent=31 // pred_check_branch
              %143 = sbr.rel target = $region40
            $region39: #{rttdetv2_forward.12} parent=31 // pred_region
              loop: start=0, step=1, limit=1
              $region41: #{rttdetv2_forward.12} parent=39 // loop_pre_header
                _
              $region42: #{rttdetv2_forward.12} parent=39 // loop_header
                %s146 = sphi 0, %s150
                %p147 = scmp.ge.s32.totalorder %s146, 1
                %s151 = sphi %s137, %s137
                %s152 = sphi %s134, %s134
              $region43: #{rttdetv2_forward.12} parent=39 // loop_header_branch
                %149 = sbr.rel (%p147) target = $region47
              $region44: #{rttdetv2_forward.12} parent=39 // loop_body
                %v153 = vld [vmem:[%s151] sm:$0xff]
                %154 = vst [vmem:[%s152] sm:$0xff] %v153
                %v155 = vld [vmem:[%s151 + $0x10] sm:$0xff]
                %156 = vst [vmem:[%s152 + $0x8] sm:$0xff] %v155
                %v157 = vld [vmem:[%s151 + $0x20] sm:$0xff]
                %158 = vst [vmem:[%s152 + $0x10] sm:$0xff] %v157
                %v159 = vld [vmem:[%s151 + $0x30] sm:$0xff]
                %160 = vst [vmem:[%s152 + $0x18] sm:$0xff] %v159
              $region45: #{rttdetv2_forward.12} parent=39 // loop_footer
                %s150 = sadd.s32 1, %s146
              $region46: #{rttdetv2_forward.12} parent=39 // loop_footer_branch
                %145 = sbr.rel target = $region42
              $region47: #{rttdetv2_forward.12} parent=39 // loop_exit
                _
            $region40: #{rttdetv2_forward.12} parent=31 // pred_fallthru
              _
          $region32: #{rttdetv2_forward.12} parent=27 // pred_fallthru
            _
          %181 = vnop
        $region28: #{rttdetv2_forward.12} parent=23 // pred_fallthru
          _
      $region24: #{rttdetv2_forward.12} parent=5 // pred_fallthru
        _
      %p182 = scmp.le.s32.totalorder 1, %s9
      %p183 = scmp.lt.s32.totalorder %s9, 3
      %p184 = pnand %p182, %p183
      %p185 = pneg %p184
      // Predicated region
      $region63: #{rttdetv2_forward.12} parent=5 // pred_check
        _
      $region64: #{rttdetv2_forward.12} parent=5 // pred_check_branch
        %187 = sbr.rel (%p184) target = $region66
      $region65: #{rttdetv2_forward.12} parent=5 // pred_region
        %s188 = ssub.s32 %s9, 1
        %s189 = sand.u32 %s43, 1
        %s190 = sand.u32 %s43, 1
        %s191 = smul.addr %s190, 32
        %s192 = scalar_lea.vmem [#allocation2], %s191
        // Predicated region
        $region67: #{rttdetv2_forward.12} parent=65 // pred_check
          %p193 = pneg %p56
        $region68: #{rttdetv2_forward.12} parent=65 // pred_check_branch
          %195 = sbr.rel (%p193) target = $region70
        $region69: #{rttdetv2_forward.12} parent=65 // pred_region
          _
        $region70: #{rttdetv2_forward.12} parent=65 // pred_fallthru
          _
        %p196 = pneg %p30
        %p197 = pneg %p27
        %s198 = sand.u32 %s43, 1
        %s199 = sand.u32 %s43, 1
        %s200 = smul.addr %s199, 32
        %s201 = scalar_lea.vmem [#allocation2], %s200
        %p202 = pneg %p56
        %p203 = pneg %p53
        %p204 = pneg %p77
        %p205 = pneg %p74
        %p206 = pneg %p103
        %p207 = pneg %p100
        %s208 = sand.u32 %s90, 1
        %s209 = sand.u32 %s90, 1
        %s210 = smul.addr %s209, 16
        %s211 = scalar_lea.vmem [#allocation3], %s210
        %s212 = smul.u32 2, %s14
        %s213 = smul.u32 2, %s14
        %v215 = vld [vmem:[%s0] sm:$0xf]
        %v216 = vld [vmem:[%s0 + $0x4] sm:$0xf]
        %v217 = vld [vmem:[%s192] sm:$0xff]
        %v218 = vld [vmem:[%s192 + $0x8] sm:$0xff]
        %v219 = vld [vmem:[%s192 + $0x10] sm:$0xff]
        %v220 = vld [vmem:[%s192 + $0x18] sm:$0xff]
        %v221 = vld [vmem:[%s2] sm:$0xff]
        %v222 = vld [vmem:[%s2 + $0x8] sm:$0xff]
        %224 = vset.pattern.permute.xlu0 0
        %225 = vperm.xlu0 %224, %v221
        %v226 = vpop.permute.xlu0 %225
        %229 = vset.pattern.permute.xlu0 0
        %230 = vperm.xlu0 %229, %v222
        %v231 = vpop.permute.xlu0 %230
        %v235 = vunpack.c.l.b16 %v215
        %v236 = vunpack.c.l.b16 %v216
        %v237 = vpack.c.b16 %v236, %v235
        %v242 = vunpack.c.l.b16 %v217
        %v243 = vunpack.c.h.b16 %v217
        %v244 = vunpack.c.l.b16 %v218
        %v245 = vunpack.c.h.b16 %v218
        %v246 = vunpack.c.l.b16 %v219
        %v247 = vunpack.c.h.b16 %v219
        %v248 = vunpack.c.l.b16 %v220
        %v249 = vunpack.c.h.b16 %v220
        %v250 = vpack.c.b16 %v244, %v242
        %v251 = vpack.c.b16 %v245, %v243
        %v252 = vpack.c.b16 %v248, %v246
        %v253 = vpack.c.b16 %v249, %v247
        %vm258 = vcmask 261120
        %v260 = vsel %vm258, %v237, 0
        %262 = vmatprep.subr.bf16.mxu0 %v251
        %263 = vmatpush1.bf16.msra.mxu0 %v250
        %264 = vmatprep.subr.bf16.mxu0 %v253
        %265 = vmatpush1.bf16.msra.mxu0 %v252
        %266 = vmatprep.subr.bf16.mxu0 0
        %267 = vmatpush1.bf16.msra.mxu0 0
        %268 = vmatprep.subr.bf16.mxu0 0
        %269 = vmatpush1.bf16.msra.mxu0 0
        %270 = vmatprep.subr.bf16.mxu0 0
        %271 = vmatpush1.bf16.msra.mxu0 0
        %272 = vmatprep.subr.bf16.mxu0 0
        %273 = vmatpush1.bf16.msra.mxu0 0
        %274 = vmatprep.subr.bf16.mxu0 0
        %275 = vmatpush1.bf16.msra.mxu0 0
        %276 = vmatprep.subr.bf16.mxu0 0
        %277 = vmatpush1.bf16.msra.mxu0 0
        %278 = vmatprep.subr.bf16.mxu0 0
        %279 = vmatpush1.bf16.msra.mxu0 0
        %280 = vmatprep.subr.bf16.mxu0 0
        %281 = vmatpush1.bf16.msra.mxu0 0
        %282 = vmatprep.subr.bf16.mxu0 0
        %283 = vmatpush1.bf16.msra.mxu0 0
        %284 = vmatprep.subr.bf16.mxu0 0
        %285 = vmatpush1.bf16.msra.mxu0 0
        %286 = vmatprep.subr.bf16.mxu0 0
        %287 = vmatpush1.bf16.msra.mxu0 0
        %288 = vmatprep.subr.bf16.mxu0 0
        %289 = vmatpush1.bf16.msra.mxu0 0
        %290 = vmatprep.subr.bf16.mxu0 0
        %291 = vmatpush1.bf16.msra.mxu0 0
        %292 = vmatprep.subr.bf16.mxu0 0
        %293 = vmatpush1.bf16.msra.mxu0 0
        %294 = vmatprep.mubr.bf16.mxu0 0
        %295 = vmatmul.mubr.bf16.gmra.mrb[0].mxu0 %v260
        %v296 = vpop.f32.mrb[0].mxu0
        %v297 = vadd.f32 %v226, %v296
        %v298 = vpop.f32.mrb[0].mxu0
        %v299 = vadd.f32 %v226, %v298
        %v300 = vpop.f32.mrb[0].mxu0
        %v301 = vadd.f32 %v231, %v300
        %v302 = vpop.f32.mrb[0].mxu0
        %v303 = vadd.f32 %v231, %v302
        %304 = vdwg.mxu0
        %v305 = vmax.f32 %v297, 0.0
        %v306 = vmax.f32 %v299, 0.0
        %v307 = vmax.f32 %v301, 0.0
        %v308 = vmax.f32 %v303, 0.0
        %v309 = vpack.c.bf16 %v307, %v305
        %v310 = vpack.c.bf16 %v308, %v306
        %v313 = vunpack.c.l.b16 %v309
        %v314 = vunpack.c.l.b16 %v310
        %v315 = vunpack.c.h.b16 %v309
        %v316 = vunpack.c.h.b16 %v310
        %v317 = vpack.c.b16 %v314, %v313
        %v318 = vpack.c.b16 %v316, %v315
        %321 = vst [vmem:[%s211] sm:$0xff] %v317
        %322 = vst [vmem:[%s211 + $0x8] sm:$0xff] %v318
        %s323 = sand.u32 %s90, 1
        %s324 = sand.u32 %s90, 1
        %s325 = smul.addr %s324, 16
        %s326 = scalar_lea.vmem [#allocation3], %s325
        // Predicated region
        $region71: #{rttdetv2_forward.12} parent=65 // pred_check
          %p327 = pneg %p100
        $region72: #{rttdetv2_forward.12} parent=65 // pred_check_branch
          %329 = sbr.rel (%p327) target = $region74
        $region73: #{rttdetv2_forward.12} parent=65 // pred_region
          %s330 = smul.u32 2, %s14
          %s331 = smul.addr %s330, 4
          %s332 = scalar_lea.vmem %s3, %s331
          // Predicated region
          $region75: #{rttdetv2_forward.12} parent=73 // pred_check
            _
          $region76: #{rttdetv2_forward.12} parent=73 // pred_check_branch
            %334 = sbr.rel (0) target = $region78
          $region77: #{rttdetv2_forward.12} parent=73 // pred_region
            // Predicated region
            $region79: #{rttdetv2_forward.12} parent=77 // pred_check
              _
            $region80: #{rttdetv2_forward.12} parent=77 // pred_check_branch
              %336 = sbr.rel (0) target = $region82
            $region81: #{rttdetv2_forward.12} parent=77 // pred_region
              // Predicated region
              $region94: #{rttdetv2_forward.12} parent=81 // pred_check
                _
              $region95: #{rttdetv2_forward.12} parent=81 // pred_check_branch
                %353 = sbr.rel (0) target = $region97
              $region96: #{rttdetv2_forward.12} parent=81 // pred_region
                loop: start=0, step=1, limit=1
                $region98: #{rttdetv2_forward.12} parent=96 // loop_pre_header
                  _
                $region99: #{rttdetv2_forward.12} parent=96 // loop_header
                  %s355 = sphi 0, %s359
                  %p356 = scmp.ge.s32.totalorder %s355, 1
                  %s360 = sphi %s326, %s326
                  %s361 = sphi %s332, %s332
                $region100: #{rttdetv2_forward.12} parent=96 // loop_header_branch
                  %358 = sbr.rel (%p356) target = $region104
                $region101: #{rttdetv2_forward.12} parent=96 // loop_body
                  %v362 = vld [vmem:[%s360] sm:$0xff]
                  %363 = vst [vmem:[%s361] sm:$0xff] %v362
                  %v364 = vld [vmem:[%s360 + $0x8] sm:$0xff]
                  %365 = vst [vmem:[%s361 + $0x10] sm:$0xff] %v364
                $region102: #{rttdetv2_forward.12} parent=96 // loop_footer
                  %s359 = sadd.s32 1, %s355
                $region103: #{rttdetv2_forward.12} parent=96 // loop_footer_branch
                  %354 = sbr.rel target = $region99
                $region104: #{rttdetv2_forward.12} parent=96 // loop_exit
                  _
              $region97: #{rttdetv2_forward.12} parent=81 // pred_fallthru
                _
              // Predicated region
              $region105: #{rttdetv2_forward.12} parent=81 // pred_check
                _
              $region106: #{rttdetv2_forward.12} parent=81 // pred_check_branch
                %367 = sbr.rel target = $region108
              $region107: #{rttdetv2_forward.12} parent=81 // pred_region
                _
              $region108: #{rttdetv2_forward.12} parent=81 // pred_fallthru
                _
            $region82: #{rttdetv2_forward.12} parent=77 // pred_fallthru
              _
            // Predicated region
            $region83: #{rttdetv2_forward.12} parent=77 // pred_check
              _
            $region84: #{rttdetv2_forward.12} parent=77 // pred_check_branch
              %338 = sbr.rel target = $region86
            $region85: #{rttdetv2_forward.12} parent=77 // pred_region
              loop: start=0, step=1, limit=1
              $region87: #{rttdetv2_forward.12} parent=85 // loop_pre_header
                _
              $region88: #{rttdetv2_forward.12} parent=85 // loop_header
                %s341 = sphi 0, %s345
                %p342 = scmp.ge.s32.totalorder %s341, 1
                %s346 = sphi %s326, %s326
                %s347 = sphi %s332, %s332
              $region89: #{rttdetv2_forward.12} parent=85 // loop_header_branch
                %344 = sbr.rel (%p342) target = $region93
              $region90: #{rttdetv2_forward.12} parent=85 // loop_body
                %v348 = vld [vmem:[%s346] sm:$0xff]
                %349 = vst [vmem:[%s347] sm:$0xff] %v348
                %v350 = vld [vmem:[%s346 + $0x8] sm:$0xff]
                %351 = vst [vmem:[%s347 + $0x10] sm:$0xff] %v350
              $region91: #{rttdetv2_forward.12} parent=85 // loop_footer
                %s345 = sadd.s32 1, %s341
              $region92: #{rttdetv2_forward.12} parent=85 // loop_footer_branch
                %340 = sbr.rel target = $region88
              $region93: #{rttdetv2_forward.12} parent=85 // loop_exit
                _
            $region86: #{rttdetv2_forward.12} parent=77 // pred_fallthru
              _
          $region78: #{rttdetv2_forward.12} parent=73 // pred_fallthru
            _
          %368 = vnop
        $region74: #{rttdetv2_forward.12} parent=65 // pred_fallthru
          _
      $region66: #{rttdetv2_forward.12} parent=5 // pred_fallthru
        _
      %p369 = scmp.le.s32.totalorder 2, %s9
      // Predicated region
      $region109: #{rttdetv2_forward.12} parent=5 // pred_check
        %p370 = pneg %p369
      $region110: #{rttdetv2_forward.12} parent=5 // pred_check_branch
        %372 = sbr.rel (%p370) target = $region112
      $region111: #{rttdetv2_forward.12} parent=5 // pred_region
        %s373 = ssub.s32 %s9, 2
        // Predicated region
        $region113: #{rttdetv2_forward.12} parent=111 // pred_check
          %p374 = pneg %p106
        $region114: #{rttdetv2_forward.12} parent=111 // pred_check_branch
          %376 = sbr.rel (%p374) target = $region116
        $region115: #{rttdetv2_forward.12} parent=111 // pred_region
          %s377 = sand.u32 %s91, 1
          %s378 = sand.u32 %s91, 1
          %s379 = smul.addr %s378, 16
          %s380 = scalar_lea.vmem [#allocation3], %s379
        $region116: #{rttdetv2_forward.12} parent=111 // pred_fallthru
          _
      $region112: #{rttdetv2_forward.12} parent=5 // pred_fallthru
        _
    $region6: #{rttdetv2_forward.12} parent=1 // loop_footer
      %s13 = sadd.s32 1, %s9
    $region7: #{rttdetv2_forward.12} parent=1 // loop_footer_branch
      %8 = sbr.rel target = $region3
    $region8: #{rttdetv2_forward.12} parent=1 // loop_exit
      _

// kernel: rttdetv2_forward.14
$region0: #{rttdetv2_forward.14}
  #allocation0 [shape = 'u32[]', space=smem, size = 0x4, offset = 0x4, fixed_abs, tag = 'smem constant byte address 0x4 - core index']
  #allocation1 [shape = 'u32[144,128]{1,0:T(1,128)}', space=vmem, size = 0x12000, scoped, tag = 'internal scratch']
  %s0 = inlined_call_operand.vmem [shape: bf16[32,144], index: 0, kind: input, shape index: {}]
  %s1 = inlined_call_operand.vmem [shape: bf16[144,128], index: 1, kind: input, shape index: {}]
  %s2 = inlined_call_operand.vmem [shape: f32[32,1], index: 2, kind: input, shape index: {}]
  %s3 = inlined_call_operand.vmem [shape: bf16[32,128], index: 3, kind: output, shape index: {}]
  %s4 = sld [smem:[#allocation0]]
  $region22: #{rttdetv2_forward.14} parent=0
    _
  %s6 = ssub.s32 1, %s4
  %s7 = scalar_select 0, %s6, %s4
  // Predicated region
  $region2: #{rttdetv2_forward.14} parent=0 // pred_check
    _
  $region3: #{rttdetv2_forward.14} parent=0 // pred_check_branch
    %9 = sbr.rel (0) target = $region5
  $region4: #{rttdetv2_forward.14} parent=0 // pred_region
    _
  $region5: #{rttdetv2_forward.14} parent=0 // pred_fallthru
    _
  // Predicated region
  $region6: #{rttdetv2_forward.14} parent=0 // pred_check
    _
  $region7: #{rttdetv2_forward.14} parent=0 // pred_check_branch
    %11 = sbr.rel (0) target = $region9
  $region8: #{rttdetv2_forward.14} parent=0 // pred_region
    _
  $region9: #{rttdetv2_forward.14} parent=0 // pred_fallthru
    _
  // Predicated region
  $region10: #{rttdetv2_forward.14} parent=0 // pred_check
    _
  $region11: #{rttdetv2_forward.14} parent=0 // pred_check_branch
    %13 = sbr.rel (0) target = $region13
  $region12: #{rttdetv2_forward.14} parent=0 // pred_region
    _
  $region13: #{rttdetv2_forward.14} parent=0 // pred_fallthru
    _
  %v15 = vld [vmem:[%s0] sm:$0xff]
  %v16 = vld [vmem:[%s0 + $0x8] sm:$0xff]
  %v17 = vld [vmem:[%s0 + $0x10] sm:$0xff]
  %v18 = vld [vmem:[%s0 + $0x18] sm:$0xff]
  %v19 = vld [vmem:[%s1] sm:$0xf]
  %v20 = vld [vmem:[%s1 + $0x4] sm:$0xf]
  %v21 = vld [vmem:[%s1 + $0x8] sm:$0xf]
  %v22 = vld [vmem:[%s1 + $0xc] sm:$0xf]
  %v23 = vld [vmem:[%s1 + $0x10] sm:$0xf]
  %v24 = vld [vmem:[%s1 + $0x14] sm:$0xf]
  %v25 = vld [vmem:[%s1 + $0x18] sm:$0xf]
  %v26 = vld [vmem:[%s1 + $0x1c] sm:$0xf]
  %v27 = vld [vmem:[%s1 + $0x20] sm:$0xf]
  %v28 = vld [vmem:[%s1 + $0x24] sm:$0xf]
  %v29 = vld [vmem:[%s1 + $0x28] sm:$0xf]
  %v30 = vld [vmem:[%s1 + $0x2c] sm:$0xf]
  %v31 = vld [vmem:[%s1 + $0x30] sm:$0xf]
  %v32 = vld [vmem:[%s1 + $0x34] sm:$0xf]
  %v33 = vld [vmem:[%s1 + $0x38] sm:$0xf]
  %v34 = vld [vmem:[%s1 + $0x3c] sm:$0xf]
  %v35 = vld [vmem:[%s1 + $0x40] sm:$0xf]
  %v36 = vld [vmem:[%s1 + $0x44] sm:$0xf]
  %v37 = vld [vmem:[%s2] sm:$0xff]
  %v38 = vld [vmem:[%s2 + $0x8] sm:$0xff]
  %v39 = vld [vmem:[%s2 + $0x10] sm:$0xff]
  %v40 = vld [vmem:[%s2 + $0x18] sm:$0xff]
  %42 = vset.pattern.permute.xlu0 0
  %43 = vperm.xlu0 %42, %v37
  %v44 = vpop.permute.xlu0 %43
  %47 = vset.pattern.permute.xlu0 0
  %48 = vperm.xlu0 %47, %v38
  %v49 = vpop.permute.xlu0 %48
  %52 = vset.pattern.permute.xlu0 0
  %53 = vperm.xlu0 %52, %v39
  %v54 = vpop.permute.xlu0 %53
  %57 = vset.pattern.permute.xlu0 0
  %58 = vperm.xlu0 %57, %v40
  %v59 = vpop.permute.xlu0 %58
  %v65 = vunpack.c.l.b16 %v15
  %v66 = vunpack.c.h.b16 %v15
  %v67 = vunpack.c.l.b16 %v16
  %v68 = vunpack.c.h.b16 %v16
  %v69 = vunpack.c.l.b16 %v17
  %v70 = vunpack.c.h.b16 %v17
  %v71 = vunpack.c.l.b16 %v18
  %v72 = vunpack.c.h.b16 %v18
  %v73 = vpack.c.b16 %v67, %v65
  %v74 = vpack.c.b16 %v68, %v66
  %v75 = vpack.c.b16 %v71, %v69
  %v76 = vpack.c.b16 %v72, %v70
  %v97 = vunpack.c.l.b16 %v19
  %v98 = vunpack.c.l.b16 %v20
  %v99 = vunpack.c.l.b16 %v21
  %v100 = vunpack.c.l.b16 %v22
  %v101 = vunpack.c.l.b16 %v23
  %v102 = vunpack.c.l.b16 %v24
  %v103 = vunpack.c.l.b16 %v25
  %v104 = vunpack.c.l.b16 %v26
  %v105 = vunpack.c.l.b16 %v27
  %v106 = vunpack.c.l.b16 %v28
  %v107 = vunpack.c.l.b16 %v29
  %v108 = vunpack.c.l.b16 %v30
  %v109 = vunpack.c.l.b16 %v31
  %v110 = vunpack.c.l.b16 %v32
  %v111 = vunpack.c.l.b16 %v33
  %v112 = vunpack.c.l.b16 %v34
  %v113 = vunpack.c.l.b16 %v35
  %v114 = vunpack.c.l.b16 %v36
  %v115 = vpack.c.b16 %v98, %v97
  %v116 = vpack.c.b16 %v100, %v99
  %v117 = vpack.c.b16 %v102, %v101
  %v118 = vpack.c.b16 %v104, %v103
  %v119 = vpack.c.b16 %v106, %v105
  %v120 = vpack.c.b16 %v108, %v107
  %v121 = vpack.c.b16 %v110, %v109
  %v122 = vpack.c.b16 %v112, %v111
  %v123 = vpack.c.b16 %v114, %v113
  %vm133 = vcmask 130048
  %v135 = vsel %vm133, %v74, 0
  %v138 = vsel %vm133, %v76, 0
  %140 = vmatprep.subr.bf16.mxu0 0
  %141 = vmatpush1.bf16.msra.mxu0 %v115
  %142 = vmatprep.subr.bf16.mxu0 0
  %143 = vmatpush1.bf16.msra.mxu0 %v116
  %144 = vmatprep.subr.bf16.mxu0 0
  %145 = vmatpush1.bf16.msra.mxu0 %v117
  %146 = vmatprep.subr.bf16.mxu0 0
  %147 = vmatpush1.bf16.msra.mxu0 %v118
  %148 = vmatprep.subr.bf16.mxu0 0
  %149 = vmatpush1.bf16.msra.mxu0 %v119
  %150 = vmatprep.subr.bf16.mxu0 0
  %151 = vmatpush1.bf16.msra.mxu0 %v120
  %152 = vmatprep.subr.bf16.mxu0 0
  %153 = vmatpush1.bf16.msra.mxu0 %v121
  %154 = vmatprep.subr.bf16.mxu0 0
  %155 = vmatpush1.bf16.msra.mxu0 %v122
  %156 = vmatprep.subr.bf16.mxu0 0
  %157 = vmatpush1.bf16.msra.mxu0 %v123
  %158 = vmatprep.subr.bf16.mxu0 0
  %159 = vmatpush1.bf16.msra.mxu0 0
  %160 = vmatprep.subr.bf16.mxu0 0
  %161 = vmatpush1.bf16.msra.mxu0 0
  %162 = vmatprep.subr.bf16.mxu0 0
  %163 = vmatpush1.bf16.msra.mxu0 0
  %164 = vmatprep.subr.bf16.mxu0 0
  %165 = vmatpush1.bf16.msra.mxu0 0
  %166 = vmatprep.subr.bf16.mxu0 0
  %167 = vmatpush1.bf16.msra.mxu0 0
  %168 = vmatprep.subr.bf16.mxu0 0
  %169 = vmatpush1.bf16.msra.mxu0 0
  %170 = vmatprep.subr.bf16.mxu0 0
  %171 = vmatpush1.bf16.msra.mxu0 0
  %172 = vmatprep.mubr.bf16.mxu0 %v135
  %173 = vmatmul.mubr.bf16.gmra.mrb[0].mxu0 %v73
  %v174 = vpop.f32.mrb[0].mxu0
  %v175 = vadd.f32 %v44, %v174
  %v176 = vpop.f32.mrb[0].mxu0
  %v177 = vpop.f32.mrb[0].mxu0
  %v178 = vadd.f32 %v49, %v177
  %v179 = vpop.f32.mrb[0].mxu0
  %180 = vmatprep.mubr.bf16.mxu0 %v138
  %181 = vmatmul.mubr.bf16.gmra.mrb[0].mxu0 %v75
  %v182 = vpop.f32.mrb[0].mxu0
  %v183 = vadd.f32 %v54, %v182
  %v184 = vpop.f32.mrb[0].mxu0
  %v185 = vpop.f32.mrb[0].mxu0
  %v186 = vadd.f32 %v59, %v185
  %v187 = vpop.f32.mrb[0].mxu0
  %188 = vdwg.mxu0
  %v189 = vmax.f32 %v175, 0.0
  %v190 = vmax.f32 %v178, 0.0
  %v191 = vmax.f32 %v183, 0.0
  %v192 = vmax.f32 %v186, 0.0
  %v193 = vpack.c.bf16 %v190, %v189
  %v194 = vpack.c.bf16 %v192, %v191
  %v197 = vunpack.c.l.b16 %v193
  %v198 = vunpack.c.h.b16 %v193
  %v199 = vunpack.c.l.b16 %v194
  %v200 = vunpack.c.h.b16 %v194
  %v201 = vpack.c.b16 %v197, %v197
  %v202 = vpack.c.b16 %v198, %v198
  %v203 = vpack.c.b16 %v199, %v199
  %v204 = vpack.c.b16 %v200, %v200
  %209 = vst [vmem:[%s3] sm:$0xf] %v201
  %210 = vst [vmem:[%s3 + $0x4] sm:$0xf] %v202
  %211 = vst [vmem:[%s3 + $0x8] sm:$0xf] %v203
  %212 = vst [vmem:[%s3 + $0xc] sm:$0xf] %v204
  // Predicated region
  $region14: #{rttdetv2_forward.14} parent=0 // pred_check
    _
  $region15: #{rttdetv2_forward.14} parent=0 // pred_check_branch
    %214 = sbr.rel (0) target = $region17
  $region16: #{rttdetv2_forward.14} parent=0 // pred_region
    _
  $region17: #{rttdetv2_forward.14} parent=0 // pred_fallthru
    _
  // Predicated region
  $region18: #{rttdetv2_forward.14} parent=0 // pred_check
    _
  $region19: #{rttdetv2_forward.14} parent=0 // pred_check_branch
    %216 = sbr.rel (0) target = $region21
  $region20: #{rttdetv2_forward.14} parent=0 // pred_region
    _
  $region21: #{rttdetv2_forward.14} parent=0 // pred_fallthru
    _

// kernel: rttdetv2_forward.15
$region0: #{rttdetv2_forward.15}
  #allocation0 [shape = 'u32[]', space=smem, size = 0x4, offset = 0x4, fixed_abs, tag = 'smem constant byte address 0x4 - core index']
  #allocation1 [shape = 'u32[144,128]{1,0:T(1,128)}', space=vmem, size = 0x12000, scoped, tag = 'internal scratch']
  %s0 = inlined_call_operand.vmem [shape: bf16[64,288], index: 0, kind: input, shape index: {}]
  %s1 = inlined_call_operand.vmem [shape: bf16[288,128], index: 1, kind: input, shape index: {}]
  %s2 = inlined_call_operand.vmem [shape: f32[64,1], index: 2, kind: input, shape index: {}]
  %s3 = inlined_call_operand.vmem [shape: bf16[64,128], index: 3, kind: output, shape index: {}]
  %s4 = sld [smem:[#allocation0]]
  $region22: #{rttdetv2_forward.15} parent=0
    _
  %s6 = ssub.s32 1, %s4
  %s7 = scalar_select 0, %s6, %s4
  // Predicated region
  $region2: #{rttdetv2_forward.15} parent=0 // pred_check
    _
  $region3: #{rttdetv2_forward.15} parent=0 // pred_check_branch
    %9 = sbr.rel (0) target = $region5
  $region4: #{rttdetv2_forward.15} parent=0 // pred_region
    _
  $region5: #{rttdetv2_forward.15} parent=0 // pred_fallthru
    _
  // Predicated region
  $region6: #{rttdetv2_forward.15} parent=0 // pred_check
    _
  $region7: #{rttdetv2_forward.15} parent=0 // pred_check_branch
    %11 = sbr.rel (0) target = $region9
  $region8: #{rttdetv2_forward.15} parent=0 // pred_region
    _
  $region9: #{rttdetv2_forward.15} parent=0 // pred_fallthru
    _
  // Predicated region
  $region10: #{rttdetv2_forward.15} parent=0 // pred_check
    _
  $region11: #{rttdetv2_forward.15} parent=0 // pred_check_branch
    %13 = sbr.rel (0) target = $region13
  $region12: #{rttdetv2_forward.15} parent=0 // pred_region
    _
  $region13: #{rttdetv2_forward.15} parent=0 // pred_fallthru
    _
  %v15 = vld [vmem:[%s0] sm:$0xff]
  %v16 = vld [vmem:[%s0 + $0x8] sm:$0xf]
  %v17 = vld [vmem:[%s0 + $0xc] sm:$0xff]
  %v18 = vld [vmem:[%s0 + $0x14] sm:$0xf]
  %v19 = vld [vmem:[%s0 + $0x18] sm:$0xff]
  %v20 = vld [vmem:[%s0 + $0x20] sm:$0xf]
  %v21 = vld [vmem:[%s0 + $0x24] sm:$0xff]
  %v22 = vld [vmem:[%s0 + $0x2c] sm:$0xf]
  %v23 = vld [vmem:[%s0 + $0x30] sm:$0xff]
  %v24 = vld [vmem:[%s0 + $0x38] sm:$0xf]
  %v25 = vld [vmem:[%s0 + $0x3c] sm:$0xff]
  %v26 = vld [vmem:[%s0 + $0x44] sm:$0xf]
  %v27 = vld [vmem:[%s0 + $0x48] sm:$0xff]
  %v28 = vld [vmem:[%s0 + $0x50] sm:$0xf]
  %v29 = vld [vmem:[%s0 + $0x54] sm:$0xff]
  %v30 = vld [vmem:[%s0 + $0x5c] sm:$0xf]
  %v31 = vld [vmem:[%s1] sm:$0xf]
  %v32 = vld [vmem:[%s1 + $0x4] sm:$0xf]
  %v33 = vld [vmem:[%s1 + $0x8] sm:$0xf]
  %v34 = vld [vmem:[%s1 + $0xc] sm:$0xf]
  %v35 = vld [vmem:[%s1 + $0x10] sm:$0xf]
  %v36 = vld [vmem:[%s1 + $0x14] sm:$0xf]
  %v37 = vld [vmem:[%s1 + $0x18] sm:$0xf]
  %v38 = vld [vmem:[%s1 + $0x1c] sm:$0xf]
  %v39 = vld [vmem:[%s1 + $0x20] sm:$0xf]
  %v40 = vld [vmem:[%s1 + $0x24] sm:$0xf]
  %v41 = vld [vmem:[%s1 + $0x28] sm:$0xf]
  %v42 = vld [vmem:[%s1 + $0x2c] sm:$0xf]
  %v43 = vld [vmem:[%s1 + $0x30] sm:$0xf]
  %v44 = vld [vmem:[%s1 + $0x34] sm:$0xf]
  %v45 = vld [vmem:[%s1 + $0x38] sm:$0xf]
  %v46 = vld [vmem:[%s1 + $0x3c] sm:$0xf]
  %v47 = vld [vmem:[%s1 + $0x40] sm:$0xf]
  %v48 = vld [vmem:[%s1 + $0x44] sm:$0xf]
  %v49 = vld [vmem:[%s1 + $0x48] sm:$0xf]
  %v50 = vld [vmem:[%s1 + $0x4c] sm:$0xf]
  %v51 = vld [vmem:[%s1 + $0x50] sm:$0xf]
  %v52 = vld [vmem:[%s1 + $0x54] sm:$0xf]
  %v53 = vld [vmem:[%s1 + $0x58] sm:$0xf]
  %v54 = vld [vmem:[%s1 + $0x5c] sm:$0xf]
  %v55 = vld [vmem:[%s1 + $0x60] sm:$0xf]
  %v56 = vld [vmem:[%s1 + $0x64] sm:$0xf]
  %v57 = vld [vmem:[%s1 + $0x68] sm:$0xf]
  %v58 = vld [vmem:[%s1 + $0x6c] sm:$0xf]
  %v59 = vld [vmem:[%s1 + $0x70] sm:$0xf]
  %v60 = vld [vmem:[%s1 + $0x74] sm:$0xf]
  %v61 = vld [vmem:[%s1 + $0x78] sm:$0xf]
  %v62 = vld [vmem:[%s1 + $0x7c] sm:$0xf]
  %v63 = vld [vmem:[%s1 + $0x80] sm:$0xf]
  %v64 = vld [vmem:[%s1 + $0x84] sm:$0xf]
  %v65 = vld [vmem:[%s1 + $0x88] sm:$0xf]
  %v66 = vld [vmem:[%s1 + $0x8c] sm:$0xf]
  %v67 = vld [vmem:[%s2] sm:$0xff]
  %v68 = vld [vmem:[%s2 + $0x8] sm:$0xff]
  %v69 = vld [vmem:[%s2 + $0x10] sm:$0xff]
  %v70 = vld [vmem:[%s2 + $0x18] sm:$0xff]
  %v71 = vld [vmem:[%s2 + $0x20] sm:$0xff]
  %v72 = vld [vmem:[%s2 + $0x28] sm:$0xff]
  %v73 = vld [vmem:[%s2 + $0x30] sm:$0xff]
  %v74 = vld [vmem:[%s2 + $0x38] sm:$0xff]
  %76 = vset.pattern.permute.xlu0 0
  %77 = vperm.xlu0 %76, %v67
  %v78 = vpop.permute.xlu0 %77
  %81 = vset.pattern.permute.xlu0 0
  %82 = vperm.xlu0 %81, %v68
  %v83 = vpop.permute.xlu0 %82
  %86 = vset.pattern.permute.xlu0 0
  %87 = vperm.xlu0 %86, %v69
  %v88 = vpop.permute.xlu0 %87
  %91 = vset.pattern.permute.xlu0 0
  %92 = vperm.xlu0 %91, %v70
  %v93 = vpop.permute.xlu0 %92
  %96 = vset.pattern.permute.xlu0 0
  %97 = vperm.xlu0 %96, %v71
  %v98 = vpop.permute.xlu0 %97
  %101 = vset.pattern.permute.xlu0 0
  %102 = vperm.xlu0 %101, %v72
  %v103 = vpop.permute.xlu0 %102
  %106 = vset.pattern.permute.xlu0 0
  %107 = vperm.xlu0 %106, %v73
  %v108 = vpop.permute.xlu0 %107
  %111 = vset.pattern.permute.xlu0 0
  %112 = vperm.xlu0 %111, %v74
  %v113 = vpop.permute.xlu0 %112
  %v131 = vunpack.c.l.b16 %v15
  %v132 = vunpack.c.h.b16 %v15
  %v133 = vunpack.c.l.b16 %v16
  %v134 = vunpack.c.l.b16 %v17
  %v135 = vunpack.c.h.b16 %v17
  %v136 = vunpack.c.l.b16 %v18
  %v137 = vunpack.c.l.b16 %v19
  %v138 = vunpack.c.h.b16 %v19
  %v139 = vunpack.c.l.b16 %v20
  %v140 = vunpack.c.l.b16 %v21
  %v141 = vunpack.c.h.b16 %v21
  %v142 = vunpack.c.l.b16 %v22
  %v143 = vunpack.c.l.b16 %v23
  %v144 = vunpack.c.h.b16 %v23
  %v145 = vunpack.c.l.b16 %v24
  %v146 = vunpack.c.l.b16 %v25
  %v147 = vunpack.c.h.b16 %v25
  %v148 = vunpack.c.l.b16 %v26
  %v149 = vunpack.c.l.b16 %v27
  %v150 = vunpack.c.h.b16 %v27
  %v151 = vunpack.c.l.b16 %v28
  %v152 = vunpack.c.l.b16 %v29
  %v153 = vunpack.c.h.b16 %v29
  %v154 = vunpack.c.l.b16 %v30
  %v155 = vpack.c.b16 %v134, %v131
  %v156 = vpack.c.b16 %v135, %v132
  %v157 = vpack.c.b16 %v136, %v133
  %v158 = vpack.c.b16 %v140, %v137
  %v159 = vpack.c.b16 %v141, %v138
  %v160 = vpack.c.b16 %v142, %v139
  %v161 = vpack.c.b16 %v146, %v143
  %v162 = vpack.c.b16 %v147, %v144
  %v163 = vpack.c.b16 %v148, %v145
  %v164 = vpack.c.b16 %v152, %v149
  %v165 = vpack.c.b16 %v153, %v150
  %v166 = vpack.c.b16 %v154, %v151
  %v211 = vunpack.c.l.b16 %v31
  %v212 = vunpack.c.l.b16 %v32
  %v213 = vunpack.c.l.b16 %v33
  %v214 = vunpack.c.l.b16 %v34
  %v215 = vunpack.c.l.b16 %v35
  %v216 = vunpack.c.l.b16 %v36
  %v217 = vunpack.c.l.b16 %v37
  %v218 = vunpack.c.l.b16 %v38
  %v219 = vunpack.c.l.b16 %v39
  %v220 = vunpack.c.l.b16 %v40
  %v221 = vunpack.c.l.b16 %v41
  %v222 = vunpack.c.l.b16 %v42
  %v223 = vunpack.c.l.b16 %v43
  %v224 = vunpack.c.l.b16 %v44
  %v225 = vunpack.c.l.b16 %v45
  %v226 = vunpack.c.l.b16 %v46
  %v227 = vunpack.c.l.b16 %v47
  %v228 = vunpack.c.l.b16 %v48
  %v229 = vunpack.c.l.b16 %v49
  %v230 = vunpack.c.l.b16 %v50
  %v231 = vunpack.c.l.b16 %v51
  %v232 = vunpack.c.l.b16 %v52
  %v233 = vunpack.c.l.b16 %v53
  %v234 = vunpack.c.l.b16 %v54
  %v235 = vunpack.c.l.b16 %v55
  %v236 = vunpack.c.l.b16 %v56
  %v237 = vunpack.c.l.b16 %v57
  %v238 = vunpack.c.l.b16 %v58
  %v239 = vunpack.c.l.b16 %v59
  %v240 = vunpack.c.l.b16 %v60
  %v241 = vunpack.c.l.b16 %v61
  %v242 = vunpack.c.l.b16 %v62
  %v243 = vunpack.c.l.b16 %v63
  %v244 = vunpack.c.l.b16 %v64
  %v245 = vunpack.c.l.b16 %v65
  %v246 = vunpack.c.l.b16 %v66
  %v247 = vpack.c.b16 %v212, %v211
  %v248 = vpack.c.b16 %v214, %v213
  %v249 = vpack.c.b16 %v216, %v215
  %v250 = vpack.c.b16 %v218, %v217
  %v251 = vpack.c.b16 %v220, %v219
  %v252 = vpack.c.b16 %v222, %v221
  %v253 = vpack.c.b16 %v224, %v223
  %v254 = vpack.c.b16 %v226, %v225
  %v255 = vpack.c.b16 %v228, %v227
  %v256 = vpack.c.b16 %v230, %v229
  %v257 = vpack.c.b16 %v232, %v231
  %v258 = vpack.c.b16 %v234, %v233
  %v259 = vpack.c.b16 %v236, %v235
  %v260 = vpack.c.b16 %v238, %v237
  %v261 = vpack.c.b16 %v240, %v239
  %v262 = vpack.c.b16 %v242, %v241
  %v263 = vpack.c.b16 %v244, %v243
  %v264 = vpack.c.b16 %v246, %v245
  %vm283 = vcmask 261120
  %v285 = vsel %vm283, %v157, 0
  %v288 = vsel %vm283, %v160, 0
  %v291 = vsel %vm283, %v163, 0
  %v294 = vsel %vm283, %v166, 0
  %296 = vmatprep.subr.bf16.mxu0 0
  %297 = vmatpush1.bf16.msra.mxu0 %v247
  %298 = vmatprep.subr.bf16.mxu0 0
  %299 = vmatpush1.bf16.msra.mxu0 %v248
  %300 = vmatprep.subr.bf16.mxu0 0
  %301 = vmatpush1.bf16.msra.mxu0 %v249
  %302 = vmatprep.subr.bf16.mxu0 0
  %303 = vmatpush1.bf16.msra.mxu0 %v250
  %304 = vmatprep.subr.bf16.mxu0 0
  %305 = vmatpush1.bf16.msra.mxu0 %v251
  %306 = vmatprep.subr.bf16.mxu0 0
  %307 = vmatpush1.bf16.msra.mxu0 %v252
  %308 = vmatprep.subr.bf16.mxu0 0
  %309 = vmatpush1.bf16.msra.mxu0 %v253
  %310 = vmatprep.subr.bf16.mxu0 0
  %311 = vmatpush1.bf16.msra.mxu0 %v254
  %312 = vmatprep.subr.bf16.mxu0 0
  %313 = vmatpush1.bf16.msra.mxu0 %v255
  %314 = vmatprep.subr.bf16.mxu0 0
  %315 = vmatpush1.bf16.msra.mxu0 %v256
  %316 = vmatprep.subr.bf16.mxu0 0
  %317 = vmatpush1.bf16.msra.mxu0 %v257
  %318 = vmatprep.subr.bf16.mxu0 0
  %319 = vmatpush1.bf16.msra.mxu0 %v258
  %320 = vmatprep.subr.bf16.mxu0 0
  %321 = vmatpush1.bf16.msra.mxu0 %v259
  %322 = vmatprep.subr.bf16.mxu0 0
  %323 = vmatpush1.bf16.msra.mxu0 %v260
  %324 = vmatprep.subr.bf16.mxu0 0
  %325 = vmatpush1.bf16.msra.mxu0 %v261
  %326 = vmatprep.subr.bf16.mxu0 0
  %327 = vmatpush1.bf16.msra.mxu0 %v262
  %328 = vmatprep.mubr.bf16.mxu0 %v156
  %329 = vmatmul.mubr.bf16.gmra.mrb[0].mxu0 %v155
  %v330 = vpop.f32.mrb[0].mxu0
  %v331 = vadd.f32 %v78, %v330
  %v332 = vpop.f32.mrb[0].mxu0
  %v333 = vpop.f32.mrb[0].mxu0
  %v334 = vadd.f32 %v83, %v333
  %v335 = vpop.f32.mrb[0].mxu0
  %336 = vmatprep.mubr.bf16.mxu0 %v159
  %337 = vmatmul.mubr.bf16.gmra.mrb[0].mxu0 %v158
  %v338 = vpop.f32.mrb[0].mxu0
  %v339 = vadd.f32 %v88, %v338
  %v340 = vpop.f32.mrb[0].mxu0
  %v341 = vpop.f32.mrb[0].mxu0
  %v342 = vadd.f32 %v93, %v341
  %v343 = vpop.f32.mrb[0].mxu0
  %344 = vmatprep.mubr.bf16.mxu0 %v162
  %345 = vmatmul.mubr.bf16.gmra.mrb[0].mxu0 %v161
  %v346 = vpop.f32.mrb[0].mxu0
  %v347 = vadd.f32 %v98, %v346
  %v348 = vpop.f32.mrb[0].mxu0
  %v349 = vpop.f32.mrb[0].mxu0
  %v350 = vadd.f32 %v103, %v349
  %v351 = vpop.f32.mrb[0].mxu0
  %352 = vmatprep.mubr.bf16.mxu0 %v165
  %353 = vmatmul.mubr.bf16.gmra.mrb[0].mxu0 %v164
  %v354 = vpop.f32.mrb[0].mxu0
  %v355 = vadd.f32 %v108, %v354
  %v356 = vpop.f32.mrb[0].mxu0
  %v357 = vpop.f32.mrb[0].mxu0
  %v358 = vadd.f32 %v113, %v357
  %v359 = vpop.f32.mrb[0].mxu0
  %360 = vdwg.mxu0
  %361 = vmatprep.subr.bf16.mxu0 0
  %362 = vmatpush1.bf16.msra.mxu0 %v263
  %363 = vmatprep.subr.bf16.mxu0 0
  %364 = vmatpush1.bf16.msra.mxu0 %v264
  %365 = vmatprep.subr.bf16.mxu0 0
  %366 = vmatpush1.bf16.msra.mxu0 0
  %367 = vmatprep.subr.bf16.mxu0 0
  %368 = vmatpush1.bf16.msra.mxu0 0
  %369 = vmatprep.subr.bf16.mxu0 0
  %370 = vmatpush1.bf16.msra.mxu0 0
  %371 = vmatprep.subr.bf16.mxu0 0
  %372 = vmatpush1.bf16.msra.mxu0 0
  %373 = vmatprep.subr.bf16.mxu0 0
  %374 = vmatpush1.bf16.msra.mxu0 0
  %375 = vmatprep.subr.bf16.mxu0 0
  %376 = vmatpush1.bf16.msra.mxu0 0
  %377 = vmatprep.subr.bf16.mxu0 0
  %378 = vmatpush1.bf16.msra.mxu0 0
  %379 = vmatprep.subr.bf16.mxu0 0
  %380 = vmatpush1.bf16.msra.mxu0 0
  %381 = vmatprep.subr.bf16.mxu0 0
  %382 = vmatpush1.bf16.msra.mxu0 0
  %383 = vmatprep.subr.bf16.mxu0 0
  %384 = vmatpush1.bf16.msra.mxu0 0
  %385 = vmatprep.subr.bf16.mxu0 0
  %386 = vmatpush1.bf16.msra.mxu0 0
  %387 = vmatprep.subr.bf16.mxu0 0
  %388 = vmatpush1.bf16.msra.mxu0 0
  %389 = vmatprep.subr.bf16.mxu0 0
  %390 = vmatpush1.bf16.msra.mxu0 0
  %391 = vmatprep.subr.bf16.mxu0 0
  %392 = vmatpush1.bf16.msra.mxu0 0
  %393 = vmatprep.mubr.bf16.mxu0 0
  %394 = vmatmul.mubr.bf16.gmra.mrb[0].mxu0 %v285
  %v395 = vpop.f32.mrb[0].mxu0
  %v396 = vadd.f32 %v331, %v395
  %v397 = vpop.f32.mrb[0].mxu0
  %v398 = vpop.f32.mrb[0].mxu0
  %v399 = vadd.f32 %v334, %v398
  %v400 = vpop.f32.mrb[0].mxu0
  %401 = vmatprep.mubr.bf16.mxu0 0
  %402 = vmatmul.mubr.bf16.gmra.mrb[0].mxu0 %v288
  %v403 = vpop.f32.mrb[0].mxu0
  %v404 = vadd.f32 %v339, %v403
  %v405 = vpop.f32.mrb[0].mxu0
  %v406 = vpop.f32.mrb[0].mxu0
  %v407 = vadd.f32 %v342, %v406
  %v408 = vpop.f32.mrb[0].mxu0
  %409 = vmatprep.mubr.bf16.mxu0 0
  %410 = vmatmul.mubr.bf16.gmra.mrb[0].mxu0 %v291
  %v411 = vpop.f32.mrb[0].mxu0
  %v412 = vadd.f32 %v347, %v411
  %v413 = vpop.f32.mrb[0].mxu0
  %v414 = vpop.f32.mrb[0].mxu0
  %v415 = vadd.f32 %v350, %v414
  %v416 = vpop.f32.mrb[0].mxu0
  %417 = vmatprep.mubr.bf16.mxu0 0
  %418 = vmatmul.mubr.bf16.gmra.mrb[0].mxu0 %v294
  %v419 = vpop.f32.mrb[0].mxu0
  %v420 = vadd.f32 %v355, %v419
  %v421 = vpop.f32.mrb[0].mxu0
  %v422 = vpop.f32.mrb[0].mxu0
  %v423 = vadd.f32 %v358, %v422
  %v424 = vpop.f32.mrb[0].mxu0
  %425 = vdwg.mxu0
  %v426 = vmax.f32 %v396, 0.0
  %v427 = vmax.f32 %v399, 0.0
  %v428 = vmax.f32 %v404, 0.0
  %v429 = vmax.f32 %v407, 0.0
  %v430 = vmax.f32 %v412, 0.0
  %v431 = vmax.f32 %v415, 0.0
  %v432 = vmax.f32 %v420, 0.0
  %v433 = vmax.f32 %v423, 0.0
  %v434 = vpack.c.bf16 %v427, %v426
  %v435 = vpack.c.bf16 %v429, %v428
  %v436 = vpack.c.bf16 %v431, %v430
  %v437 = vpack.c.bf16 %v433, %v432
  %v442 = vunpack.c.l.b16 %v434
  %v443 = vunpack.c.h.b16 %v434
  %v444 = vunpack.c.l.b16 %v435
  %v445 = vunpack.c.h.b16 %v435
  %v446 = vunpack.c.l.b16 %v436
  %v447 = vunpack.c.h.b16 %v436
  %v448 = vunpack.c.l.b16 %v437
  %v449 = vunpack.c.h.b16 %v437
  %v450 = vpack.c.b16 %v442, %v442
  %v451 = vpack.c.b16 %v443, %v443
  %v452 = vpack.c.b16 %v444, %v444
  %v453 = vpack.c.b16 %v445, %v445
  %v454 = vpack.c.b16 %v446, %v446
  %v455 = vpack.c.b16 %v447, %v447
  %v456 = vpack.c.b16 %v448, %v448
  %v457 = vpack.c.b16 %v449, %v449
  %466 = vst [vmem:[%s3] sm:$0xf] %v450
  %467 = vst [vmem:[%s3 + $0x4] sm:$0xf] %v451
  %468 = vst [vmem:[%s3 + $0x8] sm:$0xf] %v452
  %469 = vst [vmem:[%s3 + $0xc] sm:$0xf] %v453
  %470 = vst [vmem:[%s3 + $0x10] sm:$0xf] %v454
  %471 = vst [vmem:[%s3 + $0x14] sm:$0xf] %v455
  %472 = vst [vmem:[%s3 + $0x18] sm:$0xf] %v456
  %473 = vst [vmem:[%s3 + $0x1c] sm:$0xf] %v457
  // Predicated region
  $region14: #{rttdetv2_forward.15} parent=0 // pred_check
    _
  $region15: #{rttdetv2_forward.15} parent=0 // pred_check_branch
    %475 = sbr.rel (0) target = $region17
  $region16: #{rttdetv2_forward.15} parent=0 // pred_region
    _
  $region17: #{rttdetv2_forward.15} parent=0 // pred_fallthru
    _
  // Predicated region
  $region18: #{rttdetv2_forward.15} parent=0 // pred_check
    _
  $region19: #{rttdetv2_forward.15} parent=0 // pred_check_branch
    %477 = sbr.rel (0) target = $region21
  $region20: #{rttdetv2_forward.15} parent=0 // pred_region
    _
  $region21: #{rttdetv2_forward.15} parent=0 // pred_fallthru
    _

// kernel: rttdetv2_forward.19
$region0: #{rttdetv2_forward.19}
  #allocation0 [shape = 'u32[]', space=smem, size = 0x4, offset = 0x4, fixed_abs, tag = 'smem constant byte address 0x4 - core index']
  #allocation1 [shape = 'u32[144,128]{1,0:T(1,128)}', space=vmem, size = 0x12000, scoped, tag = 'internal scratch']
  %s0 = inlined_call_operand.vmem [shape: bf16[16,32], index: 0, kind: input, shape index: {}]
  %s1 = inlined_call_operand.vmem [shape: bf16[32,128], index: 1, kind: input, shape index: {}]
  %s2 = inlined_call_operand.vmem [shape: f32[16,1], index: 2, kind: input, shape index: {}]
  %s3 = inlined_call_operand.vmem [shape: bf16[16,128], index: 3, kind: input, shape index: {}]
  %s4 = inlined_call_operand.vmem [shape: bf16[16,128], index: 4, kind: output, shape index: {}]
  %s5 = sld [smem:[#allocation0]]
  $region26: #{rttdetv2_forward.19} parent=0
    _
  %s7 = ssub.s32 1, %s5
  %s8 = scalar_select 0, %s7, %s5
  // Predicated region
  $region2: #{rttdetv2_forward.19} parent=0 // pred_check
    _
  $region3: #{rttdetv2_forward.19} parent=0 // pred_check_branch
    %10 = sbr.rel (0) target = $region5
  $region4: #{rttdetv2_forward.19} parent=0 // pred_region
    _
  $region5: #{rttdetv2_forward.19} parent=0 // pred_fallthru
    _
  // Predicated region
  $region6: #{rttdetv2_forward.19} parent=0 // pred_check
    _
  $region7: #{rttdetv2_forward.19} parent=0 // pred_check_branch
    %12 = sbr.rel (0) target = $region9
  $region8: #{rttdetv2_forward.19} parent=0 // pred_region
    _
  $region9: #{rttdetv2_forward.19} parent=0 // pred_fallthru
    _
  // Predicated region
  $region10: #{rttdetv2_forward.19} parent=0 // pred_check
    _
  $region11: #{rttdetv2_forward.19} parent=0 // pred_check_branch
    %14 = sbr.rel (0) target = $region13
  $region12: #{rttdetv2_forward.19} parent=0 // pred_region
    _
  $region13: #{rttdetv2_forward.19} parent=0 // pred_fallthru
    _
  // Predicated region
  $region14: #{rttdetv2_forward.19} parent=0 // pred_check
    _
  $region15: #{rttdetv2_forward.19} parent=0 // pred_check_branch
    %16 = sbr.rel (0) target = $region17
  $region16: #{rttdetv2_forward.19} parent=0 // pred_region
    _
  $region17: #{rttdetv2_forward.19} parent=0 // pred_fallthru
    _
  %v18 = vld [vmem:[%s0] sm:$0xf]
  %v19 = vld [vmem:[%s0 + $0x4] sm:$0xf]
  %v20 = vld [vmem:[%s1] sm:$0xf]
  %v21 = vld [vmem:[%s1 + $0x4] sm:$0xf]
  %v22 = vld [vmem:[%s1 + $0x8] sm:$0xf]
  %v23 = vld [vmem:[%s1 + $0xc] sm:$0xf]
  %v24 = vld [vmem:[%s2] sm:$0xff]
  %v25 = vld [vmem:[%s2 + $0x8] sm:$0xff]
  %27 = vset.pattern.permute.xlu0 0
  %28 = vperm.xlu0 %27, %v24
  %v29 = vpop.permute.xlu0 %28
  %32 = vset.pattern.permute.xlu0 0
  %33 = vperm.xlu0 %32, %v25
  %v34 = vpop.permute.xlu0 %33
  %v38 = vunpack.c.l.b16 %v18
  %v39 = vunpack.c.l.b16 %v19
  %v40 = vpack.c.b16 %v39, %v38
  %v45 = vunpack.c.l.b16 %v20
  %v46 = vunpack.c.l.b16 %v21
  %v47 = vunpack.c.l.b16 %v22
  %v48 = vunpack.c.l.b16 %v23
  %v49 = vpack.c.b16 %v46, %v45
  %v50 = vpack.c.b16 %v48, %v47
  %vm53 = vcmask 261120
  %v55 = vsel %vm53, %v40, 0
  %57 = vmatprep.subr.bf16.mxu0 0
  %58 = vmatpush1.bf16.msra.mxu0 %v49
  %59 = vmatprep.subr.bf16.mxu0 0
  %60 = vmatpush1.bf16.msra.mxu0 %v50
  %61 = vmatprep.subr.bf16.mxu0 0
  %62 = vmatpush1.bf16.msra.mxu0 0
  %63 = vmatprep.subr.bf16.mxu0 0
  %64 = vmatpush1.bf16.msra.mxu0 0
  %65 = vmatprep.subr.bf16.mxu0 0
  %66 = vmatpush1.bf16.msra.mxu0 0
  %67 = vmatprep.subr.bf16.mxu0 0
  %68 = vmatpush1.bf16.msra.mxu0 0
  %69 = vmatprep.subr.bf16.mxu0 0
  %70 = vmatpush1.bf16.msra.mxu0 0
  %71 = vmatprep.subr.bf16.mxu0 0
  %72 = vmatpush1.bf16.msra.mxu0 0
  %73 = vmatprep.subr.bf16.mxu0 0
  %74 = vmatpush1.bf16.msra.mxu0 0
  %75 = vmatprep.subr.bf16.mxu0 0
  %76 = vmatpush1.bf16.msra.mxu0 0
  %77 = vmatprep.subr.bf16.mxu0 0
  %78 = vmatpush1.bf16.msra.mxu0 0
  %79 = vmatprep.subr.bf16.mxu0 0
  %80 = vmatpush1.bf16.msra.mxu0 0
  %81 = vmatprep.subr.bf16.mxu0 0
  %82 = vmatpush1.bf16.msra.mxu0 0
  %83 = vmatprep.subr.bf16.mxu0 0
  %84 = vmatpush1.bf16.msra.mxu0 0
  %85 = vmatprep.subr.bf16.mxu0 0
  %86 = vmatpush1.bf16.msra.mxu0 0
  %87 = vmatprep.subr.bf16.mxu0 0
  %88 = vmatpush1.bf16.msra.mxu0 0
  %89 = vmatprep.mubr.bf16.mxu0 0
  %90 = vmatmul.mubr.bf16.gmra.mrb[0].mxu0 %v55
  %v91 = vpop.f32.mrb[0].mxu0
  %v92 = vadd.f32 %v29, %v91
  %v93 = vpop.f32.mrb[0].mxu0
  %v94 = vpop.f32.mrb[0].mxu0
  %v95 = vadd.f32 %v34, %v94
  %v96 = vpop.f32.mrb[0].mxu0
  %97 = vdwg.mxu0
  %v98 = vld [vmem:[%s3] sm:$0xf]
  %v99 = vld [vmem:[%s3 + $0x4] sm:$0xf]
  %v100 = vunpack.c.l.bf16 %v98
  %v101 = vunpack.c.l.bf16 %v99
  %v102 = vadd.f32 %v92, %v100
  %v103 = vadd.f32 %v95, %v101
  %v104 = vpack.c.bf16 %v103, %v102
  %v106 = vunpack.c.l.b16 %v104
  %v107 = vunpack.c.h.b16 %v104
  %v108 = vpack.c.b16 %v106, %v106
  %v109 = vpack.c.b16 %v107, %v107
  %112 = vst [vmem:[%s4] sm:$0xf] %v108
  %113 = vst [vmem:[%s4 + $0x4] sm:$0xf] %v109
  // Predicated region
  $region18: #{rttdetv2_forward.19} parent=0 // pred_check
    _
  $region19: #{rttdetv2_forward.19} parent=0 // pred_check_branch
    %115 = sbr.rel (0) target = $region21
  $region20: #{rttdetv2_forward.19} parent=0 // pred_region
    _
  $region21: #{rttdetv2_forward.19} parent=0 // pred_fallthru
    _
  // Predicated region
  $region22: #{rttdetv2_forward.19} parent=0 // pred_check
    _
  $region23: #{rttdetv2_forward.19} parent=0 // pred_check_branch
    %117 = sbr.rel (0) target = $region25
  $region24: #{rttdetv2_forward.19} parent=0 // pred_region
    _
  $region25: #{rttdetv2_forward.19} parent=0 // pred_fallthru
    _

// kernel: rttdetv2_forward.16
$region0: #{rttdetv2_forward.16}
  #allocation0 [shape = 'u32[]', space=smem, size = 0x4, offset = 0x4, fixed_abs, tag = 'smem constant byte address 0x4 - core index']
  #allocation1 [shape = 'u32[144,128]{1,0:T(1,128)}', space=vmem, size = 0x12000, scoped, tag = 'internal scratch']
  %s0 = inlined_call_operand.vmem [shape: bf16[32,64], index: 0, kind: input, shape index: {}]
  %s1 = inlined_call_operand.vmem [shape: bf16[64,128], index: 1, kind: input, shape index: {}]
  %s2 = inlined_call_operand.vmem [shape: f32[32,1], index: 2, kind: input, shape index: {}]
  %s3 = inlined_call_operand.vmem [shape: bf16[32,128], index: 3, kind: output, shape index: {}]
  %s4 = sld [smem:[#allocation0]]
  $region22: #{rttdetv2_forward.16} parent=0
    _
  %s6 = ssub.s32 1, %s4
  %s7 = scalar_select 0, %s6, %s4
  // Predicated region
  $region2: #{rttdetv2_forward.16} parent=0 // pred_check
    _
  $region3: #{rttdetv2_forward.16} parent=0 // pred_check_branch
    %9 = sbr.rel (0) target = $region5
  $region4: #{rttdetv2_forward.16} parent=0 // pred_region
    _
  $region5: #{rttdetv2_forward.16} parent=0 // pred_fallthru
    _
  // Predicated region
  $region6: #{rttdetv2_forward.16} parent=0 // pred_check
    _
  $region7: #{rttdetv2_forward.16} parent=0 // pred_check_branch
    %11 = sbr.rel (0) target = $region9
  $region8: #{rttdetv2_forward.16} parent=0 // pred_region
    _
  $region9: #{rttdetv2_forward.16} parent=0 // pred_fallthru
    _
  // Predicated region
  $region10: #{rttdetv2_forward.16} parent=0 // pred_check
    _
  $region11: #{rttdetv2_forward.16} parent=0 // pred_check_branch
    %13 = sbr.rel (0) target = $region13
  $region12: #{rttdetv2_forward.16} parent=0 // pred_region
    _
  $region13: #{rttdetv2_forward.16} parent=0 // pred_fallthru
    _
  %v15 = vld [vmem:[%s0] sm:$0xf]
  %v16 = vld [vmem:[%s0 + $0x4] sm:$0xf]
  %v17 = vld [vmem:[%s0 + $0x8] sm:$0xf]
  %v18 = vld [vmem:[%s0 + $0xc] sm:$0xf]
  %v19 = vld [vmem:[%s1] sm:$0xf]
  %v20 = vld [vmem:[%s1 + $0x4] sm:$0xf]
  %v21 = vld [vmem:[%s1 + $0x8] sm:$0xf]
  %v22 = vld [vmem:[%s1 + $0xc] sm:$0xf]
  %v23 = vld [vmem:[%s1 + $0x10] sm:$0xf]
  %v24 = vld [vmem:[%s1 + $0x14] sm:$0xf]
  %v25 = vld [vmem:[%s1 + $0x18] sm:$0xf]
  %v26 = vld [vmem:[%s1 + $0x1c] sm:$0xf]
  %v27 = vld [vmem:[%s2] sm:$0xff]
  %v28 = vld [vmem:[%s2 + $0x8] sm:$0xff]
  %v29 = vld [vmem:[%s2 + $0x10] sm:$0xff]
  %v30 = vld [vmem:[%s2 + $0x18] sm:$0xff]
  %32 = vset.pattern.permute.xlu0 0
  %33 = vperm.xlu0 %32, %v27
  %v34 = vpop.permute.xlu0 %33
  %37 = vset.pattern.permute.xlu0 0
  %38 = vperm.xlu0 %37, %v28
  %v39 = vpop.permute.xlu0 %38
  %42 = vset.pattern.permute.xlu0 0
  %43 = vperm.xlu0 %42, %v29
  %v44 = vpop.permute.xlu0 %43
  %47 = vset.pattern.permute.xlu0 0
  %48 = vperm.xlu0 %47, %v30
  %v49 = vpop.permute.xlu0 %48
  %v55 = vunpack.c.l.b16 %v15
  %v56 = vunpack.c.l.b16 %v16
  %v57 = vunpack.c.l.b16 %v17
  %v58 = vunpack.c.l.b16 %v18
  %v59 = vpack.c.b16 %v56, %v55
  %v60 = vpack.c.b16 %v58, %v57
  %v69 = vunpack.c.l.b16 %v19
  %v70 = vunpack.c.l.b16 %v20
  %v71 = vunpack.c.l.b16 %v21
  %v72 = vunpack.c.l.b16 %v22
  %v73 = vunpack.c.l.b16 %v23
  %v74 = vunpack.c.l.b16 %v24
  %v75 = vunpack.c.l.b16 %v25
  %v76 = vunpack.c.l.b16 %v26
  %v77 = vpack.c.b16 %v70, %v69
  %v78 = vpack.c.b16 %v72, %v71
  %v79 = vpack.c.b16 %v74, %v73
  %v80 = vpack.c.b16 %v76, %v75
  %vm85 = vcmask 523264
  %v87 = vsel %vm85, %v59, 0
  %v90 = vsel %vm85, %v60, 0
  %92 = vmatprep.subr.bf16.mxu0 0
  %93 = vmatpush1.bf16.msra.mxu0 %v77
  %94 = vmatprep.subr.bf16.mxu0 0
  %95 = vmatpush1.bf16.msra.mxu0 %v78
  %96 = vmatprep.subr.bf16.mxu0 0
  %97 = vmatpush1.bf16.msra.mxu0 %v79
  %98 = vmatprep.subr.bf16.mxu0 0
  %99 = vmatpush1.bf16.msra.mxu0 %v80
  %100 = vmatprep.subr.bf16.mxu0 0
  %101 = vmatpush1.bf16.msra.mxu0 0
  %102 = vmatprep.subr.bf16.mxu0 0
  %103 = vmatpush1.bf16.msra.mxu0 0
  %104 = vmatprep.subr.bf16.mxu0 0
  %105 = vmatpush1.bf16.msra.mxu0 0
  %106 = vmatprep.subr.bf16.mxu0 0
  %107 = vmatpush1.bf16.msra.mxu0 0
  %108 = vmatprep.subr.bf16.mxu0 0
  %109 = vmatpush1.bf16.msra.mxu0 0
  %110 = vmatprep.subr.bf16.mxu0 0
  %111 = vmatpush1.bf16.msra.mxu0 0
  %112 = vmatprep.subr.bf16.mxu0 0
  %113 = vmatpush1.bf16.msra.mxu0 0
  %114 = vmatprep.subr.bf16.mxu0 0
  %115 = vmatpush1.bf16.msra.mxu0 0
  %116 = vmatprep.subr.bf16.mxu0 0
  %117 = vmatpush1.bf16.msra.mxu0 0
  %118 = vmatprep.subr.bf16.mxu0 0
  %119 = vmatpush1.bf16.msra.mxu0 0
  %120 = vmatprep.subr.bf16.mxu0 0
  %121 = vmatpush1.bf16.msra.mxu0 0
  %122 = vmatprep.subr.bf16.mxu0 0
  %123 = vmatpush1.bf16.msra.mxu0 0
  %124 = vmatprep.mubr.bf16.mxu0 0
  %125 = vmatmul.mubr.bf16.gmra.mrb[0].mxu0 %v87
  %v126 = vpop.f32.mrb[0].mxu0
  %v127 = vadd.f32 %v34, %v126
  %v128 = vpop.f32.mrb[0].mxu0
  %v129 = vpop.f32.mrb[0].mxu0
  %v130 = vadd.f32 %v39, %v129
  %v131 = vpop.f32.mrb[0].mxu0
  %132 = vmatprep.mubr.bf16.mxu0 0
  %133 = vmatmul.mubr.bf16.gmra.mrb[0].mxu0 %v90
  %v134 = vpop.f32.mrb[0].mxu0
  %v135 = vadd.f32 %v44, %v134
  %v136 = vpop.f32.mrb[0].mxu0
  %v137 = vpop.f32.mrb[0].mxu0
  %v138 = vadd.f32 %v49, %v137
  %v139 = vpop.f32.mrb[0].mxu0
  %140 = vdwg.mxu0
  %v141 = vmax.f32 %v127, 0.0
  %v142 = vmax.f32 %v130, 0.0
  %v143 = vmax.f32 %v135, 0.0
  %v144 = vmax.f32 %v138, 0.0
  %v145 = vpack.c.bf16 %v142, %v141
  %v146 = vpack.c.bf16 %v144, %v143
  %v149 = vunpack.c.l.b16 %v145
  %v150 = vunpack.c.h.b16 %v145
  %v151 = vunpack.c.l.b16 %v146
  %v152 = vunpack.c.h.b16 %v146
  %v153 = vpack.c.b16 %v149, %v149
  %v154 = vpack.c.b16 %v150, %v150
  %v155 = vpack.c.b16 %v151, %v151
  %v156 = vpack.c.b16 %v152, %v152
  %161 = vst [vmem:[%s3] sm:$0xf] %v153
  %162 = vst [vmem:[%s3 + $0x4] sm:$0xf] %v154
  %163 = vst [vmem:[%s3 + $0x8] sm:$0xf] %v155
  %164 = vst [vmem:[%s3 + $0xc] sm:$0xf] %v156
  // Predicated region
  $region14: #{rttdetv2_forward.16} parent=0 // pred_check
    _
  $region15: #{rttdetv2_forward.16} parent=0 // pred_check_branch
    %166 = sbr.rel (0) target = $region17
  $region16: #{rttdetv2_forward.16} parent=0 // pred_region
    _
  $region17: #{rttdetv2_forward.16} parent=0 // pred_fallthru
    _
  // Predicated region
  $region18: #{rttdetv2_forward.16} parent=0 // pred_check
    _
  $region19: #{rttdetv2_forward.16} parent=0 // pred_check_branch
    %168 = sbr.rel (0) target = $region21
  $region20: #{rttdetv2_forward.16} parent=0 // pred_region
    _
  $region21: #{rttdetv2_forward.16} parent=0 // pred_fallthru
    _

// kernel: rttdetv2_forward.17
$region0: #{rttdetv2_forward.17}
  #allocation0 [shape = 'u32[]', space=smem, size = 0x4, offset = 0x4, fixed_abs, tag = 'smem constant byte address 0x4 - core index']
  #allocation1 [shape = 'u32[144,128]{1,0:T(1,128)}', space=vmem, size = 0x12000, scoped, tag = 'internal scratch']
  %s0 = inlined_call_operand.vmem [shape: bf16[16,32], index: 0, kind: input, shape index: {}]
  %s1 = inlined_call_operand.vmem [shape: bf16[32,128], index: 1, kind: input, shape index: {}]
  %s2 = inlined_call_operand.vmem [shape: f32[16,1], index: 2, kind: input, shape index: {}]
  %s3 = inlined_call_operand.vmem [shape: bf16[16,128], index: 3, kind: output, shape index: {}]
  %s4 = sld [smem:[#allocation0]]
  $region22: #{rttdetv2_forward.17} parent=0
    _
  %s6 = ssub.s32 1, %s4
  %s7 = scalar_select 0, %s6, %s4
  // Predicated region
  $region2: #{rttdetv2_forward.17} parent=0 // pred_check
    _
  $region3: #{rttdetv2_forward.17} parent=0 // pred_check_branch
    %9 = sbr.rel (0) target = $region5
  $region4: #{rttdetv2_forward.17} parent=0 // pred_region
    _
  $region5: #{rttdetv2_forward.17} parent=0 // pred_fallthru
    _
  // Predicated region
  $region6: #{rttdetv2_forward.17} parent=0 // pred_check
    _
  $region7: #{rttdetv2_forward.17} parent=0 // pred_check_branch
    %11 = sbr.rel (0) target = $region9
  $region8: #{rttdetv2_forward.17} parent=0 // pred_region
    _
  $region9: #{rttdetv2_forward.17} parent=0 // pred_fallthru
    _
  // Predicated region
  $region10: #{rttdetv2_forward.17} parent=0 // pred_check
    _
  $region11: #{rttdetv2_forward.17} parent=0 // pred_check_branch
    %13 = sbr.rel (0) target = $region13
  $region12: #{rttdetv2_forward.17} parent=0 // pred_region
    _
  $region13: #{rttdetv2_forward.17} parent=0 // pred_fallthru
    _
  %v15 = vld [vmem:[%s0] sm:$0xf]
  %v16 = vld [vmem:[%s0 + $0x4] sm:$0xf]
  %v17 = vld [vmem:[%s1] sm:$0xf]
  %v18 = vld [vmem:[%s1 + $0x4] sm:$0xf]
  %v19 = vld [vmem:[%s1 + $0x8] sm:$0xf]
  %v20 = vld [vmem:[%s1 + $0xc] sm:$0xf]
  %v21 = vld [vmem:[%s2] sm:$0xff]
  %v22 = vld [vmem:[%s2 + $0x8] sm:$0xff]
  %24 = vset.pattern.permute.xlu0 0
  %25 = vperm.xlu0 %24, %v21
  %v26 = vpop.permute.xlu0 %25
  %29 = vset.pattern.permute.xlu0 0
  %30 = vperm.xlu0 %29, %v22
  %v31 = vpop.permute.xlu0 %30
  %v35 = vunpack.c.l.b16 %v15
  %v36 = vunpack.c.l.b16 %v16
  %v37 = vpack.c.b16 %v36, %v35
  %v42 = vunpack.c.l.b16 %v17
  %v43 = vunpack.c.l.b16 %v18
  %v44 = vunpack.c.l.b16 %v19
  %v45 = vunpack.c.l.b16 %v20
  %v46 = vpack.c.b16 %v43, %v42
  %v47 = vpack.c.b16 %v45, %v44
  %vm50 = vcmask 261120
  %v52 = vsel %vm50, %v37, 0
  %54 = vmatprep.subr.bf16.mxu0 0
  %55 = vmatpush1.bf16.msra.mxu0 %v46
  %56 = vmatprep.subr.bf16.mxu0 0
  %57 = vmatpush1.bf16.msra.mxu0 %v47
  %58 = vmatprep.subr.bf16.mxu0 0
  %59 = vmatpush1.bf16.msra.mxu0 0
  %60 = vmatprep.subr.bf16.mxu0 0
  %61 = vmatpush1.bf16.msra.mxu0 0
  %62 = vmatprep.subr.bf16.mxu0 0
  %63 = vmatpush1.bf16.msra.mxu0 0
  %64 = vmatprep.subr.bf16.mxu0 0
  %65 = vmatpush1.bf16.msra.mxu0 0
  %66 = vmatprep.subr.bf16.mxu0 0
  %67 = vmatpush1.bf16.msra.mxu0 0
  %68 = vmatprep.subr.bf16.mxu0 0
  %69 = vmatpush1.bf16.msra.mxu0 0
  %70 = vmatprep.subr.bf16.mxu0 0
  %71 = vmatpush1.bf16.msra.mxu0 0
  %72 = vmatprep.subr.bf16.mxu0 0
  %73 = vmatpush1.bf16.msra.mxu0 0
  %74 = vmatprep.subr.bf16.mxu0 0
  %75 = vmatpush1.bf16.msra.mxu0 0
  %76 = vmatprep.subr.bf16.mxu0 0
  %77 = vmatpush1.bf16.msra.mxu0 0
  %78 = vmatprep.subr.bf16.mxu0 0
  %79 = vmatpush1.bf16.msra.mxu0 0
  %80 = vmatprep.subr.bf16.mxu0 0
  %81 = vmatpush1.bf16.msra.mxu0 0
  %82 = vmatprep.subr.bf16.mxu0 0
  %83 = vmatpush1.bf16.msra.mxu0 0
  %84 = vmatprep.subr.bf16.mxu0 0
  %85 = vmatpush1.bf16.msra.mxu0 0
  %86 = vmatprep.mubr.bf16.mxu0 0
  %87 = vmatmul.mubr.bf16.gmra.mrb[0].mxu0 %v52
  %v88 = vpop.f32.mrb[0].mxu0
  %v89 = vadd.f32 %v26, %v88
  %v90 = vpop.f32.mrb[0].mxu0
  %v91 = vpop.f32.mrb[0].mxu0
  %v92 = vadd.f32 %v31, %v91
  %v93 = vpop.f32.mrb[0].mxu0
  %94 = vdwg.mxu0
  %v95 = vpack.c.bf16 %v92, %v89
  %v97 = vunpack.c.l.b16 %v95
  %v98 = vunpack.c.h.b16 %v95
  %v99 = vpack.c.b16 %v97, %v97
  %v100 = vpack.c.b16 %v98, %v98
  %103 = vst [vmem:[%s3] sm:$0xf] %v99
  %104 = vst [vmem:[%s3 + $0x4] sm:$0xf] %v100
  // Predicated region
  $region14: #{rttdetv2_forward.17} parent=0 // pred_check
    _
  $region15: #{rttdetv2_forward.17} parent=0 // pred_check_branch
    %106 = sbr.rel (0) target = $region17
  $region16: #{rttdetv2_forward.17} parent=0 // pred_region
    _
  $region17: #{rttdetv2_forward.17} parent=0 // pred_fallthru
    _
  // Predicated region
  $region18: #{rttdetv2_forward.17} parent=0 // pred_check
    _
  $region19: #{rttdetv2_forward.17} parent=0 // pred_check_branch
    %108 = sbr.rel (0) target = $region21
  $region20: #{rttdetv2_forward.17} parent=0 // pred_region
    _
  $region21: #{rttdetv2_forward.17} parent=0 // pred_fallthru
    _

// kernel: rttdetv2_forward.20
$region0: #{rttdetv2_forward.20}
  #allocation0 [shape = 'u32[]', space=smem, size = 0x4, offset = 0x4, fixed_abs, tag = 'smem constant byte address 0x4 - core index']
  #allocation1 [shape = 'u32[144,128]{1,0:T(1,128)}', space=vmem, size = 0x12000, scoped, tag = 'internal scratch']
  %s0 = inlined_call_operand.vmem [shape: f32[8,4], index: 0, kind: input, shape index: {}]
  %s1 = inlined_call_operand.vmem [shape: f32[4,8], index: 1, kind: input, shape index: {}]
  %s2 = inlined_call_operand.vmem [shape: bf16[32,4,4], index: 2, kind: input, shape index: {}]
  %s3 = inlined_call_operand.vmem [shape: bf16[32,8,8], index: 3, kind: output, shape index: {}]
  %s4 = sld [smem:[#allocation0]]
  $region45: #{rttdetv2_forward.20} parent=0
    _
  %s6 = ssub.s32 1, %s4
  %s7 = scalar_select 0, %s6, %s4
  loop: start=0, step=1, limit=6
  $region2: #{rttdetv2_forward.20} parent=0 // loop_pre_header
    _
  $region3: #{rttdetv2_forward.20} parent=0 // loop_header
    %s9 = sphi 0, %s13
    %p10 = scmp.ge.s32.totalorder %s9, 6
    %s17 = sphi 0, %s17
    %s19 = sphi 0, %s17
    %s20 = sphi 0, %s19
    %s34 = sphi 0, %s20
    %s38 = sphi 0, %s38
    %s40 = sphi 0, %s38
    %s41 = sphi 0, %s40
    %s55 = sphi 0, %s41
    %s61 = sphi 0, %s63
    %s64 = sphi 0, %s61
    %s65 = sphi 0, %s64
    %s81 = sphi 0, %s65
    %s87 = sphi 0, %s89
    %s90 = sphi 0, %s87
    %s91 = sphi 0, %s90
    %s107 = sphi 0, %s91
  $region4: #{rttdetv2_forward.20} parent=0 // loop_header_branch
    %12 = sbr.rel (%p10) target = $region8
  $region5: #{rttdetv2_forward.20} parent=0 // loop_body
    %s14 = ssub.s32 %s9, 1
    %s15 = ssub.s32 %s9, 2
    %s16 = sadd.s32 %s9, 1
    %s18 = sadd.s32 %s17, 1
    %p21 = scmp.eq.s32.totalorder %s9, 3
    %p22 = scmp.ne.s32.totalorder %s17, %s19
    %p23 = scmp.eq.s32.totalorder %s9, 0
    %p24 = por %p22, %p23
    %p25 = scmp.ne.s32.totalorder %s17, %s19
    %p26 = scmp.eq.s32.totalorder %s14, 3
    %p27 = por %p25, %p26
    %p28 = scmp.ne.s32.totalorder %s19, %s20
    %p29 = scmp.eq.s32.totalorder %s14, 0
    %p30 = por %p28, %p29
    %p31 = scmp.ne.s32.totalorder %s19, %s20
    %p32 = scmp.eq.s32.totalorder %s15, 3
    %p33 = por %p31, %p32
    %p35 = scmp.ne.s32.totalorder %s20, %s34
    %p36 = scmp.eq.s32.totalorder %s15, 0
    %p37 = por %p35, %p36
    %s39 = sadd.s32 %s38, 1
    %p42 = scmp.eq.s32.totalorder %s9, 3
    %p43 = scmp.ne.s32.totalorder %s38, %s40
    %p44 = scmp.eq.s32.totalorder %s9, 0
    %p45 = por %p43, %p44
    %p46 = scmp.ne.s32.totalorder %s38, %s40
    %p47 = scmp.eq.s32.totalorder %s14, 3
    %p48 = por %p46, %p47
    %p49 = scmp.ne.s32.totalorder %s40, %s41
    %p50 = scmp.eq.s32.totalorder %s14, 0
    %p51 = por %p49, %p50
    %p52 = scmp.ne.s32.totalorder %s40, %s41
    %p53 = scmp.eq.s32.totalorder %s15, 3
    %p54 = por %p52, %p53
    %p56 = scmp.ne.s32.totalorder %s41, %s55
    %p57 = scmp.eq.s32.totalorder %s15, 0
    %p58 = por %p56, %p57
    %s59 = ssub.s32 %s9, %s16
    %p60 = scmp.eq.s32.totalorder %s59, 0
    %s62 = sadd.s32 %s61, 1
    %s63 = scalar_select %p60, %s61, %s62
    %p66 = pneg %p60
    %p67 = scmp.eq.s32.totalorder %s9, 3
    %p68 = por %p66, %p67
    %p69 = scmp.ne.s32.totalorder %s61, %s64
    %p70 = scmp.eq.s32.totalorder %s9, 0
    %p71 = por %p69, %p70
    %p72 = scmp.ne.s32.totalorder %s61, %s64
    %p73 = scmp.eq.s32.totalorder %s14, 3
    %p74 = por %p72, %p73
    %p75 = scmp.ne.s32.totalorder %s64, %s65
    %p76 = scmp.eq.s32.totalorder %s14, 0
    %p77 = por %p75, %p76
    %p78 = scmp.ne.s32.totalorder %s64, %s65
    %p79 = scmp.eq.s32.totalorder %s15, 3
    %p80 = por %p78, %p79
    %p82 = scmp.ne.s32.totalorder %s65, %s81
    %p83 = scmp.eq.s32.totalorder %s15, 0
    %p84 = por %p82, %p83
    %s85 = ssub.s32 %s9, %s16
    %p86 = scmp.eq.s32.totalorder %s85, 0
    %s88 = sadd.s32 %s87, 1
    %s89 = scalar_select %p86, %s87, %s88
    %p92 = pneg %p86
    %p93 = scmp.eq.s32.totalorder %s9, 3
    %p94 = por %p92, %p93
    %p95 = scmp.ne.s32.totalorder %s87, %s90
    %p96 = scmp.eq.s32.totalorder %s9, 0
    %p97 = por %p95, %p96
    %p98 = scmp.ne.s32.totalorder %s87, %s90
    %p99 = scmp.eq.s32.totalorder %s14, 3
    %p100 = por %p98, %p99
    %p101 = scmp.ne.s32.totalorder %s90, %s91
    %p102 = scmp.eq.s32.totalorder %s14, 0
    %p103 = por %p101, %p102
    %p104 = scmp.ne.s32.totalorder %s90, %s91
    %p105 = scmp.eq.s32.totalorder %s15, 3
    %p106 = por %p104, %p105
    %p108 = scmp.ne.s32.totalorder %s91, %s107
    %p109 = scmp.eq.s32.totalorder %s15, 0
    %p110 = por %p108, %p109
    %p111 = scmp.le.s32.totalorder 1, %s9
    %p112 = scmp.lt.s32.totalorder %s9, 5
    %p113 = pnand %p111, %p112
    %p114 = pneg %p113
    // Predicated region
    $region9: #{rttdetv2_forward.20} parent=5 // pred_check
      _
    $region10: #{rttdetv2_forward.20} parent=5 // pred_check_branch
      %116 = sbr.rel (%p113) target = $region12
    $region11: #{rttdetv2_forward.20} parent=5 // pred_region
      %s117 = ssub.s32 %s9, 1
      // Predicated region
      $region13: #{rttdetv2_forward.20} parent=11 // pred_check
        %p118 = pneg %p30
      $region14: #{rttdetv2_forward.20} parent=11 // pred_check_branch
        %120 = sbr.rel (%p118) target = $region16
      $region15: #{rttdetv2_forward.20} parent=11 // pred_region
        _
      $region16: #{rttdetv2_forward.20} parent=11 // pred_fallthru
        _
      // Predicated region
      $region17: #{rttdetv2_forward.20} parent=11 // pred_check
        %p121 = pneg %p51
      $region18: #{rttdetv2_forward.20} parent=11 // pred_check_branch
        %123 = sbr.rel (%p121) target = $region20
      $region19: #{rttdetv2_forward.20} parent=11 // pred_region
        _
      $region20: #{rttdetv2_forward.20} parent=11 // pred_fallthru
        _
    $region12: #{rttdetv2_forward.20} parent=5 // pred_fallthru
      _
    %p124 = scmp.lt.s32.totalorder %s9, 4
    // Predicated region
    $region21: #{rttdetv2_forward.20} parent=5 // pred_check
      %p125 = pneg %p124
    $region22: #{rttdetv2_forward.20} parent=5 // pred_check_branch
      %127 = sbr.rel (%p125) target = $region24
    $region23: #{rttdetv2_forward.20} parent=5 // pred_region
      // Predicated region
      $region25: #{rttdetv2_forward.20} parent=23 // pred_check
        %p128 = pneg %p71
      $region26: #{rttdetv2_forward.20} parent=23 // pred_check_branch
        %130 = sbr.rel (%p128) target = $region28
      $region27: #{rttdetv2_forward.20} parent=23 // pred_region
        %s131 = smul.u32 8, %s9
        %p132 = scmp.lt.s32.totalorder %s131, 31
        %s133 = scalar_select %p132, %s131, 31
        %s134 = smul.addr %s133, 2
        %s135 = scalar_lea.vmem %s2, %s134
        %s136 = smul.u32 8, %s9
      $region28: #{rttdetv2_forward.20} parent=23 // pred_fallthru
        _
    $region24: #{rttdetv2_forward.20} parent=5 // pred_fallthru
      _
    %p137 = scmp.le.s32.totalorder 1, %s9
    %p138 = scmp.lt.s32.totalorder %s9, 5
    %p139 = pnand %p137, %p138
    %p140 = pneg %p139
    // Predicated region
    $region29: #{rttdetv2_forward.20} parent=5 // pred_check
      _
    $region30: #{rttdetv2_forward.20} parent=5 // pred_check_branch
      %142 = sbr.rel (%p139) target = $region32
    $region31: #{rttdetv2_forward.20} parent=5 // pred_region
      %s143 = ssub.s32 %s9, 1
      %p144 = pneg %p30
      %p145 = pneg %p27
      %p146 = pneg %p51
      %p147 = pneg %p48
      %s148 = smul.u32 8, %s14
      %p149 = scmp.lt.s32.totalorder %s148, 31
      %s150 = scalar_select %p149, %s148, 31
      %s151 = smul.addr %s150, 2
      %s152 = scalar_lea.vmem %s2, %s151
      %p153 = pneg %p77
      %p154 = pneg %p74
      %p155 = pneg %p103
      %p156 = pneg %p100
      %s157 = smul.u32 8, %s14
      %p158 = scmp.lt.s32.totalorder %s157, 31
      %s159 = scalar_select %p158, %s157, 31
      %s160 = smul.addr %s159, 4
      %s161 = scalar_lea.vmem %s3, %s160
      %s162 = smul.u32 8, %s14
      %p163 = scmp.lt.s32.totalorder %s162, 31
      %s164 = scalar_select %p163, %s162, 31
      %s165 = smul.addr %s164, 2
      %s166 = scalar_lea.vmem %s2, %s165
      %s167 = smul.u32 8, %s14
      %s168 = smul.u32 8, %s14
      %p169 = scmp.lt.s32.totalorder %s168, 31
      %s170 = scalar_select %p169, %s168, 31
      %s171 = smul.addr %s170, 4
      %s172 = scalar_lea.vmem %s3, %s171
      %s173 = smul.u32 8, %s14
      %v174 = vld [vmem:[%s166] sm:$0x3]
      %v175 = vunpack.c.l.bf16 %v174
      %v176 = vld [vmem:[%s1] sm:$0xf]
      %vm177 = vcmask 31744
      %v179 = vsel %vm177, %v175, 0
      %vm181 = vcmask 1043456
      %v183 = vsel %vm181, %v176, 0
      %185 = vmatprep.subr.mxu0 0.0
      %186 = vmatpush1.msra.mxu0 %v183
      %187 = vmatprep.subr.mxu0 0.0
      %188 = vmatpush1.msra.mxu0 0.0
      %189 = vmatprep.subr.mxu0 0.0
      %190 = vmatpush1.msra.mxu0 0.0
      %191 = vmatprep.subr.mxu0 0.0
      %192 = vmatpush1.msra.mxu0 0.0
      %193 = vmatprep.subr.mxu0 0.0
      %194 = vmatpush1.msra.mxu0 0.0
      %195 = vmatprep.subr.mxu0 0.0
      %196 = vmatpush1.msra.mxu0 0.0
      %197 = vmatprep.subr.mxu0 0.0
      %198 = vmatpush1.msra.mxu0 0.0
      %199 = vmatprep.subr.mxu0 0.0
      %200 = vmatpush1.msra.mxu0 0.0
      %201 = vmatprep.subr.mxu0 0.0
      %202 = vmatpush1.msra.mxu0 0.0
      %203 = vmatprep.subr.mxu0 0.0
      %204 = vmatpush1.msra.mxu0 0.0
      %205 = vmatprep.subr.mxu0 0.0
      %206 = vmatpush1.msra.mxu0 0.0
      %207 = vmatprep.subr.mxu0 0.0
      %208 = vmatpush1.msra.mxu0 0.0
      %209 = vmatprep.subr.mxu0 0.0
      %210 = vmatpush1.msra.mxu0 0.0
      %211 = vmatprep.subr.mxu0 0.0
      %212 = vmatpush1.msra.mxu0 0.0
      %213 = vmatprep.subr.mxu0 0.0
      %214 = vmatpush1.msra.mxu0 0.0
      %215 = vmatprep.subr.mxu0 0.0
      %216 = vmatpush1.msra.mxu0 0.0
      %217 = vmatprep.subr.mxu0 0.0
      %218 = vmatpush1.msra.mxu0 0.0
      %219 = vmatprep.subr.mxu0 0.0
      %220 = vmatpush1.msra.mxu0 0.0
      %221 = vmatprep.subr.mxu0 0.0
      %222 = vmatpush1.msra.mxu0 0.0
      %223 = vmatprep.subr.mxu0 0.0
      %224 = vmatpush1.msra.mxu0 0.0
      %225 = vmatprep.subr.mxu0 0.0
      %226 = vmatpush1.msra.mxu0 0.0
      %227 = vmatprep.subr.mxu0 0.0
      %228 = vmatpush1.msra.mxu0 0.0
      %229 = vmatprep.subr.mxu0 0.0
      %230 = vmatpush1.msra.mxu0 0.0
      %231 = vmatprep.subr.mxu0 0.0
      %232 = vmatpush1.msra.mxu0 0.0
      %233 = vmatprep.subr.mxu0 0.0
      %234 = vmatpush1.msra.mxu0 0.0
      %235 = vmatprep.subr.mxu0 0.0
      %236 = vmatpush1.msra.mxu0 0.0
      %237 = vmatprep.subr.mxu0 0.0
      %238 = vmatpush1.msra.mxu0 0.0
      %239 = vmatprep.subr.mxu0 0.0
      %240 = vmatpush1.msra.mxu0 0.0
      %241 = vmatprep.subr.mxu0 0.0
      %242 = vmatpush1.msra.mxu0 0.0
      %243 = vmatprep.subr.mxu0 0.0
      %244 = vmatpush1.msra.mxu0 0.0
      %245 = vmatprep.subr.mxu0 0.0
      %246 = vmatpush1.msra.mxu0 0.0
      %247 = vmatprep.subr.mxu0 0.0
      %248 = vmatpush1.msra.mxu0 0.0
      %249 = vmatprep.mubr.f32.mxu0 0.0
      %250 = vmatmul.mubr.f32.gmra.mrb[0].mxu0 %v179
      %v251 = vpop.f32.mrb[0].mxu0
      %v252 = vadd.f32 0.0, %v251
      %v253 = vpop.f32.mrb[0].mxu0
      %254 = vdwg.mxu0
      %v255 = vld [vmem:[%s0] sm:$0xff]
      %v257 = vsel %vm177, %v255, 0
      %v260 = vsel %vm181, %v252, 0
      %262 = vmatprep.subr.mxu0 0.0
      %263 = vmatpush1.msra.mxu0 %v260
      %264 = vmatprep.subr.mxu0 0.0
      %265 = vmatpush1.msra.mxu0 0.0
      %266 = vmatprep.subr.mxu0 0.0
      %267 = vmatpush1.msra.mxu0 0.0
      %268 = vmatprep.subr.mxu0 0.0
      %269 = vmatpush1.msra.mxu0 0.0
      %270 = vmatprep.subr.mxu0 0.0
      %271 = vmatpush1.msra.mxu0 0.0
      %272 = vmatprep.subr.mxu0 0.0
      %273 = vmatpush1.msra.mxu0 0.0
      %274 = vmatprep.subr.mxu0 0.0
      %275 = vmatpush1.msra.mxu0 0.0
      %276 = vmatprep.subr.mxu0 0.0
      %277 = vmatpush1.msra.mxu0 0.0
      %278 = vmatprep.subr.mxu0 0.0
      %279 = vmatpush1.msra.mxu0 0.0
      %280 = vmatprep.subr.mxu0 0.0
      %281 = vmatpush1.msra.mxu0 0.0
      %282 = vmatprep.subr.mxu0 0.0
      %283 = vmatpush1.msra.mxu0 0.0
      %284 = vmatprep.subr.mxu0 0.0
      %285 = vmatpush1.msra.mxu0 0.0
      %286 = vmatprep.subr.mxu0 0.0
      %287 = vmatpush1.msra.mxu0 0.0
      %288 = vmatprep.subr.mxu0 0.0
      %289 = vmatpush1.msra.mxu0 0.0
      %290 = vmatprep.subr.mxu0 0.0
      %291 = vmatpush1.msra.mxu0 0.0
      %292 = vmatprep.subr.mxu0 0.0
      %293 = vmatpush1.msra.mxu0 0.0
      %294 = vmatprep.subr.mxu0 0.0
      %295 = vmatpush1.msra.mxu0 0.0
      %296 = vmatprep.subr.mxu0 0.0
      %297 = vmatpush1.msra.mxu0 0.0
      %298 = vmatprep.subr.mxu0 0.0
      %299 = vmatpush1.msra.mxu0 0.0
      %300 = vmatprep.subr.mxu0 0.0
      %301 = vmatpush1.msra.mxu0 0.0
      %302 = vmatprep.subr.mxu0 0.0
      %303 = vmatpush1.msra.mxu0 0.0
      %304 = vmatprep.subr.mxu0 0.0
      %305 = vmatpush1.msra.mxu0 0.0
      %306 = vmatprep.subr.mxu0 0.0
      %307 = vmatpush1.msra.mxu0 0.0
      %308 = vmatprep.subr.mxu0 0.0
      %309 = vmatpush1.msra.mxu0 0.0
      %310 = vmatprep.subr.mxu0 0.0
      %311 = vmatpush1.msra.mxu0 0.0
      %312 = vmatprep.subr.mxu0 0.0
      %313 = vmatpush1.msra.mxu0 0.0
      %314 = vmatprep.subr.mxu0 0.0
      %315 = vmatpush1.msra.mxu0 0.0
      %316 = vmatprep.subr.mxu0 0.0
      %317 = vmatpush1.msra.mxu0 0.0
      %318 = vmatprep.subr.mxu0 0.0
      %319 = vmatpush1.msra.mxu0 0.0
      %320 = vmatprep.subr.mxu0 0.0
      %321 = vmatpush1.msra.mxu0 0.0
      %322 = vmatprep.subr.mxu0 0.0
      %323 = vmatpush1.msra.mxu0 0.0
      %324 = vmatprep.subr.mxu0 0.0
      %325 = vmatpush1.msra.mxu0 0.0
      %326 = vmatprep.mubr.f32.mxu0 0.0
      %327 = vmatmul.mubr.f32.gmra.mrb[0].mxu0 %v257
      %v328 = vpop.f32.mrb[0].mxu0
      %v329 = vadd.f32 0.0, %v328
      %v330 = vpop.f32.mrb[0].mxu0
      %331 = vdwg.mxu0
      %v332 = vpack.c.bf16 %v329, %v329
      %vm333 = vcmask 60416
      %334 = vst.msk [vmem:[%s172] sm:$0xf] %vm333, %v332
      %s335 = scalar_lea.vmem %s166, 2
      %v336 = vld [vmem:[%s335] sm:$0x3]
      %v337 = vunpack.c.l.bf16 %v336
      %v338 = vld [vmem:[%s1] sm:$0xf]
      %v340 = vsel %vm177, %v337, 0
      %v343 = vsel %vm181, %v338, 0
      %345 = vmatprep.subr.mxu0 0.0
      %346 = vmatpush1.msra.mxu0 %v343
      %347 = vmatprep.subr.mxu0 0.0
      %348 = vmatpush1.msra.mxu0 0.0
      %349 = vmatprep.subr.mxu0 0.0
      %350 = vmatpush1.msra.mxu0 0.0
      %351 = vmatprep.subr.mxu0 0.0
      %352 = vmatpush1.msra.mxu0 0.0
      %353 = vmatprep.subr.mxu0 0.0
      %354 = vmatpush1.msra.mxu0 0.0
      %355 = vmatprep.subr.mxu0 0.0
      %356 = vmatpush1.msra.mxu0 0.0
      %357 = vmatprep.subr.mxu0 0.0
      %358 = vmatpush1.msra.mxu0 0.0
      %359 = vmatprep.subr.mxu0 0.0
      %360 = vmatpush1.msra.mxu0 0.0
      %361 = vmatprep.subr.mxu0 0.0
      %362 = vmatpush1.msra.mxu0 0.0
      %363 = vmatprep.subr.mxu0 0.0
      %364 = vmatpush1.msra.mxu0 0.0
      %365 = vmatprep.subr.mxu0 0.0
      %366 = vmatpush1.msra.mxu0 0.0
      %367 = vmatprep.subr.mxu0 0.0
      %368 = vmatpush1.msra.mxu0 0.0
      %369 = vmatprep.subr.mxu0 0.0
      %370 = vmatpush1.msra.mxu0 0.0
      %371 = vmatprep.subr.mxu0 0.0
      %372 = vmatpush1.msra.mxu0 0.0
      %373 = vmatprep.subr.mxu0 0.0
      %374 = vmatpush1.msra.mxu0 0.0
      %375 = vmatprep.subr.mxu0 0.0
      %376 = vmatpush1.msra.mxu0 0.0
      %377 = vmatprep.subr.mxu0 0.0
      %378 = vmatpush1.msra.mxu0 0.0
      %379 = vmatprep.subr.mxu0 0.0
      %380 = vmatpush1.msra.mxu0 0.0
      %381 = vmatprep.subr.mxu0 0.0
      %382 = vmatpush1.msra.mxu0 0.0
      %383 = vmatprep.subr.mxu0 0.0
      %384 = vmatpush1.msra.mxu0 0.0
      %385 = vmatprep.subr.mxu0 0.0
      %386 = vmatpush1.msra.mxu0 0.0
      %387 = vmatprep.subr.mxu0 0.0
      %388 = vmatpush1.msra.mxu0 0.0
      %389 = vmatprep.subr.mxu0 0.0
      %390 = vmatpush1.msra.mxu0 0.0
      %391 = vmatprep.subr.mxu0 0.0
      %392 = vmatpush1.msra.mxu0 0.0
      %393 = vmatprep.subr.mxu0 0.0
      %394 = vmatpush1.msra.mxu0 0.0
      %395 = vmatprep.subr.mxu0 0.0
      %396 = vmatpush1.msra.mxu0 0.0
      %397 = vmatprep.subr.mxu0 0.0
      %398 = vmatpush1.msra.mxu0 0.0
      %399 = vmatprep.subr.mxu0 0.0
      %400 = vmatpush1.msra.mxu0 0.0
      %401 = vmatprep.subr.mxu0 0.0
      %402 = vmatpush1.msra.mxu0 0.0
      %403 = vmatprep.subr.mxu0 0.0
      %404 = vmatpush1.msra.mxu0 0.0
      %405 = vmatprep.subr.mxu0 0.0
      %406 = vmatpush1.msra.mxu0 0.0
      %407 = vmatprep.subr.mxu0 0.0
      %408 = vmatpush1.msra.mxu0 0.0
      %409 = vmatprep.mubr.f32.mxu0 0.0
      %410 = vmatmul.mubr.f32.gmra.mrb[0].mxu0 %v340
      %v411 = vpop.f32.mrb[0].mxu0
      %v412 = vadd.f32 0.0, %v411
      %v413 = vpop.f32.mrb[0].mxu0
      %414 = vdwg.mxu0
      %v415 = vld [vmem:[%s0] sm:$0xff]
      %v417 = vsel %vm177, %v415, 0
      %v420 = vsel %vm181, %v412, 0
      %422 = vmatprep.subr.mxu0 0.0
      %423 = vmatpush1.msra.mxu0 %v420
      %424 = vmatprep.subr.mxu0 0.0
      %425 = vmatpush1.msra.mxu0 0.0
      %426 = vmatprep.subr.mxu0 0.0
      %427 = vmatpush1.msra.mxu0 0.0
      %428 = vmatprep.subr.mxu0 0.0
      %429 = vmatpush1.msra.mxu0 0.0
      %430 = vmatprep.subr.mxu0 0.0
      %431 = vmatpush1.msra.mxu0 0.0
      %432 = vmatprep.subr.mxu0 0.0
      %433 = vmatpush1.msra.mxu0 0.0
      %434 = vmatprep.subr.mxu0 0.0
      %435 = vmatpush1.msra.mxu0 0.0
      %436 = vmatprep.subr.mxu0 0.0
      %437 = vmatpush1.msra.mxu0 0.0
      %438 = vmatprep.subr.mxu0 0.0
      %439 = vmatpush1.msra.mxu0 0.0
      %440 = vmatprep.subr.mxu0 0.0
      %441 = vmatpush1.msra.mxu0 0.0
      %442 = vmatprep.subr.mxu0 0.0
      %443 = vmatpush1.msra.mxu0 0.0
      %444 = vmatprep.subr.mxu0 0.0
      %445 = vmatpush1.msra.mxu0 0.0
      %446 = vmatprep.subr.mxu0 0.0
      %447 = vmatpush1.msra.mxu0 0.0
      %448 = vmatprep.subr.mxu0 0.0
      %449 = vmatpush1.msra.mxu0 0.0
      %450 = vmatprep.subr.mxu0 0.0
      %451 = vmatpush1.msra.mxu0 0.0
      %452 = vmatprep.subr.mxu0 0.0
      %453 = vmatpush1.msra.mxu0 0.0
      %454 = vmatprep.subr.mxu0 0.0
      %455 = vmatpush1.msra.mxu0 0.0
      %456 = vmatprep.subr.mxu0 0.0
      %457 = vmatpush1.msra.mxu0 0.0
      %458 = vmatprep.subr.mxu0 0.0
      %459 = vmatpush1.msra.mxu0 0.0
      %460 = vmatprep.subr.mxu0 0.0
      %461 = vmatpush1.msra.mxu0 0.0
      %462 = vmatprep.subr.mxu0 0.0
      %463 = vmatpush1.msra.mxu0 0.0
      %464 = vmatprep.subr.mxu0 0.0
      %465 = vmatpush1.msra.mxu0 0.0
      %466 = vmatprep.subr.mxu0 0.0
      %467 = vmatpush1.msra.mxu0 0.0
      %468 = vmatprep.subr.mxu0 0.0
      %469 = vmatpush1.msra.mxu0 0.0
      %470 = vmatprep.subr.mxu0 0.0
      %471 = vmatpush1.msra.mxu0 0.0
      %472 = vmatprep.subr.mxu0 0.0
      %473 = vmatpush1.msra.mxu0 0.0
      %474 = vmatprep.subr.mxu0 0.0
      %475 = vmatpush1.msra.mxu0 0.0
      %476 = vmatprep.subr.mxu0 0.0
      %477 = vmatpush1.msra.mxu0 0.0
      %478 = vmatprep.subr.mxu0 0.0
      %479 = vmatpush1.msra.mxu0 0.0
      %480 = vmatprep.subr.mxu0 0.0
      %481 = vmatpush1.msra.mxu0 0.0
      %482 = vmatprep.subr.mxu0 0.0
      %483 = vmatpush1.msra.mxu0 0.0
      %484 = vmatprep.subr.mxu0 0.0
      %485 = vmatpush1.msra.mxu0 0.0
      %486 = vmatprep.mubr.f32.mxu0 0.0
      %487 = vmatmul.mubr.f32.gmra.mrb[0].mxu0 %v417
      %v488 = vpop.f32.mrb[0].mxu0
      %v489 = vadd.f32 0.0, %v488
      %v490 = vpop.f32.mrb[0].mxu0
      %491 = vdwg.mxu0
      %v492 = vpack.c.bf16 %v489, %v489
      %s493 = scalar_lea.vmem %s172, 4
      %494 = vst.msk [vmem:[%s493] sm:$0xf] %vm333, %v492
      %s495 = scalar_lea.vmem %s166, 4
      %v496 = vld [vmem:[%s495] sm:$0x3]
      %v497 = vunpack.c.l.bf16 %v496
      %v498 = vld [vmem:[%s1] sm:$0xf]
      %v500 = vsel %vm177, %v497, 0
      %v503 = vsel %vm181, %v498, 0
      %505 = vmatprep.subr.mxu0 0.0
      %506 = vmatpush1.msra.mxu0 %v503
      %507 = vmatprep.subr.mxu0 0.0
      %508 = vmatpush1.msra.mxu0 0.0
      %509 = vmatprep.subr.mxu0 0.0
      %510 = vmatpush1.msra.mxu0 0.0
      %511 = vmatprep.subr.mxu0 0.0
      %512 = vmatpush1.msra.mxu0 0.0
      %513 = vmatprep.subr.mxu0 0.0
      %514 = vmatpush1.msra.mxu0 0.0
      %515 = vmatprep.subr.mxu0 0.0
      %516 = vmatpush1.msra.mxu0 0.0
      %517 = vmatprep.subr.mxu0 0.0
      %518 = vmatpush1.msra.mxu0 0.0
      %519 = vmatprep.subr.mxu0 0.0
      %520 = vmatpush1.msra.mxu0 0.0
      %521 = vmatprep.subr.mxu0 0.0
      %522 = vmatpush1.msra.mxu0 0.0
      %523 = vmatprep.subr.mxu0 0.0
      %524 = vmatpush1.msra.mxu0 0.0
      %525 = vmatprep.subr.mxu0 0.0
      %526 = vmatpush1.msra.mxu0 0.0
      %527 = vmatprep.subr.mxu0 0.0
      %528 = vmatpush1.msra.mxu0 0.0
      %529 = vmatprep.subr.mxu0 0.0
      %530 = vmatpush1.msra.mxu0 0.0
      %531 = vmatprep.subr.mxu0 0.0
      %532 = vmatpush1.msra.mxu0 0.0
      %533 = vmatprep.subr.mxu0 0.0
      %534 = vmatpush1.msra.mxu0 0.0
      %535 = vmatprep.subr.mxu0 0.0
      %536 = vmatpush1.msra.mxu0 0.0
      %537 = vmatprep.subr.mxu0 0.0
      %538 = vmatpush1.msra.mxu0 0.0
      %539 = vmatprep.subr.mxu0 0.0
      %540 = vmatpush1.msra.mxu0 0.0
      %541 = vmatprep.subr.mxu0 0.0
      %542 = vmatpush1.msra.mxu0 0.0
      %543 = vmatprep.subr.mxu0 0.0
      %544 = vmatpush1.msra.mxu0 0.0
      %545 = vmatprep.subr.mxu0 0.0
      %546 = vmatpush1.msra.mxu0 0.0
      %547 = vmatprep.subr.mxu0 0.0
      %548 = vmatpush1.msra.mxu0 0.0
      %549 = vmatprep.subr.mxu0 0.0
      %550 = vmatpush1.msra.mxu0 0.0
      %551 = vmatprep.subr.mxu0 0.0
      %552 = vmatpush1.msra.mxu0 0.0
      %553 = vmatprep.subr.mxu0 0.0
      %554 = vmatpush1.msra.mxu0 0.0
      %555 = vmatprep.subr.mxu0 0.0
      %556 = vmatpush1.msra.mxu0 0.0
      %557 = vmatprep.subr.mxu0 0.0
      %558 = vmatpush1.msra.mxu0 0.0
      %559 = vmatprep.subr.mxu0 0.0
      %560 = vmatpush1.msra.mxu0 0.0
      %561 = vmatprep.subr.mxu0 0.0
      %562 = vmatpush1.msra.mxu0 0.0
      %563 = vmatprep.subr.mxu0 0.0
      %564 = vmatpush1.msra.mxu0 0.0
      %565 = vmatprep.subr.mxu0 0.0
      %566 = vmatpush1.msra.mxu0 0.0
      %567 = vmatprep.subr.mxu0 0.0
      %568 = vmatpush1.msra.mxu0 0.0
      %569 = vmatprep.mubr.f32.mxu0 0.0
      %570 = vmatmul.mubr.f32.gmra.mrb[0].mxu0 %v500
      %v571 = vpop.f32.mrb[0].mxu0
      %v572 = vadd.f32 0.0, %v571
      %v573 = vpop.f32.mrb[0].mxu0
      %574 = vdwg.mxu0
      %v575 = vld [vmem:[%s0] sm:$0xff]
      %v577 = vsel %vm177, %v575, 0
      %v580 = vsel %vm181, %v572, 0
      %582 = vmatprep.subr.mxu0 0.0
      %583 = vmatpush1.msra.mxu0 %v580
      %584 = vmatprep.subr.mxu0 0.0
      %585 = vmatpush1.msra.mxu0 0.0
      %586 = vmatprep.subr.mxu0 0.0
      %587 = vmatpush1.msra.mxu0 0.0
      %588 = vmatprep.subr.mxu0 0.0
      %589 = vmatpush1.msra.mxu0 0.0
      %590 = vmatprep.subr.mxu0 0.0
      %591 = vmatpush1.msra.mxu0 0.0
      %592 = vmatprep.subr.mxu0 0.0
      %593 = vmatpush1.msra.mxu0 0.0
      %594 = vmatprep.subr.mxu0 0.0
      %595 = vmatpush1.msra.mxu0 0.0
      %596 = vmatprep.subr.mxu0 0.0
      %597 = vmatpush1.msra.mxu0 0.0
      %598 = vmatprep.subr.mxu0 0.0
      %599 = vmatpush1.msra.mxu0 0.0
      %600 = vmatprep.subr.mxu0 0.0
      %601 = vmatpush1.msra.mxu0 0.0
      %602 = vmatprep.subr.mxu0 0.0
      %603 = vmatpush1.msra.mxu0 0.0
      %604 = vmatprep.subr.mxu0 0.0
      %605 = vmatpush1.msra.mxu0 0.0
      %606 = vmatprep.subr.mxu0 0.0
      %607 = vmatpush1.msra.mxu0 0.0
      %608 = vmatprep.subr.mxu0 0.0
      %609 = vmatpush1.msra.mxu0 0.0
      %610 = vmatprep.subr.mxu0 0.0
      %611 = vmatpush1.msra.mxu0 0.0
      %612 = vmatprep.subr.mxu0 0.0
      %613 = vmatpush1.msra.mxu0 0.0
      %614 = vmatprep.subr.mxu0 0.0
      %615 = vmatpush1.msra.mxu0 0.0
      %616 = vmatprep.subr.mxu0 0.0
      %617 = vmatpush1.msra.mxu0 0.0
      %618 = vmatprep.subr.mxu0 0.0
      %619 = vmatpush1.msra.mxu0 0.0
      %620 = vmatprep.subr.mxu0 0.0
      %621 = vmatpush1.msra.mxu0 0.0
      %622 = vmatprep.subr.mxu0 0.0
      %623 = vmatpush1.msra.mxu0 0.0
      %624 = vmatprep.subr.mxu0 0.0
      %625 = vmatpush1.msra.mxu0 0.0
      %626 = vmatprep.subr.mxu0 0.0
      %627 = vmatpush1.msra.mxu0 0.0
      %628 = vmatprep.subr.mxu0 0.0
      %629 = vmatpush1.msra.mxu0 0.0
      %630 = vmatprep.subr.mxu0 0.0
      %631 = vmatpush1.msra.mxu0 0.0
      %632 = vmatprep.subr.mxu0 0.0
      %633 = vmatpush1.msra.mxu0 0.0
      %634 = vmatprep.subr.mxu0 0.0
      %635 = vmatpush1.msra.mxu0 0.0
      %636 = vmatprep.subr.mxu0 0.0
      %637 = vmatpush1.msra.mxu0 0.0
      %638 = vmatprep.subr.mxu0 0.0
      %639 = vmatpush1.msra.mxu0 0.0
      %640 = vmatprep.subr.mxu0 0.0
      %641 = vmatpush1.msra.mxu0 0.0
      %642 = vmatprep.subr.mxu0 0.0
      %643 = vmatpush1.msra.mxu0 0.0
      %644 = vmatprep.subr.mxu0 0.0
      %645 = vmatpush1.msra.mxu0 0.0
      %646 = vmatprep.mubr.f32.mxu0 0.0
      %647 = vmatmul.mubr.f32.gmra.mrb[0].mxu0 %v577
      %v648 = vpop.f32.mrb[0].mxu0
      %v649 = vadd.f32 0.0, %v648
      %v650 = vpop.f32.mrb[0].mxu0
      %651 = vdwg.mxu0
      %v652 = vpack.c.bf16 %v649, %v649
      %s653 = scalar_lea.vmem %s172, 8
      %654 = vst.msk [vmem:[%s653] sm:$0xf] %vm333, %v652
      %s655 = scalar_lea.vmem %s166, 6
      %v656 = vld [vmem:[%s655] sm:$0x3]
      %v657 = vunpack.c.l.bf16 %v656
      %v658 = vld [vmem:[%s1] sm:$0xf]
      %v660 = vsel %vm177, %v657, 0
      %v663 = vsel %vm181, %v658, 0
      %665 = vmatprep.subr.mxu0 0.0
      %666 = vmatpush1.msra.mxu0 %v663
      %667 = vmatprep.subr.mxu0 0.0
      %668 = vmatpush1.msra.mxu0 0.0
      %669 = vmatprep.subr.mxu0 0.0
      %670 = vmatpush1.msra.mxu0 0.0
      %671 = vmatprep.subr.mxu0 0.0
      %672 = vmatpush1.msra.mxu0 0.0
      %673 = vmatprep.subr.mxu0 0.0
      %674 = vmatpush1.msra.mxu0 0.0
      %675 = vmatprep.subr.mxu0 0.0
      %676 = vmatpush1.msra.mxu0 0.0
      %677 = vmatprep.subr.mxu0 0.0
      %678 = vmatpush1.msra.mxu0 0.0
      %679 = vmatprep.subr.mxu0 0.0
      %680 = vmatpush1.msra.mxu0 0.0
      %681 = vmatprep.subr.mxu0 0.0
      %682 = vmatpush1.msra.mxu0 0.0
      %683 = vmatprep.subr.mxu0 0.0
      %684 = vmatpush1.msra.mxu0 0.0
      %685 = vmatprep.subr.mxu0 0.0
      %686 = vmatpush1.msra.mxu0 0.0
      %687 = vmatprep.subr.mxu0 0.0
      %688 = vmatpush1.msra.mxu0 0.0
      %689 = vmatprep.subr.mxu0 0.0
      %690 = vmatpush1.msra.mxu0 0.0
      %691 = vmatprep.subr.mxu0 0.0
      %692 = vmatpush1.msra.mxu0 0.0
      %693 = vmatprep.subr.mxu0 0.0
      %694 = vmatpush1.msra.mxu0 0.0
      %695 = vmatprep.subr.mxu0 0.0
      %696 = vmatpush1.msra.mxu0 0.0
      %697 = vmatprep.subr.mxu0 0.0
      %698 = vmatpush1.msra.mxu0 0.0
      %699 = vmatprep.subr.mxu0 0.0
      %700 = vmatpush1.msra.mxu0 0.0
      %701 = vmatprep.subr.mxu0 0.0
      %702 = vmatpush1.msra.mxu0 0.0
      %703 = vmatprep.subr.mxu0 0.0
      %704 = vmatpush1.msra.mxu0 0.0
      %705 = vmatprep.subr.mxu0 0.0
      %706 = vmatpush1.msra.mxu0 0.0
      %707 = vmatprep.subr.mxu0 0.0
      %708 = vmatpush1.msra.mxu0 0.0
      %709 = vmatprep.subr.mxu0 0.0
      %710 = vmatpush1.msra.mxu0 0.0
      %711 = vmatprep.subr.mxu0 0.0
      %712 = vmatpush1.msra.mxu0 0.0
      %713 = vmatprep.subr.mxu0 0.0
      %714 = vmatpush1.msra.mxu0 0.0
      %715 = vmatprep.subr.mxu0 0.0
      %716 = vmatpush1.msra.mxu0 0.0
      %717 = vmatprep.subr.mxu0 0.0
      %718 = vmatpush1.msra.mxu0 0.0
      %719 = vmatprep.subr.mxu0 0.0
      %720 = vmatpush1.msra.mxu0 0.0
      %721 = vmatprep.subr.mxu0 0.0
      %722 = vmatpush1.msra.mxu0 0.0
      %723 = vmatprep.subr.mxu0 0.0
      %724 = vmatpush1.msra.mxu0 0.0
      %725 = vmatprep.subr.mxu0 0.0
      %726 = vmatpush1.msra.mxu0 0.0
      %727 = vmatprep.subr.mxu0 0.0
      %728 = vmatpush1.msra.mxu0 0.0
      %729 = vmatprep.mubr.f32.mxu0 0.0
      %730 = vmatmul.mubr.f32.gmra.mrb[0].mxu0 %v660
      %v731 = vpop.f32.mrb[0].mxu0
      %v732 = vadd.f32 0.0, %v731
      %v733 = vpop.f32.mrb[0].mxu0
      %734 = vdwg.mxu0
      %v735 = vld [vmem:[%s0] sm:$0xff]
      %v737 = vsel %vm177, %v735, 0
      %v740 = vsel %vm181, %v732, 0
      %742 = vmatprep.subr.mxu0 0.0
      %743 = vmatpush1.msra.mxu0 %v740
      %744 = vmatprep.subr.mxu0 0.0
      %745 = vmatpush1.msra.mxu0 0.0
      %746 = vmatprep.subr.mxu0 0.0
      %747 = vmatpush1.msra.mxu0 0.0
      %748 = vmatprep.subr.mxu0 0.0
      %749 = vmatpush1.msra.mxu0 0.0
      %750 = vmatprep.subr.mxu0 0.0
      %751 = vmatpush1.msra.mxu0 0.0
      %752 = vmatprep.subr.mxu0 0.0
      %753 = vmatpush1.msra.mxu0 0.0
      %754 = vmatprep.subr.mxu0 0.0
      %755 = vmatpush1.msra.mxu0 0.0
      %756 = vmatprep.subr.mxu0 0.0
      %757 = vmatpush1.msra.mxu0 0.0
      %758 = vmatprep.subr.mxu0 0.0
      %759 = vmatpush1.msra.mxu0 0.0
      %760 = vmatprep.subr.mxu0 0.0
      %761 = vmatpush1.msra.mxu0 0.0
      %762 = vmatprep.subr.mxu0 0.0
      %763 = vmatpush1.msra.mxu0 0.0
      %764 = vmatprep.subr.mxu0 0.0
      %765 = vmatpush1.msra.mxu0 0.0
      %766 = vmatprep.subr.mxu0 0.0
      %767 = vmatpush1.msra.mxu0 0.0
      %768 = vmatprep.subr.mxu0 0.0
      %769 = vmatpush1.msra.mxu0 0.0
      %770 = vmatprep.subr.mxu0 0.0
      %771 = vmatpush1.msra.mxu0 0.0
      %772 = vmatprep.subr.mxu0 0.0
      %773 = vmatpush1.msra.mxu0 0.0
      %774 = vmatprep.subr.mxu0 0.0
      %775 = vmatpush1.msra.mxu0 0.0
      %776 = vmatprep.subr.mxu0 0.0
      %777 = vmatpush1.msra.mxu0 0.0
      %778 = vmatprep.subr.mxu0 0.0
      %779 = vmatpush1.msra.mxu0 0.0
      %780 = vmatprep.subr.mxu0 0.0
      %781 = vmatpush1.msra.mxu0 0.0
      %782 = vmatprep.subr.mxu0 0.0
      %783 = vmatpush1.msra.mxu0 0.0
      %784 = vmatprep.subr.mxu0 0.0
      %785 = vmatpush1.msra.mxu0 0.0
      %786 = vmatprep.subr.mxu0 0.0
      %787 = vmatpush1.msra.mxu0 0.0
      %788 = vmatprep.subr.mxu0 0.0
      %789 = vmatpush1.msra.mxu0 0.0
      %790 = vmatprep.subr.mxu0 0.0
      %791 = vmatpush1.msra.mxu0 0.0
      %792 = vmatprep.subr.mxu0 0.0
      %793 = vmatpush1.msra.mxu0 0.0
      %794 = vmatprep.subr.mxu0 0.0
      %795 = vmatpush1.msra.mxu0 0.0
      %796 = vmatprep.subr.mxu0 0.0
      %797 = vmatpush1.msra.mxu0 0.0
      %798 = vmatprep.subr.mxu0 0.0
      %799 = vmatpush1.msra.mxu0 0.0
      %800 = vmatprep.subr.mxu0 0.0
      %801 = vmatpush1.msra.mxu0 0.0
      %802 = vmatprep.subr.mxu0 0.0
      %803 = vmatpush1.msra.mxu0 0.0
      %804 = vmatprep.subr.mxu0 0.0
      %805 = vmatpush1.msra.mxu0 0.0
      %806 = vmatprep.mubr.f32.mxu0 0.0
      %807 = vmatmul.mubr.f32.gmra.mrb[0].mxu0 %v737
      %v808 = vpop.f32.mrb[0].mxu0
      %v809 = vadd.f32 0.0, %v808
      %v810 = vpop.f32.mrb[0].mxu0
      %811 = vdwg.mxu0
      %v812 = vpack.c.bf16 %v809, %v809
      %s813 = scalar_lea.vmem %s172, 12
      %814 = vst.msk [vmem:[%s813] sm:$0xf] %vm333, %v812
      %s815 = scalar_lea.vmem %s166, 8
      %v816 = vld [vmem:[%s815] sm:$0x3]
      %v817 = vunpack.c.l.bf16 %v816
      %v818 = vld [vmem:[%s1] sm:$0xf]
      %v820 = vsel %vm177, %v817, 0
      %v823 = vsel %vm181, %v818, 0
      %825 = vmatprep.subr.mxu0 0.0
      %826 = vmatpush1.msra.mxu0 %v823
      %827 = vmatprep.subr.mxu0 0.0
      %828 = vmatpush1.msra.mxu0 0.0
      %829 = vmatprep.subr.mxu0 0.0
      %830 = vmatpush1.msra.mxu0 0.0
      %831 = vmatprep.subr.mxu0 0.0
      %832 = vmatpush1.msra.mxu0 0.0
      %833 = vmatprep.subr.mxu0 0.0
      %834 = vmatpush1.msra.mxu0 0.0
      %835 = vmatprep.subr.mxu0 0.0
      %836 = vmatpush1.msra.mxu0 0.0
      %837 = vmatprep.subr.mxu0 0.0
      %838 = vmatpush1.msra.mxu0 0.0
      %839 = vmatprep.subr.mxu0 0.0
      %840 = vmatpush1.msra.mxu0 0.0
      %841 = vmatprep.subr.mxu0 0.0
      %842 = vmatpush1.msra.mxu0 0.0
      %843 = vmatprep.subr.mxu0 0.0
      %844 = vmatpush1.msra.mxu0 0.0
      %845 = vmatprep.subr.mxu0 0.0
      %846 = vmatpush1.msra.mxu0 0.0
      %847 = vmatprep.subr.mxu0 0.0
      %848 = vmatpush1.msra.mxu0 0.0
      %849 = vmatprep.subr.mxu0 0.0
      %850 = vmatpush1.msra.mxu0 0.0
      %851 = vmatprep.subr.mxu0 0.0
      %852 = vmatpush1.msra.mxu0 0.0
      %853 = vmatprep.subr.mxu0 0.0
      %854 = vmatpush1.msra.mxu0 0.0
      %855 = vmatprep.subr.mxu0 0.0
      %856 = vmatpush1.msra.mxu0 0.0
      %857 = vmatprep.subr.mxu0 0.0
      %858 = vmatpush1.msra.mxu0 0.0
      %859 = vmatprep.subr.mxu0 0.0
      %860 = vmatpush1.msra.mxu0 0.0
      %861 = vmatprep.subr.mxu0 0.0
      %862 = vmatpush1.msra.mxu0 0.0
      %863 = vmatprep.subr.mxu0 0.0
      %864 = vmatpush1.msra.mxu0 0.0
      %865 = vmatprep.subr.mxu0 0.0
      %866 = vmatpush1.msra.mxu0 0.0
      %867 = vmatprep.subr.mxu0 0.0
      %868 = vmatpush1.msra.mxu0 0.0
      %869 = vmatprep.subr.mxu0 0.0
      %870 = vmatpush1.msra.mxu0 0.0
      %871 = vmatprep.subr.mxu0 0.0
      %872 = vmatpush1.msra.mxu0 0.0
      %873 = vmatprep.subr.mxu0 0.0
      %874 = vmatpush1.msra.mxu0 0.0
      %875 = vmatprep.subr.mxu0 0.0
      %876 = vmatpush1.msra.mxu0 0.0
      %877 = vmatprep.subr.mxu0 0.0
      %878 = vmatpush1.msra.mxu0 0.0
      %879 = vmatprep.subr.mxu0 0.0
      %880 = vmatpush1.msra.mxu0 0.0
      %881 = vmatprep.subr.mxu0 0.0
      %882 = vmatpush1.msra.mxu0 0.0
      %883 = vmatprep.subr.mxu0 0.0
      %884 = vmatpush1.msra.mxu0 0.0
      %885 = vmatprep.subr.mxu0 0.0
      %886 = vmatpush1.msra.mxu0 0.0
      %887 = vmatprep.subr.mxu0 0.0
      %888 = vmatpush1.msra.mxu0 0.0
      %889 = vmatprep.mubr.f32.mxu0 0.0
      %890 = vmatmul.mubr.f32.gmra.mrb[0].mxu0 %v820
      %v891 = vpop.f32.mrb[0].mxu0
      %v892 = vadd.f32 0.0, %v891
      %v893 = vpop.f32.mrb[0].mxu0
      %894 = vdwg.mxu0
      %v895 = vld [vmem:[%s0] sm:$0xff]
      %v897 = vsel %vm177, %v895, 0
      %v900 = vsel %vm181, %v892, 0
      %902 = vmatprep.subr.mxu0 0.0
      %903 = vmatpush1.msra.mxu0 %v900
      %904 = vmatprep.subr.mxu0 0.0
      %905 = vmatpush1.msra.mxu0 0.0
      %906 = vmatprep.subr.mxu0 0.0
      %907 = vmatpush1.msra.mxu0 0.0
      %908 = vmatprep.subr.mxu0 0.0
      %909 = vmatpush1.msra.mxu0 0.0
      %910 = vmatprep.subr.mxu0 0.0
      %911 = vmatpush1.msra.mxu0 0.0
      %912 = vmatprep.subr.mxu0 0.0
      %913 = vmatpush1.msra.mxu0 0.0
      %914 = vmatprep.subr.mxu0 0.0
      %915 = vmatpush1.msra.mxu0 0.0
      %916 = vmatprep.subr.mxu0 0.0
      %917 = vmatpush1.msra.mxu0 0.0
      %918 = vmatprep.subr.mxu0 0.0
      %919 = vmatpush1.msra.mxu0 0.0
      %920 = vmatprep.subr.mxu0 0.0
      %921 = vmatpush1.msra.mxu0 0.0
      %922 = vmatprep.subr.mxu0 0.0
      %923 = vmatpush1.msra.mxu0 0.0
      %924 = vmatprep.subr.mxu0 0.0
      %925 = vmatpush1.msra.mxu0 0.0
      %926 = vmatprep.subr.mxu0 0.0
      %927 = vmatpush1.msra.mxu0 0.0
      %928 = vmatprep.subr.mxu0 0.0
      %929 = vmatpush1.msra.mxu0 0.0
      %930 = vmatprep.subr.mxu0 0.0
      %931 = vmatpush1.msra.mxu0 0.0
      %932 = vmatprep.subr.mxu0 0.0
      %933 = vmatpush1.msra.mxu0 0.0
      %934 = vmatprep.subr.mxu0 0.0
      %935 = vmatpush1.msra.mxu0 0.0
      %936 = vmatprep.subr.mxu0 0.0
      %937 = vmatpush1.msra.mxu0 0.0
      %938 = vmatprep.subr.mxu0 0.0
      %939 = vmatpush1.msra.mxu0 0.0
      %940 = vmatprep.subr.mxu0 0.0
      %941 = vmatpush1.msra.mxu0 0.0
      %942 = vmatprep.subr.mxu0 0.0
      %943 = vmatpush1.msra.mxu0 0.0
      %944 = vmatprep.subr.mxu0 0.0
      %945 = vmatpush1.msra.mxu0 0.0
      %946 = vmatprep.subr.mxu0 0.0
      %947 = vmatpush1.msra.mxu0 0.0
      %948 = vmatprep.subr.mxu0 0.0
      %949 = vmatpush1.msra.mxu0 0.0
      %950 = vmatprep.subr.mxu0 0.0
      %951 = vmatpush1.msra.mxu0 0.0
      %952 = vmatprep.subr.mxu0 0.0
      %953 = vmatpush1.msra.mxu0 0.0
      %954 = vmatprep.subr.mxu0 0.0
      %955 = vmatpush1.msra.mxu0 0.0
      %956 = vmatprep.subr.mxu0 0.0
      %957 = vmatpush1.msra.mxu0 0.0
      %958 = vmatprep.subr.mxu0 0.0
      %959 = vmatpush1.msra.mxu0 0.0
      %960 = vmatprep.subr.mxu0 0.0
      %961 = vmatpush1.msra.mxu0 0.0
      %962 = vmatprep.subr.mxu0 0.0
      %963 = vmatpush1.msra.mxu0 0.0
      %964 = vmatprep.subr.mxu0 0.0
      %965 = vmatpush1.msra.mxu0 0.0
      %966 = vmatprep.mubr.f32.mxu0 0.0
      %967 = vmatmul.mubr.f32.gmra.mrb[0].mxu0 %v897
      %v968 = vpop.f32.mrb[0].mxu0
      %v969 = vadd.f32 0.0, %v968
      %v970 = vpop.f32.mrb[0].mxu0
      %971 = vdwg.mxu0
      %v972 = vpack.c.bf16 %v969, %v969
      %s973 = scalar_lea.vmem %s172, 16
      %974 = vst.msk [vmem:[%s973] sm:$0xf] %vm333, %v972
      %s975 = scalar_lea.vmem %s166, 10
      %v976 = vld [vmem:[%s975] sm:$0x3]
      %v977 = vunpack.c.l.bf16 %v976
      %v978 = vld [vmem:[%s1] sm:$0xf]
      %v980 = vsel %vm177, %v977, 0
      %v983 = vsel %vm181, %v978, 0
      %985 = vmatprep.subr.mxu0 0.0
      %986 = vmatpush1.msra.mxu0 %v983
      %987 = vmatprep.subr.mxu0 0.0
      %988 = vmatpush1.msra.mxu0 0.0
      %989 = vmatprep.subr.mxu0 0.0
      %990 = vmatpush1.msra.mxu0 0.0
      %991 = vmatprep.subr.mxu0 0.0
      %992 = vmatpush1.msra.mxu0 0.0
      %993 = vmatprep.subr.mxu0 0.0
      %994 = vmatpush1.msra.mxu0 0.0
      %995 = vmatprep.subr.mxu0 0.0
      %996 = vmatpush1.msra.mxu0 0.0
      %997 = vmatprep.subr.mxu0 0.0
      %998 = vmatpush1.msra.mxu0 0.0
      %999 = vmatprep.subr.mxu0 0.0
      %1000 = vmatpush1.msra.mxu0 0.0
      %1001 = vmatprep.subr.mxu0 0.0
      %1002 = vmatpush1.msra.mxu0 0.0
      %1003 = vmatprep.subr.mxu0 0.0
      %1004 = vmatpush1.msra.mxu0 0.0
      %1005 = vmatprep.subr.mxu0 0.0
      %1006 = vmatpush1.msra.mxu0 0.0
      %1007 = vmatprep.subr.mxu0 0.0
      %1008 = vmatpush1.msra.mxu0 0.0
      %1009 = vmatprep.subr.mxu0 0.0
      %1010 = vmatpush1.msra.mxu0 0.0
      %1011 = vmatprep.subr.mxu0 0.0
      %1012 = vmatpush1.msra.mxu0 0.0
      %1013 = vmatprep.subr.mxu0 0.0
      %1014 = vmatpush1.msra.mxu0 0.0
      %1015 = vmatprep.subr.mxu0 0.0
      %1016 = vmatpush1.msra.mxu0 0.0
      %1017 = vmatprep.subr.mxu0 0.0
      %1018 = vmatpush1.msra.mxu0 0.0
      %1019 = vmatprep.subr.mxu0 0.0
      %1020 = vmatpush1.msra.mxu0 0.0
      %1021 = vmatprep.subr.mxu0 0.0
      %1022 = vmatpush1.msra.mxu0 0.0
      %1023 = vmatprep.subr.mxu0 0.0
      %1024 = vmatpush1.msra.mxu0 0.0
      %1025 = vmatprep.subr.mxu0 0.0
      %1026 = vmatpush1.msra.mxu0 0.0
      %1027 = vmatprep.subr.mxu0 0.0
      %1028 = vmatpush1.msra.mxu0 0.0
      %1029 = vmatprep.subr.mxu0 0.0
      %1030 = vmatpush1.msra.mxu0 0.0
      %1031 = vmatprep.subr.mxu0 0.0
      %1032 = vmatpush1.msra.mxu0 0.0
      %1033 = vmatprep.subr.mxu0 0.0
      %1034 = vmatpush1.msra.mxu0 0.0
      %1035 = vmatprep.subr.mxu0 0.0
      %1036 = vmatpush1.msra.mxu0 0.0
      %1037 = vmatprep.subr.mxu0 0.0
      %1038 = vmatpush1.msra.mxu0 0.0
      %1039 = vmatprep.subr.mxu0 0.0
      %1040 = vmatpush1.msra.mxu0 0.0
      %1041 = vmatprep.subr.mxu0 0.0
      %1042 = vmatpush1.msra.mxu0 0.0
      %1043 = vmatprep.subr.mxu0 0.0
      %1044 = vmatpush1.msra.mxu0 0.0
      %1045 = vmatprep.subr.mxu0 0.0
      %1046 = vmatpush1.msra.mxu0 0.0
      %1047 = vmatprep.subr.mxu0 0.0
      %1048 = vmatpush1.msra.mxu0 0.0
      %1049 = vmatprep.mubr.f32.mxu0 0.0
      %1050 = vmatmul.mubr.f32.gmra.mrb[0].mxu0 %v980
      %v1051 = vpop.f32.mrb[0].mxu0
      %v1052 = vadd.f32 0.0, %v1051
      %v1053 = vpop.f32.mrb[0].mxu0
      %1054 = vdwg.mxu0
      %v1055 = vld [vmem:[%s0] sm:$0xff]
      %v1057 = vsel %vm177, %v1055, 0
      %v1060 = vsel %vm181, %v1052, 0
      %1062 = vmatprep.subr.mxu0 0.0
      %1063 = vmatpush1.msra.mxu0 %v1060
      %1064 = vmatprep.subr.mxu0 0.0
      %1065 = vmatpush1.msra.mxu0 0.0
      %1066 = vmatprep.subr.mxu0 0.0
      %1067 = vmatpush1.msra.mxu0 0.0
      %1068 = vmatprep.subr.mxu0 0.0
      %1069 = vmatpush1.msra.mxu0 0.0
      %1070 = vmatprep.subr.mxu0 0.0
      %1071 = vmatpush1.msra.mxu0 0.0
      %1072 = vmatprep.subr.mxu0 0.0
      %1073 = vmatpush1.msra.mxu0 0.0
      %1074 = vmatprep.subr.mxu0 0.0
      %1075 = vmatpush1.msra.mxu0 0.0
      %1076 = vmatprep.subr.mxu0 0.0
      %1077 = vmatpush1.msra.mxu0 0.0
      %1078 = vmatprep.subr.mxu0 0.0
      %1079 = vmatpush1.msra.mxu0 0.0
      %1080 = vmatprep.subr.mxu0 0.0
      %1081 = vmatpush1.msra.mxu0 0.0
      %1082 = vmatprep.subr.mxu0 0.0
      %1083 = vmatpush1.msra.mxu0 0.0
      %1084 = vmatprep.subr.mxu0 0.0
      %1085 = vmatpush1.msra.mxu0 0.0
      %1086 = vmatprep.subr.mxu0 0.0
      %1087 = vmatpush1.msra.mxu0 0.0
      %1088 = vmatprep.subr.mxu0 0.0
      %1089 = vmatpush1.msra.mxu0 0.0
      %1090 = vmatprep.subr.mxu0 0.0
      %1091 = vmatpush1.msra.mxu0 0.0
      %1092 = vmatprep.subr.mxu0 0.0
      %1093 = vmatpush1.msra.mxu0 0.0
      %1094 = vmatprep.subr.mxu0 0.0
      %1095 = vmatpush1.msra.mxu0 0.0
      %1096 = vmatprep.subr.mxu0 0.0
      %1097 = vmatpush1.msra.mxu0 0.0
      %1098 = vmatprep.subr.mxu0 0.0
      %1099 = vmatpush1.msra.mxu0 0.0
      %1100 = vmatprep.subr.mxu0 0.0
      %1101 = vmatpush1.msra.mxu0 0.0
      %1102 = vmatprep.subr.mxu0 0.0
      %1103 = vmatpush1.msra.mxu0 0.0
      %1104 = vmatprep.subr.mxu0 0.0
      %1105 = vmatpush1.msra.mxu0 0.0
      %1106 = vmatprep.subr.mxu0 0.0
      %1107 = vmatpush1.msra.mxu0 0.0
      %1108 = vmatprep.subr.mxu0 0.0
      %1109 = vmatpush1.msra.mxu0 0.0
      %1110 = vmatprep.subr.mxu0 0.0
      %1111 = vmatpush1.msra.mxu0 0.0
      %1112 = vmatprep.subr.mxu0 0.0
      %1113 = vmatpush1.msra.mxu0 0.0
      %1114 = vmatprep.subr.mxu0 0.0
      %1115 = vmatpush1.msra.mxu0 0.0
      %1116 = vmatprep.subr.mxu0 0.0
      %1117 = vmatpush1.msra.mxu0 0.0
      %1118 = vmatprep.subr.mxu0 0.0
      %1119 = vmatpush1.msra.mxu0 0.0
      %1120 = vmatprep.subr.mxu0 0.0
      %1121 = vmatpush1.msra.mxu0 0.0
      %1122 = vmatprep.subr.mxu0 0.0
      %1123 = vmatpush1.msra.mxu0 0.0
      %1124 = vmatprep.subr.mxu0 0.0
      %1125 = vmatpush1.msra.mxu0 0.0
      %1126 = vmatprep.mubr.f32.mxu0 0.0
      %1127 = vmatmul.mubr.f32.gmra.mrb[0].mxu0 %v1057
      %v1128 = vpop.f32.mrb[0].mxu0
      %v1129 = vadd.f32 0.0, %v1128
      %v1130 = vpop.f32.mrb[0].mxu0
      %1131 = vdwg.mxu0
      %v1132 = vpack.c.bf16 %v1129, %v1129
      %s1133 = scalar_lea.vmem %s172, 20
      %1134 = vst.msk [vmem:[%s1133] sm:$0xf] %vm333, %v1132
      %s1135 = scalar_lea.vmem %s166, 12
      %v1136 = vld [vmem:[%s1135] sm:$0x3]
      %v1137 = vunpack.c.l.bf16 %v1136
      %v1138 = vld [vmem:[%s1] sm:$0xf]
      %v1140 = vsel %vm177, %v1137, 0
      %v1143 = vsel %vm181, %v1138, 0
      %1145 = vmatprep.subr.mxu0 0.0
      %1146 = vmatpush1.msra.mxu0 %v1143
      %1147 = vmatprep.subr.mxu0 0.0
      %1148 = vmatpush1.msra.mxu0 0.0
      %1149 = vmatprep.subr.mxu0 0.0
      %1150 = vmatpush1.msra.mxu0 0.0
      %1151 = vmatprep.subr.mxu0 0.0
      %1152 = vmatpush1.msra.mxu0 0.0
      %1153 = vmatprep.subr.mxu0 0.0
      %1154 = vmatpush1.msra.mxu0 0.0
      %1155 = vmatprep.subr.mxu0 0.0
      %1156 = vmatpush1.msra.mxu0 0.0
      %1157 = vmatprep.subr.mxu0 0.0
      %1158 = vmatpush1.msra.mxu0 0.0
      %1159 = vmatprep.subr.mxu0 0.0
      %1160 = vmatpush1.msra.mxu0 0.0
      %1161 = vmatprep.subr.mxu0 0.0
      %1162 = vmatpush1.msra.mxu0 0.0
      %1163 = vmatprep.subr.mxu0 0.0
      %1164 = vmatpush1.msra.mxu0 0.0
      %1165 = vmatprep.subr.mxu0 0.0
      %1166 = vmatpush1.msra.mxu0 0.0
      %1167 = vmatprep.subr.mxu0 0.0
      %1168 = vmatpush1.msra.mxu0 0.0
      %1169 = vmatprep.subr.mxu0 0.0
      %1170 = vmatpush1.msra.mxu0 0.0
      %1171 = vmatprep.subr.mxu0 0.0
      %1172 = vmatpush1.msra.mxu0 0.0
      %1173 = vmatprep.subr.mxu0 0.0
      %1174 = vmatpush1.msra.mxu0 0.0
      %1175 = vmatprep.subr.mxu0 0.0
      %1176 = vmatpush1.msra.mxu0 0.0
      %1177 = vmatprep.subr.mxu0 0.0
      %1178 = vmatpush1.msra.mxu0 0.0
      %1179 = vmatprep.subr.mxu0 0.0
      %1180 = vmatpush1.msra.mxu0 0.0
      %1181 = vmatprep.subr.mxu0 0.0
      %1182 = vmatpush1.msra.mxu0 0.0
      %1183 = vmatprep.subr.mxu0 0.0
      %1184 = vmatpush1.msra.mxu0 0.0
      %1185 = vmatprep.subr.mxu0 0.0
      %1186 = vmatpush1.msra.mxu0 0.0
      %1187 = vmatprep.subr.mxu0 0.0
      %1188 = vmatpush1.msra.mxu0 0.0
      %1189 = vmatprep.subr.mxu0 0.0
      %1190 = vmatpush1.msra.mxu0 0.0
      %1191 = vmatprep.subr.mxu0 0.0
      %1192 = vmatpush1.msra.mxu0 0.0
      %1193 = vmatprep.subr.mxu0 0.0
      %1194 = vmatpush1.msra.mxu0 0.0
      %1195 = vmatprep.subr.mxu0 0.0
      %1196 = vmatpush1.msra.mxu0 0.0
      %1197 = vmatprep.subr.mxu0 0.0
      %1198 = vmatpush1.msra.mxu0 0.0
      %1199 = vmatprep.subr.mxu0 0.0
      %1200 = vmatpush1.msra.mxu0 0.0
      %1201 = vmatprep.subr.mxu0 0.0
      %1202 = vmatpush1.msra.mxu0 0.0
      %1203 = vmatprep.subr.mxu0 0.0
      %1204 = vmatpush1.msra.mxu0 0.0
      %1205 = vmatprep.subr.mxu0 0.0
      %1206 = vmatpush1.msra.mxu0 0.0
      %1207 = vmatprep.subr.mxu0 0.0
      %1208 = vmatpush1.msra.mxu0 0.0
      %1209 = vmatprep.mubr.f32.mxu0 0.0
      %1210 = vmatmul.mubr.f32.gmra.mrb[0].mxu0 %v1140
      %v1211 = vpop.f32.mrb[0].mxu0
      %v1212 = vadd.f32 0.0, %v1211
      %v1213 = vpop.f32.mrb[0].mxu0
      %1214 = vdwg.mxu0
      %v1215 = vld [vmem:[%s0] sm:$0xff]
      %v1217 = vsel %vm177, %v1215, 0
      %v1220 = vsel %vm181, %v1212, 0
      %1222 = vmatprep.subr.mxu0 0.0
      %1223 = vmatpush1.msra.mxu0 %v1220
      %1224 = vmatprep.subr.mxu0 0.0
      %1225 = vmatpush1.msra.mxu0 0.0
      %1226 = vmatprep.subr.mxu0 0.0
      %1227 = vmatpush1.msra.mxu0 0.0
      %1228 = vmatprep.subr.mxu0 0.0
      %1229 = vmatpush1.msra.mxu0 0.0
      %1230 = vmatprep.subr.mxu0 0.0
      %1231 = vmatpush1.msra.mxu0 0.0
      %1232 = vmatprep.subr.mxu0 0.0
      %1233 = vmatpush1.msra.mxu0 0.0
      %1234 = vmatprep.subr.mxu0 0.0
      %1235 = vmatpush1.msra.mxu0 0.0
      %1236 = vmatprep.subr.mxu0 0.0
      %1237 = vmatpush1.msra.mxu0 0.0
      %1238 = vmatprep.subr.mxu0 0.0
      %1239 = vmatpush1.msra.mxu0 0.0
      %1240 = vmatprep.subr.mxu0 0.0
      %1241 = vmatpush1.msra.mxu0 0.0
      %1242 = vmatprep.subr.mxu0 0.0
      %1243 = vmatpush1.msra.mxu0 0.0
      %1244 = vmatprep.subr.mxu0 0.0
      %1245 = vmatpush1.msra.mxu0 0.0
      %1246 = vmatprep.subr.mxu0 0.0
      %1247 = vmatpush1.msra.mxu0 0.0
      %1248 = vmatprep.subr.mxu0 0.0
      %1249 = vmatpush1.msra.mxu0 0.0
      %1250 = vmatprep.subr.mxu0 0.0
      %1251 = vmatpush1.msra.mxu0 0.0
      %1252 = vmatprep.subr.mxu0 0.0
      %1253 = vmatpush1.msra.mxu0 0.0
      %1254 = vmatprep.subr.mxu0 0.0
      %1255 = vmatpush1.msra.mxu0 0.0
      %1256 = vmatprep.subr.mxu0 0.0
      %1257 = vmatpush1.msra.mxu0 0.0
      %1258 = vmatprep.subr.mxu0 0.0
      %1259 = vmatpush1.msra.mxu0 0.0
      %1260 = vmatprep.subr.mxu0 0.0
      %1261 = vmatpush1.msra.mxu0 0.0
      %1262 = vmatprep.subr.mxu0 0.0
      %1263 = vmatpush1.msra.mxu0 0.0
      %1264 = vmatprep.subr.mxu0 0.0
      %1265 = vmatpush1.msra.mxu0 0.0
      %1266 = vmatprep.subr.mxu0 0.0
      %1267 = vmatpush1.msra.mxu0 0.0
      %1268 = vmatprep.subr.mxu0 0.0
      %1269 = vmatpush1.msra.mxu0 0.0
      %1270 = vmatprep.subr.mxu0 0.0
      %1271 = vmatpush1.msra.mxu0 0.0
      %1272 = vmatprep.subr.mxu0 0.0
      %1273 = vmatpush1.msra.mxu0 0.0
      %1274 = vmatprep.subr.mxu0 0.0
      %1275 = vmatpush1.msra.mxu0 0.0
      %1276 = vmatprep.subr.mxu0 0.0
      %1277 = vmatpush1.msra.mxu0 0.0
      %1278 = vmatprep.subr.mxu0 0.0
      %1279 = vmatpush1.msra.mxu0 0.0
      %1280 = vmatprep.subr.mxu0 0.0
      %1281 = vmatpush1.msra.mxu0 0.0
      %1282 = vmatprep.subr.mxu0 0.0
      %1283 = vmatpush1.msra.mxu0 0.0
      %1284 = vmatprep.subr.mxu0 0.0
      %1285 = vmatpush1.msra.mxu0 0.0
      %1286 = vmatprep.mubr.f32.mxu0 0.0
      %1287 = vmatmul.mubr.f32.gmra.mrb[0].mxu0 %v1217
      %v1288 = vpop.f32.mrb[0].mxu0
      %v1289 = vadd.f32 0.0, %v1288
      %v1290 = vpop.f32.mrb[0].mxu0
      %1291 = vdwg.mxu0
      %v1292 = vpack.c.bf16 %v1289, %v1289
      %s1293 = scalar_lea.vmem %s172, 24
      %1294 = vst.msk [vmem:[%s1293] sm:$0xf] %vm333, %v1292
      %s1295 = scalar_lea.vmem %s166, 14
      %v1296 = vld [vmem:[%s1295] sm:$0x3]
      %v1297 = vunpack.c.l.bf16 %v1296
      %v1298 = vld [vmem:[%s1] sm:$0xf]
      %v1300 = vsel %vm177, %v1297, 0
      %v1303 = vsel %vm181, %v1298, 0
      %1305 = vmatprep.subr.mxu0 0.0
      %1306 = vmatpush1.msra.mxu0 %v1303
      %1307 = vmatprep.subr.mxu0 0.0
      %1308 = vmatpush1.msra.mxu0 0.0
      %1309 = vmatprep.subr.mxu0 0.0
      %1310 = vmatpush1.msra.mxu0 0.0
      %1311 = vmatprep.subr.mxu0 0.0
      %1312 = vmatpush1.msra.mxu0 0.0
      %1313 = vmatprep.subr.mxu0 0.0
      %1314 = vmatpush1.msra.mxu0 0.0
      %1315 = vmatprep.subr.mxu0 0.0
      %1316 = vmatpush1.msra.mxu0 0.0
      %1317 = vmatprep.subr.mxu0 0.0
      %1318 = vmatpush1.msra.mxu0 0.0
      %1319 = vmatprep.subr.mxu0 0.0
      %1320 = vmatpush1.msra.mxu0 0.0
      %1321 = vmatprep.subr.mxu0 0.0
      %1322 = vmatpush1.msra.mxu0 0.0
      %1323 = vmatprep.subr.mxu0 0.0
      %1324 = vmatpush1.msra.mxu0 0.0
      %1325 = vmatprep.subr.mxu0 0.0
      %1326 = vmatpush1.msra.mxu0 0.0
      %1327 = vmatprep.subr.mxu0 0.0
      %1328 = vmatpush1.msra.mxu0 0.0
      %1329 = vmatprep.subr.mxu0 0.0
      %1330 = vmatpush1.msra.mxu0 0.0
      %1331 = vmatprep.subr.mxu0 0.0
      %1332 = vmatpush1.msra.mxu0 0.0
      %1333 = vmatprep.subr.mxu0 0.0
      %1334 = vmatpush1.msra.mxu0 0.0
      %1335 = vmatprep.subr.mxu0 0.0
      %1336 = vmatpush1.msra.mxu0 0.0
      %1337 = vmatprep.subr.mxu0 0.0
      %1338 = vmatpush1.msra.mxu0 0.0
      %1339 = vmatprep.subr.mxu0 0.0
      %1340 = vmatpush1.msra.mxu0 0.0
      %1341 = vmatprep.subr.mxu0 0.0
      %1342 = vmatpush1.msra.mxu0 0.0
      %1343 = vmatprep.subr.mxu0 0.0
      %1344 = vmatpush1.msra.mxu0 0.0
      %1345 = vmatprep.subr.mxu0 0.0
      %1346 = vmatpush1.msra.mxu0 0.0
      %1347 = vmatprep.subr.mxu0 0.0
      %1348 = vmatpush1.msra.mxu0 0.0
      %1349 = vmatprep.subr.mxu0 0.0
      %1350 = vmatpush1.msra.mxu0 0.0
      %1351 = vmatprep.subr.mxu0 0.0
      %1352 = vmatpush1.msra.mxu0 0.0
      %1353 = vmatprep.subr.mxu0 0.0
      %1354 = vmatpush1.msra.mxu0 0.0
      %1355 = vmatprep.subr.mxu0 0.0
      %1356 = vmatpush1.msra.mxu0 0.0
      %1357 = vmatprep.subr.mxu0 0.0
      %1358 = vmatpush1.msra.mxu0 0.0
      %1359 = vmatprep.subr.mxu0 0.0
      %1360 = vmatpush1.msra.mxu0 0.0
      %1361 = vmatprep.subr.mxu0 0.0
      %1362 = vmatpush1.msra.mxu0 0.0
      %1363 = vmatprep.subr.mxu0 0.0
      %1364 = vmatpush1.msra.mxu0 0.0
      %1365 = vmatprep.subr.mxu0 0.0
      %1366 = vmatpush1.msra.mxu0 0.0
      %1367 = vmatprep.subr.mxu0 0.0
      %1368 = vmatpush1.msra.mxu0 0.0
      %1369 = vmatprep.mubr.f32.mxu0 0.0
      %1370 = vmatmul.mubr.f32.gmra.mrb[0].mxu0 %v1300
      %v1371 = vpop.f32.mrb[0].mxu0
      %v1372 = vadd.f32 0.0, %v1371
      %v1373 = vpop.f32.mrb[0].mxu0
      %1374 = vdwg.mxu0
      %v1375 = vld [vmem:[%s0] sm:$0xff]
      %v1377 = vsel %vm177, %v1375, 0
      %v1380 = vsel %vm181, %v1372, 0
      %1382 = vmatprep.subr.mxu0 0.0
      %1383 = vmatpush1.msra.mxu0 %v1380
      %1384 = vmatprep.subr.mxu0 0.0
      %1385 = vmatpush1.msra.mxu0 0.0
      %1386 = vmatprep.subr.mxu0 0.0
      %1387 = vmatpush1.msra.mxu0 0.0
      %1388 = vmatprep.subr.mxu0 0.0
      %1389 = vmatpush1.msra.mxu0 0.0
      %1390 = vmatprep.subr.mxu0 0.0
      %1391 = vmatpush1.msra.mxu0 0.0
      %1392 = vmatprep.subr.mxu0 0.0
      %1393 = vmatpush1.msra.mxu0 0.0
      %1394 = vmatprep.subr.mxu0 0.0
      %1395 = vmatpush1.msra.mxu0 0.0
      %1396 = vmatprep.subr.mxu0 0.0
      %1397 = vmatpush1.msra.mxu0 0.0
      %1398 = vmatprep.subr.mxu0 0.0
      %1399 = vmatpush1.msra.mxu0 0.0
      %1400 = vmatprep.subr.mxu0 0.0
      %1401 = vmatpush1.msra.mxu0 0.0
      %1402 = vmatprep.subr.mxu0 0.0
      %1403 = vmatpush1.msra.mxu0 0.0
      %1404 = vmatprep.subr.mxu0 0.0
      %1405 = vmatpush1.msra.mxu0 0.0
      %1406 = vmatprep.subr.mxu0 0.0
      %1407 = vmatpush1.msra.mxu0 0.0
      %1408 = vmatprep.subr.mxu0 0.0
      %1409 = vmatpush1.msra.mxu0 0.0
      %1410 = vmatprep.subr.mxu0 0.0
      %1411 = vmatpush1.msra.mxu0 0.0
      %1412 = vmatprep.subr.mxu0 0.0
      %1413 = vmatpush1.msra.mxu0 0.0
      %1414 = vmatprep.subr.mxu0 0.0
      %1415 = vmatpush1.msra.mxu0 0.0
      %1416 = vmatprep.subr.mxu0 0.0
      %1417 = vmatpush1.msra.mxu0 0.0
      %1418 = vmatprep.subr.mxu0 0.0
      %1419 = vmatpush1.msra.mxu0 0.0
      %1420 = vmatprep.subr.mxu0 0.0
      %1421 = vmatpush1.msra.mxu0 0.0
      %1422 = vmatprep.subr.mxu0 0.0
      %1423 = vmatpush1.msra.mxu0 0.0
      %1424 = vmatprep.subr.mxu0 0.0
      %1425 = vmatpush1.msra.mxu0 0.0
      %1426 = vmatprep.subr.mxu0 0.0
      %1427 = vmatpush1.msra.mxu0 0.0
      %1428 = vmatprep.subr.mxu0 0.0
      %1429 = vmatpush1.msra.mxu0 0.0
      %1430 = vmatprep.subr.mxu0 0.0
      %1431 = vmatpush1.msra.mxu0 0.0
      %1432 = vmatprep.subr.mxu0 0.0
      %1433 = vmatpush1.msra.mxu0 0.0
      %1434 = vmatprep.subr.mxu0 0.0
      %1435 = vmatpush1.msra.mxu0 0.0
      %1436 = vmatprep.subr.mxu0 0.0
      %1437 = vmatpush1.msra.mxu0 0.0
      %1438 = vmatprep.subr.mxu0 0.0
      %1439 = vmatpush1.msra.mxu0 0.0
      %1440 = vmatprep.subr.mxu0 0.0
      %1441 = vmatpush1.msra.mxu0 0.0
      %1442 = vmatprep.subr.mxu0 0.0
      %1443 = vmatpush1.msra.mxu0 0.0
      %1444 = vmatprep.subr.mxu0 0.0
      %1445 = vmatpush1.msra.mxu0 0.0
      %1446 = vmatprep.mubr.f32.mxu0 0.0
      %1447 = vmatmul.mubr.f32.gmra.mrb[0].mxu0 %v1377
      %v1448 = vpop.f32.mrb[0].mxu0
      %v1449 = vadd.f32 0.0, %v1448
      %v1450 = vpop.f32.mrb[0].mxu0
      %1451 = vdwg.mxu0
      %v1452 = vpack.c.bf16 %v1449, %v1449
      %s1453 = scalar_lea.vmem %s172, 28
      %1454 = vst.msk [vmem:[%s1453] sm:$0xf] %vm333, %v1452
      %s1455 = smul.u32 8, %s14
      %p1456 = scmp.lt.s32.totalorder %s1455, 31
      %s1457 = scalar_select %p1456, %s1455, 31
      %s1458 = smul.addr %s1457, 4
      %s1459 = scalar_lea.vmem %s3, %s1458
      // Predicated region
      $region33: #{rttdetv2_forward.20} parent=31 // pred_check
        %p1460 = pneg %p100
      $region34: #{rttdetv2_forward.20} parent=31 // pred_check_branch
        %1462 = sbr.rel (%p1460) target = $region36
      $region35: #{rttdetv2_forward.20} parent=31 // pred_region
        %s1463 = smul.u32 8, %s14
      $region36: #{rttdetv2_forward.20} parent=31 // pred_fallthru
        _
    $region32: #{rttdetv2_forward.20} parent=5 // pred_fallthru
      _
    %p1464 = scmp.le.s32.totalorder 2, %s9
    // Predicated region
    $region37: #{rttdetv2_forward.20} parent=5 // pred_check
      %p1465 = pneg %p1464
    $region38: #{rttdetv2_forward.20} parent=5 // pred_check_branch
      %1467 = sbr.rel (%p1465) target = $region40
    $region39: #{rttdetv2_forward.20} parent=5 // pred_region
      %s1468 = ssub.s32 %s9, 2
      // Predicated region
      $region41: #{rttdetv2_forward.20} parent=39 // pred_check
        %p1469 = pneg %p106
      $region42: #{rttdetv2_forward.20} parent=39 // pred_check_branch
        %1471 = sbr.rel (%p1469) target = $region44
      $region43: #{rttdetv2_forward.20} parent=39 // pred_region
        %s1472 = smul.u32 8, %s15
        %p1473 = scmp.lt.s32.totalorder %s1472, 31
        %s1474 = scalar_select %p1473, %s1472, 31
        %s1475 = smul.addr %s1474, 4
        %s1476 = scalar_lea.vmem %s3, %s1475
      $region44: #{rttdetv2_forward.20} parent=39 // pred_fallthru
        _
    $region40: #{rttdetv2_forward.20} parent=5 // pred_fallthru
      _
  $region6: #{rttdetv2_forward.20} parent=0 // loop_footer
    %s13 = sadd.s32 1, %s9
  $region7: #{rttdetv2_forward.20} parent=0 // loop_footer_branch
    %8 = sbr.rel target = $region3
  $region8: #{rttdetv2_forward.20} parent=0 // loop_exit
    _

// kernel: rttdetv2_forward.21
$region0: #{rttdetv2_forward.21}
  #allocation0 [shape = 'u32[]', space=smem, size = 0x4, offset = 0x4, fixed_abs, tag = 'smem constant byte address 0x4 - core index']
  #allocation1 [shape = 'u32[144,128]{1,0:T(1,128)}', space=vmem, size = 0x12000, scoped, tag = 'internal scratch']
  %s0 = inlined_call_operand.vmem [shape: bf16[16,16], index: 0, kind: input, shape index: {}]
  %s1 = inlined_call_operand.vmem [shape: bf16[16,128], index: 1, kind: input, shape index: {}]
  %s2 = inlined_call_operand.vmem [shape: f32[16,1], index: 2, kind: input, shape index: {}]
  %s3 = inlined_call_operand.vmem [shape: bf16[16,128], index: 3, kind: input, shape index: {}]
  %s4 = inlined_call_operand.vmem [shape: bf16[16,128], index: 4, kind: output, shape index: {}]
  %s5 = sld [smem:[#allocation0]]
  $region26: #{rttdetv2_forward.21} parent=0
    _
  %s7 = ssub.s32 1, %s5
  %s8 = scalar_select 0, %s7, %s5
  // Predicated region
  $region2: #{rttdetv2_forward.21} parent=0 // pred_check
    _
  $region3: #{rttdetv2_forward.21} parent=0 // pred_check_branch
    %10 = sbr.rel (0) target = $region5
  $region4: #{rttdetv2_forward.21} parent=0 // pred_region
    _
  $region5: #{rttdetv2_forward.21} parent=0 // pred_fallthru
    _
  // Predicated region
  $region6: #{rttdetv2_forward.21} parent=0 // pred_check
    _
  $region7: #{rttdetv2_forward.21} parent=0 // pred_check_branch
    %12 = sbr.rel (0) target = $region9
  $region8: #{rttdetv2_forward.21} parent=0 // pred_region
    _
  $region9: #{rttdetv2_forward.21} parent=0 // pred_fallthru
    _
  // Predicated region
  $region10: #{rttdetv2_forward.21} parent=0 // pred_check
    _
  $region11: #{rttdetv2_forward.21} parent=0 // pred_check_branch
    %14 = sbr.rel (0) target = $region13
  $region12: #{rttdetv2_forward.21} parent=0 // pred_region
    _
  $region13: #{rttdetv2_forward.21} parent=0 // pred_fallthru
    _
  // Predicated region
  $region14: #{rttdetv2_forward.21} parent=0 // pred_check
    _
  $region15: #{rttdetv2_forward.21} parent=0 // pred_check_branch
    %16 = sbr.rel (0) target = $region17
  $region16: #{rttdetv2_forward.21} parent=0 // pred_region
    _
  $region17: #{rttdetv2_forward.21} parent=0 // pred_fallthru
    _
  %v18 = vld [vmem:[%s0] sm:$0xf]
  %v19 = vld [vmem:[%s0 + $0x4] sm:$0xf]
  %v20 = vld [vmem:[%s1] sm:$0xf]
  %v21 = vld [vmem:[%s1 + $0x4] sm:$0xf]
  %v22 = vld [vmem:[%s2] sm:$0xff]
  %v23 = vld [vmem:[%s2 + $0x8] sm:$0xff]
  %25 = vset.pattern.permute.xlu0 0
  %26 = vperm.xlu0 %25, %v22
  %v27 = vpop.permute.xlu0 %26
  %30 = vset.pattern.permute.xlu0 0
  %31 = vperm.xlu0 %30, %v23
  %v32 = vpop.permute.xlu0 %31
  %v36 = vunpack.c.l.b16 %v18
  %v37 = vunpack.c.l.b16 %v19
  %v38 = vpack.c.b16 %v37, %v36
  %v41 = vunpack.c.l.b16 %v20
  %v42 = vunpack.c.l.b16 %v21
  %v43 = vpack.c.b16 %v42, %v41
  %vm45 = vcmask 130048
  %v47 = vsel %vm45, %v38, 0
  %49 = vmatprep.subr.bf16.mxu0 0
  %50 = vmatpush1.bf16.msra.mxu0 %v43
  %51 = vmatprep.subr.bf16.mxu0 0
  %52 = vmatpush1.bf16.msra.mxu0 0
  %53 = vmatprep.subr.bf16.mxu0 0
  %54 = vmatpush1.bf16.msra.mxu0 0
  %55 = vmatprep.subr.bf16.mxu0 0
  %56 = vmatpush1.bf16.msra.mxu0 0
  %57 = vmatprep.subr.bf16.mxu0 0
  %58 = vmatpush1.bf16.msra.mxu0 0
  %59 = vmatprep.subr.bf16.mxu0 0
  %60 = vmatpush1.bf16.msra.mxu0 0
  %61 = vmatprep.subr.bf16.mxu0 0
  %62 = vmatpush1.bf16.msra.mxu0 0
  %63 = vmatprep.subr.bf16.mxu0 0
  %64 = vmatpush1.bf16.msra.mxu0 0
  %65 = vmatprep.subr.bf16.mxu0 0
  %66 = vmatpush1.bf16.msra.mxu0 0
  %67 = vmatprep.subr.bf16.mxu0 0
  %68 = vmatpush1.bf16.msra.mxu0 0
  %69 = vmatprep.subr.bf16.mxu0 0
  %70 = vmatpush1.bf16.msra.mxu0 0
  %71 = vmatprep.subr.bf16.mxu0 0
  %72 = vmatpush1.bf16.msra.mxu0 0
  %73 = vmatprep.subr.bf16.mxu0 0
  %74 = vmatpush1.bf16.msra.mxu0 0
  %75 = vmatprep.subr.bf16.mxu0 0
  %76 = vmatpush1.bf16.msra.mxu0 0
  %77 = vmatprep.subr.bf16.mxu0 0
  %78 = vmatpush1.bf16.msra.mxu0 0
  %79 = vmatprep.subr.bf16.mxu0 0
  %80 = vmatpush1.bf16.msra.mxu0 0
  %81 = vmatprep.mubr.bf16.mxu0 0
  %82 = vmatmul.mubr.bf16.gmra.mrb[0].mxu0 %v47
  %v83 = vpop.f32.mrb[0].mxu0
  %v84 = vadd.f32 %v27, %v83
  %v85 = vpop.f32.mrb[0].mxu0
  %v86 = vpop.f32.mrb[0].mxu0
  %v87 = vadd.f32 %v32, %v86
  %v88 = vpop.f32.mrb[0].mxu0
  %89 = vdwg.mxu0
  %v90 = vld [vmem:[%s3] sm:$0xf]
  %v91 = vld [vmem:[%s3 + $0x4] sm:$0xf]
  %v92 = vunpack.c.l.bf16 %v90
  %v93 = vunpack.c.l.bf16 %v91
  %v94 = vadd.f32 %v84, %v92
  %v95 = vadd.f32 %v87, %v93
  %v96 = vpack.c.bf16 %v95, %v94
  %v98 = vunpack.c.l.b16 %v96
  %v99 = vunpack.c.h.b16 %v96
  %v100 = vpack.c.b16 %v98, %v98
  %v101 = vpack.c.b16 %v99, %v99
  %104 = vst [vmem:[%s4] sm:$0xf] %v100
  %105 = vst [vmem:[%s4 + $0x4] sm:$0xf] %v101
  // Predicated region
  $region18: #{rttdetv2_forward.21} parent=0 // pred_check
    _
  $region19: #{rttdetv2_forward.21} parent=0 // pred_check_branch
    %107 = sbr.rel (0) target = $region21
  $region20: #{rttdetv2_forward.21} parent=0 // pred_region
    _
  $region21: #{rttdetv2_forward.21} parent=0 // pred_fallthru
    _
  // Predicated region
  $region22: #{rttdetv2_forward.21} parent=0 // pred_check
    _
  $region23: #{rttdetv2_forward.21} parent=0 // pred_check_branch
    %109 = sbr.rel (0) target = $region25
  $region24: #{rttdetv2_forward.21} parent=0 // pred_region
    _
  $region25: #{rttdetv2_forward.21} parent=0 // pred_fallthru
    _

// kernel: rttdetv2_forward.18
$region0: #{rttdetv2_forward.18}
  #allocation0 [shape = 'u32[]', space=smem, size = 0x4, offset = 0x4, fixed_abs, tag = 'smem constant byte address 0x4 - core index']
  #allocation1 [shape = 'u32[144,128]{1,0:T(1,128)}', space=vmem, size = 0x12000, scoped, tag = 'internal scratch']
  %s0 = inlined_call_operand.vmem [shape: f32[4,2], index: 0, kind: input, shape index: {}]
  %s1 = inlined_call_operand.vmem [shape: f32[2,4], index: 1, kind: input, shape index: {}]
  %s2 = inlined_call_operand.vmem [shape: bf16[32,2,2], index: 2, kind: input, shape index: {}]
  %s3 = inlined_call_operand.vmem [shape: bf16[32,4,4], index: 3, kind: output, shape index: {}]
  %s4 = sld [smem:[#allocation0]]
  $region45: #{rttdetv2_forward.18} parent=0
    _
  %s6 = ssub.s32 1, %s4
  %s7 = scalar_select 0, %s6, %s4
  loop: start=0, step=1, limit=6
  $region2: #{rttdetv2_forward.18} parent=0 // loop_pre_header
    _
  $region3: #{rttdetv2_forward.18} parent=0 // loop_header
    %s9 = sphi 0, %s13
    %p10 = scmp.ge.s32.totalorder %s9, 6
    %s17 = sphi 0, %s17
    %s19 = sphi 0, %s17
    %s20 = sphi 0, %s19
    %s34 = sphi 0, %s20
    %s38 = sphi 0, %s38
    %s40 = sphi 0, %s38
    %s41 = sphi 0, %s40
    %s55 = sphi 0, %s41
    %s61 = sphi 0, %s63
    %s64 = sphi 0, %s61
    %s65 = sphi 0, %s64
    %s81 = sphi 0, %s65
    %s87 = sphi 0, %s89
    %s90 = sphi 0, %s87
    %s91 = sphi 0, %s90
    %s107 = sphi 0, %s91
  $region4: #{rttdetv2_forward.18} parent=0 // loop_header_branch
    %12 = sbr.rel (%p10) target = $region8
  $region5: #{rttdetv2_forward.18} parent=0 // loop_body
    %s14 = ssub.s32 %s9, 1
    %s15 = ssub.s32 %s9, 2
    %s16 = sadd.s32 %s9, 1
    %s18 = sadd.s32 %s17, 1
    %p21 = scmp.eq.s32.totalorder %s9, 3
    %p22 = scmp.ne.s32.totalorder %s17, %s19
    %p23 = scmp.eq.s32.totalorder %s9, 0
    %p24 = por %p22, %p23
    %p25 = scmp.ne.s32.totalorder %s17, %s19
    %p26 = scmp.eq.s32.totalorder %s14, 3
    %p27 = por %p25, %p26
    %p28 = scmp.ne.s32.totalorder %s19, %s20
    %p29 = scmp.eq.s32.totalorder %s14, 0
    %p30 = por %p28, %p29
    %p31 = scmp.ne.s32.totalorder %s19, %s20
    %p32 = scmp.eq.s32.totalorder %s15, 3
    %p33 = por %p31, %p32
    %p35 = scmp.ne.s32.totalorder %s20, %s34
    %p36 = scmp.eq.s32.totalorder %s15, 0
    %p37 = por %p35, %p36
    %s39 = sadd.s32 %s38, 1
    %p42 = scmp.eq.s32.totalorder %s9, 3
    %p43 = scmp.ne.s32.totalorder %s38, %s40
    %p44 = scmp.eq.s32.totalorder %s9, 0
    %p45 = por %p43, %p44
    %p46 = scmp.ne.s32.totalorder %s38, %s40
    %p47 = scmp.eq.s32.totalorder %s14, 3
    %p48 = por %p46, %p47
    %p49 = scmp.ne.s32.totalorder %s40, %s41
    %p50 = scmp.eq.s32.totalorder %s14, 0
    %p51 = por %p49, %p50
    %p52 = scmp.ne.s32.totalorder %s40, %s41
    %p53 = scmp.eq.s32.totalorder %s15, 3
    %p54 = por %p52, %p53
    %p56 = scmp.ne.s32.totalorder %s41, %s55
    %p57 = scmp.eq.s32.totalorder %s15, 0
    %p58 = por %p56, %p57
    %s59 = ssub.s32 %s9, %s16
    %p60 = scmp.eq.s32.totalorder %s59, 0
    %s62 = sadd.s32 %s61, 1
    %s63 = scalar_select %p60, %s61, %s62
    %p66 = pneg %p60
    %p67 = scmp.eq.s32.totalorder %s9, 3
    %p68 = por %p66, %p67
    %p69 = scmp.ne.s32.totalorder %s61, %s64
    %p70 = scmp.eq.s32.totalorder %s9, 0
    %p71 = por %p69, %p70
    %p72 = scmp.ne.s32.totalorder %s61, %s64
    %p73 = scmp.eq.s32.totalorder %s14, 3
    %p74 = por %p72, %p73
    %p75 = scmp.ne.s32.totalorder %s64, %s65
    %p76 = scmp.eq.s32.totalorder %s14, 0
    %p77 = por %p75, %p76
    %p78 = scmp.ne.s32.totalorder %s64, %s65
    %p79 = scmp.eq.s32.totalorder %s15, 3
    %p80 = por %p78, %p79
    %p82 = scmp.ne.s32.totalorder %s65, %s81
    %p83 = scmp.eq.s32.totalorder %s15, 0
    %p84 = por %p82, %p83
    %s85 = ssub.s32 %s9, %s16
    %p86 = scmp.eq.s32.totalorder %s85, 0
    %s88 = sadd.s32 %s87, 1
    %s89 = scalar_select %p86, %s87, %s88
    %p92 = pneg %p86
    %p93 = scmp.eq.s32.totalorder %s9, 3
    %p94 = por %p92, %p93
    %p95 = scmp.ne.s32.totalorder %s87, %s90
    %p96 = scmp.eq.s32.totalorder %s9, 0
    %p97 = por %p95, %p96
    %p98 = scmp.ne.s32.totalorder %s87, %s90
    %p99 = scmp.eq.s32.totalorder %s14, 3
    %p100 = por %p98, %p99
    %p101 = scmp.ne.s32.totalorder %s90, %s91
    %p102 = scmp.eq.s32.totalorder %s14, 0
    %p103 = por %p101, %p102
    %p104 = scmp.ne.s32.totalorder %s90, %s91
    %p105 = scmp.eq.s32.totalorder %s15, 3
    %p106 = por %p104, %p105
    %p108 = scmp.ne.s32.totalorder %s91, %s107
    %p109 = scmp.eq.s32.totalorder %s15, 0
    %p110 = por %p108, %p109
    %p111 = scmp.le.s32.totalorder 1, %s9
    %p112 = scmp.lt.s32.totalorder %s9, 5
    %p113 = pnand %p111, %p112
    %p114 = pneg %p113
    // Predicated region
    $region9: #{rttdetv2_forward.18} parent=5 // pred_check
      _
    $region10: #{rttdetv2_forward.18} parent=5 // pred_check_branch
      %116 = sbr.rel (%p113) target = $region12
    $region11: #{rttdetv2_forward.18} parent=5 // pred_region
      %s117 = ssub.s32 %s9, 1
      // Predicated region
      $region13: #{rttdetv2_forward.18} parent=11 // pred_check
        %p118 = pneg %p30
      $region14: #{rttdetv2_forward.18} parent=11 // pred_check_branch
        %120 = sbr.rel (%p118) target = $region16
      $region15: #{rttdetv2_forward.18} parent=11 // pred_region
        _
      $region16: #{rttdetv2_forward.18} parent=11 // pred_fallthru
        _
      // Predicated region
      $region17: #{rttdetv2_forward.18} parent=11 // pred_check
        %p121 = pneg %p51
      $region18: #{rttdetv2_forward.18} parent=11 // pred_check_branch
        %123 = sbr.rel (%p121) target = $region20
      $region19: #{rttdetv2_forward.18} parent=11 // pred_region
        _
      $region20: #{rttdetv2_forward.18} parent=11 // pred_fallthru
        _
    $region12: #{rttdetv2_forward.18} parent=5 // pred_fallthru
      _
    %p124 = scmp.lt.s32.totalorder %s9, 4
    // Predicated region
    $region21: #{rttdetv2_forward.18} parent=5 // pred_check
      %p125 = pneg %p124
    $region22: #{rttdetv2_forward.18} parent=5 // pred_check_branch
      %127 = sbr.rel (%p125) target = $region24
    $region23: #{rttdetv2_forward.18} parent=5 // pred_region
      // Predicated region
      $region25: #{rttdetv2_forward.18} parent=23 // pred_check
        %p128 = pneg %p71
      $region26: #{rttdetv2_forward.18} parent=23 // pred_check_branch
        %130 = sbr.rel (%p128) target = $region28
      $region27: #{rttdetv2_forward.18} parent=23 // pred_region
        %s131 = smul.u32 8, %s9
        %p132 = scmp.lt.s32.totalorder %s131, 31
        %s133 = scalar_select %p132, %s131, 31
        %s134 = scalar_lea.vmem %s2, %s133
        %s135 = smul.u32 8, %s9
      $region28: #{rttdetv2_forward.18} parent=23 // pred_fallthru
        _
    $region24: #{rttdetv2_forward.18} parent=5 // pred_fallthru
      _
    %p136 = scmp.le.s32.totalorder 1, %s9
    %p137 = scmp.lt.s32.totalorder %s9, 5
    %p138 = pnand %p136, %p137
    %p139 = pneg %p138
    // Predicated region
    $region29: #{rttdetv2_forward.18} parent=5 // pred_check
      _
    $region30: #{rttdetv2_forward.18} parent=5 // pred_check_branch
      %141 = sbr.rel (%p138) target = $region32
    $region31: #{rttdetv2_forward.18} parent=5 // pred_region
      %s142 = ssub.s32 %s9, 1
      %p143 = pneg %p30
      %p144 = pneg %p27
      %p145 = pneg %p51
      %p146 = pneg %p48
      %s147 = smul.u32 8, %s14
      %p148 = scmp.lt.s32.totalorder %s147, 31
      %s149 = scalar_select %p148, %s147, 31
      %s150 = scalar_lea.vmem %s2, %s149
      %p151 = pneg %p77
      %p152 = pneg %p74
      %p153 = pneg %p103
      %p154 = pneg %p100
      %s155 = smul.u32 8, %s14
      %p156 = scmp.lt.s32.totalorder %s155, 31
      %s157 = scalar_select %p156, %s155, 31
      %s158 = smul.addr %s157, 2
      %s159 = scalar_lea.vmem %s3, %s158
      %s160 = smul.u32 8, %s14
      %p161 = scmp.lt.s32.totalorder %s160, 31
      %s162 = scalar_select %p161, %s160, 31
      %s163 = scalar_lea.vmem %s2, %s162
      %s164 = smul.u32 8, %s14
      %s165 = smul.u32 8, %s14
      %p166 = scmp.lt.s32.totalorder %s165, 31
      %s167 = scalar_select %p166, %s165, 31
      %s168 = smul.addr %s167, 2
      %s169 = scalar_lea.vmem %s3, %s168
      %s170 = smul.u32 8, %s14
      %v171 = vld [vmem:[%s163] sm:$0x1]
      %v172 = vunpack.c.l.bf16 %v171
      %v173 = vld [vmem:[%s1] sm:$0x3]
      %vm174 = vcmask 15360
      %v176 = vsel %vm174, %v172, 0
      %vm178 = vcmask 1041408
      %v180 = vsel %vm178, %v173, 0
      %182 = vmatprep.subr.mxu0 0.0
      %183 = vmatpush1.msra.mxu0 %v180
      %184 = vmatprep.subr.mxu0 0.0
      %185 = vmatpush1.msra.mxu0 0.0
      %186 = vmatprep.subr.mxu0 0.0
      %187 = vmatpush1.msra.mxu0 0.0
      %188 = vmatprep.subr.mxu0 0.0
      %189 = vmatpush1.msra.mxu0 0.0
      %190 = vmatprep.subr.mxu0 0.0
      %191 = vmatpush1.msra.mxu0 0.0
      %192 = vmatprep.subr.mxu0 0.0
      %193 = vmatpush1.msra.mxu0 0.0
      %194 = vmatprep.subr.mxu0 0.0
      %195 = vmatpush1.msra.mxu0 0.0
      %196 = vmatprep.subr.mxu0 0.0
      %197 = vmatpush1.msra.mxu0 0.0
      %198 = vmatprep.subr.mxu0 0.0
      %199 = vmatpush1.msra.mxu0 0.0
      %200 = vmatprep.subr.mxu0 0.0
      %201 = vmatpush1.msra.mxu0 0.0
      %202 = vmatprep.subr.mxu0 0.0
      %203 = vmatpush1.msra.mxu0 0.0
      %204 = vmatprep.subr.mxu0 0.0
      %205 = vmatpush1.msra.mxu0 0.0
      %206 = vmatprep.subr.mxu0 0.0
      %207 = vmatpush1.msra.mxu0 0.0
      %208 = vmatprep.subr.mxu0 0.0
      %209 = vmatpush1.msra.mxu0 0.0
      %210 = vmatprep.subr.mxu0 0.0
      %211 = vmatpush1.msra.mxu0 0.0
      %212 = vmatprep.subr.mxu0 0.0
      %213 = vmatpush1.msra.mxu0 0.0
      %214 = vmatprep.subr.mxu0 0.0
      %215 = vmatpush1.msra.mxu0 0.0
      %216 = vmatprep.subr.mxu0 0.0
      %217 = vmatpush1.msra.mxu0 0.0
      %218 = vmatprep.subr.mxu0 0.0
      %219 = vmatpush1.msra.mxu0 0.0
      %220 = vmatprep.subr.mxu0 0.0
      %221 = vmatpush1.msra.mxu0 0.0
      %222 = vmatprep.subr.mxu0 0.0
      %223 = vmatpush1.msra.mxu0 0.0
      %224 = vmatprep.subr.mxu0 0.0
      %225 = vmatpush1.msra.mxu0 0.0
      %226 = vmatprep.subr.mxu0 0.0
      %227 = vmatpush1.msra.mxu0 0.0
      %228 = vmatprep.subr.mxu0 0.0
      %229 = vmatpush1.msra.mxu0 0.0
      %230 = vmatprep.subr.mxu0 0.0
      %231 = vmatpush1.msra.mxu0 0.0
      %232 = vmatprep.subr.mxu0 0.0
      %233 = vmatpush1.msra.mxu0 0.0
      %234 = vmatprep.subr.mxu0 0.0
      %235 = vmatpush1.msra.mxu0 0.0
      %236 = vmatprep.subr.mxu0 0.0
      %237 = vmatpush1.msra.mxu0 0.0
      %238 = vmatprep.subr.mxu0 0.0
      %239 = vmatpush1.msra.mxu0 0.0
      %240 = vmatprep.subr.mxu0 0.0
      %241 = vmatpush1.msra.mxu0 0.0
      %242 = vmatprep.subr.mxu0 0.0
      %243 = vmatpush1.msra.mxu0 0.0
      %244 = vmatprep.subr.mxu0 0.0
      %245 = vmatpush1.msra.mxu0 0.0
      %246 = vmatprep.mubr.f32.mxu0 0.0
      %247 = vmatmul.mubr.f32.gmra.mrb[0].mxu0 %v176
      %v248 = vpop.f32.mrb[0].mxu0
      %v249 = vadd.f32 0.0, %v248
      %v250 = vpop.f32.mrb[0].mxu0
      %251 = vdwg.mxu0
      %v252 = vld [vmem:[%s0] sm:$0xf]
      %v254 = vsel %vm174, %v252, 0
      %v257 = vsel %vm178, %v249, 0
      %259 = vmatprep.subr.mxu0 0.0
      %260 = vmatpush1.msra.mxu0 %v257
      %261 = vmatprep.subr.mxu0 0.0
      %262 = vmatpush1.msra.mxu0 0.0
      %263 = vmatprep.subr.mxu0 0.0
      %264 = vmatpush1.msra.mxu0 0.0
      %265 = vmatprep.subr.mxu0 0.0
      %266 = vmatpush1.msra.mxu0 0.0
      %267 = vmatprep.subr.mxu0 0.0
      %268 = vmatpush1.msra.mxu0 0.0
      %269 = vmatprep.subr.mxu0 0.0
      %270 = vmatpush1.msra.mxu0 0.0
      %271 = vmatprep.subr.mxu0 0.0
      %272 = vmatpush1.msra.mxu0 0.0
      %273 = vmatprep.subr.mxu0 0.0
      %274 = vmatpush1.msra.mxu0 0.0
      %275 = vmatprep.subr.mxu0 0.0
      %276 = vmatpush1.msra.mxu0 0.0
      %277 = vmatprep.subr.mxu0 0.0
      %278 = vmatpush1.msra.mxu0 0.0
      %279 = vmatprep.subr.mxu0 0.0
      %280 = vmatpush1.msra.mxu0 0.0
      %281 = vmatprep.subr.mxu0 0.0
      %282 = vmatpush1.msra.mxu0 0.0
      %283 = vmatprep.subr.mxu0 0.0
      %284 = vmatpush1.msra.mxu0 0.0
      %285 = vmatprep.subr.mxu0 0.0
      %286 = vmatpush1.msra.mxu0 0.0
      %287 = vmatprep.subr.mxu0 0.0
      %288 = vmatpush1.msra.mxu0 0.0
      %289 = vmatprep.subr.mxu0 0.0
      %290 = vmatpush1.msra.mxu0 0.0
      %291 = vmatprep.subr.mxu0 0.0
      %292 = vmatpush1.msra.mxu0 0.0
      %293 = vmatprep.subr.mxu0 0.0
      %294 = vmatpush1.msra.mxu0 0.0
      %295 = vmatprep.subr.mxu0 0.0
      %296 = vmatpush1.msra.mxu0 0.0
      %297 = vmatprep.subr.mxu0 0.0
      %298 = vmatpush1.msra.mxu0 0.0
      %299 = vmatprep.subr.mxu0 0.0
      %300 = vmatpush1.msra.mxu0 0.0
      %301 = vmatprep.subr.mxu0 0.0
      %302 = vmatpush1.msra.mxu0 0.0
      %303 = vmatprep.subr.mxu0 0.0
      %304 = vmatpush1.msra.mxu0 0.0
      %305 = vmatprep.subr.mxu0 0.0
      %306 = vmatpush1.msra.mxu0 0.0
      %307 = vmatprep.subr.mxu0 0.0
      %308 = vmatpush1.msra.mxu0 0.0
      %309 = vmatprep.subr.mxu0 0.0
      %310 = vmatpush1.msra.mxu0 0.0
      %311 = vmatprep.subr.mxu0 0.0
      %312 = vmatpush1.msra.mxu0 0.0
      %313 = vmatprep.subr.mxu0 0.0
      %314 = vmatpush1.msra.mxu0 0.0
      %315 = vmatprep.subr.mxu0 0.0
      %316 = vmatpush1.msra.mxu0 0.0
      %317 = vmatprep.subr.mxu0 0.0
      %318 = vmatpush1.msra.mxu0 0.0
      %319 = vmatprep.subr.mxu0 0.0
      %320 = vmatpush1.msra.mxu0 0.0
      %321 = vmatprep.subr.mxu0 0.0
      %322 = vmatpush1.msra.mxu0 0.0
      %323 = vmatprep.mubr.f32.mxu0 0.0
      %324 = vmatmul.mubr.f32.gmra.mrb[0].mxu0 %v254
      %v325 = vpop.f32.mrb[0].mxu0
      %v326 = vadd.f32 0.0, %v325
      %v327 = vpop.f32.mrb[0].mxu0
      %328 = vdwg.mxu0
      %v329 = vpack.c.bf16 %v326, %v326
      %vm330 = vcmask 25600
      %331 = vst.msk [vmem:[%s169] sm:$0x3] %vm330, %v329
      %s332 = scalar_lea.vmem %s163, 1
      %v333 = vld [vmem:[%s332] sm:$0x1]
      %v334 = vunpack.c.l.bf16 %v333
      %v335 = vld [vmem:[%s1] sm:$0x3]
      %v337 = vsel %vm174, %v334, 0
      %v340 = vsel %vm178, %v335, 0
      %342 = vmatprep.subr.mxu0 0.0
      %343 = vmatpush1.msra.mxu0 %v340
      %344 = vmatprep.subr.mxu0 0.0
      %345 = vmatpush1.msra.mxu0 0.0
      %346 = vmatprep.subr.mxu0 0.0
      %347 = vmatpush1.msra.mxu0 0.0
      %348 = vmatprep.subr.mxu0 0.0
      %349 = vmatpush1.msra.mxu0 0.0
      %350 = vmatprep.subr.mxu0 0.0
      %351 = vmatpush1.msra.mxu0 0.0
      %352 = vmatprep.subr.mxu0 0.0
      %353 = vmatpush1.msra.mxu0 0.0
      %354 = vmatprep.subr.mxu0 0.0
      %355 = vmatpush1.msra.mxu0 0.0
      %356 = vmatprep.subr.mxu0 0.0
      %357 = vmatpush1.msra.mxu0 0.0
      %358 = vmatprep.subr.mxu0 0.0
      %359 = vmatpush1.msra.mxu0 0.0
      %360 = vmatprep.subr.mxu0 0.0
      %361 = vmatpush1.msra.mxu0 0.0
      %362 = vmatprep.subr.mxu0 0.0
      %363 = vmatpush1.msra.mxu0 0.0
      %364 = vmatprep.subr.mxu0 0.0
      %365 = vmatpush1.msra.mxu0 0.0
      %366 = vmatprep.subr.mxu0 0.0
      %367 = vmatpush1.msra.mxu0 0.0
      %368 = vmatprep.subr.mxu0 0.0
      %369 = vmatpush1.msra.mxu0 0.0
      %370 = vmatprep.subr.mxu0 0.0
      %371 = vmatpush1.msra.mxu0 0.0
      %372 = vmatprep.subr.mxu0 0.0
      %373 = vmatpush1.msra.mxu0 0.0
      %374 = vmatprep.subr.mxu0 0.0
      %375 = vmatpush1.msra.mxu0 0.0
      %376 = vmatprep.subr.mxu0 0.0
      %377 = vmatpush1.msra.mxu0 0.0
      %378 = vmatprep.subr.mxu0 0.0
      %379 = vmatpush1.msra.mxu0 0.0
      %380 = vmatprep.subr.mxu0 0.0
      %381 = vmatpush1.msra.mxu0 0.0
      %382 = vmatprep.subr.mxu0 0.0
      %383 = vmatpush1.msra.mxu0 0.0
      %384 = vmatprep.subr.mxu0 0.0
      %385 = vmatpush1.msra.mxu0 0.0
      %386 = vmatprep.subr.mxu0 0.0
      %387 = vmatpush1.msra.mxu0 0.0
      %388 = vmatprep.subr.mxu0 0.0
      %389 = vmatpush1.msra.mxu0 0.0
      %390 = vmatprep.subr.mxu0 0.0
      %391 = vmatpush1.msra.mxu0 0.0
      %392 = vmatprep.subr.mxu0 0.0
      %393 = vmatpush1.msra.mxu0 0.0
      %394 = vmatprep.subr.mxu0 0.0
      %395 = vmatpush1.msra.mxu0 0.0
      %396 = vmatprep.subr.mxu0 0.0
      %397 = vmatpush1.msra.mxu0 0.0
      %398 = vmatprep.subr.mxu0 0.0
      %399 = vmatpush1.msra.mxu0 0.0
      %400 = vmatprep.subr.mxu0 0.0
      %401 = vmatpush1.msra.mxu0 0.0
      %402 = vmatprep.subr.mxu0 0.0
      %403 = vmatpush1.msra.mxu0 0.0
      %404 = vmatprep.subr.mxu0 0.0
      %405 = vmatpush1.msra.mxu0 0.0
      %406 = vmatprep.mubr.f32.mxu0 0.0
      %407 = vmatmul.mubr.f32.gmra.mrb[0].mxu0 %v337
      %v408 = vpop.f32.mrb[0].mxu0
      %v409 = vadd.f32 0.0, %v408
      %v410 = vpop.f32.mrb[0].mxu0
      %411 = vdwg.mxu0
      %v412 = vld [vmem:[%s0] sm:$0xf]
      %v414 = vsel %vm174, %v412, 0
      %v417 = vsel %vm178, %v409, 0
      %419 = vmatprep.subr.mxu0 0.0
      %420 = vmatpush1.msra.mxu0 %v417
      %421 = vmatprep.subr.mxu0 0.0
      %422 = vmatpush1.msra.mxu0 0.0
      %423 = vmatprep.subr.mxu0 0.0
      %424 = vmatpush1.msra.mxu0 0.0
      %425 = vmatprep.subr.mxu0 0.0
      %426 = vmatpush1.msra.mxu0 0.0
      %427 = vmatprep.subr.mxu0 0.0
      %428 = vmatpush1.msra.mxu0 0.0
      %429 = vmatprep.subr.mxu0 0.0
      %430 = vmatpush1.msra.mxu0 0.0
      %431 = vmatprep.subr.mxu0 0.0
      %432 = vmatpush1.msra.mxu0 0.0
      %433 = vmatprep.subr.mxu0 0.0
      %434 = vmatpush1.msra.mxu0 0.0
      %435 = vmatprep.subr.mxu0 0.0
      %436 = vmatpush1.msra.mxu0 0.0
      %437 = vmatprep.subr.mxu0 0.0
      %438 = vmatpush1.msra.mxu0 0.0
      %439 = vmatprep.subr.mxu0 0.0
      %440 = vmatpush1.msra.mxu0 0.0
      %441 = vmatprep.subr.mxu0 0.0
      %442 = vmatpush1.msra.mxu0 0.0
      %443 = vmatprep.subr.mxu0 0.0
      %444 = vmatpush1.msra.mxu0 0.0
      %445 = vmatprep.subr.mxu0 0.0
      %446 = vmatpush1.msra.mxu0 0.0
      %447 = vmatprep.subr.mxu0 0.0
      %448 = vmatpush1.msra.mxu0 0.0
      %449 = vmatprep.subr.mxu0 0.0
      %450 = vmatpush1.msra.mxu0 0.0
      %451 = vmatprep.subr.mxu0 0.0
      %452 = vmatpush1.msra.mxu0 0.0
      %453 = vmatprep.subr.mxu0 0.0
      %454 = vmatpush1.msra.mxu0 0.0
      %455 = vmatprep.subr.mxu0 0.0
      %456 = vmatpush1.msra.mxu0 0.0
      %457 = vmatprep.subr.mxu0 0.0
      %458 = vmatpush1.msra.mxu0 0.0
      %459 = vmatprep.subr.mxu0 0.0
      %460 = vmatpush1.msra.mxu0 0.0
      %461 = vmatprep.subr.mxu0 0.0
      %462 = vmatpush1.msra.mxu0 0.0
      %463 = vmatprep.subr.mxu0 0.0
      %464 = vmatpush1.msra.mxu0 0.0
      %465 = vmatprep.subr.mxu0 0.0
      %466 = vmatpush1.msra.mxu0 0.0
      %467 = vmatprep.subr.mxu0 0.0
      %468 = vmatpush1.msra.mxu0 0.0
      %469 = vmatprep.subr.mxu0 0.0
      %470 = vmatpush1.msra.mxu0 0.0
      %471 = vmatprep.subr.mxu0 0.0
      %472 = vmatpush1.msra.mxu0 0.0
      %473 = vmatprep.subr.mxu0 0.0
      %474 = vmatpush1.msra.mxu0 0.0
      %475 = vmatprep.subr.mxu0 0.0
      %476 = vmatpush1.msra.mxu0 0.0
      %477 = vmatprep.subr.mxu0 0.0
      %478 = vmatpush1.msra.mxu0 0.0
      %479 = vmatprep.subr.mxu0 0.0
      %480 = vmatpush1.msra.mxu0 0.0
      %481 = vmatprep.subr.mxu0 0.0
      %482 = vmatpush1.msra.mxu0 0.0
      %483 = vmatprep.mubr.f32.mxu0 0.0
      %484 = vmatmul.mubr.f32.gmra.mrb[0].mxu0 %v414
      %v485 = vpop.f32.mrb[0].mxu0
      %v486 = vadd.f32 0.0, %v485
      %v487 = vpop.f32.mrb[0].mxu0
      %488 = vdwg.mxu0
      %v489 = vpack.c.bf16 %v486, %v486
      %s490 = scalar_lea.vmem %s169, 2
      %491 = vst.msk [vmem:[%s490] sm:$0x3] %vm330, %v489
      %s492 = scalar_lea.vmem %s163, 2
      %v493 = vld [vmem:[%s492] sm:$0x1]
      %v494 = vunpack.c.l.bf16 %v493
      %v495 = vld [vmem:[%s1] sm:$0x3]
      %v497 = vsel %vm174, %v494, 0
      %v500 = vsel %vm178, %v495, 0
      %502 = vmatprep.subr.mxu0 0.0
      %503 = vmatpush1.msra.mxu0 %v500
      %504 = vmatprep.subr.mxu0 0.0
      %505 = vmatpush1.msra.mxu0 0.0
      %506 = vmatprep.subr.mxu0 0.0
      %507 = vmatpush1.msra.mxu0 0.0
      %508 = vmatprep.subr.mxu0 0.0
      %509 = vmatpush1.msra.mxu0 0.0
      %510 = vmatprep.subr.mxu0 0.0
      %511 = vmatpush1.msra.mxu0 0.0
      %512 = vmatprep.subr.mxu0 0.0
      %513 = vmatpush1.msra.mxu0 0.0
      %514 = vmatprep.subr.mxu0 0.0
      %515 = vmatpush1.msra.mxu0 0.0
      %516 = vmatprep.subr.mxu0 0.0
      %517 = vmatpush1.msra.mxu0 0.0
      %518 = vmatprep.subr.mxu0 0.0
      %519 = vmatpush1.msra.mxu0 0.0
      %520 = vmatprep.subr.mxu0 0.0
      %521 = vmatpush1.msra.mxu0 0.0
      %522 = vmatprep.subr.mxu0 0.0
      %523 = vmatpush1.msra.mxu0 0.0
      %524 = vmatprep.subr.mxu0 0.0
      %525 = vmatpush1.msra.mxu0 0.0
      %526 = vmatprep.subr.mxu0 0.0
      %527 = vmatpush1.msra.mxu0 0.0
      %528 = vmatprep.subr.mxu0 0.0
      %529 = vmatpush1.msra.mxu0 0.0
      %530 = vmatprep.subr.mxu0 0.0
      %531 = vmatpush1.msra.mxu0 0.0
      %532 = vmatprep.subr.mxu0 0.0
      %533 = vmatpush1.msra.mxu0 0.0
      %534 = vmatprep.subr.mxu0 0.0
      %535 = vmatpush1.msra.mxu0 0.0
      %536 = vmatprep.subr.mxu0 0.0
      %537 = vmatpush1.msra.mxu0 0.0
      %538 = vmatprep.subr.mxu0 0.0
      %539 = vmatpush1.msra.mxu0 0.0
      %540 = vmatprep.subr.mxu0 0.0
      %541 = vmatpush1.msra.mxu0 0.0
      %542 = vmatprep.subr.mxu0 0.0
      %543 = vmatpush1.msra.mxu0 0.0
      %544 = vmatprep.subr.mxu0 0.0
      %545 = vmatpush1.msra.mxu0 0.0
      %546 = vmatprep.subr.mxu0 0.0
      %547 = vmatpush1.msra.mxu0 0.0
      %548 = vmatprep.subr.mxu0 0.0
      %549 = vmatpush1.msra.mxu0 0.0
      %550 = vmatprep.subr.mxu0 0.0
      %551 = vmatpush1.msra.mxu0 0.0
      %552 = vmatprep.subr.mxu0 0.0
      %553 = vmatpush1.msra.mxu0 0.0
      %554 = vmatprep.subr.mxu0 0.0
      %555 = vmatpush1.msra.mxu0 0.0
      %556 = vmatprep.subr.mxu0 0.0
      %557 = vmatpush1.msra.mxu0 0.0
      %558 = vmatprep.subr.mxu0 0.0
      %559 = vmatpush1.msra.mxu0 0.0
      %560 = vmatprep.subr.mxu0 0.0
      %561 = vmatpush1.msra.mxu0 0.0
      %562 = vmatprep.subr.mxu0 0.0
      %563 = vmatpush1.msra.mxu0 0.0
      %564 = vmatprep.subr.mxu0 0.0
      %565 = vmatpush1.msra.mxu0 0.0
      %566 = vmatprep.mubr.f32.mxu0 0.0
      %567 = vmatmul.mubr.f32.gmra.mrb[0].mxu0 %v497
      %v568 = vpop.f32.mrb[0].mxu0
      %v569 = vadd.f32 0.0, %v568
      %v570 = vpop.f32.mrb[0].mxu0
      %571 = vdwg.mxu0
      %v572 = vld [vmem:[%s0] sm:$0xf]
      %v574 = vsel %vm174, %v572, 0
      %v577 = vsel %vm178, %v569, 0
      %579 = vmatprep.subr.mxu0 0.0
      %580 = vmatpush1.msra.mxu0 %v577
      %581 = vmatprep.subr.mxu0 0.0
      %582 = vmatpush1.msra.mxu0 0.0
      %583 = vmatprep.subr.mxu0 0.0
      %584 = vmatpush1.msra.mxu0 0.0
      %585 = vmatprep.subr.mxu0 0.0
      %586 = vmatpush1.msra.mxu0 0.0
      %587 = vmatprep.subr.mxu0 0.0
      %588 = vmatpush1.msra.mxu0 0.0
      %589 = vmatprep.subr.mxu0 0.0
      %590 = vmatpush1.msra.mxu0 0.0
      %591 = vmatprep.subr.mxu0 0.0
      %592 = vmatpush1.msra.mxu0 0.0
      %593 = vmatprep.subr.mxu0 0.0
      %594 = vmatpush1.msra.mxu0 0.0
      %595 = vmatprep.subr.mxu0 0.0
      %596 = vmatpush1.msra.mxu0 0.0
      %597 = vmatprep.subr.mxu0 0.0
      %598 = vmatpush1.msra.mxu0 0.0
      %599 = vmatprep.subr.mxu0 0.0
      %600 = vmatpush1.msra.mxu0 0.0
      %601 = vmatprep.subr.mxu0 0.0
      %602 = vmatpush1.msra.mxu0 0.0
      %603 = vmatprep.subr.mxu0 0.0
      %604 = vmatpush1.msra.mxu0 0.0
      %605 = vmatprep.subr.mxu0 0.0
      %606 = vmatpush1.msra.mxu0 0.0
      %607 = vmatprep.subr.mxu0 0.0
      %608 = vmatpush1.msra.mxu0 0.0
      %609 = vmatprep.subr.mxu0 0.0
      %610 = vmatpush1.msra.mxu0 0.0
      %611 = vmatprep.subr.mxu0 0.0
      %612 = vmatpush1.msra.mxu0 0.0
      %613 = vmatprep.subr.mxu0 0.0
      %614 = vmatpush1.msra.mxu0 0.0
      %615 = vmatprep.subr.mxu0 0.0
      %616 = vmatpush1.msra.mxu0 0.0
      %617 = vmatprep.subr.mxu0 0.0
      %618 = vmatpush1.msra.mxu0 0.0
      %619 = vmatprep.subr.mxu0 0.0
      %620 = vmatpush1.msra.mxu0 0.0
      %621 = vmatprep.subr.mxu0 0.0
      %622 = vmatpush1.msra.mxu0 0.0
      %623 = vmatprep.subr.mxu0 0.0
      %624 = vmatpush1.msra.mxu0 0.0
      %625 = vmatprep.subr.mxu0 0.0
      %626 = vmatpush1.msra.mxu0 0.0
      %627 = vmatprep.subr.mxu0 0.0
      %628 = vmatpush1.msra.mxu0 0.0
      %629 = vmatprep.subr.mxu0 0.0
      %630 = vmatpush1.msra.mxu0 0.0
      %631 = vmatprep.subr.mxu0 0.0
      %632 = vmatpush1.msra.mxu0 0.0
      %633 = vmatprep.subr.mxu0 0.0
      %634 = vmatpush1.msra.mxu0 0.0
      %635 = vmatprep.subr.mxu0 0.0
      %636 = vmatpush1.msra.mxu0 0.0
      %637 = vmatprep.subr.mxu0 0.0
      %638 = vmatpush1.msra.mxu0 0.0
      %639 = vmatprep.subr.mxu0 0.0
      %640 = vmatpush1.msra.mxu0 0.0
      %641 = vmatprep.subr.mxu0 0.0
      %642 = vmatpush1.msra.mxu0 0.0
      %643 = vmatprep.mubr.f32.mxu0 0.0
      %644 = vmatmul.mubr.f32.gmra.mrb[0].mxu0 %v574
      %v645 = vpop.f32.mrb[0].mxu0
      %v646 = vadd.f32 0.0, %v645
      %v647 = vpop.f32.mrb[0].mxu0
      %648 = vdwg.mxu0
      %v649 = vpack.c.bf16 %v646, %v646
      %s650 = scalar_lea.vmem %s169, 4
      %651 = vst.msk [vmem:[%s650] sm:$0x3] %vm330, %v649
      %s652 = scalar_lea.vmem %s163, 3
      %v653 = vld [vmem:[%s652] sm:$0x1]
      %v654 = vunpack.c.l.bf16 %v653
      %v655 = vld [vmem:[%s1] sm:$0x3]
      %v657 = vsel %vm174, %v654, 0
      %v660 = vsel %vm178, %v655, 0
      %662 = vmatprep.subr.mxu0 0.0
      %663 = vmatpush1.msra.mxu0 %v660
      %664 = vmatprep.subr.mxu0 0.0
      %665 = vmatpush1.msra.mxu0 0.0
      %666 = vmatprep.subr.mxu0 0.0
      %667 = vmatpush1.msra.mxu0 0.0
      %668 = vmatprep.subr.mxu0 0.0
      %669 = vmatpush1.msra.mxu0 0.0
      %670 = vmatprep.subr.mxu0 0.0
      %671 = vmatpush1.msra.mxu0 0.0
      %672 = vmatprep.subr.mxu0 0.0
      %673 = vmatpush1.msra.mxu0 0.0
      %674 = vmatprep.subr.mxu0 0.0
      %675 = vmatpush1.msra.mxu0 0.0
      %676 = vmatprep.subr.mxu0 0.0
      %677 = vmatpush1.msra.mxu0 0.0
      %678 = vmatprep.subr.mxu0 0.0
      %679 = vmatpush1.msra.mxu0 0.0
      %680 = vmatprep.subr.mxu0 0.0
      %681 = vmatpush1.msra.mxu0 0.0
      %682 = vmatprep.subr.mxu0 0.0
      %683 = vmatpush1.msra.mxu0 0.0
      %684 = vmatprep.subr.mxu0 0.0
      %685 = vmatpush1.msra.mxu0 0.0
      %686 = vmatprep.subr.mxu0 0.0
      %687 = vmatpush1.msra.mxu0 0.0
      %688 = vmatprep.subr.mxu0 0.0
      %689 = vmatpush1.msra.mxu0 0.0
      %690 = vmatprep.subr.mxu0 0.0
      %691 = vmatpush1.msra.mxu0 0.0
      %692 = vmatprep.subr.mxu0 0.0
      %693 = vmatpush1.msra.mxu0 0.0
      %694 = vmatprep.subr.mxu0 0.0
      %695 = vmatpush1.msra.mxu0 0.0
      %696 = vmatprep.subr.mxu0 0.0
      %697 = vmatpush1.msra.mxu0 0.0
      %698 = vmatprep.subr.mxu0 0.0
      %699 = vmatpush1.msra.mxu0 0.0
      %700 = vmatprep.subr.mxu0 0.0
      %701 = vmatpush1.msra.mxu0 0.0
      %702 = vmatprep.subr.mxu0 0.0
      %703 = vmatpush1.msra.mxu0 0.0
      %704 = vmatprep.subr.mxu0 0.0
      %705 = vmatpush1.msra.mxu0 0.0
      %706 = vmatprep.subr.mxu0 0.0
      %707 = vmatpush1.msra.mxu0 0.0
      %708 = vmatprep.subr.mxu0 0.0
      %709 = vmatpush1.msra.mxu0 0.0
      %710 = vmatprep.subr.mxu0 0.0
      %711 = vmatpush1.msra.mxu0 0.0
      %712 = vmatprep.subr.mxu0 0.0
      %713 = vmatpush1.msra.mxu0 0.0
      %714 = vmatprep.subr.mxu0 0.0
      %715 = vmatpush1.msra.mxu0 0.0
      %716 = vmatprep.subr.mxu0 0.0
      %717 = vmatpush1.msra.mxu0 0.0
      %718 = vmatprep.subr.mxu0 0.0
      %719 = vmatpush1.msra.mxu0 0.0
      %720 = vmatprep.subr.mxu0 0.0
      %721 = vmatpush1.msra.mxu0 0.0
      %722 = vmatprep.subr.mxu0 0.0
      %723 = vmatpush1.msra.mxu0 0.0
      %724 = vmatprep.subr.mxu0 0.0
      %725 = vmatpush1.msra.mxu0 0.0
      %726 = vmatprep.mubr.f32.mxu0 0.0
      %727 = vmatmul.mubr.f32.gmra.mrb[0].mxu0 %v657
      %v728 = vpop.f32.mrb[0].mxu0
      %v729 = vadd.f32 0.0, %v728
      %v730 = vpop.f32.mrb[0].mxu0
      %731 = vdwg.mxu0
      %v732 = vld [vmem:[%s0] sm:$0xf]
      %v734 = vsel %vm174, %v732, 0
      %v737 = vsel %vm178, %v729, 0
      %739 = vmatprep.subr.mxu0 0.0
      %740 = vmatpush1.msra.mxu0 %v737
      %741 = vmatprep.subr.mxu0 0.0
      %742 = vmatpush1.msra.mxu0 0.0
      %743 = vmatprep.subr.mxu0 0.0
      %744 = vmatpush1.msra.mxu0 0.0
      %745 = vmatprep.subr.mxu0 0.0
      %746 = vmatpush1.msra.mxu0 0.0
      %747 = vmatprep.subr.mxu0 0.0
      %748 = vmatpush1.msra.mxu0 0.0
      %749 = vmatprep.subr.mxu0 0.0
      %750 = vmatpush1.msra.mxu0 0.0
      %751 = vmatprep.subr.mxu0 0.0
      %752 = vmatpush1.msra.mxu0 0.0
      %753 = vmatprep.subr.mxu0 0.0
      %754 = vmatpush1.msra.mxu0 0.0
      %755 = vmatprep.subr.mxu0 0.0
      %756 = vmatpush1.msra.mxu0 0.0
      %757 = vmatprep.subr.mxu0 0.0
      %758 = vmatpush1.msra.mxu0 0.0
      %759 = vmatprep.subr.mxu0 0.0
      %760 = vmatpush1.msra.mxu0 0.0
      %761 = vmatprep.subr.mxu0 0.0
      %762 = vmatpush1.msra.mxu0 0.0
      %763 = vmatprep.subr.mxu0 0.0
      %764 = vmatpush1.msra.mxu0 0.0
      %765 = vmatprep.subr.mxu0 0.0
      %766 = vmatpush1.msra.mxu0 0.0
      %767 = vmatprep.subr.mxu0 0.0
      %768 = vmatpush1.msra.mxu0 0.0
      %769 = vmatprep.subr.mxu0 0.0
      %770 = vmatpush1.msra.mxu0 0.0
      %771 = vmatprep.subr.mxu0 0.0
      %772 = vmatpush1.msra.mxu0 0.0
      %773 = vmatprep.subr.mxu0 0.0
      %774 = vmatpush1.msra.mxu0 0.0
      %775 = vmatprep.subr.mxu0 0.0
      %776 = vmatpush1.msra.mxu0 0.0
      %777 = vmatprep.subr.mxu0 0.0
      %778 = vmatpush1.msra.mxu0 0.0
      %779 = vmatprep.subr.mxu0 0.0
      %780 = vmatpush1.msra.mxu0 0.0
      %781 = vmatprep.subr.mxu0 0.0
      %782 = vmatpush1.msra.mxu0 0.0
      %783 = vmatprep.subr.mxu0 0.0
      %784 = vmatpush1.msra.mxu0 0.0
      %785 = vmatprep.subr.mxu0 0.0
      %786 = vmatpush1.msra.mxu0 0.0
      %787 = vmatprep.subr.mxu0 0.0
      %788 = vmatpush1.msra.mxu0 0.0
      %789 = vmatprep.subr.mxu0 0.0
      %790 = vmatpush1.msra.mxu0 0.0
      %791 = vmatprep.subr.mxu0 0.0
      %792 = vmatpush1.msra.mxu0 0.0
      %793 = vmatprep.subr.mxu0 0.0
      %794 = vmatpush1.msra.mxu0 0.0
      %795 = vmatprep.subr.mxu0 0.0
      %796 = vmatpush1.msra.mxu0 0.0
      %797 = vmatprep.subr.mxu0 0.0
      %798 = vmatpush1.msra.mxu0 0.0
      %799 = vmatprep.subr.mxu0 0.0
      %800 = vmatpush1.msra.mxu0 0.0
      %801 = vmatprep.subr.mxu0 0.0
      %802 = vmatpush1.msra.mxu0 0.0
      %803 = vmatprep.mubr.f32.mxu0 0.0
      %804 = vmatmul.mubr.f32.gmra.mrb[0].mxu0 %v734
      %v805 = vpop.f32.mrb[0].mxu0
      %v806 = vadd.f32 0.0, %v805
      %v807 = vpop.f32.mrb[0].mxu0
      %808 = vdwg.mxu0
      %v809 = vpack.c.bf16 %v806, %v806
      %s810 = scalar_lea.vmem %s169, 6
      %811 = vst.msk [vmem:[%s810] sm:$0x3] %vm330, %v809
      %s812 = scalar_lea.vmem %s163, 4
      %v813 = vld [vmem:[%s812] sm:$0x1]
      %v814 = vunpack.c.l.bf16 %v813
      %v815 = vld [vmem:[%s1] sm:$0x3]
      %v817 = vsel %vm174, %v814, 0
      %v820 = vsel %vm178, %v815, 0
      %822 = vmatprep.subr.mxu0 0.0
      %823 = vmatpush1.msra.mxu0 %v820
      %824 = vmatprep.subr.mxu0 0.0
      %825 = vmatpush1.msra.mxu0 0.0
      %826 = vmatprep.subr.mxu0 0.0
      %827 = vmatpush1.msra.mxu0 0.0
      %828 = vmatprep.subr.mxu0 0.0
      %829 = vmatpush1.msra.mxu0 0.0
      %830 = vmatprep.subr.mxu0 0.0
      %831 = vmatpush1.msra.mxu0 0.0
      %832 = vmatprep.subr.mxu0 0.0
      %833 = vmatpush1.msra.mxu0 0.0
      %834 = vmatprep.subr.mxu0 0.0
      %835 = vmatpush1.msra.mxu0 0.0
      %836 = vmatprep.subr.mxu0 0.0
      %837 = vmatpush1.msra.mxu0 0.0
      %838 = vmatprep.subr.mxu0 0.0
      %839 = vmatpush1.msra.mxu0 0.0
      %840 = vmatprep.subr.mxu0 0.0
      %841 = vmatpush1.msra.mxu0 0.0
      %842 = vmatprep.subr.mxu0 0.0
      %843 = vmatpush1.msra.mxu0 0.0
      %844 = vmatprep.subr.mxu0 0.0
      %845 = vmatpush1.msra.mxu0 0.0
      %846 = vmatprep.subr.mxu0 0.0
      %847 = vmatpush1.msra.mxu0 0.0
      %848 = vmatprep.subr.mxu0 0.0
      %849 = vmatpush1.msra.mxu0 0.0
      %850 = vmatprep.subr.mxu0 0.0
      %851 = vmatpush1.msra.mxu0 0.0
      %852 = vmatprep.subr.mxu0 0.0
      %853 = vmatpush1.msra.mxu0 0.0
      %854 = vmatprep.subr.mxu0 0.0
      %855 = vmatpush1.msra.mxu0 0.0
      %856 = vmatprep.subr.mxu0 0.0
      %857 = vmatpush1.msra.mxu0 0.0
      %858 = vmatprep.subr.mxu0 0.0
      %859 = vmatpush1.msra.mxu0 0.0
      %860 = vmatprep.subr.mxu0 0.0
      %861 = vmatpush1.msra.mxu0 0.0
      %862 = vmatprep.subr.mxu0 0.0
      %863 = vmatpush1.msra.mxu0 0.0
      %864 = vmatprep.subr.mxu0 0.0
      %865 = vmatpush1.msra.mxu0 0.0
      %866 = vmatprep.subr.mxu0 0.0
      %867 = vmatpush1.msra.mxu0 0.0
      %868 = vmatprep.subr.mxu0 0.0
      %869 = vmatpush1.msra.mxu0 0.0
      %870 = vmatprep.subr.mxu0 0.0
      %871 = vmatpush1.msra.mxu0 0.0
      %872 = vmatprep.subr.mxu0 0.0
      %873 = vmatpush1.msra.mxu0 0.0
      %874 = vmatprep.subr.mxu0 0.0
      %875 = vmatpush1.msra.mxu0 0.0
      %876 = vmatprep.subr.mxu0 0.0
      %877 = vmatpush1.msra.mxu0 0.0
      %878 = vmatprep.subr.mxu0 0.0
      %879 = vmatpush1.msra.mxu0 0.0
      %880 = vmatprep.subr.mxu0 0.0
      %881 = vmatpush1.msra.mxu0 0.0
      %882 = vmatprep.subr.mxu0 0.0
      %883 = vmatpush1.msra.mxu0 0.0
      %884 = vmatprep.subr.mxu0 0.0
      %885 = vmatpush1.msra.mxu0 0.0
      %886 = vmatprep.mubr.f32.mxu0 0.0
      %887 = vmatmul.mubr.f32.gmra.mrb[0].mxu0 %v817
      %v888 = vpop.f32.mrb[0].mxu0
      %v889 = vadd.f32 0.0, %v888
      %v890 = vpop.f32.mrb[0].mxu0
      %891 = vdwg.mxu0
      %v892 = vld [vmem:[%s0] sm:$0xf]
      %v894 = vsel %vm174, %v892, 0
      %v897 = vsel %vm178, %v889, 0
      %899 = vmatprep.subr.mxu0 0.0
      %900 = vmatpush1.msra.mxu0 %v897
      %901 = vmatprep.subr.mxu0 0.0
      %902 = vmatpush1.msra.mxu0 0.0
      %903 = vmatprep.subr.mxu0 0.0
      %904 = vmatpush1.msra.mxu0 0.0
      %905 = vmatprep.subr.mxu0 0.0
      %906 = vmatpush1.msra.mxu0 0.0
      %907 = vmatprep.subr.mxu0 0.0
      %908 = vmatpush1.msra.mxu0 0.0
      %909 = vmatprep.subr.mxu0 0.0
      %910 = vmatpush1.msra.mxu0 0.0
      %911 = vmatprep.subr.mxu0 0.0
      %912 = vmatpush1.msra.mxu0 0.0
      %913 = vmatprep.subr.mxu0 0.0
      %914 = vmatpush1.msra.mxu0 0.0
      %915 = vmatprep.subr.mxu0 0.0
      %916 = vmatpush1.msra.mxu0 0.0
      %917 = vmatprep.subr.mxu0 0.0
      %918 = vmatpush1.msra.mxu0 0.0
      %919 = vmatprep.subr.mxu0 0.0
      %920 = vmatpush1.msra.mxu0 0.0
      %921 = vmatprep.subr.mxu0 0.0
      %922 = vmatpush1.msra.mxu0 0.0
      %923 = vmatprep.subr.mxu0 0.0
      %924 = vmatpush1.msra.mxu0 0.0
      %925 = vmatprep.subr.mxu0 0.0
      %926 = vmatpush1.msra.mxu0 0.0
      %927 = vmatprep.subr.mxu0 0.0
      %928 = vmatpush1.msra.mxu0 0.0
      %929 = vmatprep.subr.mxu0 0.0
      %930 = vmatpush1.msra.mxu0 0.0
      %931 = vmatprep.subr.mxu0 0.0
      %932 = vmatpush1.msra.mxu0 0.0
      %933 = vmatprep.subr.mxu0 0.0
      %934 = vmatpush1.msra.mxu0 0.0
      %935 = vmatprep.subr.mxu0 0.0
      %936 = vmatpush1.msra.mxu0 0.0
      %937 = vmatprep.subr.mxu0 0.0
      %938 = vmatpush1.msra.mxu0 0.0
      %939 = vmatprep.subr.mxu0 0.0
      %940 = vmatpush1.msra.mxu0 0.0
      %941 = vmatprep.subr.mxu0 0.0
      %942 = vmatpush1.msra.mxu0 0.0
      %943 = vmatprep.subr.mxu0 0.0
      %944 = vmatpush1.msra.mxu0 0.0
      %945 = vmatprep.subr.mxu0 0.0
      %946 = vmatpush1.msra.mxu0 0.0
      %947 = vmatprep.subr.mxu0 0.0
      %948 = vmatpush1.msra.mxu0 0.0
      %949 = vmatprep.subr.mxu0 0.0
      %950 = vmatpush1.msra.mxu0 0.0
      %951 = vmatprep.subr.mxu0 0.0
      %952 = vmatpush1.msra.mxu0 0.0
      %953 = vmatprep.subr.mxu0 0.0
      %954 = vmatpush1.msra.mxu0 0.0
      %955 = vmatprep.subr.mxu0 0.0
      %956 = vmatpush1.msra.mxu0 0.0
      %957 = vmatprep.subr.mxu0 0.0
      %958 = vmatpush1.msra.mxu0 0.0
      %959 = vmatprep.subr.mxu0 0.0
      %960 = vmatpush1.msra.mxu0 0.0
      %961 = vmatprep.subr.mxu0 0.0
      %962 = vmatpush1.msra.mxu0 0.0
      %963 = vmatprep.mubr.f32.mxu0 0.0
      %964 = vmatmul.mubr.f32.gmra.mrb[0].mxu0 %v894
      %v965 = vpop.f32.mrb[0].mxu0
      %v966 = vadd.f32 0.0, %v965
      %v967 = vpop.f32.mrb[0].mxu0
      %968 = vdwg.mxu0
      %v969 = vpack.c.bf16 %v966, %v966
      %s970 = scalar_lea.vmem %s169, 8
      %971 = vst.msk [vmem:[%s970] sm:$0x3] %vm330, %v969
      %s972 = scalar_lea.vmem %s163, 5
      %v973 = vld [vmem:[%s972] sm:$0x1]
      %v974 = vunpack.c.l.bf16 %v973
      %v975 = vld [vmem:[%s1] sm:$0x3]
      %v977 = vsel %vm174, %v974, 0
      %v980 = vsel %vm178, %v975, 0
      %982 = vmatprep.subr.mxu0 0.0
      %983 = vmatpush1.msra.mxu0 %v980
      %984 = vmatprep.subr.mxu0 0.0
      %985 = vmatpush1.msra.mxu0 0.0
      %986 = vmatprep.subr.mxu0 0.0
      %987 = vmatpush1.msra.mxu0 0.0
      %988 = vmatprep.subr.mxu0 0.0
      %989 = vmatpush1.msra.mxu0 0.0
      %990 = vmatprep.subr.mxu0 0.0
      %991 = vmatpush1.msra.mxu0 0.0
      %992 = vmatprep.subr.mxu0 0.0
      %993 = vmatpush1.msra.mxu0 0.0
      %994 = vmatprep.subr.mxu0 0.0
      %995 = vmatpush1.msra.mxu0 0.0
      %996 = vmatprep.subr.mxu0 0.0
      %997 = vmatpush1.msra.mxu0 0.0
      %998 = vmatprep.subr.mxu0 0.0
      %999 = vmatpush1.msra.mxu0 0.0
      %1000 = vmatprep.subr.mxu0 0.0
      %1001 = vmatpush1.msra.mxu0 0.0
      %1002 = vmatprep.subr.mxu0 0.0
      %1003 = vmatpush1.msra.mxu0 0.0
      %1004 = vmatprep.subr.mxu0 0.0
      %1005 = vmatpush1.msra.mxu0 0.0
      %1006 = vmatprep.subr.mxu0 0.0
      %1007 = vmatpush1.msra.mxu0 0.0
      %1008 = vmatprep.subr.mxu0 0.0
      %1009 = vmatpush1.msra.mxu0 0.0
      %1010 = vmatprep.subr.mxu0 0.0
      %1011 = vmatpush1.msra.mxu0 0.0
      %1012 = vmatprep.subr.mxu0 0.0
      %1013 = vmatpush1.msra.mxu0 0.0
      %1014 = vmatprep.subr.mxu0 0.0
      %1015 = vmatpush1.msra.mxu0 0.0
      %1016 = vmatprep.subr.mxu0 0.0
      %1017 = vmatpush1.msra.mxu0 0.0
      %1018 = vmatprep.subr.mxu0 0.0
      %1019 = vmatpush1.msra.mxu0 0.0
      %1020 = vmatprep.subr.mxu0 0.0
      %1021 = vmatpush1.msra.mxu0 0.0
      %1022 = vmatprep.subr.mxu0 0.0
      %1023 = vmatpush1.msra.mxu0 0.0
      %1024 = vmatprep.subr.mxu0 0.0
      %1025 = vmatpush1.msra.mxu0 0.0
      %1026 = vmatprep.subr.mxu0 0.0
      %1027 = vmatpush1.msra.mxu0 0.0
      %1028 = vmatprep.subr.mxu0 0.0
      %1029 = vmatpush1.msra.mxu0 0.0
      %1030 = vmatprep.subr.mxu0 0.0
      %1031 = vmatpush1.msra.mxu0 0.0
      %1032 = vmatprep.subr.mxu0 0.0
      %1033 = vmatpush1.msra.mxu0 0.0
      %1034 = vmatprep.subr.mxu0 0.0
      %1035 = vmatpush1.msra.mxu0 0.0
      %1036 = vmatprep.subr.mxu0 0.0
      %1037 = vmatpush1.msra.mxu0 0.0
      %1038 = vmatprep.subr.mxu0 0.0
      %1039 = vmatpush1.msra.mxu0 0.0
      %1040 = vmatprep.subr.mxu0 0.0
      %1041 = vmatpush1.msra.mxu0 0.0
      %1042 = vmatprep.subr.mxu0 0.0
      %1043 = vmatpush1.msra.mxu0 0.0
      %1044 = vmatprep.subr.mxu0 0.0
      %1045 = vmatpush1.msra.mxu0 0.0
      %1046 = vmatprep.mubr.f32.mxu0 0.0
      %1047 = vmatmul.mubr.f32.gmra.mrb[0].mxu0 %v977
      %v1048 = vpop.f32.mrb[0].mxu0
      %v1049 = vadd.f32 0.0, %v1048
      %v1050 = vpop.f32.mrb[0].mxu0
      %1051 = vdwg.mxu0
      %v1052 = vld [vmem:[%s0] sm:$0xf]
      %v1054 = vsel %vm174, %v1052, 0
      %v1057 = vsel %vm178, %v1049, 0
      %1059 = vmatprep.subr.mxu0 0.0
      %1060 = vmatpush1.msra.mxu0 %v1057
      %1061 = vmatprep.subr.mxu0 0.0
      %1062 = vmatpush1.msra.mxu0 0.0
      %1063 = vmatprep.subr.mxu0 0.0
      %1064 = vmatpush1.msra.mxu0 0.0
      %1065 = vmatprep.subr.mxu0 0.0
      %1066 = vmatpush1.msra.mxu0 0.0
      %1067 = vmatprep.subr.mxu0 0.0
      %1068 = vmatpush1.msra.mxu0 0.0
      %1069 = vmatprep.subr.mxu0 0.0
      %1070 = vmatpush1.msra.mxu0 0.0
      %1071 = vmatprep.subr.mxu0 0.0
      %1072 = vmatpush1.msra.mxu0 0.0
      %1073 = vmatprep.subr.mxu0 0.0
      %1074 = vmatpush1.msra.mxu0 0.0
      %1075 = vmatprep.subr.mxu0 0.0
      %1076 = vmatpush1.msra.mxu0 0.0
      %1077 = vmatprep.subr.mxu0 0.0
      %1078 = vmatpush1.msra.mxu0 0.0
      %1079 = vmatprep.subr.mxu0 0.0
      %1080 = vmatpush1.msra.mxu0 0.0
      %1081 = vmatprep.subr.mxu0 0.0
      %1082 = vmatpush1.msra.mxu0 0.0
      %1083 = vmatprep.subr.mxu0 0.0
      %1084 = vmatpush1.msra.mxu0 0.0
      %1085 = vmatprep.subr.mxu0 0.0
      %1086 = vmatpush1.msra.mxu0 0.0
      %1087 = vmatprep.subr.mxu0 0.0
      %1088 = vmatpush1.msra.mxu0 0.0
      %1089 = vmatprep.subr.mxu0 0.0
      %1090 = vmatpush1.msra.mxu0 0.0
      %1091 = vmatprep.subr.mxu0 0.0
      %1092 = vmatpush1.msra.mxu0 0.0
      %1093 = vmatprep.subr.mxu0 0.0
      %1094 = vmatpush1.msra.mxu0 0.0
      %1095 = vmatprep.subr.mxu0 0.0
      %1096 = vmatpush1.msra.mxu0 0.0
      %1097 = vmatprep.subr.mxu0 0.0
      %1098 = vmatpush1.msra.mxu0 0.0
      %1099 = vmatprep.subr.mxu0 0.0
      %1100 = vmatpush1.msra.mxu0 0.0
      %1101 = vmatprep.subr.mxu0 0.0
      %1102 = vmatpush1.msra.mxu0 0.0
      %1103 = vmatprep.subr.mxu0 0.0
      %1104 = vmatpush1.msra.mxu0 0.0
      %1105 = vmatprep.subr.mxu0 0.0
      %1106 = vmatpush1.msra.mxu0 0.0
      %1107 = vmatprep.subr.mxu0 0.0
      %1108 = vmatpush1.msra.mxu0 0.0
      %1109 = vmatprep.subr.mxu0 0.0
      %1110 = vmatpush1.msra.mxu0 0.0
      %1111 = vmatprep.subr.mxu0 0.0
      %1112 = vmatpush1.msra.mxu0 0.0
      %1113 = vmatprep.subr.mxu0 0.0
      %1114 = vmatpush1.msra.mxu0 0.0
      %1115 = vmatprep.subr.mxu0 0.0
      %1116 = vmatpush1.msra.mxu0 0.0
      %1117 = vmatprep.subr.mxu0 0.0
      %1118 = vmatpush1.msra.mxu0 0.0
      %1119 = vmatprep.subr.mxu0 0.0
      %1120 = vmatpush1.msra.mxu0 0.0
      %1121 = vmatprep.subr.mxu0 0.0
      %1122 = vmatpush1.msra.mxu0 0.0
      %1123 = vmatprep.mubr.f32.mxu0 0.0
      %1124 = vmatmul.mubr.f32.gmra.mrb[0].mxu0 %v1054
      %v1125 = vpop.f32.mrb[0].mxu0
      %v1126 = vadd.f32 0.0, %v1125
      %v1127 = vpop.f32.mrb[0].mxu0
      %1128 = vdwg.mxu0
      %v1129 = vpack.c.bf16 %v1126, %v1126
      %s1130 = scalar_lea.vmem %s169, 10
      %1131 = vst.msk [vmem:[%s1130] sm:$0x3] %vm330, %v1129
      %s1132 = scalar_lea.vmem %s163, 6
      %v1133 = vld [vmem:[%s1132] sm:$0x1]
      %v1134 = vunpack.c.l.bf16 %v1133
      %v1135 = vld [vmem:[%s1] sm:$0x3]
      %v1137 = vsel %vm174, %v1134, 0
      %v1140 = vsel %vm178, %v1135, 0
      %1142 = vmatprep.subr.mxu0 0.0
      %1143 = vmatpush1.msra.mxu0 %v1140
      %1144 = vmatprep.subr.mxu0 0.0
      %1145 = vmatpush1.msra.mxu0 0.0
      %1146 = vmatprep.subr.mxu0 0.0
      %1147 = vmatpush1.msra.mxu0 0.0
      %1148 = vmatprep.subr.mxu0 0.0
      %1149 = vmatpush1.msra.mxu0 0.0
      %1150 = vmatprep.subr.mxu0 0.0
      %1151 = vmatpush1.msra.mxu0 0.0
      %1152 = vmatprep.subr.mxu0 0.0
      %1153 = vmatpush1.msra.mxu0 0.0
      %1154 = vmatprep.subr.mxu0 0.0
      %1155 = vmatpush1.msra.mxu0 0.0
      %1156 = vmatprep.subr.mxu0 0.0
      %1157 = vmatpush1.msra.mxu0 0.0
      %1158 = vmatprep.subr.mxu0 0.0
      %1159 = vmatpush1.msra.mxu0 0.0
      %1160 = vmatprep.subr.mxu0 0.0
      %1161 = vmatpush1.msra.mxu0 0.0
      %1162 = vmatprep.subr.mxu0 0.0
      %1163 = vmatpush1.msra.mxu0 0.0
      %1164 = vmatprep.subr.mxu0 0.0
      %1165 = vmatpush1.msra.mxu0 0.0
      %1166 = vmatprep.subr.mxu0 0.0
      %1167 = vmatpush1.msra.mxu0 0.0
      %1168 = vmatprep.subr.mxu0 0.0
      %1169 = vmatpush1.msra.mxu0 0.0
      %1170 = vmatprep.subr.mxu0 0.0
      %1171 = vmatpush1.msra.mxu0 0.0
      %1172 = vmatprep.subr.mxu0 0.0
      %1173 = vmatpush1.msra.mxu0 0.0
      %1174 = vmatprep.subr.mxu0 0.0
      %1175 = vmatpush1.msra.mxu0 0.0
      %1176 = vmatprep.subr.mxu0 0.0
      %1177 = vmatpush1.msra.mxu0 0.0
      %1178 = vmatprep.subr.mxu0 0.0
      %1179 = vmatpush1.msra.mxu0 0.0
      %1180 = vmatprep.subr.mxu0 0.0
      %1181 = vmatpush1.msra.mxu0 0.0
      %1182 = vmatprep.subr.mxu0 0.0
      %1183 = vmatpush1.msra.mxu0 0.0
      %1184 = vmatprep.subr.mxu0 0.0
      %1185 = vmatpush1.msra.mxu0 0.0
      %1186 = vmatprep.subr.mxu0 0.0
      %1187 = vmatpush1.msra.mxu0 0.0
      %1188 = vmatprep.subr.mxu0 0.0
      %1189 = vmatpush1.msra.mxu0 0.0
      %1190 = vmatprep.subr.mxu0 0.0
      %1191 = vmatpush1.msra.mxu0 0.0
      %1192 = vmatprep.subr.mxu0 0.0
      %1193 = vmatpush1.msra.mxu0 0.0
      %1194 = vmatprep.subr.mxu0 0.0
      %1195 = vmatpush1.msra.mxu0 0.0
      %1196 = vmatprep.subr.mxu0 0.0
      %1197 = vmatpush1.msra.mxu0 0.0
      %1198 = vmatprep.subr.mxu0 0.0
      %1199 = vmatpush1.msra.mxu0 0.0
      %1200 = vmatprep.subr.mxu0 0.0
      %1201 = vmatpush1.msra.mxu0 0.0
      %1202 = vmatprep.subr.mxu0 0.0
      %1203 = vmatpush1.msra.mxu0 0.0
      %1204 = vmatprep.subr.mxu0 0.0
      %1205 = vmatpush1.msra.mxu0 0.0
      %1206 = vmatprep.mubr.f32.mxu0 0.0
      %1207 = vmatmul.mubr.f32.gmra.mrb[0].mxu0 %v1137
      %v1208 = vpop.f32.mrb[0].mxu0
      %v1209 = vadd.f32 0.0, %v1208
      %v1210 = vpop.f32.mrb[0].mxu0
      %1211 = vdwg.mxu0
      %v1212 = vld [vmem:[%s0] sm:$0xf]
      %v1214 = vsel %vm174, %v1212, 0
      %v1217 = vsel %vm178, %v1209, 0
      %1219 = vmatprep.subr.mxu0 0.0
      %1220 = vmatpush1.msra.mxu0 %v1217
      %1221 = vmatprep.subr.mxu0 0.0
      %1222 = vmatpush1.msra.mxu0 0.0
      %1223 = vmatprep.subr.mxu0 0.0
      %1224 = vmatpush1.msra.mxu0 0.0
      %1225 = vmatprep.subr.mxu0 0.0
      %1226 = vmatpush1.msra.mxu0 0.0
      %1227 = vmatprep.subr.mxu0 0.0
      %1228 = vmatpush1.msra.mxu0 0.0
      %1229 = vmatprep.subr.mxu0 0.0
      %1230 = vmatpush1.msra.mxu0 0.0
      %1231 = vmatprep.subr.mxu0 0.0
      %1232 = vmatpush1.msra.mxu0 0.0
      %1233 = vmatprep.subr.mxu0 0.0
      %1234 = vmatpush1.msra.mxu0 0.0
      %1235 = vmatprep.subr.mxu0 0.0
      %1236 = vmatpush1.msra.mxu0 0.0
      %1237 = vmatprep.subr.mxu0 0.0
      %1238 = vmatpush1.msra.mxu0 0.0
      %1239 = vmatprep.subr.mxu0 0.0
      %1240 = vmatpush1.msra.mxu0 0.0
      %1241 = vmatprep.subr.mxu0 0.0
      %1242 = vmatpush1.msra.mxu0 0.0
      %1243 = vmatprep.subr.mxu0 0.0
      %1244 = vmatpush1.msra.mxu0 0.0
      %1245 = vmatprep.subr.mxu0 0.0
      %1246 = vmatpush1.msra.mxu0 0.0
      %1247 = vmatprep.subr.mxu0 0.0
      %1248 = vmatpush1.msra.mxu0 0.0
      %1249 = vmatprep.subr.mxu0 0.0
      %1250 = vmatpush1.msra.mxu0 0.0
      %1251 = vmatprep.subr.mxu0 0.0
      %1252 = vmatpush1.msra.mxu0 0.0
      %1253 = vmatprep.subr.mxu0 0.0
      %1254 = vmatpush1.msra.mxu0 0.0
      %1255 = vmatprep.subr.mxu0 0.0
      %1256 = vmatpush1.msra.mxu0 0.0
      %1257 = vmatprep.subr.mxu0 0.0
      %1258 = vmatpush1.msra.mxu0 0.0
      %1259 = vmatprep.subr.mxu0 0.0
      %1260 = vmatpush1.msra.mxu0 0.0
      %1261 = vmatprep.subr.mxu0 0.0
      %1262 = vmatpush1.msra.mxu0 0.0
      %1263 = vmatprep.subr.mxu0 0.0
      %1264 = vmatpush1.msra.mxu0 0.0
      %1265 = vmatprep.subr.mxu0 0.0
      %1266 = vmatpush1.msra.mxu0 0.0
      %1267 = vmatprep.subr.mxu0 0.0
      %1268 = vmatpush1.msra.mxu0 0.0
      %1269 = vmatprep.subr.mxu0 0.0
      %1270 = vmatpush1.msra.mxu0 0.0
      %1271 = vmatprep.subr.mxu0 0.0
      %1272 = vmatpush1.msra.mxu0 0.0
      %1273 = vmatprep.subr.mxu0 0.0
      %1274 = vmatpush1.msra.mxu0 0.0
      %1275 = vmatprep.subr.mxu0 0.0
      %1276 = vmatpush1.msra.mxu0 0.0
      %1277 = vmatprep.subr.mxu0 0.0
      %1278 = vmatpush1.msra.mxu0 0.0
      %1279 = vmatprep.subr.mxu0 0.0
      %1280 = vmatpush1.msra.mxu0 0.0
      %1281 = vmatprep.subr.mxu0 0.0
      %1282 = vmatpush1.msra.mxu0 0.0
      %1283 = vmatprep.mubr.f32.mxu0 0.0
      %1284 = vmatmul.mubr.f32.gmra.mrb[0].mxu0 %v1214
      %v1285 = vpop.f32.mrb[0].mxu0
      %v1286 = vadd.f32 0.0, %v1285
      %v1287 = vpop.f32.mrb[0].mxu0
      %1288 = vdwg.mxu0
      %v1289 = vpack.c.bf16 %v1286, %v1286
      %s1290 = scalar_lea.vmem %s169, 12
      %1291 = vst.msk [vmem:[%s1290] sm:$0x3] %vm330, %v1289
      %s1292 = scalar_lea.vmem %s163, 7
      %v1293 = vld [vmem:[%s1292] sm:$0x1]
      %v1294 = vunpack.c.l.bf16 %v1293
      %v1295 = vld [vmem:[%s1] sm:$0x3]
      %v1297 = vsel %vm174, %v1294, 0
      %v1300 = vsel %vm178, %v1295, 0
      %1302 = vmatprep.subr.mxu0 0.0
      %1303 = vmatpush1.msra.mxu0 %v1300
      %1304 = vmatprep.subr.mxu0 0.0
      %1305 = vmatpush1.msra.mxu0 0.0
      %1306 = vmatprep.subr.mxu0 0.0
      %1307 = vmatpush1.msra.mxu0 0.0
      %1308 = vmatprep.subr.mxu0 0.0
      %1309 = vmatpush1.msra.mxu0 0.0
      %1310 = vmatprep.subr.mxu0 0.0
      %1311 = vmatpush1.msra.mxu0 0.0
      %1312 = vmatprep.subr.mxu0 0.0
      %1313 = vmatpush1.msra.mxu0 0.0
      %1314 = vmatprep.subr.mxu0 0.0
      %1315 = vmatpush1.msra.mxu0 0.0
      %1316 = vmatprep.subr.mxu0 0.0
      %1317 = vmatpush1.msra.mxu0 0.0
      %1318 = vmatprep.subr.mxu0 0.0
      %1319 = vmatpush1.msra.mxu0 0.0
      %1320 = vmatprep.subr.mxu0 0.0
      %1321 = vmatpush1.msra.mxu0 0.0
      %1322 = vmatprep.subr.mxu0 0.0
      %1323 = vmatpush1.msra.mxu0 0.0
      %1324 = vmatprep.subr.mxu0 0.0
      %1325 = vmatpush1.msra.mxu0 0.0
      %1326 = vmatprep.subr.mxu0 0.0
      %1327 = vmatpush1.msra.mxu0 0.0
      %1328 = vmatprep.subr.mxu0 0.0
      %1329 = vmatpush1.msra.mxu0 0.0
      %1330 = vmatprep.subr.mxu0 0.0
      %1331 = vmatpush1.msra.mxu0 0.0
      %1332 = vmatprep.subr.mxu0 0.0
      %1333 = vmatpush1.msra.mxu0 0.0
      %1334 = vmatprep.subr.mxu0 0.0
      %1335 = vmatpush1.msra.mxu0 0.0
      %1336 = vmatprep.subr.mxu0 0.0
      %1337 = vmatpush1.msra.mxu0 0.0
      %1338 = vmatprep.subr.mxu0 0.0
      %1339 = vmatpush1.msra.mxu0 0.0
      %1340 = vmatprep.subr.mxu0 0.0
      %1341 = vmatpush1.msra.mxu0 0.0
      %1342 = vmatprep.subr.mxu0 0.0
      %1343 = vmatpush1.msra.mxu0 0.0
      %1344 = vmatprep.subr.mxu0 0.0
      %1345 = vmatpush1.msra.mxu0 0.0
      %1346 = vmatprep.subr.mxu0 0.0
      %1347 = vmatpush1.msra.mxu0 0.0
      %1348 = vmatprep.subr.mxu0 0.0
      %1349 = vmatpush1.msra.mxu0 0.0
      %1350 = vmatprep.subr.mxu0 0.0
      %1351 = vmatpush1.msra.mxu0 0.0
      %1352 = vmatprep.subr.mxu0 0.0
      %1353 = vmatpush1.msra.mxu0 0.0
      %1354 = vmatprep.subr.mxu0 0.0
      %1355 = vmatpush1.msra.mxu0 0.0
      %1356 = vmatprep.subr.mxu0 0.0
      %1357 = vmatpush1.msra.mxu0 0.0
      %1358 = vmatprep.subr.mxu0 0.0
      %1359 = vmatpush1.msra.mxu0 0.0
      %1360 = vmatprep.subr.mxu0 0.0
      %1361 = vmatpush1.msra.mxu0 0.0
      %1362 = vmatprep.subr.mxu0 0.0
      %1363 = vmatpush1.msra.mxu0 0.0
      %1364 = vmatprep.subr.mxu0 0.0
      %1365 = vmatpush1.msra.mxu0 0.0
      %1366 = vmatprep.mubr.f32.mxu0 0.0
      %1367 = vmatmul.mubr.f32.gmra.mrb[0].mxu0 %v1297
      %v1368 = vpop.f32.mrb[0].mxu0
      %v1369 = vadd.f32 0.0, %v1368
      %v1370 = vpop.f32.mrb[0].mxu0
      %1371 = vdwg.mxu0
      %v1372 = vld [vmem:[%s0] sm:$0xf]
      %v1374 = vsel %vm174, %v1372, 0
      %v1377 = vsel %vm178, %v1369, 0
      %1379 = vmatprep.subr.mxu0 0.0
      %1380 = vmatpush1.msra.mxu0 %v1377
      %1381 = vmatprep.subr.mxu0 0.0
      %1382 = vmatpush1.msra.mxu0 0.0
      %1383 = vmatprep.subr.mxu0 0.0
      %1384 = vmatpush1.msra.mxu0 0.0
      %1385 = vmatprep.subr.mxu0 0.0
      %1386 = vmatpush1.msra.mxu0 0.0
      %1387 = vmatprep.subr.mxu0 0.0
      %1388 = vmatpush1.msra.mxu0 0.0
      %1389 = vmatprep.subr.mxu0 0.0
      %1390 = vmatpush1.msra.mxu0 0.0
      %1391 = vmatprep.subr.mxu0 0.0
      %1392 = vmatpush1.msra.mxu0 0.0
      %1393 = vmatprep.subr.mxu0 0.0
      %1394 = vmatpush1.msra.mxu0 0.0
      %1395 = vmatprep.subr.mxu0 0.0
      %1396 = vmatpush1.msra.mxu0 0.0
      %1397 = vmatprep.subr.mxu0 0.0
      %1398 = vmatpush1.msra.mxu0 0.0
      %1399 = vmatprep.subr.mxu0 0.0
      %1400 = vmatpush1.msra.mxu0 0.0
      %1401 = vmatprep.subr.mxu0 0.0
      %1402 = vmatpush1.msra.mxu0 0.0
      %1403 = vmatprep.subr.mxu0 0.0
      %1404 = vmatpush1.msra.mxu0 0.0
      %1405 = vmatprep.subr.mxu0 0.0
      %1406 = vmatpush1.msra.mxu0 0.0
      %1407 = vmatprep.subr.mxu0 0.0
      %1408 = vmatpush1.msra.mxu0 0.0
      %1409 = vmatprep.subr.mxu0 0.0
      %1410 = vmatpush1.msra.mxu0 0.0
      %1411 = vmatprep.subr.mxu0 0.0
      %1412 = vmatpush1.msra.mxu0 0.0
      %1413 = vmatprep.subr.mxu0 0.0
      %1414 = vmatpush1.msra.mxu0 0.0
      %1415 = vmatprep.subr.mxu0 0.0
      %1416 = vmatpush1.msra.mxu0 0.0
      %1417 = vmatprep.subr.mxu0 0.0
      %1418 = vmatpush1.msra.mxu0 0.0
      %1419 = vmatprep.subr.mxu0 0.0
      %1420 = vmatpush1.msra.mxu0 0.0
      %1421 = vmatprep.subr.mxu0 0.0
      %1422 = vmatpush1.msra.mxu0 0.0
      %1423 = vmatprep.subr.mxu0 0.0
      %1424 = vmatpush1.msra.mxu0 0.0
      %1425 = vmatprep.subr.mxu0 0.0
      %1426 = vmatpush1.msra.mxu0 0.0
      %1427 = vmatprep.subr.mxu0 0.0
      %1428 = vmatpush1.msra.mxu0 0.0
      %1429 = vmatprep.subr.mxu0 0.0
      %1430 = vmatpush1.msra.mxu0 0.0
      %1431 = vmatprep.subr.mxu0 0.0
      %1432 = vmatpush1.msra.mxu0 0.0
      %1433 = vmatprep.subr.mxu0 0.0
      %1434 = vmatpush1.msra.mxu0 0.0
      %1435 = vmatprep.subr.mxu0 0.0
      %1436 = vmatpush1.msra.mxu0 0.0
      %1437 = vmatprep.subr.mxu0 0.0
      %1438 = vmatpush1.msra.mxu0 0.0
      %1439 = vmatprep.subr.mxu0 0.0
      %1440 = vmatpush1.msra.mxu0 0.0
      %1441 = vmatprep.subr.mxu0 0.0
      %1442 = vmatpush1.msra.mxu0 0.0
      %1443 = vmatprep.mubr.f32.mxu0 0.0
      %1444 = vmatmul.mubr.f32.gmra.mrb[0].mxu0 %v1374
      %v1445 = vpop.f32.mrb[0].mxu0
      %v1446 = vadd.f32 0.0, %v1445
      %v1447 = vpop.f32.mrb[0].mxu0
      %1448 = vdwg.mxu0
      %v1449 = vpack.c.bf16 %v1446, %v1446
      %s1450 = scalar_lea.vmem %s169, 14
      %1451 = vst.msk [vmem:[%s1450] sm:$0x3] %vm330, %v1449
      %s1452 = smul.u32 8, %s14
      %p1453 = scmp.lt.s32.totalorder %s1452, 31
      %s1454 = scalar_select %p1453, %s1452, 31
      %s1455 = smul.addr %s1454, 2
      %s1456 = scalar_lea.vmem %s3, %s1455
      // Predicated region
      $region33: #{rttdetv2_forward.18} parent=31 // pred_check
        %p1457 = pneg %p100
      $region34: #{rttdetv2_forward.18} parent=31 // pred_check_branch
        %1459 = sbr.rel (%p1457) target = $region36
      $region35: #{rttdetv2_forward.18} parent=31 // pred_region
        %s1460 = smul.u32 8, %s14
      $region36: #{rttdetv2_forward.18} parent=31 // pred_fallthru
        _
    $region32: #{rttdetv2_forward.18} parent=5 // pred_fallthru
      _
    %p1461 = scmp.le.s32.totalorder 2, %s9
    // Predicated region
    $region37: #{rttdetv2_forward.18} parent=5 // pred_check
      %p1462 = pneg %p1461
    $region38: #{rttdetv2_forward.18} parent=5 // pred_check_branch
      %1464 = sbr.rel (%p1462) target = $region40
    $region39: #{rttdetv2_forward.18} parent=5 // pred_region
      %s1465 = ssub.s32 %s9, 2
      // Predicated region
      $region41: #{rttdetv2_forward.18} parent=39 // pred_check
        %p1466 = pneg %p106
      $region42: #{rttdetv2_forward.18} parent=39 // pred_check_branch
        %1468 = sbr.rel (%p1466) target = $region44
      $region43: #{rttdetv2_forward.18} parent=39 // pred_region
        %s1469 = smul.u32 8, %s15
        %p1470 = scmp.lt.s32.totalorder %s1469, 31
        %s1471 = scalar_select %p1470, %s1469, 31
        %s1472 = smul.addr %s1471, 2
        %s1473 = scalar_lea.vmem %s3, %s1472
      $region44: #{rttdetv2_forward.18} parent=39 // pred_fallthru
        _
    $region40: #{rttdetv2_forward.18} parent=5 // pred_fallthru
      _
  $region6: #{rttdetv2_forward.18} parent=0 // loop_footer
    %s13 = sadd.s32 1, %s9
  $region7: #{rttdetv2_forward.18} parent=0 // loop_footer_branch
    %8 = sbr.rel target = $region3
  $region8: #{rttdetv2_forward.18} parent=0 // loop_exit
    _

// kernel: rttdetv2_forward.22
$region0: #{rttdetv2_forward.22}
  #allocation0 [shape = 'u32[]', space=smem, size = 0x4, offset = 0x4, fixed_abs, tag = 'smem constant byte address 0x4 - core index']
  #allocation1 [shape = 'u32[144,128]{1,0:T(1,128)}', space=vmem, size = 0x12000, scoped, tag = 'internal scratch']
  %s0 = inlined_call_operand.vmem [shape: bf16[16,144], index: 0, kind: input, shape index: {}]
  %s1 = inlined_call_operand.vmem [shape: bf16[144,128], index: 1, kind: input, shape index: {}]
  %s2 = inlined_call_operand.vmem [shape: f32[16,1], index: 2, kind: input, shape index: {}]
  %s3 = inlined_call_operand.vmem [shape: f32[8,16], index: 3, kind: input, shape index: {}]
  %s4 = inlined_call_operand.vmem [shape: f32[8,1], index: 4, kind: input, shape index: {}]
  %s5 = inlined_call_operand.vmem [shape: f32[8,128], index: 5, kind: output, shape index: {}]
  %s6 = sld [smem:[#allocation0]]
  $region30: #{rttdetv2_forward.22} parent=0
    _
  %s8 = ssub.s32 1, %s6
  %s9 = scalar_select 0, %s8, %s6
  // Predicated region
  $region2: #{rttdetv2_forward.22} parent=0 // pred_check
    _
  $region3: #{rttdetv2_forward.22} parent=0 // pred_check_branch
    %11 = sbr.rel (0) target = $region5
  $region4: #{rttdetv2_forward.22} parent=0 // pred_region
    _
  $region5: #{rttdetv2_forward.22} parent=0 // pred_fallthru
    _
  // Predicated region
  $region6: #{rttdetv2_forward.22} parent=0 // pred_check
    _
  $region7: #{rttdetv2_forward.22} parent=0 // pred_check_branch
    %13 = sbr.rel (0) target = $region9
  $region8: #{rttdetv2_forward.22} parent=0 // pred_region
    _
  $region9: #{rttdetv2_forward.22} parent=0 // pred_fallthru
    _
  // Predicated region
  $region10: #{rttdetv2_forward.22} parent=0 // pred_check
    _
  $region11: #{rttdetv2_forward.22} parent=0 // pred_check_branch
    %15 = sbr.rel (0) target = $region13
  $region12: #{rttdetv2_forward.22} parent=0 // pred_region
    _
  $region13: #{rttdetv2_forward.22} parent=0 // pred_fallthru
    _
  // Predicated region
  $region14: #{rttdetv2_forward.22} parent=0 // pred_check
    _
  $region15: #{rttdetv2_forward.22} parent=0 // pred_check_branch
    %17 = sbr.rel (0) target = $region17
  $region16: #{rttdetv2_forward.22} parent=0 // pred_region
    _
  $region17: #{rttdetv2_forward.22} parent=0 // pred_fallthru
    _
  // Predicated region
  $region18: #{rttdetv2_forward.22} parent=0 // pred_check
    _
  $region19: #{rttdetv2_forward.22} parent=0 // pred_check_branch
    %19 = sbr.rel (0) target = $region21
  $region20: #{rttdetv2_forward.22} parent=0 // pred_region
    _
  $region21: #{rttdetv2_forward.22} parent=0 // pred_fallthru
    _
  %v21 = vld [vmem:[%s0] sm:$0xff]
  %v22 = vld [vmem:[%s0 + $0x8] sm:$0xff]
  %v23 = vld [vmem:[%s1] sm:$0xf]
  %v24 = vld [vmem:[%s1 + $0x4] sm:$0xf]
  %v25 = vld [vmem:[%s1 + $0x8] sm:$0xf]
  %v26 = vld [vmem:[%s1 + $0xc] sm:$0xf]
  %v27 = vld [vmem:[%s1 + $0x10] sm:$0xf]
  %v28 = vld [vmem:[%s1 + $0x14] sm:$0xf]
  %v29 = vld [vmem:[%s1 + $0x18] sm:$0xf]
  %v30 = vld [vmem:[%s1 + $0x1c] sm:$0xf]
  %v31 = vld [vmem:[%s1 + $0x20] sm:$0xf]
  %v32 = vld [vmem:[%s1 + $0x24] sm:$0xf]
  %v33 = vld [vmem:[%s1 + $0x28] sm:$0xf]
  %v34 = vld [vmem:[%s1 + $0x2c] sm:$0xf]
  %v35 = vld [vmem:[%s1 + $0x30] sm:$0xf]
  %v36 = vld [vmem:[%s1 + $0x34] sm:$0xf]
  %v37 = vld [vmem:[%s1 + $0x38] sm:$0xf]
  %v38 = vld [vmem:[%s1 + $0x3c] sm:$0xf]
  %v39 = vld [vmem:[%s1 + $0x40] sm:$0xf]
  %v40 = vld [vmem:[%s1 + $0x44] sm:$0xf]
  %v41 = vld [vmem:[%s2] sm:$0xff]
  %v42 = vld [vmem:[%s2 + $0x8] sm:$0xff]
  %44 = vset.pattern.permute.xlu0 0
  %45 = vperm.xlu0 %44, %v41
  %v46 = vpop.permute.xlu0 %45
  %49 = vset.pattern.permute.xlu0 0
  %50 = vperm.xlu0 %49, %v42
  %v51 = vpop.permute.xlu0 %50
  %v55 = vunpack.c.l.b16 %v21
  %v56 = vunpack.c.h.b16 %v21
  %v57 = vunpack.c.l.b16 %v22
  %v58 = vunpack.c.h.b16 %v22
  %v59 = vpack.c.b16 %v57, %v55
  %v60 = vpack.c.b16 %v58, %v56
  %v80 = vunpack.c.l.b16 %v23
  %v81 = vunpack.c.l.b16 %v24
  %v82 = vunpack.c.l.b16 %v25
  %v83 = vunpack.c.l.b16 %v26
  %v84 = vunpack.c.l.b16 %v27
  %v85 = vunpack.c.l.b16 %v28
  %v86 = vunpack.c.l.b16 %v29
  %v87 = vunpack.c.l.b16 %v30
  %v88 = vunpack.c.l.b16 %v31
  %v89 = vunpack.c.l.b16 %v32
  %v90 = vunpack.c.l.b16 %v33
  %v91 = vunpack.c.l.b16 %v34
  %v92 = vunpack.c.l.b16 %v35
  %v93 = vunpack.c.l.b16 %v36
  %v94 = vunpack.c.l.b16 %v37
  %v95 = vunpack.c.l.b16 %v38
  %v96 = vunpack.c.l.b16 %v39
  %v97 = vunpack.c.l.b16 %v40
  %v98 = vpack.c.b16 %v81, %v80
  %v99 = vpack.c.b16 %v83, %v82
  %v100 = vpack.c.b16 %v85, %v84
  %v101 = vpack.c.b16 %v87, %v86
  %v102 = vpack.c.b16 %v89, %v88
  %v103 = vpack.c.b16 %v91, %v90
  %v104 = vpack.c.b16 %v93, %v92
  %v105 = vpack.c.b16 %v95, %v94
  %v106 = vpack.c.b16 %v97, %v96
  %vm116 = vcmask 130048
  %v118 = vsel %vm116, %v60, 0
  %120 = vmatprep.subr.bf16.mxu0 0
  %121 = vmatpush1.bf16.msra.mxu0 %v98
  %122 = vmatprep.subr.bf16.mxu0 0
  %123 = vmatpush1.bf16.msra.mxu0 %v99
  %124 = vmatprep.subr.bf16.mxu0 0
  %125 = vmatpush1.bf16.msra.mxu0 %v100
  %126 = vmatprep.subr.bf16.mxu0 0
  %127 = vmatpush1.bf16.msra.mxu0 %v101
  %128 = vmatprep.subr.bf16.mxu0 0
  %129 = vmatpush1.bf16.msra.mxu0 %v102
  %130 = vmatprep.subr.bf16.mxu0 0
  %131 = vmatpush1.bf16.msra.mxu0 %v103
  %132 = vmatprep.subr.bf16.mxu0 0
  %133 = vmatpush1.bf16.msra.mxu0 %v104
  %134 = vmatprep.subr.bf16.mxu0 0
  %135 = vmatpush1.bf16.msra.mxu0 %v105
  %136 = vmatprep.subr.bf16.mxu0 0
  %137 = vmatpush1.bf16.msra.mxu0 %v106
  %138 = vmatprep.subr.bf16.mxu0 0
  %139 = vmatpush1.bf16.msra.mxu0 0
  %140 = vmatprep.subr.bf16.mxu0 0
  %141 = vmatpush1.bf16.msra.mxu0 0
  %142 = vmatprep.subr.bf16.mxu0 0
  %143 = vmatpush1.bf16.msra.mxu0 0
  %144 = vmatprep.subr.bf16.mxu0 0
  %145 = vmatpush1.bf16.msra.mxu0 0
  %146 = vmatprep.subr.bf16.mxu0 0
  %147 = vmatpush1.bf16.msra.mxu0 0
  %148 = vmatprep.subr.bf16.mxu0 0
  %149 = vmatpush1.bf16.msra.mxu0 0
  %150 = vmatprep.subr.bf16.mxu0 0
  %151 = vmatpush1.bf16.msra.mxu0 0
  %152 = vmatprep.mubr.bf16.mxu0 %v118
  %153 = vmatmul.mubr.bf16.gmra.mrb[0].mxu0 %v59
  %v154 = vpop.f32.mrb[0].mxu0
  %v155 = vadd.f32 %v46, %v154
  %v156 = vpop.f32.mrb[0].mxu0
  %v157 = vpop.f32.mrb[0].mxu0
  %v158 = vadd.f32 %v51, %v157
  %v159 = vpop.f32.mrb[0].mxu0
  %160 = vdwg.mxu0
  %v161 = vmax.f32 %v155, 0.0
  %v162 = vmax.f32 %v158, 0.0
  %v163 = vld [vmem:[%s3] sm:$0xff]
  %v164 = vld [vmem:[%s4] sm:$0xff]
  %166 = vset.pattern.permute.xlu0 0
  %167 = vperm.xlu0 %166, %v164
  %v168 = vpop.permute.xlu0 %167
  %v171 = vsel %vm116, %v163, 0
  %173 = vmatprep.subr.mxu0 0.0
  %174 = vmatpush1.msra.mxu0 %v161
  %175 = vmatprep.subr.mxu0 0.0
  %176 = vmatpush1.msra.mxu0 %v162
  %177 = vmatprep.subr.mxu0 0.0
  %178 = vmatpush1.msra.mxu0 0.0
  %179 = vmatprep.subr.mxu0 0.0
  %180 = vmatpush1.msra.mxu0 0.0
  %181 = vmatprep.subr.mxu0 0.0
  %182 = vmatpush1.msra.mxu0 0.0
  %183 = vmatprep.subr.mxu0 0.0
  %184 = vmatpush1.msra.mxu0 0.0
  %185 = vmatprep.subr.mxu0 0.0
  %186 = vmatpush1.msra.mxu0 0.0
  %187 = vmatprep.subr.mxu0 0.0
  %188 = vmatpush1.msra.mxu0 0.0
  %189 = vmatprep.subr.mxu0 0.0
  %190 = vmatpush1.msra.mxu0 0.0
  %191 = vmatprep.subr.mxu0 0.0
  %192 = vmatpush1.msra.mxu0 0.0
  %193 = vmatprep.subr.mxu0 0.0
  %194 = vmatpush1.msra.mxu0 0.0
  %195 = vmatprep.subr.mxu0 0.0
  %196 = vmatpush1.msra.mxu0 0.0
  %197 = vmatprep.subr.mxu0 0.0
  %198 = vmatpush1.msra.mxu0 0.0
  %199 = vmatprep.subr.mxu0 0.0
  %200 = vmatpush1.msra.mxu0 0.0
  %201 = vmatprep.subr.mxu0 0.0
  %202 = vmatpush1.msra.mxu0 0.0
  %203 = vmatprep.subr.mxu0 0.0
  %204 = vmatpush1.msra.mxu0 0.0
  %205 = vmatprep.subr.mxu0 0.0
  %206 = vmatpush1.msra.mxu0 0.0
  %207 = vmatprep.subr.mxu0 0.0
  %208 = vmatpush1.msra.mxu0 0.0
  %209 = vmatprep.subr.mxu0 0.0
  %210 = vmatpush1.msra.mxu0 0.0
  %211 = vmatprep.subr.mxu0 0.0
  %212 = vmatpush1.msra.mxu0 0.0
  %213 = vmatprep.subr.mxu0 0.0
  %214 = vmatpush1.msra.mxu0 0.0
  %215 = vmatprep.subr.mxu0 0.0
  %216 = vmatpush1.msra.mxu0 0.0
  %217 = vmatprep.subr.mxu0 0.0
  %218 = vmatpush1.msra.mxu0 0.0
  %219 = vmatprep.subr.mxu0 0.0
  %220 = vmatpush1.msra.mxu0 0.0
  %221 = vmatprep.subr.mxu0 0.0
  %222 = vmatpush1.msra.mxu0 0.0
  %223 = vmatprep.subr.mxu0 0.0
  %224 = vmatpush1.msra.mxu0 0.0
  %225 = vmatprep.subr.mxu0 0.0
  %226 = vmatpush1.msra.mxu0 0.0
  %227 = vmatprep.subr.mxu0 0.0
  %228 = vmatpush1.msra.mxu0 0.0
  %229 = vmatprep.subr.mxu0 0.0
  %230 = vmatpush1.msra.mxu0 0.0
  %231 = vmatprep.subr.mxu0 0.0
  %232 = vmatpush1.msra.mxu0 0.0
  %233 = vmatprep.subr.mxu0 0.0
  %234 = vmatpush1.msra.mxu0 0.0
  %235 = vmatprep.subr.mxu0 0.0
  %236 = vmatpush1.msra.mxu0 0.0
  %237 = vmatprep.mubr.f32.mxu0 0.0
  %238 = vmatmul.mubr.f32.gmra.mrb[0].mxu0 %v171
  %v239 = vpop.f32.mrb[0].mxu0
  %v240 = vadd.f32 %v168, %v239
  %v241 = vpop.f32.mrb[0].mxu0
  %242 = vdwg.mxu0
  %243 = vst [vmem:[%s5] sm:$0xff] %v240
  // Predicated region
  $region22: #{rttdetv2_forward.22} parent=0 // pred_check
    _
  $region23: #{rttdetv2_forward.22} parent=0 // pred_check_branch
    %245 = sbr.rel (0) target = $region25
  $region24: #{rttdetv2_forward.22} parent=0 // pred_region
    _
  $region25: #{rttdetv2_forward.22} parent=0 // pred_fallthru
    _
  // Predicated region
  $region26: #{rttdetv2_forward.22} parent=0 // pred_check
    _
  $region27: #{rttdetv2_forward.22} parent=0 // pred_check_branch
    %247 = sbr.rel (0) target = $region29
  $region28: #{rttdetv2_forward.22} parent=0 // pred_region
    _
  $region29: #{rttdetv2_forward.22} parent=0 // pred_fallthru
    _

// kernel: rttdetv2_forward.23
$region0: #{rttdetv2_forward.23}
  #allocation0 [shape = 'u32[]', space=smem, size = 0x4, offset = 0x4, fixed_abs, tag = 'smem constant byte address 0x4 - core index']
  #allocation1 [shape = 'u32[144,128]{1,0:T(1,128)}', space=vmem, size = 0x12000, scoped, tag = 'internal scratch']
  %s0 = inlined_call_operand.vmem [shape: f32[16,8], index: 0, kind: input, shape index: {}]
  %s1 = inlined_call_operand.vmem [shape: f32[8,16], index: 1, kind: input, shape index: {}]
  %s2 = inlined_call_operand.vmem [shape: f32[4,8,8], index: 2, kind: input, shape index: {}]
  %s3 = inlined_call_operand.vmem [shape: f32[4,16,16], index: 3, kind: output, shape index: {}]
  %s4 = sld [smem:[#allocation0]]
  $region22: #{rttdetv2_forward.23} parent=0
    _
  %s6 = ssub.s32 1, %s4
  %s7 = scalar_select 0, %s6, %s4
  // Predicated region
  $region2: #{rttdetv2_forward.23} parent=0 // pred_check
    _
  $region3: #{rttdetv2_forward.23} parent=0 // pred_check_branch
    %9 = sbr.rel (0) target = $region5
  $region4: #{rttdetv2_forward.23} parent=0 // pred_region
    _
  $region5: #{rttdetv2_forward.23} parent=0 // pred_fallthru
    _
  // Predicated region
  $region6: #{rttdetv2_forward.23} parent=0 // pred_check
    _
  $region7: #{rttdetv2_forward.23} parent=0 // pred_check_branch
    %11 = sbr.rel (0) target = $region9
  $region8: #{rttdetv2_forward.23} parent=0 // pred_region
    _
  $region9: #{rttdetv2_forward.23} parent=0 // pred_fallthru
    _
  // Predicated region
  $region10: #{rttdetv2_forward.23} parent=0 // pred_check
    _
  $region11: #{rttdetv2_forward.23} parent=0 // pred_check_branch
    %13 = sbr.rel (0) target = $region13
  $region12: #{rttdetv2_forward.23} parent=0 // pred_region
    _
  $region13: #{rttdetv2_forward.23} parent=0 // pred_fallthru
    _
  %v14 = vld [vmem:[%s2] sm:$0xff]
  %v15 = vld [vmem:[%s1] sm:$0xff]
  %vm16 = vcmask 64512
  %v18 = vsel %vm16, %v14, 0
  %20 = vmatprep.subr.mxu0 0.0
  %21 = vmatpush1.msra.mxu0 %v15
  %22 = vmatprep.subr.mxu0 0.0
  %23 = vmatpush1.msra.mxu0 0.0
  %24 = vmatprep.subr.mxu0 0.0
  %25 = vmatpush1.msra.mxu0 0.0
  %26 = vmatprep.subr.mxu0 0.0
  %27 = vmatpush1.msra.mxu0 0.0
  %28 = vmatprep.subr.mxu0 0.0
  %29 = vmatpush1.msra.mxu0 0.0
  %30 = vmatprep.subr.mxu0 0.0
  %31 = vmatpush1.msra.mxu0 0.0
  %32 = vmatprep.subr.mxu0 0.0
  %33 = vmatpush1.msra.mxu0 0.0
  %34 = vmatprep.subr.mxu0 0.0
  %35 = vmatpush1.msra.mxu0 0.0
  %36 = vmatprep.subr.mxu0 0.0
  %37 = vmatpush1.msra.mxu0 0.0
  %38 = vmatprep.subr.mxu0 0.0
  %39 = vmatpush1.msra.mxu0 0.0
  %40 = vmatprep.subr.mxu0 0.0
  %41 = vmatpush1.msra.mxu0 0.0
  %42 = vmatprep.subr.mxu0 0.0
  %43 = vmatpush1.msra.mxu0 0.0
  %44 = vmatprep.subr.mxu0 0.0
  %45 = vmatpush1.msra.mxu0 0.0
  %46 = vmatprep.subr.mxu0 0.0
  %47 = vmatpush1.msra.mxu0 0.0
  %48 = vmatprep.subr.mxu0 0.0
  %49 = vmatpush1.msra.mxu0 0.0
  %50 = vmatprep.subr.mxu0 0.0
  %51 = vmatpush1.msra.mxu0 0.0
  %52 = vmatprep.subr.mxu0 0.0
  %53 = vmatpush1.msra.mxu0 0.0
  %54 = vmatprep.subr.mxu0 0.0
  %55 = vmatpush1.msra.mxu0 0.0
  %56 = vmatprep.subr.mxu0 0.0
  %57 = vmatpush1.msra.mxu0 0.0
  %58 = vmatprep.subr.mxu0 0.0
  %59 = vmatpush1.msra.mxu0 0.0
  %60 = vmatprep.subr.mxu0 0.0
  %61 = vmatpush1.msra.mxu0 0.0
  %62 = vmatprep.subr.mxu0 0.0
  %63 = vmatpush1.msra.mxu0 0.0
  %64 = vmatprep.subr.mxu0 0.0
  %65 = vmatpush1.msra.mxu0 0.0
  %66 = vmatprep.subr.mxu0 0.0
  %67 = vmatpush1.msra.mxu0 0.0
  %68 = vmatprep.subr.mxu0 0.0
  %69 = vmatpush1.msra.mxu0 0.0
  %70 = vmatprep.subr.mxu0 0.0
  %71 = vmatpush1.msra.mxu0 0.0
  %72 = vmatprep.subr.mxu0 0.0
  %73 = vmatpush1.msra.mxu0 0.0
  %74 = vmatprep.subr.mxu0 0.0
  %75 = vmatpush1.msra.mxu0 0.0
  %76 = vmatprep.subr.mxu0 0.0
  %77 = vmatpush1.msra.mxu0 0.0
  %78 = vmatprep.subr.mxu0 0.0
  %79 = vmatpush1.msra.mxu0 0.0
  %80 = vmatprep.subr.mxu0 0.0
  %81 = vmatpush1.msra.mxu0 0.0
  %82 = vmatprep.subr.mxu0 0.0
  %83 = vmatpush1.msra.mxu0 0.0
  %84 = vmatprep.mubr.f32.mxu0 0.0
  %85 = vmatmul.mubr.f32.gmra.mrb[0].mxu0 %v18
  %v86 = vpop.f32.mrb[0].mxu0
  %v87 = vadd.f32 0.0, %v86
  %v88 = vpop.f32.mrb[0].mxu0
  %89 = vdwg.mxu0
  %v90 = vld [vmem:[%s0] sm:$0xff]
  %v91 = vld [vmem:[%s0 + $0x8] sm:$0xff]
  %v93 = vsel %vm16, %v90, 0
  %v96 = vsel %vm16, %v91, 0
  %98 = vmatprep.subr.mxu0 0.0
  %99 = vmatpush1.msra.mxu0 %v87
  %100 = vmatprep.subr.mxu0 0.0
  %101 = vmatpush1.msra.mxu0 0.0
  %102 = vmatprep.subr.mxu0 0.0
  %103 = vmatpush1.msra.mxu0 0.0
  %104 = vmatprep.subr.mxu0 0.0
  %105 = vmatpush1.msra.mxu0 0.0
  %106 = vmatprep.subr.mxu0 0.0
  %107 = vmatpush1.msra.mxu0 0.0
  %108 = vmatprep.subr.mxu0 0.0
  %109 = vmatpush1.msra.mxu0 0.0
  %110 = vmatprep.subr.mxu0 0.0
  %111 = vmatpush1.msra.mxu0 0.0
  %112 = vmatprep.subr.mxu0 0.0
  %113 = vmatpush1.msra.mxu0 0.0
  %114 = vmatprep.subr.mxu0 0.0
  %115 = vmatpush1.msra.mxu0 0.0
  %116 = vmatprep.subr.mxu0 0.0
  %117 = vmatpush1.msra.mxu0 0.0
  %118 = vmatprep.subr.mxu0 0.0
  %119 = vmatpush1.msra.mxu0 0.0
  %120 = vmatprep.subr.mxu0 0.0
  %121 = vmatpush1.msra.mxu0 0.0
  %122 = vmatprep.subr.mxu0 0.0
  %123 = vmatpush1.msra.mxu0 0.0
  %124 = vmatprep.subr.mxu0 0.0
  %125 = vmatpush1.msra.mxu0 0.0
  %126 = vmatprep.subr.mxu0 0.0
  %127 = vmatpush1.msra.mxu0 0.0
  %128 = vmatprep.subr.mxu0 0.0
  %129 = vmatpush1.msra.mxu0 0.0
  %130 = vmatprep.subr.mxu0 0.0
  %131 = vmatpush1.msra.mxu0 0.0
  %132 = vmatprep.subr.mxu0 0.0
  %133 = vmatpush1.msra.mxu0 0.0
  %134 = vmatprep.subr.mxu0 0.0
  %135 = vmatpush1.msra.mxu0 0.0
  %136 = vmatprep.subr.mxu0 0.0
  %137 = vmatpush1.msra.mxu0 0.0
  %138 = vmatprep.subr.mxu0 0.0
  %139 = vmatpush1.msra.mxu0 0.0
  %140 = vmatprep.subr.mxu0 0.0
  %141 = vmatpush1.msra.mxu0 0.0
  %142 = vmatprep.subr.mxu0 0.0
  %143 = vmatpush1.msra.mxu0 0.0
  %144 = vmatprep.subr.mxu0 0.0
  %145 = vmatpush1.msra.mxu0 0.0
  %146 = vmatprep.subr.mxu0 0.0
  %147 = vmatpush1.msra.mxu0 0.0
  %148 = vmatprep.subr.mxu0 0.0
  %149 = vmatpush1.msra.mxu0 0.0
  %150 = vmatprep.subr.mxu0 0.0
  %151 = vmatpush1.msra.mxu0 0.0
  %152 = vmatprep.subr.mxu0 0.0
  %153 = vmatpush1.msra.mxu0 0.0
  %154 = vmatprep.subr.mxu0 0.0
  %155 = vmatpush1.msra.mxu0 0.0
  %156 = vmatprep.subr.mxu0 0.0
  %157 = vmatpush1.msra.mxu0 0.0
  %158 = vmatprep.subr.mxu0 0.0
  %159 = vmatpush1.msra.mxu0 0.0
  %160 = vmatprep.subr.mxu0 0.0
  %161 = vmatpush1.msra.mxu0 0.0
  %162 = vmatprep.mubr.f32.mxu0 0.0
  %163 = vmatmul.mubr.f32.gmra.mrb[0].mxu0 %v93
  %v164 = vpop.f32.mrb[0].mxu0
  %v165 = vadd.f32 0.0, %v164
  %v166 = vpop.f32.mrb[0].mxu0
  %167 = vmatprep.mubr.f32.mxu0 0.0
  %168 = vmatmul.mubr.f32.gmra.mrb[0].mxu0 %v96
  %v169 = vpop.f32.mrb[0].mxu0
  %v170 = vadd.f32 0.0, %v169
  %v171 = vpop.f32.mrb[0].mxu0
  %172 = vdwg.mxu0
  %vm173 = vcmask 130048
  %174 = vst.msk [vmem:[%s3] sm:$0xff] %vm173, %v165
  %175 = vst.msk [vmem:[%s3 + $0x8] sm:$0xff] %vm173, %v170
  %s176 = scalar_lea.vmem %s2, 8
  %v177 = vld [vmem:[%s176] sm:$0xff]
  %v178 = vld [vmem:[%s1] sm:$0xff]
  %v180 = vsel %vm16, %v177, 0
  %182 = vmatprep.subr.mxu0 0.0
  %183 = vmatpush1.msra.mxu0 %v178
  %184 = vmatprep.subr.mxu0 0.0
  %185 = vmatpush1.msra.mxu0 0.0
  %186 = vmatprep.subr.mxu0 0.0
  %187 = vmatpush1.msra.mxu0 0.0
  %188 = vmatprep.subr.mxu0 0.0
  %189 = vmatpush1.msra.mxu0 0.0
  %190 = vmatprep.subr.mxu0 0.0
  %191 = vmatpush1.msra.mxu0 0.0
  %192 = vmatprep.subr.mxu0 0.0
  %193 = vmatpush1.msra.mxu0 0.0
  %194 = vmatprep.subr.mxu0 0.0
  %195 = vmatpush1.msra.mxu0 0.0
  %196 = vmatprep.subr.mxu0 0.0
  %197 = vmatpush1.msra.mxu0 0.0
  %198 = vmatprep.subr.mxu0 0.0
  %199 = vmatpush1.msra.mxu0 0.0
  %200 = vmatprep.subr.mxu0 0.0
  %201 = vmatpush1.msra.mxu0 0.0
  %202 = vmatprep.subr.mxu0 0.0
  %203 = vmatpush1.msra.mxu0 0.0
  %204 = vmatprep.subr.mxu0 0.0
  %205 = vmatpush1.msra.mxu0 0.0
  %206 = vmatprep.subr.mxu0 0.0
  %207 = vmatpush1.msra.mxu0 0.0
  %208 = vmatprep.subr.mxu0 0.0
  %209 = vmatpush1.msra.mxu0 0.0
  %210 = vmatprep.subr.mxu0 0.0
  %211 = vmatpush1.msra.mxu0 0.0
  %212 = vmatprep.subr.mxu0 0.0
  %213 = vmatpush1.msra.mxu0 0.0
  %214 = vmatprep.subr.mxu0 0.0
  %215 = vmatpush1.msra.mxu0 0.0
  %216 = vmatprep.subr.mxu0 0.0
  %217 = vmatpush1.msra.mxu0 0.0
  %218 = vmatprep.subr.mxu0 0.0
  %219 = vmatpush1.msra.mxu0 0.0
  %220 = vmatprep.subr.mxu0 0.0
  %221 = vmatpush1.msra.mxu0 0.0
  %222 = vmatprep.subr.mxu0 0.0
  %223 = vmatpush1.msra.mxu0 0.0
  %224 = vmatprep.subr.mxu0 0.0
  %225 = vmatpush1.msra.mxu0 0.0
  %226 = vmatprep.subr.mxu0 0.0
  %227 = vmatpush1.msra.mxu0 0.0
  %228 = vmatprep.subr.mxu0 0.0
  %229 = vmatpush1.msra.mxu0 0.0
  %230 = vmatprep.subr.mxu0 0.0
  %231 = vmatpush1.msra.mxu0 0.0
  %232 = vmatprep.subr.mxu0 0.0
  %233 = vmatpush1.msra.mxu0 0.0
  %234 = vmatprep.subr.mxu0 0.0
  %235 = vmatpush1.msra.mxu0 0.0
  %236 = vmatprep.subr.mxu0 0.0
  %237 = vmatpush1.msra.mxu0 0.0
  %238 = vmatprep.subr.mxu0 0.0
  %239 = vmatpush1.msra.mxu0 0.0
  %240 = vmatprep.subr.mxu0 0.0
  %241 = vmatpush1.msra.mxu0 0.0
  %242 = vmatprep.subr.mxu0 0.0
  %243 = vmatpush1.msra.mxu0 0.0
  %244 = vmatprep.subr.mxu0 0.0
  %245 = vmatpush1.msra.mxu0 0.0
  %246 = vmatprep.mubr.f32.mxu0 0.0
  %247 = vmatmul.mubr.f32.gmra.mrb[0].mxu0 %v180
  %v248 = vpop.f32.mrb[0].mxu0
  %v249 = vadd.f32 0.0, %v248
  %v250 = vpop.f32.mrb[0].mxu0
  %251 = vdwg.mxu0
  %v252 = vld [vmem:[%s0] sm:$0xff]
  %v253 = vld [vmem:[%s0 + $0x8] sm:$0xff]
  %v255 = vsel %vm16, %v252, 0
  %v258 = vsel %vm16, %v253, 0
  %260 = vmatprep.subr.mxu0 0.0
  %261 = vmatpush1.msra.mxu0 %v249
  %262 = vmatprep.subr.mxu0 0.0
  %263 = vmatpush1.msra.mxu0 0.0
  %264 = vmatprep.subr.mxu0 0.0
  %265 = vmatpush1.msra.mxu0 0.0
  %266 = vmatprep.subr.mxu0 0.0
  %267 = vmatpush1.msra.mxu0 0.0
  %268 = vmatprep.subr.mxu0 0.0
  %269 = vmatpush1.msra.mxu0 0.0
  %270 = vmatprep.subr.mxu0 0.0
  %271 = vmatpush1.msra.mxu0 0.0
  %272 = vmatprep.subr.mxu0 0.0
  %273 = vmatpush1.msra.mxu0 0.0
  %274 = vmatprep.subr.mxu0 0.0
  %275 = vmatpush1.msra.mxu0 0.0
  %276 = vmatprep.subr.mxu0 0.0
  %277 = vmatpush1.msra.mxu0 0.0
  %278 = vmatprep.subr.mxu0 0.0
  %279 = vmatpush1.msra.mxu0 0.0
  %280 = vmatprep.subr.mxu0 0.0
  %281 = vmatpush1.msra.mxu0 0.0
  %282 = vmatprep.subr.mxu0 0.0
  %283 = vmatpush1.msra.mxu0 0.0
  %284 = vmatprep.subr.mxu0 0.0
  %285 = vmatpush1.msra.mxu0 0.0
  %286 = vmatprep.subr.mxu0 0.0
  %287 = vmatpush1.msra.mxu0 0.0
  %288 = vmatprep.subr.mxu0 0.0
  %289 = vmatpush1.msra.mxu0 0.0
  %290 = vmatprep.subr.mxu0 0.0
  %291 = vmatpush1.msra.mxu0 0.0
  %292 = vmatprep.subr.mxu0 0.0
  %293 = vmatpush1.msra.mxu0 0.0
  %294 = vmatprep.subr.mxu0 0.0
  %295 = vmatpush1.msra.mxu0 0.0
  %296 = vmatprep.subr.mxu0 0.0
  %297 = vmatpush1.msra.mxu0 0.0
  %298 = vmatprep.subr.mxu0 0.0
  %299 = vmatpush1.msra.mxu0 0.0
  %300 = vmatprep.subr.mxu0 0.0
  %301 = vmatpush1.msra.mxu0 0.0
  %302 = vmatprep.subr.mxu0 0.0
  %303 = vmatpush1.msra.mxu0 0.0
  %304 = vmatprep.subr.mxu0 0.0
  %305 = vmatpush1.msra.mxu0 0.0
  %306 = vmatprep.subr.mxu0 0.0
  %307 = vmatpush1.msra.mxu0 0.0
  %308 = vmatprep.subr.mxu0 0.0
  %309 = vmatpush1.msra.mxu0 0.0
  %310 = vmatprep.subr.mxu0 0.0
  %311 = vmatpush1.msra.mxu0 0.0
  %312 = vmatprep.subr.mxu0 0.0
  %313 = vmatpush1.msra.mxu0 0.0
  %314 = vmatprep.subr.mxu0 0.0
  %315 = vmatpush1.msra.mxu0 0.0
  %316 = vmatprep.subr.mxu0 0.0
  %317 = vmatpush1.msra.mxu0 0.0
  %318 = vmatprep.subr.mxu0 0.0
  %319 = vmatpush1.msra.mxu0 0.0
  %320 = vmatprep.subr.mxu0 0.0
  %321 = vmatpush1.msra.mxu0 0.0
  %322 = vmatprep.subr.mxu0 0.0
  %323 = vmatpush1.msra.mxu0 0.0
  %324 = vmatprep.mubr.f32.mxu0 0.0
  %325 = vmatmul.mubr.f32.gmra.mrb[0].mxu0 %v255
  %v326 = vpop.f32.mrb[0].mxu0
  %v327 = vadd.f32 0.0, %v326
  %v328 = vpop.f32.mrb[0].mxu0
  %329 = vmatprep.mubr.f32.mxu0 0.0
  %330 = vmatmul.mubr.f32.gmra.mrb[0].mxu0 %v258
  %v331 = vpop.f32.mrb[0].mxu0
  %v332 = vadd.f32 0.0, %v331
  %v333 = vpop.f32.mrb[0].mxu0
  %334 = vdwg.mxu0
  %s335 = scalar_lea.vmem %s3, 16
  %336 = vst.msk [vmem:[%s335] sm:$0xff] %vm173, %v327
  %337 = vst.msk [vmem:[%s335 + $0x8] sm:$0xff] %vm173, %v332
  %s338 = scalar_lea.vmem %s2, 16
  %v339 = vld [vmem:[%s338] sm:$0xff]
  %v340 = vld [vmem:[%s1] sm:$0xff]
  %v342 = vsel %vm16, %v339, 0
  %344 = vmatprep.subr.mxu0 0.0
  %345 = vmatpush1.msra.mxu0 %v340
  %346 = vmatprep.subr.mxu0 0.0
  %347 = vmatpush1.msra.mxu0 0.0
  %348 = vmatprep.subr.mxu0 0.0
  %349 = vmatpush1.msra.mxu0 0.0
  %350 = vmatprep.subr.mxu0 0.0
  %351 = vmatpush1.msra.mxu0 0.0
  %352 = vmatprep.subr.mxu0 0.0
  %353 = vmatpush1.msra.mxu0 0.0
  %354 = vmatprep.subr.mxu0 0.0
  %355 = vmatpush1.msra.mxu0 0.0
  %356 = vmatprep.subr.mxu0 0.0
  %357 = vmatpush1.msra.mxu0 0.0
  %358 = vmatprep.subr.mxu0 0.0
  %359 = vmatpush1.msra.mxu0 0.0
  %360 = vmatprep.subr.mxu0 0.0
  %361 = vmatpush1.msra.mxu0 0.0
  %362 = vmatprep.subr.mxu0 0.0
  %363 = vmatpush1.msra.mxu0 0.0
  %364 = vmatprep.subr.mxu0 0.0
  %365 = vmatpush1.msra.mxu0 0.0
  %366 = vmatprep.subr.mxu0 0.0
  %367 = vmatpush1.msra.mxu0 0.0
  %368 = vmatprep.subr.mxu0 0.0
  %369 = vmatpush1.msra.mxu0 0.0
  %370 = vmatprep.subr.mxu0 0.0
  %371 = vmatpush1.msra.mxu0 0.0
  %372 = vmatprep.subr.mxu0 0.0
  %373 = vmatpush1.msra.mxu0 0.0
  %374 = vmatprep.subr.mxu0 0.0
  %375 = vmatpush1.msra.mxu0 0.0
  %376 = vmatprep.subr.mxu0 0.0
  %377 = vmatpush1.msra.mxu0 0.0
  %378 = vmatprep.subr.mxu0 0.0
  %379 = vmatpush1.msra.mxu0 0.0
  %380 = vmatprep.subr.mxu0 0.0
  %381 = vmatpush1.msra.mxu0 0.0
  %382 = vmatprep.subr.mxu0 0.0
  %383 = vmatpush1.msra.mxu0 0.0
  %384 = vmatprep.subr.mxu0 0.0
  %385 = vmatpush1.msra.mxu0 0.0
  %386 = vmatprep.subr.mxu0 0.0
  %387 = vmatpush1.msra.mxu0 0.0
  %388 = vmatprep.subr.mxu0 0.0
  %389 = vmatpush1.msra.mxu0 0.0
  %390 = vmatprep.subr.mxu0 0.0
  %391 = vmatpush1.msra.mxu0 0.0
  %392 = vmatprep.subr.mxu0 0.0
  %393 = vmatpush1.msra.mxu0 0.0
  %394 = vmatprep.subr.mxu0 0.0
  %395 = vmatpush1.msra.mxu0 0.0
  %396 = vmatprep.subr.mxu0 0.0
  %397 = vmatpush1.msra.mxu0 0.0
  %398 = vmatprep.subr.mxu0 0.0
  %399 = vmatpush1.msra.mxu0 0.0
  %400 = vmatprep.subr.mxu0 0.0
  %401 = vmatpush1.msra.mxu0 0.0
  %402 = vmatprep.subr.mxu0 0.0
  %403 = vmatpush1.msra.mxu0 0.0
  %404 = vmatprep.subr.mxu0 0.0
  %405 = vmatpush1.msra.mxu0 0.0
  %406 = vmatprep.subr.mxu0 0.0
  %407 = vmatpush1.msra.mxu0 0.0
  %408 = vmatprep.mubr.f32.mxu0 0.0
  %409 = vmatmul.mubr.f32.gmra.mrb[0].mxu0 %v342
  %v410 = vpop.f32.mrb[0].mxu0
  %v411 = vadd.f32 0.0, %v410
  %v412 = vpop.f32.mrb[0].mxu0
  %413 = vdwg.mxu0
  %v414 = vld [vmem:[%s0] sm:$0xff]
  %v415 = vld [vmem:[%s0 + $0x8] sm:$0xff]
  %v417 = vsel %vm16, %v414, 0
  %v420 = vsel %vm16, %v415, 0
  %422 = vmatprep.subr.mxu0 0.0
  %423 = vmatpush1.msra.mxu0 %v411
  %424 = vmatprep.subr.mxu0 0.0
  %425 = vmatpush1.msra.mxu0 0.0
  %426 = vmatprep.subr.mxu0 0.0
  %427 = vmatpush1.msra.mxu0 0.0
  %428 = vmatprep.subr.mxu0 0.0
  %429 = vmatpush1.msra.mxu0 0.0
  %430 = vmatprep.subr.mxu0 0.0
  %431 = vmatpush1.msra.mxu0 0.0
  %432 = vmatprep.subr.mxu0 0.0
  %433 = vmatpush1.msra.mxu0 0.0
  %434 = vmatprep.subr.mxu0 0.0
  %435 = vmatpush1.msra.mxu0 0.0
  %436 = vmatprep.subr.mxu0 0.0
  %437 = vmatpush1.msra.mxu0 0.0
  %438 = vmatprep.subr.mxu0 0.0
  %439 = vmatpush1.msra.mxu0 0.0
  %440 = vmatprep.subr.mxu0 0.0
  %441 = vmatpush1.msra.mxu0 0.0
  %442 = vmatprep.subr.mxu0 0.0
  %443 = vmatpush1.msra.mxu0 0.0
  %444 = vmatprep.subr.mxu0 0.0
  %445 = vmatpush1.msra.mxu0 0.0
  %446 = vmatprep.subr.mxu0 0.0
  %447 = vmatpush1.msra.mxu0 0.0
  %448 = vmatprep.subr.mxu0 0.0
  %449 = vmatpush1.msra.mxu0 0.0
  %450 = vmatprep.subr.mxu0 0.0
  %451 = vmatpush1.msra.mxu0 0.0
  %452 = vmatprep.subr.mxu0 0.0
  %453 = vmatpush1.msra.mxu0 0.0
  %454 = vmatprep.subr.mxu0 0.0
  %455 = vmatpush1.msra.mxu0 0.0
  %456 = vmatprep.subr.mxu0 0.0
  %457 = vmatpush1.msra.mxu0 0.0
  %458 = vmatprep.subr.mxu0 0.0
  %459 = vmatpush1.msra.mxu0 0.0
  %460 = vmatprep.subr.mxu0 0.0
  %461 = vmatpush1.msra.mxu0 0.0
  %462 = vmatprep.subr.mxu0 0.0
  %463 = vmatpush1.msra.mxu0 0.0
  %464 = vmatprep.subr.mxu0 0.0
  %465 = vmatpush1.msra.mxu0 0.0
  %466 = vmatprep.subr.mxu0 0.0
  %467 = vmatpush1.msra.mxu0 0.0
  %468 = vmatprep.subr.mxu0 0.0
  %469 = vmatpush1.msra.mxu0 0.0
  %470 = vmatprep.subr.mxu0 0.0
  %471 = vmatpush1.msra.mxu0 0.0
  %472 = vmatprep.subr.mxu0 0.0
  %473 = vmatpush1.msra.mxu0 0.0
  %474 = vmatprep.subr.mxu0 0.0
  %475 = vmatpush1.msra.mxu0 0.0
  %476 = vmatprep.subr.mxu0 0.0
  %477 = vmatpush1.msra.mxu0 0.0
  %478 = vmatprep.subr.mxu0 0.0
  %479 = vmatpush1.msra.mxu0 0.0
  %480 = vmatprep.subr.mxu0 0.0
  %481 = vmatpush1.msra.mxu0 0.0
  %482 = vmatprep.subr.mxu0 0.0
  %483 = vmatpush1.msra.mxu0 0.0
  %484 = vmatprep.subr.mxu0 0.0
  %485 = vmatpush1.msra.mxu0 0.0
  %486 = vmatprep.mubr.f32.mxu0 0.0
  %487 = vmatmul.mubr.f32.gmra.mrb[0].mxu0 %v417
  %v488 = vpop.f32.mrb[0].mxu0
  %v489 = vadd.f32 0.0, %v488
  %v490 = vpop.f32.mrb[0].mxu0
  %491 = vmatprep.mubr.f32.mxu0 0.0
  %492 = vmatmul.mubr.f32.gmra.mrb[0].mxu0 %v420
  %v493 = vpop.f32.mrb[0].mxu0
  %v494 = vadd.f32 0.0, %v493
  %v495 = vpop.f32.mrb[0].mxu0
  %496 = vdwg.mxu0
  %s497 = scalar_lea.vmem %s3, 32
  %498 = vst.msk [vmem:[%s497] sm:$0xff] %vm173, %v489
  %499 = vst.msk [vmem:[%s497 + $0x8] sm:$0xff] %vm173, %v494
  %s500 = scalar_lea.vmem %s2, 24
  %v501 = vld [vmem:[%s500] sm:$0xff]
  %v502 = vld [vmem:[%s1] sm:$0xff]
  %v504 = vsel %vm16, %v501, 0
  %506 = vmatprep.subr.mxu0 0.0
  %507 = vmatpush1.msra.mxu0 %v502
  %508 = vmatprep.subr.mxu0 0.0
  %509 = vmatpush1.msra.mxu0 0.0
  %510 = vmatprep.subr.mxu0 0.0
  %511 = vmatpush1.msra.mxu0 0.0
  %512 = vmatprep.subr.mxu0 0.0
  %513 = vmatpush1.msra.mxu0 0.0
  %514 = vmatprep.subr.mxu0 0.0
  %515 = vmatpush1.msra.mxu0 0.0
  %516 = vmatprep.subr.mxu0 0.0
  %517 = vmatpush1.msra.mxu0 0.0
  %518 = vmatprep.subr.mxu0 0.0
  %519 = vmatpush1.msra.mxu0 0.0
  %520 = vmatprep.subr.mxu0 0.0
  %521 = vmatpush1.msra.mxu0 0.0
  %522 = vmatprep.subr.mxu0 0.0
  %523 = vmatpush1.msra.mxu0 0.0
  %524 = vmatprep.subr.mxu0 0.0
  %525 = vmatpush1.msra.mxu0 0.0
  %526 = vmatprep.subr.mxu0 0.0
  %527 = vmatpush1.msra.mxu0 0.0
  %528 = vmatprep.subr.mxu0 0.0
  %529 = vmatpush1.msra.mxu0 0.0
  %530 = vmatprep.subr.mxu0 0.0
  %531 = vmatpush1.msra.mxu0 0.0
  %532 = vmatprep.subr.mxu0 0.0
  %533 = vmatpush1.msra.mxu0 0.0
  %534 = vmatprep.subr.mxu0 0.0
  %535 = vmatpush1.msra.mxu0 0.0
  %536 = vmatprep.subr.mxu0 0.0
  %537 = vmatpush1.msra.mxu0 0.0
  %538 = vmatprep.subr.mxu0 0.0
  %539 = vmatpush1.msra.mxu0 0.0
  %540 = vmatprep.subr.mxu0 0.0
  %541 = vmatpush1.msra.mxu0 0.0
  %542 = vmatprep.subr.mxu0 0.0
  %543 = vmatpush1.msra.mxu0 0.0
  %544 = vmatprep.subr.mxu0 0.0
  %545 = vmatpush1.msra.mxu0 0.0
  %546 = vmatprep.subr.mxu0 0.0
  %547 = vmatpush1.msra.mxu0 0.0
  %548 = vmatprep.subr.mxu0 0.0
  %549 = vmatpush1.msra.mxu0 0.0
  %550 = vmatprep.subr.mxu0 0.0
  %551 = vmatpush1.msra.mxu0 0.0
  %552 = vmatprep.subr.mxu0 0.0
  %553 = vmatpush1.msra.mxu0 0.0
  %554 = vmatprep.subr.mxu0 0.0
  %555 = vmatpush1.msra.mxu0 0.0
  %556 = vmatprep.subr.mxu0 0.0
  %557 = vmatpush1.msra.mxu0 0.0
  %558 = vmatprep.subr.mxu0 0.0
  %559 = vmatpush1.msra.mxu0 0.0
  %560 = vmatprep.subr.mxu0 0.0
  %561 = vmatpush1.msra.mxu0 0.0
  %562 = vmatprep.subr.mxu0 0.0
  %563 = vmatpush1.msra.mxu0 0.0
  %564 = vmatprep.subr.mxu0 0.0
  %565 = vmatpush1.msra.mxu0 0.0
  %566 = vmatprep.subr.mxu0 0.0
  %567 = vmatpush1.msra.mxu0 0.0
  %568 = vmatprep.subr.mxu0 0.0
  %569 = vmatpush1.msra.mxu0 0.0
  %570 = vmatprep.mubr.f32.mxu0 0.0
  %571 = vmatmul.mubr.f32.gmra.mrb[0].mxu0 %v504
  %v572 = vpop.f32.mrb[0].mxu0
  %v573 = vadd.f32 0.0, %v572
  %v574 = vpop.f32.mrb[0].mxu0
  %575 = vdwg.mxu0
  %v576 = vld [vmem:[%s0] sm:$0xff]
  %v577 = vld [vmem:[%s0 + $0x8] sm:$0xff]
  %v579 = vsel %vm16, %v576, 0
  %v582 = vsel %vm16, %v577, 0
  %584 = vmatprep.subr.mxu0 0.0
  %585 = vmatpush1.msra.mxu0 %v573
  %586 = vmatprep.subr.mxu0 0.0
  %587 = vmatpush1.msra.mxu0 0.0
  %588 = vmatprep.subr.mxu0 0.0
  %589 = vmatpush1.msra.mxu0 0.0
  %590 = vmatprep.subr.mxu0 0.0
  %591 = vmatpush1.msra.mxu0 0.0
  %592 = vmatprep.subr.mxu0 0.0
  %593 = vmatpush1.msra.mxu0 0.0
  %594 = vmatprep.subr.mxu0 0.0
  %595 = vmatpush1.msra.mxu0 0.0
  %596 = vmatprep.subr.mxu0 0.0
  %597 = vmatpush1.msra.mxu0 0.0
  %598 = vmatprep.subr.mxu0 0.0
  %599 = vmatpush1.msra.mxu0 0.0
  %600 = vmatprep.subr.mxu0 0.0
  %601 = vmatpush1.msra.mxu0 0.0
  %602 = vmatprep.subr.mxu0 0.0
  %603 = vmatpush1.msra.mxu0 0.0
  %604 = vmatprep.subr.mxu0 0.0
  %605 = vmatpush1.msra.mxu0 0.0
  %606 = vmatprep.subr.mxu0 0.0
  %607 = vmatpush1.msra.mxu0 0.0
  %608 = vmatprep.subr.mxu0 0.0
  %609 = vmatpush1.msra.mxu0 0.0
  %610 = vmatprep.subr.mxu0 0.0
  %611 = vmatpush1.msra.mxu0 0.0
  %612 = vmatprep.subr.mxu0 0.0
  %613 = vmatpush1.msra.mxu0 0.0
  %614 = vmatprep.subr.mxu0 0.0
  %615 = vmatpush1.msra.mxu0 0.0
  %616 = vmatprep.subr.mxu0 0.0
  %617 = vmatpush1.msra.mxu0 0.0
  %618 = vmatprep.subr.mxu0 0.0
  %619 = vmatpush1.msra.mxu0 0.0
  %620 = vmatprep.subr.mxu0 0.0
  %621 = vmatpush1.msra.mxu0 0.0
  %622 = vmatprep.subr.mxu0 0.0
  %623 = vmatpush1.msra.mxu0 0.0
  %624 = vmatprep.subr.mxu0 0.0
  %625 = vmatpush1.msra.mxu0 0.0
  %626 = vmatprep.subr.mxu0 0.0
  %627 = vmatpush1.msra.mxu0 0.0
  %628 = vmatprep.subr.mxu0 0.0
  %629 = vmatpush1.msra.mxu0 0.0
  %630 = vmatprep.subr.mxu0 0.0
  %631 = vmatpush1.msra.mxu0 0.0
  %632 = vmatprep.subr.mxu0 0.0
  %633 = vmatpush1.msra.mxu0 0.0
  %634 = vmatprep.subr.mxu0 0.0
  %635 = vmatpush1.msra.mxu0 0.0
  %636 = vmatprep.subr.mxu0 0.0
  %637 = vmatpush1.msra.mxu0 0.0
  %638 = vmatprep.subr.mxu0 0.0
  %639 = vmatpush1.msra.mxu0 0.0
  %640 = vmatprep.subr.mxu0 0.0
  %641 = vmatpush1.msra.mxu0 0.0
  %642 = vmatprep.subr.mxu0 0.0
  %643 = vmatpush1.msra.mxu0 0.0
  %644 = vmatprep.subr.mxu0 0.0
  %645 = vmatpush1.msra.mxu0 0.0
  %646 = vmatprep.subr.mxu0 0.0
  %647 = vmatpush1.msra.mxu0 0.0
  %648 = vmatprep.mubr.f32.mxu0 0.0
  %649 = vmatmul.mubr.f32.gmra.mrb[0].mxu0 %v579
  %v650 = vpop.f32.mrb[0].mxu0
  %v651 = vadd.f32 0.0, %v650
  %v652 = vpop.f32.mrb[0].mxu0
  %653 = vmatprep.mubr.f32.mxu0 0.0
  %654 = vmatmul.mubr.f32.gmra.mrb[0].mxu0 %v582
  %v655 = vpop.f32.mrb[0].mxu0
  %v656 = vadd.f32 0.0, %v655
  %v657 = vpop.f32.mrb[0].mxu0
  %658 = vdwg.mxu0
  %s659 = scalar_lea.vmem %s3, 48
  %660 = vst.msk [vmem:[%s659] sm:$0xff] %vm173, %v651
  %661 = vst.msk [vmem:[%s659 + $0x8] sm:$0xff] %vm173, %v656
  // Predicated region
  $region14: #{rttdetv2_forward.23} parent=0 // pred_check
    _
  $region15: #{rttdetv2_forward.23} parent=0 // pred_check_branch
    %663 = sbr.rel (0) target = $region17
  $region16: #{rttdetv2_forward.23} parent=0 // pred_region
    _
  $region17: #{rttdetv2_forward.23} parent=0 // pred_fallthru
    _
  // Predicated region
  $region18: #{rttdetv2_forward.23} parent=0 // pred_check
    _
  $region19: #{rttdetv2_forward.23} parent=0 // pred_check_branch
    %665 = sbr.rel (0) target = $region21
  $region20: #{rttdetv2_forward.23} parent=0 // pred_region
    _
  $region21: #{rttdetv2_forward.23} parent=0 // pred_fallthru
    _

</llo_original>
